<compile_context>
chip_gen: v6e
topology: v6e:2x2x1
jax: 0.10.0
libtpu: 0.0.40
codegen_flags: <defaults>
</compile_context>

<pallas_src>
import jax
import jax.numpy as jnp
from jax import lax
from jax.experimental import pallas as pl
from jax.experimental.pallas import tpu as pltpu

_EPS = 1e-6
_SQRT1_2 = 0.7071067811865476
_HALO = 8          # sublane-aligned zero halo for the in-kernel depthwise conv


# ----------------------------------------------------------------------------------
# Exact-erf GELU (torch nn.GELU default) built from guaranteed-lowerable ops
# ----------------------------------------------------------------------------------
def _gelu_exact(x):
    """0.5*x*(1+erf(x/sqrt(2))); erf via Abramowitz & Stegun 7.1.26 (|err|<=1.5e-7)."""
    z = x * _SQRT1_2
    az = jnp.abs(z)
    sgn = jnp.where(z >= 0.0, 1.0, -1.0)
    t = 1.0 / (1.0 + 0.3275911 * az)
    poly = ((((1.061405429 * t - 1.453152027) * t + 1.421413741) * t
             - 0.284496736) * t + 0.254829592) * t
    erf = sgn * (1.0 - poly * jnp.exp(-az * az))
    return 0.5 * x * (1.0 + erf)


# ----------------------------------------------------------------------------------
# Stem: normalize_inputs + Conv1d(1, C0, k=sw, s=sw) (patch matmul) + LN(channels_first)
# ----------------------------------------------------------------------------------
def _stem_kernel(mean, std, eps):
    def kernel(x_ref, w_ref, b_ref, g_ref, be_ref, o_ref):
        x = x_ref[0].astype(jnp.float32)                       # (Lp, sw) raw patches
        xn = (x - mean) / std                                  # normalize_inputs fused in
        h = jnp.dot(xn, w_ref[...].astype(jnp.float32),
                    preferred_element_type=jnp.float32) + b_ref[...].astype(jnp.float32)
        mu = jnp.mean(h, axis=-1, keepdims=True)               # two-pass LN over C0
        var = jnp.mean((h - mu) ** 2, axis=-1, keepdims=True)
        y = (h - mu) * lax.rsqrt(var + eps) * g_ref[...].astype(jnp.float32) \
            + be_ref[...].astype(jnp.float32)
        o_ref[0] = y.astype(o_ref.dtype)
    return kernel


def stem(x_raw, w, b, g, beta, *, mean, std, eps=_EPS):
    B, Lr = x_raw.shape
    sw, C = w.shape
    assert Lr % sw == 0
    Lp = Lr // sw
    xp = x_raw.reshape(B, Lp, sw)                              # metadata-only reshape
    return pl.pallas_call(
        _stem_kernel(float(mean), float(std), eps),
        out_shape=jax.ShapeDtypeStruct((B, Lp, C), x_raw.dtype),
        grid_spec=pltpu.PrefetchScalarGridSpec(
            num_scalar_prefetch=0,
            grid=(B,),
            in_specs=[
                pl.BlockSpec((1, Lp, sw), lambda bi: (bi, 0, 0)),
                pl.BlockSpec((sw, C), lambda bi: (0, 0)),      # constant -> VMEM resident
                pl.BlockSpec((1, C), lambda bi: (0, 0)),
                pl.BlockSpec((1, C), lambda bi: (0, 0)),
                pl.BlockSpec((1, C), lambda bi: (0, 0)),
            ],
            out_specs=pl.BlockSpec((1, Lp, C), lambda bi: (bi, 0, 0)),
        ),
        compiler_params=pltpu.CompilerParams(dimension_semantics=("parallel",)),
    )(xp, w, b.reshape(1, C), g.reshape(1, C), beta.reshape(1, C))


# ----------------------------------------------------------------------------------
# Fused ConvNeXtV2 block: dwconv(7) -> LN -> pwconv1 -> GELU -> GRN -> pwconv2 -> +res
# ----------------------------------------------------------------------------------
def _block_kernel(eps):
    def kernel(x_ref, dww_ref, dwb_ref, lng_ref, lnb_ref, w1_ref, b1_ref,
               gg_ref, gb_ref, w2_ref, b2_ref, o_ref):
        x = x_ref[0].astype(jnp.float32)                       # (L, C)  (residual source)
        L, C = x.shape

        # depthwise Conv1d(k=7, pad=3, groups=C): 7 shift-and-add taps, all in VMEM.
        # The halo is built in-kernel (sublane-aligned 8-row zero blocks) -> no wrapper
        # jnp.pad HBM pass.
        zeros = jnp.zeros((_HALO, C), jnp.float32)
        xpad = jnp.concatenate([zeros, x, zeros], axis=0)      # (L + 16, C)
        w = dww_ref[...].astype(jnp.float32)                   # (7, C)
        h = jnp.zeros((L, C), jnp.float32)
        for t in range(7):
            off = _HALO - 3 + t
            h = h + xpad[off:off + L, :] * w[t:t + 1, :]
        h = h + dwb_ref[...].astype(jnp.float32)

        # LayerNorm over C (two-pass mean / centered variance, eps inside the sqrt)
        mu = jnp.mean(h, axis=-1, keepdims=True)
        var = jnp.mean((h - mu) ** 2, axis=-1, keepdims=True)
        h = (h - mu) * lax.rsqrt(var + eps) * lng_ref[...].astype(jnp.float32) \
            + lnb_ref[...].astype(jnp.float32)

        # pwconv1 (C -> 4C) with exact-erf GELU fused into the epilogue
        hh = jnp.dot(h, w1_ref[...].astype(jnp.float32),
                     preferred_element_type=jnp.float32) + b1_ref[...].astype(jnp.float32)
        hh = _gelu_exact(hh)

        # GRN: L2 over the sequence axis per channel, normalized by the channel mean
        gx = jnp.sqrt(jnp.sum(hh * hh, axis=0, keepdims=True))         # (1, 4C)
        nx = gx / (jnp.mean(gx, axis=-1, keepdims=True) + eps)
        hh = gg_ref[...].astype(jnp.float32) * (hh * nx) + gb_ref[...].astype(jnp.float32) + hh

        # pwconv2 (4C -> C) with the residual add fused into the epilogue
        y = jnp.dot(hh, w2_ref[...].astype(jnp.float32),
                    preferred_element_type=jnp.float32) + b2_ref[...].astype(jnp.float32) + x
        o_ref[0] = y.astype(o_ref.dtype)
    return kernel


def convnext_block(h, blk, *, eps=_EPS):
    B, L, C = h.shape
    H = blk["w1"].shape[1]                                     # 4C
    const2 = lambda bi: (0, 0)
    return pl.pallas_call(
        _block_kernel(eps),
        out_shape=jax.ShapeDtypeStruct((B, L, C), h.dtype),
        grid_spec=pltpu.PrefetchScalarGridSpec(
            num_scalar_prefetch=0,
            grid=(B,),
            in_specs=[
                pl.BlockSpec((1, L, C), lambda bi: (bi, 0, 0)),
                pl.BlockSpec((7, C), const2),                  # dw weight (VMEM resident)
                pl.BlockSpec((1, C), const2),                  # dw bias
                pl.BlockSpec((1, C), const2),                  # LN gamma
                pl.BlockSpec((1, C), const2),                  # LN beta
                pl.BlockSpec((C, H), const2),                  # pwconv1 W
                pl.BlockSpec((1, H), const2),                  # pwconv1 b
                pl.BlockSpec((1, H), const2),                  # GRN gamma
                pl.BlockSpec((1, H), const2),                  # GRN beta
                pl.BlockSpec((H, C), const2),                  # pwconv2 W
                pl.BlockSpec((1, C), const2),                  # pwconv2 b
            ],
            out_specs=pl.BlockSpec((1, L, C), lambda bi: (bi, 0, 0)),
        ),
        compiler_params=pltpu.CompilerParams(dimension_semantics=("parallel",)),
    )(h, blk["dw_w"], blk["dw_b"].reshape(1, C), blk["ln_g"].reshape(1, C),
      blk["ln_b"].reshape(1, C), blk["w1"], blk["b1"].reshape(1, H),
      blk["grn_g"].reshape(1, H), blk["grn_b"].reshape(1, H), blk["w2"],
      blk["b2"].reshape(1, C))


# ----------------------------------------------------------------------------------
# Fused downsample: LN(channels_first) + Conv1d(Cin, Cout, k=2, s=2)
# The (B, L, C) activation is viewed as (B, L/2, 2C) (free reshape); each row holds the
# position pair (2j, 2j+1) in two lane segments, so the LN becomes two segment-LNs and
# the strided conv a single (2C, Cout) matmul.
# ----------------------------------------------------------------------------------
def _downsample_kernel(eps, C):
    inv_c = 1.0 / float(C)

    def kernel(x_ref, g_ref, be_ref, w_ref, b_ref, o_ref):
        x = x_ref[0].astype(jnp.float32)                       # (L/2, 2C)
        g = g_ref[...].astype(jnp.float32)
        be = be_ref[...].astype(jnp.float32)
        lane = lax.broadcasted_iota(jnp.int32, x.shape, 1)
        left = lane < C
        m0 = jnp.sum(jnp.where(left, x, 0.0), axis=-1, keepdims=True) * inv_c
        m1 = jnp.sum(jnp.where(left, 0.0, x), axis=-1, keepdims=True) * inv_c
        xc = x - jnp.where(left, m0, m1)
        v0 = jnp.sum(jnp.where(left, xc * xc, 0.0), axis=-1, keepdims=True) * inv_c
        v1 = jnp.sum(jnp.where(left, 0.0, xc * xc), axis=-1, keepdims=True) * inv_c
        inv = lax.rsqrt(jnp.where(left, v0, v1) + eps)
        xn = xc * inv * g + be
        y = jnp.dot(xn, w_ref[...].astype(jnp.float32),
                    preferred_element_type=jnp.float32) + b_ref[...].astype(jnp.float32)
        o_ref[0] = y.astype(o_ref.dtype)
    return kernel


def downsample(h, ln_g, ln_b, w, b, *, eps=_EPS):
    B, L, C = h.shape
    assert L % 2 == 0
    Cout = w.shape[1]
    x2 = h.reshape(B, L // 2, 2 * C)                           # metadata-only reshape
    g2 = jnp.tile(ln_g.reshape(1, C), (1, 2))
    be2 = jnp.tile(ln_b.reshape(1, C), (1, 2))
    return pl.pallas_call(
        _downsample_kernel(eps, C),
        out_shape=jax.ShapeDtypeStruct((B, L // 2, Cout), h.dtype),
        grid_spec=pltpu.PrefetchScalarGridSpec(
            num_scalar_prefetch=0,
            grid=(B,),
            in_specs=[
                pl.BlockSpec((1, L // 2, 2 * C), lambda bi: (bi, 0, 0)),
                pl.BlockSpec((1, 2 * C), lambda bi: (0, 0)),
                pl.BlockSpec((1, 2 * C), lambda bi: (0, 0)),
                pl.BlockSpec((2 * C, Cout), lambda bi: (0, 0)),
                pl.BlockSpec((1, Cout), lambda bi: (0, 0)),
            ],
            out_specs=pl.BlockSpec((1, L // 2, Cout), lambda bi: (bi, 0, 0)),
        ),
        compiler_params=pltpu.CompilerParams(dimension_semantics=("parallel",)),
    )(x2, g2, be2, w, b.reshape(1, Cout))


# ----------------------------------------------------------------------------------
# Head (mean-pool -> LayerNorm -> Linear).  Intentionally plain XLA: nanoseconds of
# math on a (B, dims[-1]) tensor; a pallas_call here is pure launch overhead. [review]
# ----------------------------------------------------------------------------------
def _head(h, g, b, w, hb, eps=_EPS):
    pooled = jnp.mean(h, axis=1)                               # x.mean([-1]) in channels_first
    mu = jnp.mean(pooled, axis=-1, keepdims=True)
    var = jnp.mean((pooled - mu) ** 2, axis=-1, keepdims=True)
    feats = (pooled - mu) / jnp.sqrt(var + eps) * g.reshape(1, -1) + b.reshape(1, -1)
    return feats @ w + hb.reshape(1, -1)                       # dropout = 0 -> identity


# ----------------------------------------------------------------------------------
# Full forward (Pallas path)
# ----------------------------------------------------------------------------------
def convnextv2_forward(params, x, cfg):
    h = stem(x, params["stem_w"], params["stem_b"], params["stem_ln_g"], params["stem_ln_b"],
             mean=cfg["input_mean"], std=cfg["input_std"])
    for i in range(4):
        if i > 0:
            d = params["down"][i - 1]
            h = downsample(h, d["ln_g"], d["ln_b"], d["w"], d["b"])
        for blk in params["stages"][i]:
            h = convnext_block(h, blk)
    return _head(h, params["norm_g"], params["norm_b"], params["head_w"], params["head_b"])


# ----------------------------------------------------------------------------------
# Pure-JAX reference (same math, no Pallas) for validation
# ----------------------------------------------------------------------------------
def _mm(a, b):
    return jnp.matmul(a, b, precision=lax.Precision.HIGHEST)


def ref_ln(x, g, b, *, eps=_EPS):
    mu = jnp.mean(x, axis=-1, keepdims=True)
    var = jnp.mean((x - mu) ** 2, axis=-1, keepdims=True)
    return (x - mu) / jnp.sqrt(var + eps) * g + b


def ref_dwconv(x_cl, w_k, bias):
    B, L, C = x_cl.shape
    K = w_k.shape[0]
    pad = (K - 1) // 2
    xp = jnp.pad(x_cl, ((0, 0), (pad, pad), (0, 0)))
    y = jnp.zeros((B, L, C), jnp.float32) + bias.reshape(1, 1, C)
    for t in range(K):
        y = y + xp[:, t:t + L, :] * w_k[t].reshape(1, 1, C)
    return y


def ref_block(h, blk, *, eps=_EPS):
    res = h
    y = ref_dwconv(h, blk["dw_w"], blk["dw_b"])
    y = ref_ln(y, blk["ln_g"], blk["ln_b"], eps=eps)
    y = _mm(y, blk["w1"]) + blk["b1"]
    y = jax.nn.gelu(y, approximate=False)                      # torch nn.GELU (exact erf)
    gx = jnp.sqrt(jnp.sum(y * y, axis=1, keepdims=True))
    nx = gx / (jnp.mean(gx, axis=-1, keepdims=True) + eps)
    y = blk["grn_g"].reshape(1, 1, -1) * (y * nx) + blk["grn_b"].reshape(1, 1, -1) + y
    return res + (_mm(y, blk["w2"]) + blk["b2"])


def ref_forward(params, x, cfg):
    sw = cfg["stem_width"]
    B, Lr = x.shape
    xn = (x - cfg["input_mean"]) / cfg["input_std"]
    h = _mm(xn.reshape(B, Lr // sw, sw), params["stem_w"]) + params["stem_b"]
    h = ref_ln(h, params["stem_ln_g"], params["stem_ln_b"])
    for i in range(4):
        if i > 0:
            d = params["down"][i - 1]
            h = ref_ln(h, d["ln_g"], d["ln_b"])
            B_, L_, C_ = h.shape
            h = _mm(h.reshape(B_, L_ // 2, 2 * C_), d["w"]) + d["b"]
        for blk in params["stages"][i]:
            h = ref_block(h, blk)
    return _head(h, params["norm_g"], params["norm_b"], params["head_w"], params["head_b"])


# ----------------------------------------------------------------------------------
# Parameter construction (torch layouts -> kernel layouts; random values so every
# path is exercised; forward semantics are independent of the init distribution)
# ----------------------------------------------------------------------------------
def build_params(key, cfg):
    dims, depths, sw = cfg["dims"], cfg["depths"], cfg["stem_width"]
    keys = iter(jax.random.split(key, 128))
    nk = lambda: next(keys)

    def tn(shape, std=0.02):                                   # stand-in for trunc_normal_
        return std * jax.random.normal(nk(), shape, jnp.float32)

    p = {}
    w = tn((dims[0], 1, sw))                                   # torch Conv1d weight (out,in,k)
    p["stem_w"] = jnp.transpose(w[:, 0, :], (1, 0))            # (k, out) for patch-matmul
    p["stem_b"] = tn((dims[0],))
    p["stem_ln_g"] = 1.0 + 0.1 * jax.random.normal(nk(), (dims[0],), jnp.float32)
    p["stem_ln_b"] = 0.1 * jax.random.normal(nk(), (dims[0],), jnp.float32)

    p["down"] = []
    for i in range(1, 4):
        cin, cout = dims[i - 1], dims[i]
        w = tn((cout, cin, 2))                                 # torch Conv1d(k=2,s=2) weight
        p["down"].append(dict(
            ln_g=1.0 + 0.1 * jax.random.normal(nk(), (cin,), jnp.float32),
            ln_b=0.1 * jax.random.normal(nk(), (cin,), jnp.float32),
            w=jnp.transpose(w, (2, 1, 0)).reshape(2 * cin, cout),   # lane index = t*C + c
            b=tn((cout,)),
        ))

    p["stages"] = []
    for i in range(4):
        blocks = []
        for _ in range(depths[i]):
            dim = dims[i]
            dw = tn((dim, 1, 7))                               # torch depthwise weight (C,1,7)
            blocks.append(dict(
                dw_w=jnp.transpose(dw[:, 0, :], (1, 0)),       # (7, C)
                dw_b=tn((dim,)),
                ln_g=1.0 + 0.1 * jax.random.normal(nk(), (dim,), jnp.float32),
                ln_b=0.1 * jax.random.normal(nk(), (dim,), jnp.float32),
                w1=jnp.transpose(tn((4 * dim, dim)), (1, 0)),  # nn.Linear W.T -> (in, out)
                b1=tn((4 * dim,)),
                grn_g=0.1 * jax.random.normal(nk(), (1, 4 * dim), jnp.float32),
                grn_b=0.1 * jax.random.normal(nk(), (1, 4 * dim), jnp.float32),
                w2=jnp.transpose(tn((dim, 4 * dim)), (1, 0)),
                b2=tn((dim,)),
            ))
        p["stages"].append(blocks)

    p["norm_g"] = 1.0 + 0.1 * jax.random.normal(nk(), (dims[-1],), jnp.float32)
    p["norm_b"] = 0.1 * jax.random.normal(nk(), (dims[-1],), jnp.float32)
    p["head_w"] = jnp.transpose(tn((cfg["num_labels"], dims[-1])), (1, 0))
    p["head_b"] = tn((cfg["num_labels"],))
    return p


if __name__ == "__main__":
    key = jax.random.PRNGKey(0)
    k_par, k_x, k_blk = jax.random.split(key, 3)

    # Small ConvNeXtV2 config (spectra input, in_chans=1 after unsqueeze).
    cfg = dict(depths=(1, 1, 1, 1), dims=(32, 64, 96, 128), stem_width=4,
               input_mean=1.0, input_std=0.2, num_labels=3)
    B, L_raw = 2, 256

    params = build_params(k_par, cfg)
    x = cfg["input_mean"] + cfg["input_std"] * jax.random.normal(k_x, (B, L_raw), jnp.float32)

    fwd = jax.jit(lambda p, xx: convnextv2_forward(p, xx, cfg))
    preds = jax.block_until_ready(fwd(params, x))

    # Standalone check of the fused block kernel (the perf-critical primitive):
    # stage-2 dim (96, not a multiple of 128) exercises the non-lane-aligned path.
    blk = params["stages"][2][0]
    hb = 0.5 * jax.random.normal(k_blk, (2, 16, cfg["dims"][2]), jnp.float32)
    out_blk = jax.block_until_ready(convnext_block(hb, blk))
    ref_blk = ref_block(hb, blk)
    assert jnp.allclose(out_blk, ref_blk, atol=5e-3, rtol=5e-3), "fused block kernel mismatch"

    # End-to-end check against the pure-JAX reference (tolerance covers the different
    # f32 matmul pass strategies of MXU vs the HIGHEST-precision XLA reference dots).
    ref_preds = ref_forward(params, x, cfg)
    assert preds.shape == (B, cfg["num_labels"])
    assert bool(jnp.all(jnp.isfinite(preds)))
    assert jnp.allclose(preds, ref_preds, atol=1e-2, rtol=1e-2), "end-to-end mismatch"

    print("KERNEL_OK")
</pallas_src>

<mosaic_0001>
module attributes {stable_mosaic.version = 11 : i64} {
  func.func @kernel(%arg0: i32, %arg1: memref<1x64x4xf32, #tpu.memory_space<vmem>>, %arg2: memref<4x32xf32, #tpu.memory_space<vmem>>, %arg3: memref<1x32xf32, #tpu.memory_space<vmem>>, %arg4: memref<1x32xf32, #tpu.memory_space<vmem>>, %arg5: memref<1x32xf32, #tpu.memory_space<vmem>>, %arg6: memref<1x64x32xf32, #tpu.memory_space<vmem>>) attributes {dimension_semantics = [#tpu.dimension_semantics<parallel>], iteration_bounds = array<i64: 2>, scalar_prefetch = 0 : i64, scratch_operands = 0 : i64, tpu.core_type = #tpu.core_type<tc>, window_params = [{transform_indices = @transform_0, window_bounds = array<i64: 1, 64, 4>}, {pipeline_mode = #tpu.pipeline_mode<synchronous>, transform_indices = @transform_1, window_bounds = array<i64: 4, 32>}, {pipeline_mode = #tpu.pipeline_mode<synchronous>, transform_indices = @transform_2, window_bounds = array<i64: 1, 32>}, {pipeline_mode = #tpu.pipeline_mode<synchronous>, transform_indices = @transform_3, window_bounds = array<i64: 1, 32>}, {pipeline_mode = #tpu.pipeline_mode<synchronous>, transform_indices = @transform_4, window_bounds = array<i64: 1, 32>}, {transform_indices = @transform_5, window_bounds = array<i64: 1, 64, 32>}]} {
    %c0 = arith.constant 0 : index
    %c0_0 = arith.constant 0 : index
    %c0_1 = arith.constant 0 : index
    %0 = vector.load %arg1[%c0, %c0_0, %c0_1] : memref<1x64x4xf32, #tpu.memory_space<vmem>>, vector<1x64x4xf32>
    %1 = vector.shape_cast %0 : vector<1x64x4xf32> to vector<64x4xf32>
    %cst = arith.constant 1.000000e+00 : f32
    %2 = vector.broadcast %cst : f32 to vector<64x4xf32>
    %3 = arith.subf %1, %2 : vector<64x4xf32>
    %cst_2 = arith.constant 2.000000e-01 : f32
    %4 = vector.broadcast %cst_2 : f32 to vector<64x4xf32>
    %5 = arith.divf %3, %4 : vector<64x4xf32>
    %c0_3 = arith.constant 0 : index
    %c0_4 = arith.constant 0 : index
    %6 = vector.load %arg2[%c0_3, %c0_4] : memref<4x32xf32, #tpu.memory_space<vmem>>, vector<4x32xf32>
    %cst_5 = arith.constant dense<0.000000e+00> : vector<64x32xf32>
    %7 = tpu.matmul %5, %6, %cst_5 {dimension_numbers = #tpu.dot_dimension_numbers<[1], [0], [0], [1], [0, 0, 1, 1], [], []>} : vector<64x4xf32>, vector<4x32xf32>, vector<64x32xf32> -> vector<64x32xf32>
    %c0_6 = arith.constant 0 : index
    %c0_7 = arith.constant 0 : index
    %8 = vector.load %arg3[%c0_6, %c0_7] : memref<1x32xf32, #tpu.memory_space<vmem>>, vector<1x32xf32>
    %9 = vector.broadcast %8 : vector<1x32xf32> to vector<64x32xf32>
    %10 = arith.addf %7, %9 : vector<64x32xf32>
    %cst_8 = arith.constant dense<0.000000e+00> : vector<64xf32>
    %11 = vector.multi_reduction <add>, %10, %cst_8 [1] : vector<64x32xf32> to vector<64xf32>
    %12 = vector.shape_cast %11 : vector<64xf32> to vector<64x1xf32>
    %cst_9 = arith.constant 3.200000e+01 : f32
    %13 = vector.broadcast %cst_9 : f32 to vector<64x1xf32>
    %14 = arith.divf %12, %13 : vector<64x1xf32>
    %15 = vector.broadcast %14 : vector<64x1xf32> to vector<64x32xf32>
    %16 = arith.subf %10, %15 : vector<64x32xf32>
    %17 = arith.mulf %16, %16 : vector<64x32xf32>
    %cst_10 = arith.constant dense<0.000000e+00> : vector<64xf32>
    %18 = vector.multi_reduction <add>, %17, %cst_10 [1] : vector<64x32xf32> to vector<64xf32>
    %19 = vector.shape_cast %18 : vector<64xf32> to vector<64x1xf32>
    %cst_11 = arith.constant 3.200000e+01 : f32
    %20 = vector.broadcast %cst_11 : f32 to vector<64x1xf32>
    %21 = arith.divf %19, %20 : vector<64x1xf32>
    %22 = vector.broadcast %14 : vector<64x1xf32> to vector<64x32xf32>
    %23 = arith.subf %10, %22 : vector<64x32xf32>
    %cst_12 = arith.constant 9.99999997E-7 : f32
    %24 = vector.broadcast %cst_12 : f32 to vector<64x1xf32>
    %25 = arith.addf %21, %24 : vector<64x1xf32>
    %26 = math.rsqrt %25 : vector<64x1xf32>
    %27 = vector.broadcast %26 : vector<64x1xf32> to vector<64x32xf32>
    %28 = arith.mulf %23, %27 : vector<64x32xf32>
    %c0_13 = arith.constant 0 : index
    %c0_14 = arith.constant 0 : index
    %29 = vector.load %arg4[%c0_13, %c0_14] : memref<1x32xf32, #tpu.memory_space<vmem>>, vector<1x32xf32>
    %30 = vector.broadcast %29 : vector<1x32xf32> to vector<64x32xf32>
    %31 = arith.mulf %28, %30 : vector<64x32xf32>
    %c0_15 = arith.constant 0 : index
    %c0_16 = arith.constant 0 : index
    %32 = vector.load %arg5[%c0_15, %c0_16] : memref<1x32xf32, #tpu.memory_space<vmem>>, vector<1x32xf32>
    %33 = vector.broadcast %32 : vector<1x32xf32> to vector<64x32xf32>
    %34 = arith.addf %31, %33 : vector<64x32xf32>
    %c0_17 = arith.constant 0 : index
    %c0_18 = arith.constant 0 : index
    %c0_19 = arith.constant 0 : index
    %35 = vector.load %arg6[%c0_17, %c0_18, %c0_19] : memref<1x64x32xf32, #tpu.memory_space<vmem>>, vector<1x64x32xf32>
    %36 = vector.shape_cast %35 : vector<1x64x32xf32> to vector<64x32xf32>
    %37 = vector.shape_cast %34 : vector<64x32xf32> to vector<1x64x32xf32>
    tpu.vector_store %arg6[%c0_17, %c0_18, %c0_19], %37 {strides = array<i32>} : memref<1x64x32xf32, #tpu.memory_space<vmem>>, vector<1x64x32xf32>,
    return
  }
  func.func @transform_0(%arg0: i32) -> (i32, i32, i32) {
    %c0_i32 = arith.constant 0 : i32
    %c0_i32_0 = arith.constant 0 : i32
    %c0_i32_1 = arith.constant 0 : i32
    return %arg0, %c0_i32, %c0_i32_0 : i32, i32, i32
  }
  func.func @transform_1(%arg0: i32) -> (i32, i32) {
    %c0_i32 = arith.constant 0 : i32
    %c0_i32_0 = arith.constant 0 : i32
    %c0_i32_1 = arith.constant 0 : i32
    return %c0_i32, %c0_i32_0 : i32, i32
  }
  func.func @transform_2(%arg0: i32) -> (i32, i32) {
    %c0_i32 = arith.constant 0 : i32
    %c0_i32_0 = arith.constant 0 : i32
    %c0_i32_1 = arith.constant 0 : i32
    return %c0_i32, %c0_i32_0 : i32, i32
  }
  func.func @transform_3(%arg0: i32) -> (i32, i32) {
    %c0_i32 = arith.constant 0 : i32
    %c0_i32_0 = arith.constant 0 : i32
    %c0_i32_1 = arith.constant 0 : i32
    return %c0_i32, %c0_i32_0 : i32, i32
  }
  func.func @transform_4(%arg0: i32) -> (i32, i32) {
    %c0_i32 = arith.constant 0 : i32
    %c0_i32_0 = arith.constant 0 : i32
    %c0_i32_1 = arith.constant 0 : i32
    return %c0_i32, %c0_i32_0 : i32, i32
  }
  func.func @transform_5(%arg0: i32) -> (i32, i32, i32) {
    %c0_i32 = arith.constant 0 : i32
    %c0_i32_0 = arith.constant 0 : i32
    %c0_i32_1 = arith.constant 0 : i32
    return %arg0, %c0_i32, %c0_i32_0 : i32, i32, i32
  }
}

module attributes {stable_mosaic.version = 11 : i64} {
  func.func @kernel(%arg0: i32, %arg1: memref<1x64x32xf32, #tpu.memory_space<vmem>>, %arg2: memref<7x32xf32, #tpu.memory_space<vmem>>, %arg3: memref<1x32xf32, #tpu.memory_space<vmem>>, %arg4: memref<1x32xf32, #tpu.memory_space<vmem>>, %arg5: memref<1x32xf32, #tpu.memory_space<vmem>>, %arg6: memref<32x128xf32, #tpu.memory_space<vmem>>, %arg7: memref<1x128xf32, #tpu.memory_space<vmem>>, %arg8: memref<1x128xf32, #tpu.memory_space<vmem>>, %arg9: memref<1x128xf32, #tpu.memory_space<vmem>>, %arg10: memref<128x32xf32, #tpu.memory_space<vmem>>, %arg11: memref<1x32xf32, #tpu.memory_space<vmem>>, %arg12: memref<1x64x32xf32, #tpu.memory_space<vmem>>) attributes {dimension_semantics = [#tpu.dimension_semantics<parallel>], iteration_bounds = array<i64: 2>, scalar_prefetch = 0 : i64, scratch_operands = 0 : i64, tpu.core_type = #tpu.core_type<tc>, window_params = [{transform_indices = @transform_0, window_bounds = array<i64: 1, 64, 32>}, {pipeline_mode = #tpu.pipeline_mode<synchronous>, transform_indices = @transform_1, window_bounds = array<i64: 7, 32>}, {pipeline_mode = #tpu.pipeline_mode<synchronous>, transform_indices = @transform_2, window_bounds = array<i64: 1, 32>}, {pipeline_mode = #tpu.pipeline_mode<synchronous>, transform_indices = @transform_3, window_bounds = array<i64: 1, 32>}, {pipeline_mode = #tpu.pipeline_mode<synchronous>, transform_indices = @transform_4, window_bounds = array<i64: 1, 32>}, {pipeline_mode = #tpu.pipeline_mode<synchronous>, transform_indices = @transform_5, window_bounds = array<i64: 32, 128>}, {pipeline_mode = #tpu.pipeline_mode<synchronous>, transform_indices = @transform_6, window_bounds = array<i64: 1, 128>}, {pipeline_mode = #tpu.pipeline_mode<synchronous>, transform_indices = @transform_7, window_bounds = array<i64: 1, 128>}, {pipeline_mode = #tpu.pipeline_mode<synchronous>, transform_indices = @transform_8, window_bounds = array<i64: 1, 128>}, {pipeline_mode = #tpu.pipeline_mode<synchronous>, transform_indices = @transform_9, window_bounds = array<i64: 128, 32>}, {pipeline_mode = #tpu.pipeline_mode<synchronous>, transform_indices = @transform_10, window_bounds = array<i64: 1, 32>}, {transform_indices = @transform_11, window_bounds = array<i64: 1, 64, 32>}]} {
    %c0 = arith.constant 0 : index
    %c0_0 = arith.constant 0 : index
    %c0_1 = arith.constant 0 : index
    %0 = vector.load %arg1[%c0, %c0_0, %c0_1] : memref<1x64x32xf32, #tpu.memory_space<vmem>>, vector<1x64x32xf32>
    %1 = vector.shape_cast %0 : vector<1x64x32xf32> to vector<64x32xf32>
    %cst = arith.constant 0.000000e+00 : f32
    %2 = vector.broadcast %cst : f32 to vector<8x32xf32>
    %3 = tpu.concatenate %2, %1, %2 in 0 : vector<8x32xf32>, vector<64x32xf32>, vector<8x32xf32> -> vector<80x32xf32>
    %c0_2 = arith.constant 0 : index
    %c0_3 = arith.constant 0 : index
    %4 = vector.load %arg2[%c0_2, %c0_3] : memref<7x32xf32, #tpu.memory_space<vmem>>, vector<7x32xf32>
    %cst_4 = arith.constant 0.000000e+00 : f32
    %5 = vector.broadcast %cst_4 : f32 to vector<64x32xf32>
    %6 = vector.extract_strided_slice %3 {offsets = [5, 0], sizes = [64, 32], strides = [1, 1]} : vector<80x32xf32> to vector<64x32xf32>
    %7 = vector.extract_strided_slice %4 {offsets = [0, 0], sizes = [1, 32], strides = [1, 1]} : vector<7x32xf32> to vector<1x32xf32>
    %8 = vector.broadcast %7 : vector<1x32xf32> to vector<64x32xf32>
    %9 = arith.mulf %6, %8 : vector<64x32xf32>
    %10 = arith.addf %5, %9 : vector<64x32xf32>
    %11 = vector.extract_strided_slice %3 {offsets = [6, 0], sizes = [64, 32], strides = [1, 1]} : vector<80x32xf32> to vector<64x32xf32>
    %12 = vector.extract_strided_slice %4 {offsets = [1, 0], sizes = [1, 32], strides = [1, 1]} : vector<7x32xf32> to vector<1x32xf32>
    %13 = vector.broadcast %12 : vector<1x32xf32> to vector<64x32xf32>
    %14 = arith.mulf %11, %13 : vector<64x32xf32>
    %15 = arith.addf %10, %14 : vector<64x32xf32>
    %16 = vector.extract_strided_slice %3 {offsets = [7, 0], sizes = [64, 32], strides = [1, 1]} : vector<80x32xf32> to vector<64x32xf32>
    %17 = vector.extract_strided_slice %4 {offsets = [2, 0], sizes = [1, 32], strides = [1, 1]} : vector<7x32xf32> to vector<1x32xf32>
    %18 = vector.broadcast %17 : vector<1x32xf32> to vector<64x32xf32>
    %19 = arith.mulf %16, %18 : vector<64x32xf32>
    %20 = arith.addf %15, %19 : vector<64x32xf32>
    %21 = vector.extract_strided_slice %3 {offsets = [8, 0], sizes = [64, 32], strides = [1, 1]} : vector<80x32xf32> to vector<64x32xf32>
    %22 = vector.extract_strided_slice %4 {offsets = [3, 0], sizes = [1, 32], strides = [1, 1]} : vector<7x32xf32> to vector<1x32xf32>
    %23 = vector.broadcast %22 : vector<1x32xf32> to vector<64x32xf32>
    %24 = arith.mulf %21, %23 : vector<64x32xf32>
    %25 = arith.addf %20, %24 : vector<64x32xf32>
    %26 = vector.extract_strided_slice %3 {offsets = [9, 0], sizes = [64, 32], strides = [1, 1]} : vector<80x32xf32> to vector<64x32xf32>
    %27 = vector.extract_strided_slice %4 {offsets = [4, 0], sizes = [1, 32], strides = [1, 1]} : vector<7x32xf32> to vector<1x32xf32>
    %28 = vector.broadcast %27 : vector<1x32xf32> to vector<64x32xf32>
    %29 = arith.mulf %26, %28 : vector<64x32xf32>
    %30 = arith.addf %25, %29 : vector<64x32xf32>
    %31 = vector.extract_strided_slice %3 {offsets = [10, 0], sizes = [64, 32], strides = [1, 1]} : vector<80x32xf32> to vector<64x32xf32>
    %32 = vector.extract_strided_slice %4 {offsets = [5, 0], sizes = [1, 32], strides = [1, 1]} : vector<7x32xf32> to vector<1x32xf32>
    %33 = vector.broadcast %32 : vector<1x32xf32> to vector<64x32xf32>
    %34 = arith.mulf %31, %33 : vector<64x32xf32>
    %35 = arith.addf %30, %34 : vector<64x32xf32>
    %36 = vector.extract_strided_slice %3 {offsets = [11, 0], sizes = [64, 32], strides = [1, 1]} : vector<80x32xf32> to vector<64x32xf32>
    %37 = vector.extract_strided_slice %4 {offsets = [6, 0], sizes = [1, 32], strides = [1, 1]} : vector<7x32xf32> to vector<1x32xf32>
    %38 = vector.broadcast %37 : vector<1x32xf32> to vector<64x32xf32>
    %39 = arith.mulf %36, %38 : vector<64x32xf32>
    %40 = arith.addf %35, %39 : vector<64x32xf32>
    %c0_5 = arith.constant 0 : index
    %c0_6 = arith.constant 0 : index
    %41 = vector.load %arg3[%c0_5, %c0_6] : memref<1x32xf32, #tpu.memory_space<vmem>>, vector<1x32xf32>
    %42 = vector.broadcast %41 : vector<1x32xf32> to vector<64x32xf32>
    %43 = arith.addf %40, %42 : vector<64x32xf32>
    %cst_7 = arith.constant dense<0.000000e+00> : vector<64xf32>
    %44 = vector.multi_reduction <add>, %43, %cst_7 [1] : vector<64x32xf32> to vector<64xf32>
    %45 = vector.shape_cast %44 : vector<64xf32> to vector<64x1xf32>
    %cst_8 = arith.constant 3.200000e+01 : f32
    %46 = vector.broadcast %cst_8 : f32 to vector<64x1xf32>
    %47 = arith.divf %45, %46 : vector<64x1xf32>
    %48 = vector.broadcast %47 : vector<64x1xf32> to vector<64x32xf32>
    %49 = arith.subf %43, %48 : vector<64x32xf32>
    %50 = arith.mulf %49, %49 : vector<64x32xf32>
    %cst_9 = arith.constant dense<0.000000e+00> : vector<64xf32>
    %51 = vector.multi_reduction <add>, %50, %cst_9 [1] : vector<64x32xf32> to vector<64xf32>
    %52 = vector.shape_cast %51 : vector<64xf32> to vector<64x1xf32>
    %cst_10 = arith.constant 3.200000e+01 : f32
    %53 = vector.broadcast %cst_10 : f32 to vector<64x1xf32>
    %54 = arith.divf %52, %53 : vector<64x1xf32>
    %55 = vector.broadcast %47 : vector<64x1xf32> to vector<64x32xf32>
    %56 = arith.subf %43, %55 : vector<64x32xf32>
    %cst_11 = arith.constant 9.99999997E-7 : f32
    %57 = vector.broadcast %cst_11 : f32 to vector<64x1xf32>
    %58 = arith.addf %54, %57 : vector<64x1xf32>
    %59 = math.rsqrt %58 : vector<64x1xf32>
    %60 = vector.broadcast %59 : vector<64x1xf32> to vector<64x32xf32>
    %61 = arith.mulf %56, %60 : vector<64x32xf32>
    %c0_12 = arith.constant 0 : index
    %c0_13 = arith.constant 0 : index
    %62 = vector.load %arg4[%c0_12, %c0_13] : memref<1x32xf32, #tpu.memory_space<vmem>>, vector<1x32xf32>
    %63 = vector.broadcast %62 : vector<1x32xf32> to vector<64x32xf32>
    %64 = arith.mulf %61, %63 : vector<64x32xf32>
    %c0_14 = arith.constant 0 : index
    %c0_15 = arith.constant 0 : index
    %65 = vector.load %arg5[%c0_14, %c0_15] : memref<1x32xf32, #tpu.memory_space<vmem>>, vector<1x32xf32>
    %66 = vector.broadcast %65 : vector<1x32xf32> to vector<64x32xf32>
    %67 = arith.addf %64, %66 : vector<64x32xf32>
    %c0_16 = arith.constant 0 : index
    %c0_17 = arith.constant 0 : index
    %68 = vector.load %arg6[%c0_16, %c0_17] : memref<32x128xf32, #tpu.memory_space<vmem>>, vector<32x128xf32>
    %cst_18 = arith.constant dense<0.000000e+00> : vector<64x128xf32>
    %69 = tpu.matmul %67, %68, %cst_18 {dimension_numbers = #tpu.dot_dimension_numbers<[1], [0], [0], [1], [0, 0, 1, 1], [], []>} : vector<64x32xf32>, vector<32x128xf32>, vector<64x128xf32> -> vector<64x128xf32>
    %c0_19 = arith.constant 0 : index
    %c0_20 = arith.constant 0 : index
    %70 = vector.load %arg7[%c0_19, %c0_20] : memref<1x128xf32, #tpu.memory_space<vmem>>, vector<1x128xf32>
    %71 = vector.broadcast %70 : vector<1x128xf32> to vector<64x128xf32>
    %72 = arith.addf %69, %71 : vector<64x128xf32>
    %cst_21 = arith.constant 0.707106769 : f32
    %73 = vector.broadcast %cst_21 : f32 to vector<64x128xf32>
    %74 = arith.mulf %72, %73 : vector<64x128xf32>
    %75 = math.absf %74 : vector<64x128xf32>
    %cst_22 = arith.constant 0.000000e+00 : f32
    %76 = vector.broadcast %cst_22 : f32 to vector<64x128xf32>
    %77 = arith.cmpf oge, %74, %76 : vector<64x128xf32>
    %cst_23 = arith.constant 1.000000e+00 : f32
    %cst_24 = arith.constant -1.000000e+00 : f32
    %78 = vector.broadcast %cst_23 : f32 to vector<64x128xf32>
    %79 = vector.broadcast %cst_24 : f32 to vector<64x128xf32>
    %80 = arith.select %77, %78, %79 : vector<64x128xi1>, vector<64x128xf32>
    %cst_25 = arith.constant 0.327591091 : f32
    %81 = vector.broadcast %cst_25 : f32 to vector<64x128xf32>
    %82 = arith.mulf %81, %75 : vector<64x128xf32>
    %cst_26 = arith.constant 1.000000e+00 : f32
    %83 = vector.broadcast %cst_26 : f32 to vector<64x128xf32>
    %84 = arith.addf %83, %82 : vector<64x128xf32>
    %cst_27 = arith.constant 1.000000e+00 : f32
    %85 = vector.broadcast %cst_27 : f32 to vector<64x128xf32>
    %86 = arith.divf %85, %84 : vector<64x128xf32>
    %cst_28 = arith.constant 1.06140542 : f32
    %87 = vector.broadcast %cst_28 : f32 to vector<64x128xf32>
    %88 = arith.mulf %87, %86 : vector<64x128xf32>
    %cst_29 = arith.constant 1.45315206 : f32
    %89 = vector.broadcast %cst_29 : f32 to vector<64x128xf32>
    %90 = arith.subf %88, %89 : vector<64x128xf32>
    %91 = arith.mulf %90, %86 : vector<64x128xf32>
    %cst_30 = arith.constant 1.42141378 : f32
    %92 = vector.broadcast %cst_30 : f32 to vector<64x128xf32>
    %93 = arith.addf %91, %92 : vector<64x128xf32>
    %94 = arith.mulf %93, %86 : vector<64x128xf32>
    %cst_31 = arith.constant 0.284496725 : f32
    %95 = vector.broadcast %cst_31 : f32 to vector<64x128xf32>
    %96 = arith.subf %94, %95 : vector<64x128xf32>
    %97 = arith.mulf %96, %86 : vector<64x128xf32>
    %cst_32 = arith.constant 0.254829586 : f32
    %98 = vector.broadcast %cst_32 : f32 to vector<64x128xf32>
    %99 = arith.addf %97, %98 : vector<64x128xf32>
    %100 = arith.mulf %99, %86 : vector<64x128xf32>
    %cst_33 = arith.constant 0.000000e+00 : f32
    %101 = vector.broadcast %cst_33 : f32 to vector<64x128xf32>
    %102 = arith.subf %101, %75 : vector<64x128xf32>
    %103 = arith.mulf %102, %75 : vector<64x128xf32>
    %104 = math.exp %103 : vector<64x128xf32>
    %105 = arith.mulf %100, %104 : vector<64x128xf32>
    %cst_34 = arith.constant 1.000000e+00 : f32
    %106 = vector.broadcast %cst_34 : f32 to vector<64x128xf32>
    %107 = arith.subf %106, %105 : vector<64x128xf32>
    %108 = arith.mulf %80, %107 : vector<64x128xf32>
    %cst_35 = arith.constant 5.000000e-01 : f32
    %109 = vector.broadcast %cst_35 : f32 to vector<64x128xf32>
    %110 = arith.mulf %109, %72 : vector<64x128xf32>
    %cst_36 = arith.constant 1.000000e+00 : f32
    %111 = vector.broadcast %cst_36 : f32 to vector<64x128xf32>
    %112 = arith.addf %111, %108 : vector<64x128xf32>
    %113 = arith.mulf %110, %112 : vector<64x128xf32>
    %114 = arith.mulf %113, %113 : vector<64x128xf32>
    %cst_37 = arith.constant dense<0.000000e+00> : vector<128xf32>
    %115 = vector.multi_reduction <add>, %114, %cst_37 [0] : vector<64x128xf32> to vector<128xf32>
    %116 = vector.shape_cast %115 : vector<128xf32> to vector<1x128xf32>
    %117 = math.sqrt %116 : vector<1x128xf32>
    %cst_38 = arith.constant dense<0.000000e+00> : vector<1xf32>
    %118 = vector.multi_reduction <add>, %117, %cst_38 [1] : vector<1x128xf32> to vector<1xf32>
    %119 = vector.shape_cast %118 : vector<1xf32> to vector<1x1xf32>
    %cst_39 = arith.constant 1.280000e+02 : f32
    %120 = vector.broadcast %cst_39 : f32 to vector<1x1xf32>
    %121 = arith.divf %119, %120 : vector<1x1xf32>
    %cst_40 = arith.constant 9.99999997E-7 : f32
    %122 = vector.broadcast %cst_40 : f32 to vector<1x1xf32>
    %123 = arith.addf %121, %122 : vector<1x1xf32>
    %124 = vector.broadcast %123 : vector<1x1xf32> to vector<1x128xf32>
    %125 = arith.divf %117, %124 : vector<1x128xf32>
    %c0_41 = arith.constant 0 : index
    %c0_42 = arith.constant 0 : index
    %126 = vector.load %arg8[%c0_41, %c0_42] : memref<1x128xf32, #tpu.memory_space<vmem>>, vector<1x128xf32>
    %127 = vector.broadcast %125 : vector<1x128xf32> to vector<64x128xf32>
    %128 = arith.mulf %113, %127 : vector<64x128xf32>
    %129 = vector.broadcast %126 : vector<1x128xf32> to vector<64x128xf32>
    %130 = arith.mulf %129, %128 : vector<64x128xf32>
    %c0_43 = arith.constant 0 : index
    %c0_44 = arith.constant 0 : index
    %131 = vector.load %arg9[%c0_43, %c0_44] : memref<1x128xf32, #tpu.memory_space<vmem>>, vector<1x128xf32>
    %132 = vector.broadcast %131 : vector<1x128xf32> to vector<64x128xf32>
    %133 = arith.addf %130, %132 : vector<64x128xf32>
    %134 = arith.addf %133, %113 : vector<64x128xf32>
    %c0_45 = arith.constant 0 : index
    %c0_46 = arith.constant 0 : index
    %135 = vector.load %arg10[%c0_45, %c0_46] : memref<128x32xf32, #tpu.memory_space<vmem>>, vector<128x32xf32>
    %cst_47 = arith.constant dense<0.000000e+00> : vector<64x32xf32>
    %136 = tpu.matmul %134, %135, %cst_47 {dimension_numbers = #tpu.dot_dimension_numbers<[1], [0], [0], [1], [0, 0, 1, 1], [], []>} : vector<64x128xf32>, vector<128x32xf32>, vector<64x32xf32> -> vector<64x32xf32>
    %c0_48 = arith.constant 0 : index
    %c0_49 = arith.constant 0 : index
    %137 = vector.load %arg11[%c0_48, %c0_49] : memref<1x32xf32, #tpu.memory_space<vmem>>, vector<1x32xf32>
    %138 = vector.broadcast %137 : vector<1x32xf32> to vector<64x32xf32>
    %139 = arith.addf %136, %138 : vector<64x32xf32>
    %140 = arith.addf %139, %1 : vector<64x32xf32>
    %c0_50 = arith.constant 0 : index
    %c0_51 = arith.constant 0 : index
    %c0_52 = arith.constant 0 : index
    %141 = vector.load %arg12[%c0_50, %c0_51, %c0_52] : memref<1x64x32xf32, #tpu.memory_space<vmem>>, vector<1x64x32xf32>
    %142 = vector.shape_cast %141 : vector<1x64x32xf32> to vector<64x32xf32>
    %143 = vector.shape_cast %140 : vector<64x32xf32> to vector<1x64x32xf32>
    tpu.vector_store %arg12[%c0_50, %c0_51, %c0_52], %143 {strides = array<i32>} : memref<1x64x32xf32, #tpu.memory_space<vmem>>, vector<1x64x32xf32>,
    return
  }
  func.func @transform_0(%arg0: i32) -> (i32, i32, i32) {
    %c0_i32 = arith.constant 0 : i32
    %c0_i32_0 = arith.constant 0 : i32
    %c0_i32_1 = arith.constant 0 : i32
    return %arg0, %c0_i32, %c0_i32_0 : i32, i32, i32
  }
  func.func @transform_1(%arg0: i32) -> (i32, i32) {
    %c0_i32 = arith.constant 0 : i32
    %c0_i32_0 = arith.constant 0 : i32
    %c0_i32_1 = arith.constant 0 : i32
    return %c0_i32, %c0_i32_0 : i32, i32
  }
  func.func @transform_2(%arg0: i32) -> (i32, i32) {
    %c0_i32 = arith.constant 0 : i32
    %c0_i32_0 = arith.constant 0 : i32
    %c0_i32_1 = arith.constant 0 : i32
    return %c0_i32, %c0_i32_0 : i32, i32
  }
  func.func @transform_3(%arg0: i32) -> (i32, i32) {
    %c0_i32 = arith.constant 0 : i32
    %c0_i32_0 = arith.constant 0 : i32
    %c0_i32_1 = arith.constant 0 : i32
    return %c0_i32, %c0_i32_0 : i32, i32
  }
  func.func @transform_4(%arg0: i32) -> (i32, i32) {
    %c0_i32 = arith.constant 0 : i32
    %c0_i32_0 = arith.constant 0 : i32
    %c0_i32_1 = arith.constant 0 : i32
    return %c0_i32, %c0_i32_0 : i32, i32
  }
  func.func @transform_5(%arg0: i32) -> (i32, i32) {
    %c0_i32 = arith.constant 0 : i32
    %c0_i32_0 = arith.constant 0 : i32
    %c0_i32_1 = arith.constant 0 : i32
    return %c0_i32, %c0_i32_0 : i32, i32
  }
  func.func @transform_6(%arg0: i32) -> (i32, i32) {
    %c0_i32 = arith.constant 0 : i32
    %c0_i32_0 = arith.constant 0 : i32
    %c0_i32_1 = arith.constant 0 : i32
    return %c0_i32, %c0_i32_0 : i32, i32
  }
  func.func @transform_7(%arg0: i32) -> (i32, i32) {
    %c0_i32 = arith.constant 0 : i32
    %c0_i32_0 = arith.constant 0 : i32
    %c0_i32_1 = arith.constant 0 : i32
    return %c0_i32, %c0_i32_0 : i32, i32
  }
  func.func @transform_8(%arg0: i32) -> (i32, i32) {
    %c0_i32 = arith.constant 0 : i32
    %c0_i32_0 = arith.constant 0 : i32
    %c0_i32_1 = arith.constant 0 : i32
    return %c0_i32, %c0_i32_0 : i32, i32
  }
  func.func @transform_9(%arg0: i32) -> (i32, i32) {
    %c0_i32 = arith.constant 0 : i32
    %c0_i32_0 = arith.constant 0 : i32
    %c0_i32_1 = arith.constant 0 : i32
    return %c0_i32, %c0_i32_0 : i32, i32
  }
  func.func @transform_10(%arg0: i32) -> (i32, i32) {
    %c0_i32 = arith.constant 0 : i32
    %c0_i32_0 = arith.constant 0 : i32
    %c0_i32_1 = arith.constant 0 : i32
    return %c0_i32, %c0_i32_0 : i32, i32
  }
  func.func @transform_11(%arg0: i32) -> (i32, i32, i32) {
    %c0_i32 = arith.constant 0 : i32
    %c0_i32_0 = arith.constant 0 : i32
    %c0_i32_1 = arith.constant 0 : i32
    return %arg0, %c0_i32, %c0_i32_0 : i32, i32, i32
  }
}

module attributes {stable_mosaic.version = 11 : i64} {
  func.func @kernel(%arg0: i32, %arg1: memref<1x32x64xf32, #tpu.memory_space<vmem>>, %arg2: memref<1x64xf32, #tpu.memory_space<vmem>>, %arg3: memref<1x64xf32, #tpu.memory_space<vmem>>, %arg4: memref<64x64xf32, #tpu.memory_space<vmem>>, %arg5: memref<1x64xf32, #tpu.memory_space<vmem>>, %arg6: memref<1x32x64xf32, #tpu.memory_space<vmem>>) attributes {dimension_semantics = [#tpu.dimension_semantics<parallel>], iteration_bounds = array<i64: 2>, scalar_prefetch = 0 : i64, scratch_operands = 0 : i64, tpu.core_type = #tpu.core_type<tc>, window_params = [{transform_indices = @transform_0, window_bounds = array<i64: 1, 32, 64>}, {pipeline_mode = #tpu.pipeline_mode<synchronous>, transform_indices = @transform_1, window_bounds = array<i64: 1, 64>}, {pipeline_mode = #tpu.pipeline_mode<synchronous>, transform_indices = @transform_2, window_bounds = array<i64: 1, 64>}, {pipeline_mode = #tpu.pipeline_mode<synchronous>, transform_indices = @transform_3, window_bounds = array<i64: 64, 64>}, {pipeline_mode = #tpu.pipeline_mode<synchronous>, transform_indices = @transform_4, window_bounds = array<i64: 1, 64>}, {transform_indices = @transform_5, window_bounds = array<i64: 1, 32, 64>}]} {
    %c0 = arith.constant 0 : index
    %c0_0 = arith.constant 0 : index
    %c0_1 = arith.constant 0 : index
    %0 = vector.load %arg1[%c0, %c0_0, %c0_1] : memref<1x32x64xf32, #tpu.memory_space<vmem>>, vector<1x32x64xf32>
    %1 = vector.shape_cast %0 : vector<1x32x64xf32> to vector<32x64xf32>
    %c0_2 = arith.constant 0 : index
    %c0_3 = arith.constant 0 : index
    %2 = vector.load %arg2[%c0_2, %c0_3] : memref<1x64xf32, #tpu.memory_space<vmem>>, vector<1x64xf32>
    %c0_4 = arith.constant 0 : index
    %c0_5 = arith.constant 0 : index
    %3 = vector.load %arg3[%c0_4, %c0_5] : memref<1x64xf32, #tpu.memory_space<vmem>>, vector<1x64xf32>
    %4 = tpu.iota {dimensions = array<i32: 1>} : vector<32x64xi32>
    %c32_i32 = arith.constant 32 : i32
    %5 = vector.broadcast %c32_i32 : i32 to vector<32x64xi32>
    %6 = arith.cmpi slt, %4, %5 : vector<32x64xi32>
    %cst = arith.constant 0.000000e+00 : f32
    %7 = vector.broadcast %cst : f32 to vector<32x64xf32>
    %8 = arith.select %6, %1, %7 : vector<32x64xi1>, vector<32x64xf32>
    %cst_6 = arith.constant dense<0.000000e+00> : vector<32xf32>
    %9 = vector.multi_reduction <add>, %8, %cst_6 [1] : vector<32x64xf32> to vector<32xf32>
    %10 = vector.shape_cast %9 : vector<32xf32> to vector<32x1xf32>
    %cst_7 = arith.constant 3.125000e-02 : f32
    %11 = vector.broadcast %cst_7 : f32 to vector<32x1xf32>
    %12 = arith.mulf %10, %11 : vector<32x1xf32>
    %cst_8 = arith.constant 0.000000e+00 : f32
    %13 = vector.broadcast %cst_8 : f32 to vector<32x64xf32>
    %14 = arith.select %6, %13, %1 : vector<32x64xi1>, vector<32x64xf32>
    %cst_9 = arith.constant dense<0.000000e+00> : vector<32xf32>
    %15 = vector.multi_reduction <add>, %14, %cst_9 [1] : vector<32x64xf32> to vector<32xf32>
    %16 = vector.shape_cast %15 : vector<32xf32> to vector<32x1xf32>
    %cst_10 = arith.constant 3.125000e-02 : f32
    %17 = vector.broadcast %cst_10 : f32 to vector<32x1xf32>
    %18 = arith.mulf %16, %17 : vector<32x1xf32>
    %19 = vector.shape_cast %12 : vector<32x1xf32> to vector<32x1xf32>
    %20 = vector.broadcast %19 : vector<32x1xf32> to vector<32x64xf32>
    %21 = vector.shape_cast %18 : vector<32x1xf32> to vector<32x1xf32>
    %22 = vector.broadcast %21 : vector<32x1xf32> to vector<32x64xf32>
    %23 = arith.select %6, %20, %22 : vector<32x64xi1>, vector<32x64xf32>
    %24 = arith.subf %1, %23 : vector<32x64xf32>
    %25 = arith.mulf %24, %24 : vector<32x64xf32>
    %cst_11 = arith.constant 0.000000e+00 : f32
    %26 = vector.broadcast %cst_11 : f32 to vector<32x64xf32>
    %27 = arith.select %6, %25, %26 : vector<32x64xi1>, vector<32x64xf32>
    %cst_12 = arith.constant dense<0.000000e+00> : vector<32xf32>
    %28 = vector.multi_reduction <add>, %27, %cst_12 [1] : vector<32x64xf32> to vector<32xf32>
    %29 = vector.shape_cast %28 : vector<32xf32> to vector<32x1xf32>
    %cst_13 = arith.constant 3.125000e-02 : f32
    %30 = vector.broadcast %cst_13 : f32 to vector<32x1xf32>
    %31 = arith.mulf %29, %30 : vector<32x1xf32>
    %32 = arith.mulf %24, %24 : vector<32x64xf32>
    %cst_14 = arith.constant 0.000000e+00 : f32
    %33 = vector.broadcast %cst_14 : f32 to vector<32x64xf32>
    %34 = arith.select %6, %33, %32 : vector<32x64xi1>, vector<32x64xf32>
    %cst_15 = arith.constant dense<0.000000e+00> : vector<32xf32>
    %35 = vector.multi_reduction <add>, %34, %cst_15 [1] : vector<32x64xf32> to vector<32xf32>
    %36 = vector.shape_cast %35 : vector<32xf32> to vector<32x1xf32>
    %cst_16 = arith.constant 3.125000e-02 : f32
    %37 = vector.broadcast %cst_16 : f32 to vector<32x1xf32>
    %38 = arith.mulf %36, %37 : vector<32x1xf32>
    %39 = vector.shape_cast %31 : vector<32x1xf32> to vector<32x1xf32>
    %40 = vector.broadcast %39 : vector<32x1xf32> to vector<32x64xf32>
    %41 = vector.shape_cast %38 : vector<32x1xf32> to vector<32x1xf32>
    %42 = vector.broadcast %41 : vector<32x1xf32> to vector<32x64xf32>
    %43 = arith.select %6, %40, %42 : vector<32x64xi1>, vector<32x64xf32>
    %cst_17 = arith.constant 9.99999997E-7 : f32
    %44 = vector.broadcast %cst_17 : f32 to vector<32x64xf32>
    %45 = arith.addf %43, %44 : vector<32x64xf32>
    %46 = math.rsqrt %45 : vector<32x64xf32>
    %47 = arith.mulf %24, %46 : vector<32x64xf32>
    %48 = vector.broadcast %2 : vector<1x64xf32> to vector<32x64xf32>
    %49 = arith.mulf %47, %48 : vector<32x64xf32>
    %50 = vector.broadcast %3 : vector<1x64xf32> to vector<32x64xf32>
    %51 = arith.addf %49, %50 : vector<32x64xf32>
    %c0_18 = arith.constant 0 : index
    %c0_19 = arith.constant 0 : index
    %52 = vector.load %arg4[%c0_18, %c0_19] : memref<64x64xf32, #tpu.memory_space<vmem>>, vector<64x64xf32>
    %cst_20 = arith.constant dense<0.000000e+00> : vector<32x64xf32>
    %53 = tpu.matmul %51, %52, %cst_20 {dimension_numbers = #tpu.dot_dimension_numbers<[1], [0], [0], [1], [0, 0, 1, 1], [], []>} : vector<32x64xf32>, vector<64x64xf32>, vector<32x64xf32> -> vector<32x64xf32>
    %c0_21 = arith.constant 0 : index
    %c0_22 = arith.constant 0 : index
    %54 = vector.load %arg5[%c0_21, %c0_22] : memref<1x64xf32, #tpu.memory_space<vmem>>, vector<1x64xf32>
    %55 = vector.broadcast %54 : vector<1x64xf32> to vector<32x64xf32>
    %56 = arith.addf %53, %55 : vector<32x64xf32>
    %c0_23 = arith.constant 0 : index
    %c0_24 = arith.constant 0 : index
    %c0_25 = arith.constant 0 : index
    %57 = vector.load %arg6[%c0_23, %c0_24, %c0_25] : memref<1x32x64xf32, #tpu.memory_space<vmem>>, vector<1x32x64xf32>
    %58 = vector.shape_cast %57 : vector<1x32x64xf32> to vector<32x64xf32>
    %59 = vector.shape_cast %56 : vector<32x64xf32> to vector<1x32x64xf32>
    tpu.vector_store %arg6[%c0_23, %c0_24, %c0_25], %59 {strides = array<i32>} : memref<1x32x64xf32, #tpu.memory_space<vmem>>, vector<1x32x64xf32>,
    return
  }
  func.func @transform_0(%arg0: i32) -> (i32, i32, i32) {
    %c0_i32 = arith.constant 0 : i32
    %c0_i32_0 = arith.constant 0 : i32
    %c0_i32_1 = arith.constant 0 : i32
    return %arg0, %c0_i32, %c0_i32_0 : i32, i32, i32
  }
  func.func @transform_1(%arg0: i32) -> (i32, i32) {
    %c0_i32 = arith.constant 0 : i32
    %c0_i32_0 = arith.constant 0 : i32
    %c0_i32_1 = arith.constant 0 : i32
    return %c0_i32, %c0_i32_0 : i32, i32
  }
  func.func @transform_2(%arg0: i32) -> (i32, i32) {
    %c0_i32 = arith.constant 0 : i32
    %c0_i32_0 = arith.constant 0 : i32
    %c0_i32_1 = arith.constant 0 : i32
    return %c0_i32, %c0_i32_0 : i32, i32
  }
  func.func @transform_3(%arg0: i32) -> (i32, i32) {
    %c0_i32 = arith.constant 0 : i32
    %c0_i32_0 = arith.constant 0 : i32
    %c0_i32_1 = arith.constant 0 : i32
    return %c0_i32, %c0_i32_0 : i32, i32
  }
  func.func @transform_4(%arg0: i32) -> (i32, i32) {
    %c0_i32 = arith.constant 0 : i32
    %c0_i32_0 = arith.constant 0 : i32
    %c0_i32_1 = arith.constant 0 : i32
    return %c0_i32, %c0_i32_0 : i32, i32
  }
  func.func @transform_5(%arg0: i32) -> (i32, i32, i32) {
    %c0_i32 = arith.constant 0 : i32
    %c0_i32_0 = arith.constant 0 : i32
    %c0_i32_1 = arith.constant 0 : i32
    return %arg0, %c0_i32, %c0_i32_0 : i32, i32, i32
  }
}

module attributes {stable_mosaic.version = 11 : i64} {
  func.func @kernel(%arg0: i32, %arg1: memref<1x32x64xf32, #tpu.memory_space<vmem>>, %arg2: memref<7x64xf32, #tpu.memory_space<vmem>>, %arg3: memref<1x64xf32, #tpu.memory_space<vmem>>, %arg4: memref<1x64xf32, #tpu.memory_space<vmem>>, %arg5: memref<1x64xf32, #tpu.memory_space<vmem>>, %arg6: memref<64x256xf32, #tpu.memory_space<vmem>>, %arg7: memref<1x256xf32, #tpu.memory_space<vmem>>, %arg8: memref<1x256xf32, #tpu.memory_space<vmem>>, %arg9: memref<1x256xf32, #tpu.memory_space<vmem>>, %arg10: memref<256x64xf32, #tpu.memory_space<vmem>>, %arg11: memref<1x64xf32, #tpu.memory_space<vmem>>, %arg12: memref<1x32x64xf32, #tpu.memory_space<vmem>>) attributes {dimension_semantics = [#tpu.dimension_semantics<parallel>], iteration_bounds = array<i64: 2>, scalar_prefetch = 0 : i64, scratch_operands = 0 : i64, tpu.core_type = #tpu.core_type<tc>, window_params = [{transform_indices = @transform_0, window_bounds = array<i64: 1, 32, 64>}, {pipeline_mode = #tpu.pipeline_mode<synchronous>, transform_indices = @transform_1, window_bounds = array<i64: 7, 64>}, {pipeline_mode = #tpu.pipeline_mode<synchronous>, transform_indices = @transform_2, window_bounds = array<i64: 1, 64>}, {pipeline_mode = #tpu.pipeline_mode<synchronous>, transform_indices = @transform_3, window_bounds = array<i64: 1, 64>}, {pipeline_mode = #tpu.pipeline_mode<synchronous>, transform_indices = @transform_4, window_bounds = array<i64: 1, 64>}, {pipeline_mode = #tpu.pipeline_mode<synchronous>, transform_indices = @transform_5, window_bounds = array<i64: 64, 256>}, {pipeline_mode = #tpu.pipeline_mode<synchronous>, transform_indices = @transform_6, window_bounds = array<i64: 1, 256>}, {pipeline_mode = #tpu.pipeline_mode<synchronous>, transform_indices = @transform_7, window_bounds = array<i64: 1, 256>}, {pipeline_mode = #tpu.pipeline_mode<synchronous>, transform_indices = @transform_8, window_bounds = array<i64: 1, 256>}, {pipeline_mode = #tpu.pipeline_mode<synchronous>, transform_indices = @transform_9, window_bounds = array<i64: 256, 64>}, {pipeline_mode = #tpu.pipeline_mode<synchronous>, transform_indices = @transform_10, window_bounds = array<i64: 1, 64>}, {transform_indices = @transform_11, window_bounds = array<i64: 1, 32, 64>}]} {
    %c0 = arith.constant 0 : index
    %c0_0 = arith.constant 0 : index
    %c0_1 = arith.constant 0 : index
    %0 = vector.load %arg1[%c0, %c0_0, %c0_1] : memref<1x32x64xf32, #tpu.memory_space<vmem>>, vector<1x32x64xf32>
    %1 = vector.shape_cast %0 : vector<1x32x64xf32> to vector<32x64xf32>
    %cst = arith.constant 0.000000e+00 : f32
    %2 = vector.broadcast %cst : f32 to vector<8x64xf32>
    %3 = tpu.concatenate %2, %1, %2 in 0 : vector<8x64xf32>, vector<32x64xf32>, vector<8x64xf32> -> vector<48x64xf32>
    %c0_2 = arith.constant 0 : index
    %c0_3 = arith.constant 0 : index
    %4 = vector.load %arg2[%c0_2, %c0_3] : memref<7x64xf32, #tpu.memory_space<vmem>>, vector<7x64xf32>
    %cst_4 = arith.constant 0.000000e+00 : f32
    %5 = vector.broadcast %cst_4 : f32 to vector<32x64xf32>
    %6 = vector.extract_strided_slice %3 {offsets = [5, 0], sizes = [32, 64], strides = [1, 1]} : vector<48x64xf32> to vector<32x64xf32>
    %7 = vector.extract_strided_slice %4 {offsets = [0, 0], sizes = [1, 64], strides = [1, 1]} : vector<7x64xf32> to vector<1x64xf32>
    %8 = vector.broadcast %7 : vector<1x64xf32> to vector<32x64xf32>
    %9 = arith.mulf %6, %8 : vector<32x64xf32>
    %10 = arith.addf %5, %9 : vector<32x64xf32>
    %11 = vector.extract_strided_slice %3 {offsets = [6, 0], sizes = [32, 64], strides = [1, 1]} : vector<48x64xf32> to vector<32x64xf32>
    %12 = vector.extract_strided_slice %4 {offsets = [1, 0], sizes = [1, 64], strides = [1, 1]} : vector<7x64xf32> to vector<1x64xf32>
    %13 = vector.broadcast %12 : vector<1x64xf32> to vector<32x64xf32>
    %14 = arith.mulf %11, %13 : vector<32x64xf32>
    %15 = arith.addf %10, %14 : vector<32x64xf32>
    %16 = vector.extract_strided_slice %3 {offsets = [7, 0], sizes = [32, 64], strides = [1, 1]} : vector<48x64xf32> to vector<32x64xf32>
    %17 = vector.extract_strided_slice %4 {offsets = [2, 0], sizes = [1, 64], strides = [1, 1]} : vector<7x64xf32> to vector<1x64xf32>
    %18 = vector.broadcast %17 : vector<1x64xf32> to vector<32x64xf32>
    %19 = arith.mulf %16, %18 : vector<32x64xf32>
    %20 = arith.addf %15, %19 : vector<32x64xf32>
    %21 = vector.extract_strided_slice %3 {offsets = [8, 0], sizes = [32, 64], strides = [1, 1]} : vector<48x64xf32> to vector<32x64xf32>
    %22 = vector.extract_strided_slice %4 {offsets = [3, 0], sizes = [1, 64], strides = [1, 1]} : vector<7x64xf32> to vector<1x64xf32>
    %23 = vector.broadcast %22 : vector<1x64xf32> to vector<32x64xf32>
    %24 = arith.mulf %21, %23 : vector<32x64xf32>
    %25 = arith.addf %20, %24 : vector<32x64xf32>
    %26 = vector.extract_strided_slice %3 {offsets = [9, 0], sizes = [32, 64], strides = [1, 1]} : vector<48x64xf32> to vector<32x64xf32>
    %27 = vector.extract_strided_slice %4 {offsets = [4, 0], sizes = [1, 64], strides = [1, 1]} : vector<7x64xf32> to vector<1x64xf32>
    %28 = vector.broadcast %27 : vector<1x64xf32> to vector<32x64xf32>
    %29 = arith.mulf %26, %28 : vector<32x64xf32>
    %30 = arith.addf %25, %29 : vector<32x64xf32>
    %31 = vector.extract_strided_slice %3 {offsets = [10, 0], sizes = [32, 64], strides = [1, 1]} : vector<48x64xf32> to vector<32x64xf32>
    %32 = vector.extract_strided_slice %4 {offsets = [5, 0], sizes = [1, 64], strides = [1, 1]} : vector<7x64xf32> to vector<1x64xf32>
    %33 = vector.broadcast %32 : vector<1x64xf32> to vector<32x64xf32>
    %34 = arith.mulf %31, %33 : vector<32x64xf32>
    %35 = arith.addf %30, %34 : vector<32x64xf32>
    %36 = vector.extract_strided_slice %3 {offsets = [11, 0], sizes = [32, 64], strides = [1, 1]} : vector<48x64xf32> to vector<32x64xf32>
    %37 = vector.extract_strided_slice %4 {offsets = [6, 0], sizes = [1, 64], strides = [1, 1]} : vector<7x64xf32> to vector<1x64xf32>
    %38 = vector.broadcast %37 : vector<1x64xf32> to vector<32x64xf32>
    %39 = arith.mulf %36, %38 : vector<32x64xf32>
    %40 = arith.addf %35, %39 : vector<32x64xf32>
    %c0_5 = arith.constant 0 : index
    %c0_6 = arith.constant 0 : index
    %41 = vector.load %arg3[%c0_5, %c0_6] : memref<1x64xf32, #tpu.memory_space<vmem>>, vector<1x64xf32>
    %42 = vector.broadcast %41 : vector<1x64xf32> to vector<32x64xf32>
    %43 = arith.addf %40, %42 : vector<32x64xf32>
    %cst_7 = arith.constant dense<0.000000e+00> : vector<32xf32>
    %44 = vector.multi_reduction <add>, %43, %cst_7 [1] : vector<32x64xf32> to vector<32xf32>
    %45 = vector.shape_cast %44 : vector<32xf32> to vector<32x1xf32>
    %cst_8 = arith.constant 6.400000e+01 : f32
    %46 = vector.broadcast %cst_8 : f32 to vector<32x1xf32>
    %47 = arith.divf %45, %46 : vector<32x1xf32>
    %48 = vector.broadcast %47 : vector<32x1xf32> to vector<32x64xf32>
    %49 = arith.subf %43, %48 : vector<32x64xf32>
    %50 = arith.mulf %49, %49 : vector<32x64xf32>
    %cst_9 = arith.constant dense<0.000000e+00> : vector<32xf32>
    %51 = vector.multi_reduction <add>, %50, %cst_9 [1] : vector<32x64xf32> to vector<32xf32>
    %52 = vector.shape_cast %51 : vector<32xf32> to vector<32x1xf32>
    %cst_10 = arith.constant 6.400000e+01 : f32
    %53 = vector.broadcast %cst_10 : f32 to vector<32x1xf32>
    %54 = arith.divf %52, %53 : vector<32x1xf32>
    %55 = vector.broadcast %47 : vector<32x1xf32> to vector<32x64xf32>
    %56 = arith.subf %43, %55 : vector<32x64xf32>
    %cst_11 = arith.constant 9.99999997E-7 : f32
    %57 = vector.broadcast %cst_11 : f32 to vector<32x1xf32>
    %58 = arith.addf %54, %57 : vector<32x1xf32>
    %59 = math.rsqrt %58 : vector<32x1xf32>
    %60 = vector.broadcast %59 : vector<32x1xf32> to vector<32x64xf32>
    %61 = arith.mulf %56, %60 : vector<32x64xf32>
    %c0_12 = arith.constant 0 : index
    %c0_13 = arith.constant 0 : index
    %62 = vector.load %arg4[%c0_12, %c0_13] : memref<1x64xf32, #tpu.memory_space<vmem>>, vector<1x64xf32>
    %63 = vector.broadcast %62 : vector<1x64xf32> to vector<32x64xf32>
    %64 = arith.mulf %61, %63 : vector<32x64xf32>
    %c0_14 = arith.constant 0 : index
    %c0_15 = arith.constant 0 : index
    %65 = vector.load %arg5[%c0_14, %c0_15] : memref<1x64xf32, #tpu.memory_space<vmem>>, vector<1x64xf32>
    %66 = vector.broadcast %65 : vector<1x64xf32> to vector<32x64xf32>
    %67 = arith.addf %64, %66 : vector<32x64xf32>
    %c0_16 = arith.constant 0 : index
    %c0_17 = arith.constant 0 : index
    %68 = vector.load %arg6[%c0_16, %c0_17] : memref<64x256xf32, #tpu.memory_space<vmem>>, vector<64x256xf32>
    %cst_18 = arith.constant dense<0.000000e+00> : vector<32x256xf32>
    %69 = tpu.matmul %67, %68, %cst_18 {dimension_numbers = #tpu.dot_dimension_numbers<[1], [0], [0], [1], [0, 0, 1, 1], [], []>} : vector<32x64xf32>, vector<64x256xf32>, vector<32x256xf32> -> vector<32x256xf32>
    %c0_19 = arith.constant 0 : index
    %c0_20 = arith.constant 0 : index
    %70 = vector.load %arg7[%c0_19, %c0_20] : memref<1x256xf32, #tpu.memory_space<vmem>>, vector<1x256xf32>
    %71 = vector.broadcast %70 : vector<1x256xf32> to vector<32x256xf32>
    %72 = arith.addf %69, %71 : vector<32x256xf32>
    %cst_21 = arith.constant 0.707106769 : f32
    %73 = vector.broadcast %cst_21 : f32 to vector<32x256xf32>
    %74 = arith.mulf %72, %73 : vector<32x256xf32>
    %75 = math.absf %74 : vector<32x256xf32>
    %cst_22 = arith.constant 0.000000e+00 : f32
    %76 = vector.broadcast %cst_22 : f32 to vector<32x256xf32>
    %77 = arith.cmpf oge, %74, %76 : vector<32x256xf32>
    %cst_23 = arith.constant 1.000000e+00 : f32
    %cst_24 = arith.constant -1.000000e+00 : f32
    %78 = vector.broadcast %cst_23 : f32 to vector<32x256xf32>
    %79 = vector.broadcast %cst_24 : f32 to vector<32x256xf32>
    %80 = arith.select %77, %78, %79 : vector<32x256xi1>, vector<32x256xf32>
    %cst_25 = arith.constant 0.327591091 : f32
    %81 = vector.broadcast %cst_25 : f32 to vector<32x256xf32>
    %82 = arith.mulf %81, %75 : vector<32x256xf32>
    %cst_26 = arith.constant 1.000000e+00 : f32
    %83 = vector.broadcast %cst_26 : f32 to vector<32x256xf32>
    %84 = arith.addf %83, %82 : vector<32x256xf32>
    %cst_27 = arith.constant 1.000000e+00 : f32
    %85 = vector.broadcast %cst_27 : f32 to vector<32x256xf32>
    %86 = arith.divf %85, %84 : vector<32x256xf32>
    %cst_28 = arith.constant 1.06140542 : f32
    %87 = vector.broadcast %cst_28 : f32 to vector<32x256xf32>
    %88 = arith.mulf %87, %86 : vector<32x256xf32>
    %cst_29 = arith.constant 1.45315206 : f32
    %89 = vector.broadcast %cst_29 : f32 to vector<32x256xf32>
    %90 = arith.subf %88, %89 : vector<32x256xf32>
    %91 = arith.mulf %90, %86 : vector<32x256xf32>
    %cst_30 = arith.constant 1.42141378 : f32
    %92 = vector.broadcast %cst_30 : f32 to vector<32x256xf32>
    %93 = arith.addf %91, %92 : vector<32x256xf32>
    %94 = arith.mulf %93, %86 : vector<32x256xf32>
    %cst_31 = arith.constant 0.284496725 : f32
    %95 = vector.broadcast %cst_31 : f32 to vector<32x256xf32>
    %96 = arith.subf %94, %95 : vector<32x256xf32>
    %97 = arith.mulf %96, %86 : vector<32x256xf32>
    %cst_32 = arith.constant 0.254829586 : f32
    %98 = vector.broadcast %cst_32 : f32 to vector<32x256xf32>
    %99 = arith.addf %97, %98 : vector<32x256xf32>
    %100 = arith.mulf %99, %86 : vector<32x256xf32>
    %cst_33 = arith.constant 0.000000e+00 : f32
    %101 = vector.broadcast %cst_33 : f32 to vector<32x256xf32>
    %102 = arith.subf %101, %75 : vector<32x256xf32>
    %103 = arith.mulf %102, %75 : vector<32x256xf32>
    %104 = math.exp %103 : vector<32x256xf32>
    %105 = arith.mulf %100, %104 : vector<32x256xf32>
    %cst_34 = arith.constant 1.000000e+00 : f32
    %106 = vector.broadcast %cst_34 : f32 to vector<32x256xf32>
    %107 = arith.subf %106, %105 : vector<32x256xf32>
    %108 = arith.mulf %80, %107 : vector<32x256xf32>
    %cst_35 = arith.constant 5.000000e-01 : f32
    %109 = vector.broadcast %cst_35 : f32 to vector<32x256xf32>
    %110 = arith.mulf %109, %72 : vector<32x256xf32>
    %cst_36 = arith.constant 1.000000e+00 : f32
    %111 = vector.broadcast %cst_36 : f32 to vector<32x256xf32>
    %112 = arith.addf %111, %108 : vector<32x256xf32>
    %113 = arith.mulf %110, %112 : vector<32x256xf32>
    %114 = arith.mulf %113, %113 : vector<32x256xf32>
    %cst_37 = arith.constant dense<0.000000e+00> : vector<256xf32>
    %115 = vector.multi_reduction <add>, %114, %cst_37 [0] : vector<32x256xf32> to vector<256xf32>
    %116 = vector.shape_cast %115 : vector<256xf32> to vector<1x256xf32>
    %117 = math.sqrt %116 : vector<1x256xf32>
    %cst_38 = arith.constant dense<0.000000e+00> : vector<1xf32>
    %118 = vector.multi_reduction <add>, %117, %cst_38 [1] : vector<1x256xf32> to vector<1xf32>
    %119 = vector.shape_cast %118 : vector<1xf32> to vector<1x1xf32>
    %cst_39 = arith.constant 2.560000e+02 : f32
    %120 = vector.broadcast %cst_39 : f32 to vector<1x1xf32>
    %121 = arith.divf %119, %120 : vector<1x1xf32>
    %cst_40 = arith.constant 9.99999997E-7 : f32
    %122 = vector.broadcast %cst_40 : f32 to vector<1x1xf32>
    %123 = arith.addf %121, %122 : vector<1x1xf32>
    %124 = vector.broadcast %123 : vector<1x1xf32> to vector<1x256xf32>
    %125 = arith.divf %117, %124 : vector<1x256xf32>
    %c0_41 = arith.constant 0 : index
    %c0_42 = arith.constant 0 : index
    %126 = vector.load %arg8[%c0_41, %c0_42] : memref<1x256xf32, #tpu.memory_space<vmem>>, vector<1x256xf32>
    %127 = vector.broadcast %125 : vector<1x256xf32> to vector<32x256xf32>
    %128 = arith.mulf %113, %127 : vector<32x256xf32>
    %129 = vector.broadcast %126 : vector<1x256xf32> to vector<32x256xf32>
    %130 = arith.mulf %129, %128 : vector<32x256xf32>
    %c0_43 = arith.constant 0 : index
    %c0_44 = arith.constant 0 : index
    %131 = vector.load %arg9[%c0_43, %c0_44] : memref<1x256xf32, #tpu.memory_space<vmem>>, vector<1x256xf32>
    %132 = vector.broadcast %131 : vector<1x256xf32> to vector<32x256xf32>
    %133 = arith.addf %130, %132 : vector<32x256xf32>
    %134 = arith.addf %133, %113 : vector<32x256xf32>
    %c0_45 = arith.constant 0 : index
    %c0_46 = arith.constant 0 : index
    %135 = vector.load %arg10[%c0_45, %c0_46] : memref<256x64xf32, #tpu.memory_space<vmem>>, vector<256x64xf32>
    %cst_47 = arith.constant dense<0.000000e+00> : vector<32x64xf32>
    %136 = tpu.matmul %134, %135, %cst_47 {dimension_numbers = #tpu.dot_dimension_numbers<[1], [0], [0], [1], [0, 0, 1, 1], [], []>} : vector<32x256xf32>, vector<256x64xf32>, vector<32x64xf32> -> vector<32x64xf32>
    %c0_48 = arith.constant 0 : index
    %c0_49 = arith.constant 0 : index
    %137 = vector.load %arg11[%c0_48, %c0_49] : memref<1x64xf32, #tpu.memory_space<vmem>>, vector<1x64xf32>
    %138 = vector.broadcast %137 : vector<1x64xf32> to vector<32x64xf32>
    %139 = arith.addf %136, %138 : vector<32x64xf32>
    %140 = arith.addf %139, %1 : vector<32x64xf32>
    %c0_50 = arith.constant 0 : index
    %c0_51 = arith.constant 0 : index
    %c0_52 = arith.constant 0 : index
    %141 = vector.load %arg12[%c0_50, %c0_51, %c0_52] : memref<1x32x64xf32, #tpu.memory_space<vmem>>, vector<1x32x64xf32>
    %142 = vector.shape_cast %141 : vector<1x32x64xf32> to vector<32x64xf32>
    %143 = vector.shape_cast %140 : vector<32x64xf32> to vector<1x32x64xf32>
    tpu.vector_store %arg12[%c0_50, %c0_51, %c0_52], %143 {strides = array<i32>} : memref<1x32x64xf32, #tpu.memory_space<vmem>>, vector<1x32x64xf32>,
    return
  }
  func.func @transform_0(%arg0: i32) -> (i32, i32, i32) {
    %c0_i32 = arith.constant 0 : i32
    %c0_i32_0 = arith.constant 0 : i32
    %c0_i32_1 = arith.constant 0 : i32
    return %arg0, %c0_i32, %c0_i32_0 : i32, i32, i32
  }
  func.func @transform_1(%arg0: i32) -> (i32, i32) {
    %c0_i32 = arith.constant 0 : i32
    %c0_i32_0 = arith.constant 0 : i32
    %c0_i32_1 = arith.constant 0 : i32
    return %c0_i32, %c0_i32_0 : i32, i32
  }
  func.func @transform_2(%arg0: i32) -> (i32, i32) {
    %c0_i32 = arith.constant 0 : i32
    %c0_i32_0 = arith.constant 0 : i32
    %c0_i32_1 = arith.constant 0 : i32
    return %c0_i32, %c0_i32_0 : i32, i32
  }
  func.func @transform_3(%arg0: i32) -> (i32, i32) {
    %c0_i32 = arith.constant 0 : i32
    %c0_i32_0 = arith.constant 0 : i32
    %c0_i32_1 = arith.constant 0 : i32
    return %c0_i32, %c0_i32_0 : i32, i32
  }
  func.func @transform_4(%arg0: i32) -> (i32, i32) {
    %c0_i32 = arith.constant 0 : i32
    %c0_i32_0 = arith.constant 0 : i32
    %c0_i32_1 = arith.constant 0 : i32
    return %c0_i32, %c0_i32_0 : i32, i32
  }
  func.func @transform_5(%arg0: i32) -> (i32, i32) {
    %c0_i32 = arith.constant 0 : i32
    %c0_i32_0 = arith.constant 0 : i32
    %c0_i32_1 = arith.constant 0 : i32
    return %c0_i32, %c0_i32_0 : i32, i32
  }
  func.func @transform_6(%arg0: i32) -> (i32, i32) {
    %c0_i32 = arith.constant 0 : i32
    %c0_i32_0 = arith.constant 0 : i32
    %c0_i32_1 = arith.constant 0 : i32
    return %c0_i32, %c0_i32_0 : i32, i32
  }
  func.func @transform_7(%arg0: i32) -> (i32, i32) {
    %c0_i32 = arith.constant 0 : i32
    %c0_i32_0 = arith.constant 0 : i32
    %c0_i32_1 = arith.constant 0 : i32
    return %c0_i32, %c0_i32_0 : i32, i32
  }
  func.func @transform_8(%arg0: i32) -> (i32, i32) {
    %c0_i32 = arith.constant 0 : i32
    %c0_i32_0 = arith.constant 0 : i32
    %c0_i32_1 = arith.constant 0 : i32
    return %c0_i32, %c0_i32_0 : i32, i32
  }
  func.func @transform_9(%arg0: i32) -> (i32, i32) {
    %c0_i32 = arith.constant 0 : i32
    %c0_i32_0 = arith.constant 0 : i32
    %c0_i32_1 = arith.constant 0 : i32
    return %c0_i32, %c0_i32_0 : i32, i32
  }
  func.func @transform_10(%arg0: i32) -> (i32, i32) {
    %c0_i32 = arith.constant 0 : i32
    %c0_i32_0 = arith.constant 0 : i32
    %c0_i32_1 = arith.constant 0 : i32
    return %c0_i32, %c0_i32_0 : i32, i32
  }
  func.func @transform_11(%arg0: i32) -> (i32, i32, i32) {
    %c0_i32 = arith.constant 0 : i32
    %c0_i32_0 = arith.constant 0 : i32
    %c0_i32_1 = arith.constant 0 : i32
    return %arg0, %c0_i32, %c0_i32_0 : i32, i32, i32
  }
}

module attributes {stable_mosaic.version = 11 : i64} {
  func.func @kernel(%arg0: i32, %arg1: memref<1x16x128xf32, #tpu.memory_space<vmem>>, %arg2: memref<1x128xf32, #tpu.memory_space<vmem>>, %arg3: memref<1x128xf32, #tpu.memory_space<vmem>>, %arg4: memref<128x96xf32, #tpu.memory_space<vmem>>, %arg5: memref<1x96xf32, #tpu.memory_space<vmem>>, %arg6: memref<1x16x96xf32, #tpu.memory_space<vmem>>) attributes {dimension_semantics = [#tpu.dimension_semantics<parallel>], iteration_bounds = array<i64: 2>, scalar_prefetch = 0 : i64, scratch_operands = 0 : i64, tpu.core_type = #tpu.core_type<tc>, window_params = [{transform_indices = @transform_0, window_bounds = array<i64: 1, 16, 128>}, {pipeline_mode = #tpu.pipeline_mode<synchronous>, transform_indices = @transform_1, window_bounds = array<i64: 1, 128>}, {pipeline_mode = #tpu.pipeline_mode<synchronous>, transform_indices = @transform_2, window_bounds = array<i64: 1, 128>}, {pipeline_mode = #tpu.pipeline_mode<synchronous>, transform_indices = @transform_3, window_bounds = array<i64: 128, 96>}, {pipeline_mode = #tpu.pipeline_mode<synchronous>, transform_indices = @transform_4, window_bounds = array<i64: 1, 96>}, {transform_indices = @transform_5, window_bounds = array<i64: 1, 16, 96>}]} {
    %c0 = arith.constant 0 : index
    %c0_0 = arith.constant 0 : index
    %c0_1 = arith.constant 0 : index
    %0 = vector.load %arg1[%c0, %c0_0, %c0_1] : memref<1x16x128xf32, #tpu.memory_space<vmem>>, vector<1x16x128xf32>
    %1 = vector.shape_cast %0 : vector<1x16x128xf32> to vector<16x128xf32>
    %c0_2 = arith.constant 0 : index
    %c0_3 = arith.constant 0 : index
    %2 = vector.load %arg2[%c0_2, %c0_3] : memref<1x128xf32, #tpu.memory_space<vmem>>, vector<1x128xf32>
    %c0_4 = arith.constant 0 : index
    %c0_5 = arith.constant 0 : index
    %3 = vector.load %arg3[%c0_4, %c0_5] : memref<1x128xf32, #tpu.memory_space<vmem>>, vector<1x128xf32>
    %4 = tpu.iota {dimensions = array<i32: 1>} : vector<16x128xi32>
    %c64_i32 = arith.constant 64 : i32
    %5 = vector.broadcast %c64_i32 : i32 to vector<16x128xi32>
    %6 = arith.cmpi slt, %4, %5 : vector<16x128xi32>
    %cst = arith.constant 0.000000e+00 : f32
    %7 = vector.broadcast %cst : f32 to vector<16x128xf32>
    %8 = arith.select %6, %1, %7 : vector<16x128xi1>, vector<16x128xf32>
    %cst_6 = arith.constant dense<0.000000e+00> : vector<16xf32>
    %9 = vector.multi_reduction <add>, %8, %cst_6 [1] : vector<16x128xf32> to vector<16xf32>
    %10 = vector.shape_cast %9 : vector<16xf32> to vector<16x1xf32>
    %cst_7 = arith.constant 1.562500e-02 : f32
    %11 = vector.broadcast %cst_7 : f32 to vector<16x1xf32>
    %12 = arith.mulf %10, %11 : vector<16x1xf32>
    %cst_8 = arith.constant 0.000000e+00 : f32
    %13 = vector.broadcast %cst_8 : f32 to vector<16x128xf32>
    %14 = arith.select %6, %13, %1 : vector<16x128xi1>, vector<16x128xf32>
    %cst_9 = arith.constant dense<0.000000e+00> : vector<16xf32>
    %15 = vector.multi_reduction <add>, %14, %cst_9 [1] : vector<16x128xf32> to vector<16xf32>
    %16 = vector.shape_cast %15 : vector<16xf32> to vector<16x1xf32>
    %cst_10 = arith.constant 1.562500e-02 : f32
    %17 = vector.broadcast %cst_10 : f32 to vector<16x1xf32>
    %18 = arith.mulf %16, %17 : vector<16x1xf32>
    %19 = vector.shape_cast %12 : vector<16x1xf32> to vector<16x1xf32>
    %20 = vector.broadcast %19 : vector<16x1xf32> to vector<16x128xf32>
    %21 = vector.shape_cast %18 : vector<16x1xf32> to vector<16x1xf32>
    %22 = vector.broadcast %21 : vector<16x1xf32> to vector<16x128xf32>
    %23 = arith.select %6, %20, %22 : vector<16x128xi1>, vector<16x128xf32>
    %24 = arith.subf %1, %23 : vector<16x128xf32>
    %25 = arith.mulf %24, %24 : vector<16x128xf32>
    %cst_11 = arith.constant 0.000000e+00 : f32
    %26 = vector.broadcast %cst_11 : f32 to vector<16x128xf32>
    %27 = arith.select %6, %25, %26 : vector<16x128xi1>, vector<16x128xf32>
    %cst_12 = arith.constant dense<0.000000e+00> : vector<16xf32>
    %28 = vector.multi_reduction <add>, %27, %cst_12 [1] : vector<16x128xf32> to vector<16xf32>
    %29 = vector.shape_cast %28 : vector<16xf32> to vector<16x1xf32>
    %cst_13 = arith.constant 1.562500e-02 : f32
    %30 = vector.broadcast %cst_13 : f32 to vector<16x1xf32>
    %31 = arith.mulf %29, %30 : vector<16x1xf32>
    %32 = arith.mulf %24, %24 : vector<16x128xf32>
    %cst_14 = arith.constant 0.000000e+00 : f32
    %33 = vector.broadcast %cst_14 : f32 to vector<16x128xf32>
    %34 = arith.select %6, %33, %32 : vector<16x128xi1>, vector<16x128xf32>
    %cst_15 = arith.constant dense<0.000000e+00> : vector<16xf32>
    %35 = vector.multi_reduction <add>, %34, %cst_15 [1] : vector<16x128xf32> to vector<16xf32>
    %36 = vector.shape_cast %35 : vector<16xf32> to vector<16x1xf32>
    %cst_16 = arith.constant 1.562500e-02 : f32
    %37 = vector.broadcast %cst_16 : f32 to vector<16x1xf32>
    %38 = arith.mulf %36, %37 : vector<16x1xf32>
    %39 = vector.shape_cast %31 : vector<16x1xf32> to vector<16x1xf32>
    %40 = vector.broadcast %39 : vector<16x1xf32> to vector<16x128xf32>
    %41 = vector.shape_cast %38 : vector<16x1xf32> to vector<16x1xf32>
    %42 = vector.broadcast %41 : vector<16x1xf32> to vector<16x128xf32>
    %43 = arith.select %6, %40, %42 : vector<16x128xi1>, vector<16x128xf32>
    %cst_17 = arith.constant 9.99999997E-7 : f32
    %44 = vector.broadcast %cst_17 : f32 to vector<16x128xf32>
    %45 = arith.addf %43, %44 : vector<16x128xf32>
    %46 = math.rsqrt %45 : vector<16x128xf32>
    %47 = arith.mulf %24, %46 : vector<16x128xf32>
    %48 = vector.broadcast %2 : vector<1x128xf32> to vector<16x128xf32>
    %49 = arith.mulf %47, %48 : vector<16x128xf32>
    %50 = vector.broadcast %3 : vector<1x128xf32> to vector<16x128xf32>
    %51 = arith.addf %49, %50 : vector<16x128xf32>
    %c0_18 = arith.constant 0 : index
    %c0_19 = arith.constant 0 : index
    %52 = vector.load %arg4[%c0_18, %c0_19] : memref<128x96xf32, #tpu.memory_space<vmem>>, vector<128x96xf32>
    %cst_20 = arith.constant dense<0.000000e+00> : vector<16x96xf32>
    %53 = tpu.matmul %51, %52, %cst_20 {dimension_numbers = #tpu.dot_dimension_numbers<[1], [0], [0], [1], [0, 0, 1, 1], [], []>} : vector<16x128xf32>, vector<128x96xf32>, vector<16x96xf32> -> vector<16x96xf32>
    %c0_21 = arith.constant 0 : index
    %c0_22 = arith.constant 0 : index
    %54 = vector.load %arg5[%c0_21, %c0_22] : memref<1x96xf32, #tpu.memory_space<vmem>>, vector<1x96xf32>
    %55 = vector.broadcast %54 : vector<1x96xf32> to vector<16x96xf32>
    %56 = arith.addf %53, %55 : vector<16x96xf32>
    %c0_23 = arith.constant 0 : index
    %c0_24 = arith.constant 0 : index
    %c0_25 = arith.constant 0 : index
    %57 = vector.load %arg6[%c0_23, %c0_24, %c0_25] : memref<1x16x96xf32, #tpu.memory_space<vmem>>, vector<1x16x96xf32>
    %58 = vector.shape_cast %57 : vector<1x16x96xf32> to vector<16x96xf32>
    %59 = vector.shape_cast %56 : vector<16x96xf32> to vector<1x16x96xf32>
    tpu.vector_store %arg6[%c0_23, %c0_24, %c0_25], %59 {strides = array<i32>} : memref<1x16x96xf32, #tpu.memory_space<vmem>>, vector<1x16x96xf32>,
    return
  }
  func.func @transform_0(%arg0: i32) -> (i32, i32, i32) {
    %c0_i32 = arith.constant 0 : i32
    %c0_i32_0 = arith.constant 0 : i32
    %c0_i32_1 = arith.constant 0 : i32
    return %arg0, %c0_i32, %c0_i32_0 : i32, i32, i32
  }
  func.func @transform_1(%arg0: i32) -> (i32, i32) {
    %c0_i32 = arith.constant 0 : i32
    %c0_i32_0 = arith.constant 0 : i32
    %c0_i32_1 = arith.constant 0 : i32
    return %c0_i32, %c0_i32_0 : i32, i32
  }
  func.func @transform_2(%arg0: i32) -> (i32, i32) {
    %c0_i32 = arith.constant 0 : i32
    %c0_i32_0 = arith.constant 0 : i32
    %c0_i32_1 = arith.constant 0 : i32
    return %c0_i32, %c0_i32_0 : i32, i32
  }
  func.func @transform_3(%arg0: i32) -> (i32, i32) {
    %c0_i32 = arith.constant 0 : i32
    %c0_i32_0 = arith.constant 0 : i32
    %c0_i32_1 = arith.constant 0 : i32
    return %c0_i32, %c0_i32_0 : i32, i32
  }
  func.func @transform_4(%arg0: i32) -> (i32, i32) {
    %c0_i32 = arith.constant 0 : i32
    %c0_i32_0 = arith.constant 0 : i32
    %c0_i32_1 = arith.constant 0 : i32
    return %c0_i32, %c0_i32_0 : i32, i32
  }
  func.func @transform_5(%arg0: i32) -> (i32, i32, i32) {
    %c0_i32 = arith.constant 0 : i32
    %c0_i32_0 = arith.constant 0 : i32
    %c0_i32_1 = arith.constant 0 : i32
    return %arg0, %c0_i32, %c0_i32_0 : i32, i32, i32
  }
}

module attributes {stable_mosaic.version = 11 : i64} {
  func.func @kernel(%arg0: i32, %arg1: memref<1x16x96xf32, #tpu.memory_space<vmem>>, %arg2: memref<7x96xf32, #tpu.memory_space<vmem>>, %arg3: memref<1x96xf32, #tpu.memory_space<vmem>>, %arg4: memref<1x96xf32, #tpu.memory_space<vmem>>, %arg5: memref<1x96xf32, #tpu.memory_space<vmem>>, %arg6: memref<96x384xf32, #tpu.memory_space<vmem>>, %arg7: memref<1x384xf32, #tpu.memory_space<vmem>>, %arg8: memref<1x384xf32, #tpu.memory_space<vmem>>, %arg9: memref<1x384xf32, #tpu.memory_space<vmem>>, %arg10: memref<384x96xf32, #tpu.memory_space<vmem>>, %arg11: memref<1x96xf32, #tpu.memory_space<vmem>>, %arg12: memref<1x16x96xf32, #tpu.memory_space<vmem>>) attributes {dimension_semantics = [#tpu.dimension_semantics<parallel>], iteration_bounds = array<i64: 2>, scalar_prefetch = 0 : i64, scratch_operands = 0 : i64, tpu.core_type = #tpu.core_type<tc>, window_params = [{transform_indices = @transform_0, window_bounds = array<i64: 1, 16, 96>}, {pipeline_mode = #tpu.pipeline_mode<synchronous>, transform_indices = @transform_1, window_bounds = array<i64: 7, 96>}, {pipeline_mode = #tpu.pipeline_mode<synchronous>, transform_indices = @transform_2, window_bounds = array<i64: 1, 96>}, {pipeline_mode = #tpu.pipeline_mode<synchronous>, transform_indices = @transform_3, window_bounds = array<i64: 1, 96>}, {pipeline_mode = #tpu.pipeline_mode<synchronous>, transform_indices = @transform_4, window_bounds = array<i64: 1, 96>}, {pipeline_mode = #tpu.pipeline_mode<synchronous>, transform_indices = @transform_5, window_bounds = array<i64: 96, 384>}, {pipeline_mode = #tpu.pipeline_mode<synchronous>, transform_indices = @transform_6, window_bounds = array<i64: 1, 384>}, {pipeline_mode = #tpu.pipeline_mode<synchronous>, transform_indices = @transform_7, window_bounds = array<i64: 1, 384>}, {pipeline_mode = #tpu.pipeline_mode<synchronous>, transform_indices = @transform_8, window_bounds = array<i64: 1, 384>}, {pipeline_mode = #tpu.pipeline_mode<synchronous>, transform_indices = @transform_9, window_bounds = array<i64: 384, 96>}, {pipeline_mode = #tpu.pipeline_mode<synchronous>, transform_indices = @transform_10, window_bounds = array<i64: 1, 96>}, {transform_indices = @transform_11, window_bounds = array<i64: 1, 16, 96>}]} {
    %c0 = arith.constant 0 : index
    %c0_0 = arith.constant 0 : index
    %c0_1 = arith.constant 0 : index
    %0 = vector.load %arg1[%c0, %c0_0, %c0_1] : memref<1x16x96xf32, #tpu.memory_space<vmem>>, vector<1x16x96xf32>
    %1 = vector.shape_cast %0 : vector<1x16x96xf32> to vector<16x96xf32>
    %cst = arith.constant 0.000000e+00 : f32
    %2 = vector.broadcast %cst : f32 to vector<8x96xf32>
    %3 = tpu.concatenate %2, %1, %2 in 0 : vector<8x96xf32>, vector<16x96xf32>, vector<8x96xf32> -> vector<32x96xf32>
    %c0_2 = arith.constant 0 : index
    %c0_3 = arith.constant 0 : index
    %4 = vector.load %arg2[%c0_2, %c0_3] : memref<7x96xf32, #tpu.memory_space<vmem>>, vector<7x96xf32>
    %cst_4 = arith.constant 0.000000e+00 : f32
    %5 = vector.broadcast %cst_4 : f32 to vector<16x96xf32>
    %6 = vector.extract_strided_slice %3 {offsets = [5, 0], sizes = [16, 96], strides = [1, 1]} : vector<32x96xf32> to vector<16x96xf32>
    %7 = vector.extract_strided_slice %4 {offsets = [0, 0], sizes = [1, 96], strides = [1, 1]} : vector<7x96xf32> to vector<1x96xf32>
    %8 = vector.broadcast %7 : vector<1x96xf32> to vector<16x96xf32>
    %9 = arith.mulf %6, %8 : vector<16x96xf32>
    %10 = arith.addf %5, %9 : vector<16x96xf32>
    %11 = vector.extract_strided_slice %3 {offsets = [6, 0], sizes = [16, 96], strides = [1, 1]} : vector<32x96xf32> to vector<16x96xf32>
    %12 = vector.extract_strided_slice %4 {offsets = [1, 0], sizes = [1, 96], strides = [1, 1]} : vector<7x96xf32> to vector<1x96xf32>
    %13 = vector.broadcast %12 : vector<1x96xf32> to vector<16x96xf32>
    %14 = arith.mulf %11, %13 : vector<16x96xf32>
    %15 = arith.addf %10, %14 : vector<16x96xf32>
    %16 = vector.extract_strided_slice %3 {offsets = [7, 0], sizes = [16, 96], strides = [1, 1]} : vector<32x96xf32> to vector<16x96xf32>
    %17 = vector.extract_strided_slice %4 {offsets = [2, 0], sizes = [1, 96], strides = [1, 1]} : vector<7x96xf32> to vector<1x96xf32>
    %18 = vector.broadcast %17 : vector<1x96xf32> to vector<16x96xf32>
    %19 = arith.mulf %16, %18 : vector<16x96xf32>
    %20 = arith.addf %15, %19 : vector<16x96xf32>
    %21 = vector.extract_strided_slice %3 {offsets = [8, 0], sizes = [16, 96], strides = [1, 1]} : vector<32x96xf32> to vector<16x96xf32>
    %22 = vector.extract_strided_slice %4 {offsets = [3, 0], sizes = [1, 96], strides = [1, 1]} : vector<7x96xf32> to vector<1x96xf32>
    %23 = vector.broadcast %22 : vector<1x96xf32> to vector<16x96xf32>
    %24 = arith.mulf %21, %23 : vector<16x96xf32>
    %25 = arith.addf %20, %24 : vector<16x96xf32>
    %26 = vector.extract_strided_slice %3 {offsets = [9, 0], sizes = [16, 96], strides = [1, 1]} : vector<32x96xf32> to vector<16x96xf32>
    %27 = vector.extract_strided_slice %4 {offsets = [4, 0], sizes = [1, 96], strides = [1, 1]} : vector<7x96xf32> to vector<1x96xf32>
    %28 = vector.broadcast %27 : vector<1x96xf32> to vector<16x96xf32>
    %29 = arith.mulf %26, %28 : vector<16x96xf32>
    %30 = arith.addf %25, %29 : vector<16x96xf32>
    %31 = vector.extract_strided_slice %3 {offsets = [10, 0], sizes = [16, 96], strides = [1, 1]} : vector<32x96xf32> to vector<16x96xf32>
    %32 = vector.extract_strided_slice %4 {offsets = [5, 0], sizes = [1, 96], strides = [1, 1]} : vector<7x96xf32> to vector<1x96xf32>
    %33 = vector.broadcast %32 : vector<1x96xf32> to vector<16x96xf32>
    %34 = arith.mulf %31, %33 : vector<16x96xf32>
    %35 = arith.addf %30, %34 : vector<16x96xf32>
    %36 = vector.extract_strided_slice %3 {offsets = [11, 0], sizes = [16, 96], strides = [1, 1]} : vector<32x96xf32> to vector<16x96xf32>
    %37 = vector.extract_strided_slice %4 {offsets = [6, 0], sizes = [1, 96], strides = [1, 1]} : vector<7x96xf32> to vector<1x96xf32>
    %38 = vector.broadcast %37 : vector<1x96xf32> to vector<16x96xf32>
    %39 = arith.mulf %36, %38 : vector<16x96xf32>
    %40 = arith.addf %35, %39 : vector<16x96xf32>
    %c0_5 = arith.constant 0 : index
    %c0_6 = arith.constant 0 : index
    %41 = vector.load %arg3[%c0_5, %c0_6] : memref<1x96xf32, #tpu.memory_space<vmem>>, vector<1x96xf32>
    %42 = vector.broadcast %41 : vector<1x96xf32> to vector<16x96xf32>
    %43 = arith.addf %40, %42 : vector<16x96xf32>
    %cst_7 = arith.constant dense<0.000000e+00> : vector<16xf32>
    %44 = vector.multi_reduction <add>, %43, %cst_7 [1] : vector<16x96xf32> to vector<16xf32>
    %45 = vector.shape_cast %44 : vector<16xf32> to vector<16x1xf32>
    %cst_8 = arith.constant 9.600000e+01 : f32
    %46 = vector.broadcast %cst_8 : f32 to vector<16x1xf32>
    %47 = arith.divf %45, %46 : vector<16x1xf32>
    %48 = vector.broadcast %47 : vector<16x1xf32> to vector<16x96xf32>
    %49 = arith.subf %43, %48 : vector<16x96xf32>
    %50 = arith.mulf %49, %49 : vector<16x96xf32>
    %cst_9 = arith.constant dense<0.000000e+00> : vector<16xf32>
    %51 = vector.multi_reduction <add>, %50, %cst_9 [1] : vector<16x96xf32> to vector<16xf32>
    %52 = vector.shape_cast %51 : vector<16xf32> to vector<16x1xf32>
    %cst_10 = arith.constant 9.600000e+01 : f32
    %53 = vector.broadcast %cst_10 : f32 to vector<16x1xf32>
    %54 = arith.divf %52, %53 : vector<16x1xf32>
    %55 = vector.broadcast %47 : vector<16x1xf32> to vector<16x96xf32>
    %56 = arith.subf %43, %55 : vector<16x96xf32>
    %cst_11 = arith.constant 9.99999997E-7 : f32
    %57 = vector.broadcast %cst_11 : f32 to vector<16x1xf32>
    %58 = arith.addf %54, %57 : vector<16x1xf32>
    %59 = math.rsqrt %58 : vector<16x1xf32>
    %60 = vector.broadcast %59 : vector<16x1xf32> to vector<16x96xf32>
    %61 = arith.mulf %56, %60 : vector<16x96xf32>
    %c0_12 = arith.constant 0 : index
    %c0_13 = arith.constant 0 : index
    %62 = vector.load %arg4[%c0_12, %c0_13] : memref<1x96xf32, #tpu.memory_space<vmem>>, vector<1x96xf32>
    %63 = vector.broadcast %62 : vector<1x96xf32> to vector<16x96xf32>
    %64 = arith.mulf %61, %63 : vector<16x96xf32>
    %c0_14 = arith.constant 0 : index
    %c0_15 = arith.constant 0 : index
    %65 = vector.load %arg5[%c0_14, %c0_15] : memref<1x96xf32, #tpu.memory_space<vmem>>, vector<1x96xf32>
    %66 = vector.broadcast %65 : vector<1x96xf32> to vector<16x96xf32>
    %67 = arith.addf %64, %66 : vector<16x96xf32>
    %c0_16 = arith.constant 0 : index
    %c0_17 = arith.constant 0 : index
    %68 = vector.load %arg6[%c0_16, %c0_17] : memref<96x384xf32, #tpu.memory_space<vmem>>, vector<96x384xf32>
    %cst_18 = arith.constant dense<0.000000e+00> : vector<16x384xf32>
    %69 = tpu.matmul %67, %68, %cst_18 {dimension_numbers = #tpu.dot_dimension_numbers<[1], [0], [0], [1], [0, 0, 1, 1], [], []>} : vector<16x96xf32>, vector<96x384xf32>, vector<16x384xf32> -> vector<16x384xf32>
    %c0_19 = arith.constant 0 : index
    %c0_20 = arith.constant 0 : index
    %70 = vector.load %arg7[%c0_19, %c0_20] : memref<1x384xf32, #tpu.memory_space<vmem>>, vector<1x384xf32>
    %71 = vector.broadcast %70 : vector<1x384xf32> to vector<16x384xf32>
    %72 = arith.addf %69, %71 : vector<16x384xf32>
    %cst_21 = arith.constant 0.707106769 : f32
    %73 = vector.broadcast %cst_21 : f32 to vector<16x384xf32>
    %74 = arith.mulf %72, %73 : vector<16x384xf32>
    %75 = math.absf %74 : vector<16x384xf32>
    %cst_22 = arith.constant 0.000000e+00 : f32
    %76 = vector.broadcast %cst_22 : f32 to vector<16x384xf32>
    %77 = arith.cmpf oge, %74, %76 : vector<16x384xf32>
    %cst_23 = arith.constant 1.000000e+00 : f32
    %cst_24 = arith.constant -1.000000e+00 : f32
    %78 = vector.broadcast %cst_23 : f32 to vector<16x384xf32>
    %79 = vector.broadcast %cst_24 : f32 to vector<16x384xf32>
    %80 = arith.select %77, %78, %79 : vector<16x384xi1>, vector<16x384xf32>
    %cst_25 = arith.constant 0.327591091 : f32
    %81 = vector.broadcast %cst_25 : f32 to vector<16x384xf32>
    %82 = arith.mulf %81, %75 : vector<16x384xf32>
    %cst_26 = arith.constant 1.000000e+00 : f32
    %83 = vector.broadcast %cst_26 : f32 to vector<16x384xf32>
    %84 = arith.addf %83, %82 : vector<16x384xf32>
    %cst_27 = arith.constant 1.000000e+00 : f32
    %85 = vector.broadcast %cst_27 : f32 to vector<16x384xf32>
    %86 = arith.divf %85, %84 : vector<16x384xf32>
    %cst_28 = arith.constant 1.06140542 : f32
    %87 = vector.broadcast %cst_28 : f32 to vector<16x384xf32>
    %88 = arith.mulf %87, %86 : vector<16x384xf32>
    %cst_29 = arith.constant 1.45315206 : f32
    %89 = vector.broadcast %cst_29 : f32 to vector<16x384xf32>
    %90 = arith.subf %88, %89 : vector<16x384xf32>
    %91 = arith.mulf %90, %86 : vector<16x384xf32>
    %cst_30 = arith.constant 1.42141378 : f32
    %92 = vector.broadcast %cst_30 : f32 to vector<16x384xf32>
    %93 = arith.addf %91, %92 : vector<16x384xf32>
    %94 = arith.mulf %93, %86 : vector<16x384xf32>
    %cst_31 = arith.constant 0.284496725 : f32
    %95 = vector.broadcast %cst_31 : f32 to vector<16x384xf32>
    %96 = arith.subf %94, %95 : vector<16x384xf32>
    %97 = arith.mulf %96, %86 : vector<16x384xf32>
    %cst_32 = arith.constant 0.254829586 : f32
    %98 = vector.broadcast %cst_32 : f32 to vector<16x384xf32>
    %99 = arith.addf %97, %98 : vector<16x384xf32>
    %100 = arith.mulf %99, %86 : vector<16x384xf32>
    %cst_33 = arith.constant 0.000000e+00 : f32
    %101 = vector.broadcast %cst_33 : f32 to vector<16x384xf32>
    %102 = arith.subf %101, %75 : vector<16x384xf32>
    %103 = arith.mulf %102, %75 : vector<16x384xf32>
    %104 = math.exp %103 : vector<16x384xf32>
    %105 = arith.mulf %100, %104 : vector<16x384xf32>
    %cst_34 = arith.constant 1.000000e+00 : f32
    %106 = vector.broadcast %cst_34 : f32 to vector<16x384xf32>
    %107 = arith.subf %106, %105 : vector<16x384xf32>
    %108 = arith.mulf %80, %107 : vector<16x384xf32>
    %cst_35 = arith.constant 5.000000e-01 : f32
    %109 = vector.broadcast %cst_35 : f32 to vector<16x384xf32>
    %110 = arith.mulf %109, %72 : vector<16x384xf32>
    %cst_36 = arith.constant 1.000000e+00 : f32
    %111 = vector.broadcast %cst_36 : f32 to vector<16x384xf32>
    %112 = arith.addf %111, %108 : vector<16x384xf32>
    %113 = arith.mulf %110, %112 : vector<16x384xf32>
    %114 = arith.mulf %113, %113 : vector<16x384xf32>
    %cst_37 = arith.constant dense<0.000000e+00> : vector<384xf32>
    %115 = vector.multi_reduction <add>, %114, %cst_37 [0] : vector<16x384xf32> to vector<384xf32>
    %116 = vector.shape_cast %115 : vector<384xf32> to vector<1x384xf32>
    %117 = math.sqrt %116 : vector<1x384xf32>
    %cst_38 = arith.constant dense<0.000000e+00> : vector<1xf32>
    %118 = vector.multi_reduction <add>, %117, %cst_38 [1] : vector<1x384xf32> to vector<1xf32>
    %119 = vector.shape_cast %118 : vector<1xf32> to vector<1x1xf32>
    %cst_39 = arith.constant 3.840000e+02 : f32
    %120 = vector.broadcast %cst_39 : f32 to vector<1x1xf32>
    %121 = arith.divf %119, %120 : vector<1x1xf32>
    %cst_40 = arith.constant 9.99999997E-7 : f32
    %122 = vector.broadcast %cst_40 : f32 to vector<1x1xf32>
    %123 = arith.addf %121, %122 : vector<1x1xf32>
    %124 = vector.broadcast %123 : vector<1x1xf32> to vector<1x384xf32>
    %125 = arith.divf %117, %124 : vector<1x384xf32>
    %c0_41 = arith.constant 0 : index
    %c0_42 = arith.constant 0 : index
    %126 = vector.load %arg8[%c0_41, %c0_42] : memref<1x384xf32, #tpu.memory_space<vmem>>, vector<1x384xf32>
    %127 = vector.broadcast %125 : vector<1x384xf32> to vector<16x384xf32>
    %128 = arith.mulf %113, %127 : vector<16x384xf32>
    %129 = vector.broadcast %126 : vector<1x384xf32> to vector<16x384xf32>
    %130 = arith.mulf %129, %128 : vector<16x384xf32>
    %c0_43 = arith.constant 0 : index
    %c0_44 = arith.constant 0 : index
    %131 = vector.load %arg9[%c0_43, %c0_44] : memref<1x384xf32, #tpu.memory_space<vmem>>, vector<1x384xf32>
    %132 = vector.broadcast %131 : vector<1x384xf32> to vector<16x384xf32>
    %133 = arith.addf %130, %132 : vector<16x384xf32>
    %134 = arith.addf %133, %113 : vector<16x384xf32>
    %c0_45 = arith.constant 0 : index
    %c0_46 = arith.constant 0 : index
    %135 = vector.load %arg10[%c0_45, %c0_46] : memref<384x96xf32, #tpu.memory_space<vmem>>, vector<384x96xf32>
    %cst_47 = arith.constant dense<0.000000e+00> : vector<16x96xf32>
    %136 = tpu.matmul %134, %135, %cst_47 {dimension_numbers = #tpu.dot_dimension_numbers<[1], [0], [0], [1], [0, 0, 1, 1], [], []>} : vector<16x384xf32>, vector<384x96xf32>, vector<16x96xf32> -> vector<16x96xf32>
    %c0_48 = arith.constant 0 : index
    %c0_49 = arith.constant 0 : index
    %137 = vector.load %arg11[%c0_48, %c0_49] : memref<1x96xf32, #tpu.memory_space<vmem>>, vector<1x96xf32>
    %138 = vector.broadcast %137 : vector<1x96xf32> to vector<16x96xf32>
    %139 = arith.addf %136, %138 : vector<16x96xf32>
    %140 = arith.addf %139, %1 : vector<16x96xf32>
    %c0_50 = arith.constant 0 : index
    %c0_51 = arith.constant 0 : index
    %c0_52 = arith.constant 0 : index
    %141 = vector.load %arg12[%c0_50, %c0_51, %c0_52] : memref<1x16x96xf32, #tpu.memory_space<vmem>>, vector<1x16x96xf32>
    %142 = vector.shape_cast %141 : vector<1x16x96xf32> to vector<16x96xf32>
    %143 = vector.shape_cast %140 : vector<16x96xf32> to vector<1x16x96xf32>
    tpu.vector_store %arg12[%c0_50, %c0_51, %c0_52], %143 {strides = array<i32>} : memref<1x16x96xf32, #tpu.memory_space<vmem>>, vector<1x16x96xf32>,
    return
  }
  func.func @transform_0(%arg0: i32) -> (i32, i32, i32) {
    %c0_i32 = arith.constant 0 : i32
    %c0_i32_0 = arith.constant 0 : i32
    %c0_i32_1 = arith.constant 0 : i32
    return %arg0, %c0_i32, %c0_i32_0 : i32, i32, i32
  }
  func.func @transform_1(%arg0: i32) -> (i32, i32) {
    %c0_i32 = arith.constant 0 : i32
    %c0_i32_0 = arith.constant 0 : i32
    %c0_i32_1 = arith.constant 0 : i32
    return %c0_i32, %c0_i32_0 : i32, i32
  }
  func.func @transform_2(%arg0: i32) -> (i32, i32) {
    %c0_i32 = arith.constant 0 : i32
    %c0_i32_0 = arith.constant 0 : i32
    %c0_i32_1 = arith.constant 0 : i32
    return %c0_i32, %c0_i32_0 : i32, i32
  }
  func.func @transform_3(%arg0: i32) -> (i32, i32) {
    %c0_i32 = arith.constant 0 : i32
    %c0_i32_0 = arith.constant 0 : i32
    %c0_i32_1 = arith.constant 0 : i32
    return %c0_i32, %c0_i32_0 : i32, i32
  }
  func.func @transform_4(%arg0: i32) -> (i32, i32) {
    %c0_i32 = arith.constant 0 : i32
    %c0_i32_0 = arith.constant 0 : i32
    %c0_i32_1 = arith.constant 0 : i32
    return %c0_i32, %c0_i32_0 : i32, i32
  }
  func.func @transform_5(%arg0: i32) -> (i32, i32) {
    %c0_i32 = arith.constant 0 : i32
    %c0_i32_0 = arith.constant 0 : i32
    %c0_i32_1 = arith.constant 0 : i32
    return %c0_i32, %c0_i32_0 : i32, i32
  }
  func.func @transform_6(%arg0: i32) -> (i32, i32) {
    %c0_i32 = arith.constant 0 : i32
    %c0_i32_0 = arith.constant 0 : i32
    %c0_i32_1 = arith.constant 0 : i32
    return %c0_i32, %c0_i32_0 : i32, i32
  }
  func.func @transform_7(%arg0: i32) -> (i32, i32) {
    %c0_i32 = arith.constant 0 : i32
    %c0_i32_0 = arith.constant 0 : i32
    %c0_i32_1 = arith.constant 0 : i32
    return %c0_i32, %c0_i32_0 : i32, i32
  }
  func.func @transform_8(%arg0: i32) -> (i32, i32) {
    %c0_i32 = arith.constant 0 : i32
    %c0_i32_0 = arith.constant 0 : i32
    %c0_i32_1 = arith.constant 0 : i32
    return %c0_i32, %c0_i32_0 : i32, i32
  }
  func.func @transform_9(%arg0: i32) -> (i32, i32) {
    %c0_i32 = arith.constant 0 : i32
    %c0_i32_0 = arith.constant 0 : i32
    %c0_i32_1 = arith.constant 0 : i32
    return %c0_i32, %c0_i32_0 : i32, i32
  }
  func.func @transform_10(%arg0: i32) -> (i32, i32) {
    %c0_i32 = arith.constant 0 : i32
    %c0_i32_0 = arith.constant 0 : i32
    %c0_i32_1 = arith.constant 0 : i32
    return %c0_i32, %c0_i32_0 : i32, i32
  }
  func.func @transform_11(%arg0: i32) -> (i32, i32, i32) {
    %c0_i32 = arith.constant 0 : i32
    %c0_i32_0 = arith.constant 0 : i32
    %c0_i32_1 = arith.constant 0 : i32
    return %arg0, %c0_i32, %c0_i32_0 : i32, i32, i32
  }
}

module attributes {stable_mosaic.version = 11 : i64} {
  func.func @kernel(%arg0: i32, %arg1: memref<1x8x192xf32, #tpu.memory_space<vmem>>, %arg2: memref<1x192xf32, #tpu.memory_space<vmem>>, %arg3: memref<1x192xf32, #tpu.memory_space<vmem>>, %arg4: memref<192x128xf32, #tpu.memory_space<vmem>>, %arg5: memref<1x128xf32, #tpu.memory_space<vmem>>, %arg6: memref<1x8x128xf32, #tpu.memory_space<vmem>>) attributes {dimension_semantics = [#tpu.dimension_semantics<parallel>], iteration_bounds = array<i64: 2>, scalar_prefetch = 0 : i64, scratch_operands = 0 : i64, tpu.core_type = #tpu.core_type<tc>, window_params = [{transform_indices = @transform_0, window_bounds = array<i64: 1, 8, 192>}, {pipeline_mode = #tpu.pipeline_mode<synchronous>, transform_indices = @transform_1, window_bounds = array<i64: 1, 192>}, {pipeline_mode = #tpu.pipeline_mode<synchronous>, transform_indices = @transform_2, window_bounds = array<i64: 1, 192>}, {pipeline_mode = #tpu.pipeline_mode<synchronous>, transform_indices = @transform_3, window_bounds = array<i64: 192, 128>}, {pipeline_mode = #tpu.pipeline_mode<synchronous>, transform_indices = @transform_4, window_bounds = array<i64: 1, 128>}, {transform_indices = @transform_5, window_bounds = array<i64: 1, 8, 128>}]} {
    %c0 = arith.constant 0 : index
    %c0_0 = arith.constant 0 : index
    %c0_1 = arith.constant 0 : index
    %0 = vector.load %arg1[%c0, %c0_0, %c0_1] : memref<1x8x192xf32, #tpu.memory_space<vmem>>, vector<1x8x192xf32>
    %1 = vector.shape_cast %0 : vector<1x8x192xf32> to vector<8x192xf32>
    %c0_2 = arith.constant 0 : index
    %c0_3 = arith.constant 0 : index
    %2 = vector.load %arg2[%c0_2, %c0_3] : memref<1x192xf32, #tpu.memory_space<vmem>>, vector<1x192xf32>
    %c0_4 = arith.constant 0 : index
    %c0_5 = arith.constant 0 : index
    %3 = vector.load %arg3[%c0_4, %c0_5] : memref<1x192xf32, #tpu.memory_space<vmem>>, vector<1x192xf32>
    %4 = tpu.iota {dimensions = array<i32: 1>} : vector<8x192xi32>
    %c96_i32 = arith.constant 96 : i32
    %5 = vector.broadcast %c96_i32 : i32 to vector<8x192xi32>
    %6 = arith.cmpi slt, %4, %5 : vector<8x192xi32>
    %cst = arith.constant 0.000000e+00 : f32
    %7 = vector.broadcast %cst : f32 to vector<8x192xf32>
    %8 = arith.select %6, %1, %7 : vector<8x192xi1>, vector<8x192xf32>
    %cst_6 = arith.constant dense<0.000000e+00> : vector<8xf32>
    %9 = vector.multi_reduction <add>, %8, %cst_6 [1] : vector<8x192xf32> to vector<8xf32>
    %10 = vector.shape_cast %9 : vector<8xf32> to vector<8x1xf32>
    %cst_7 = arith.constant 0.010416667 : f32
    %11 = vector.broadcast %cst_7 : f32 to vector<8x1xf32>
    %12 = arith.mulf %10, %11 : vector<8x1xf32>
    %cst_8 = arith.constant 0.000000e+00 : f32
    %13 = vector.broadcast %cst_8 : f32 to vector<8x192xf32>
    %14 = arith.select %6, %13, %1 : vector<8x192xi1>, vector<8x192xf32>
    %cst_9 = arith.constant dense<0.000000e+00> : vector<8xf32>
    %15 = vector.multi_reduction <add>, %14, %cst_9 [1] : vector<8x192xf32> to vector<8xf32>
    %16 = vector.shape_cast %15 : vector<8xf32> to vector<8x1xf32>
    %cst_10 = arith.constant 0.010416667 : f32
    %17 = vector.broadcast %cst_10 : f32 to vector<8x1xf32>
    %18 = arith.mulf %16, %17 : vector<8x1xf32>
    %19 = vector.shape_cast %12 : vector<8x1xf32> to vector<8x1xf32>
    %20 = vector.broadcast %19 : vector<8x1xf32> to vector<8x192xf32>
    %21 = vector.shape_cast %18 : vector<8x1xf32> to vector<8x1xf32>
    %22 = vector.broadcast %21 : vector<8x1xf32> to vector<8x192xf32>
    %23 = arith.select %6, %20, %22 : vector<8x192xi1>, vector<8x192xf32>
    %24 = arith.subf %1, %23 : vector<8x192xf32>
    %25 = arith.mulf %24, %24 : vector<8x192xf32>
    %cst_11 = arith.constant 0.000000e+00 : f32
    %26 = vector.broadcast %cst_11 : f32 to vector<8x192xf32>
    %27 = arith.select %6, %25, %26 : vector<8x192xi1>, vector<8x192xf32>
    %cst_12 = arith.constant dense<0.000000e+00> : vector<8xf32>
    %28 = vector.multi_reduction <add>, %27, %cst_12 [1] : vector<8x192xf32> to vector<8xf32>
    %29 = vector.shape_cast %28 : vector<8xf32> to vector<8x1xf32>
    %cst_13 = arith.constant 0.010416667 : f32
    %30 = vector.broadcast %cst_13 : f32 to vector<8x1xf32>
    %31 = arith.mulf %29, %30 : vector<8x1xf32>
    %32 = arith.mulf %24, %24 : vector<8x192xf32>
    %cst_14 = arith.constant 0.000000e+00 : f32
    %33 = vector.broadcast %cst_14 : f32 to vector<8x192xf32>
    %34 = arith.select %6, %33, %32 : vector<8x192xi1>, vector<8x192xf32>
    %cst_15 = arith.constant dense<0.000000e+00> : vector<8xf32>
    %35 = vector.multi_reduction <add>, %34, %cst_15 [1] : vector<8x192xf32> to vector<8xf32>
    %36 = vector.shape_cast %35 : vector<8xf32> to vector<8x1xf32>
    %cst_16 = arith.constant 0.010416667 : f32
    %37 = vector.broadcast %cst_16 : f32 to vector<8x1xf32>
    %38 = arith.mulf %36, %37 : vector<8x1xf32>
    %39 = vector.shape_cast %31 : vector<8x1xf32> to vector<8x1xf32>
    %40 = vector.broadcast %39 : vector<8x1xf32> to vector<8x192xf32>
    %41 = vector.shape_cast %38 : vector<8x1xf32> to vector<8x1xf32>
    %42 = vector.broadcast %41 : vector<8x1xf32> to vector<8x192xf32>
    %43 = arith.select %6, %40, %42 : vector<8x192xi1>, vector<8x192xf32>
    %cst_17 = arith.constant 9.99999997E-7 : f32
    %44 = vector.broadcast %cst_17 : f32 to vector<8x192xf32>
    %45 = arith.addf %43, %44 : vector<8x192xf32>
    %46 = math.rsqrt %45 : vector<8x192xf32>
    %47 = arith.mulf %24, %46 : vector<8x192xf32>
    %48 = vector.broadcast %2 : vector<1x192xf32> to vector<8x192xf32>
    %49 = arith.mulf %47, %48 : vector<8x192xf32>
    %50 = vector.broadcast %3 : vector<1x192xf32> to vector<8x192xf32>
    %51 = arith.addf %49, %50 : vector<8x192xf32>
    %c0_18 = arith.constant 0 : index
    %c0_19 = arith.constant 0 : index
    %52 = vector.load %arg4[%c0_18, %c0_19] : memref<192x128xf32, #tpu.memory_space<vmem>>, vector<192x128xf32>
    %cst_20 = arith.constant dense<0.000000e+00> : vector<8x128xf32>
    %53 = tpu.matmul %51, %52, %cst_20 {dimension_numbers = #tpu.dot_dimension_numbers<[1], [0], [0], [1], [0, 0, 1, 1], [], []>} : vector<8x192xf32>, vector<192x128xf32>, vector<8x128xf32> -> vector<8x128xf32>
    %c0_21 = arith.constant 0 : index
    %c0_22 = arith.constant 0 : index
    %54 = vector.load %arg5[%c0_21, %c0_22] : memref<1x128xf32, #tpu.memory_space<vmem>>, vector<1x128xf32>
    %55 = vector.broadcast %54 : vector<1x128xf32> to vector<8x128xf32>
    %56 = arith.addf %53, %55 : vector<8x128xf32>
    %c0_23 = arith.constant 0 : index
    %c0_24 = arith.constant 0 : index
    %c0_25 = arith.constant 0 : index
    %57 = vector.load %arg6[%c0_23, %c0_24, %c0_25] : memref<1x8x128xf32, #tpu.memory_space<vmem>>, vector<1x8x128xf32>
    %58 = vector.shape_cast %57 : vector<1x8x128xf32> to vector<8x128xf32>
    %59 = vector.shape_cast %56 : vector<8x128xf32> to vector<1x8x128xf32>
    tpu.vector_store %arg6[%c0_23, %c0_24, %c0_25], %59 {strides = array<i32>} : memref<1x8x128xf32, #tpu.memory_space<vmem>>, vector<1x8x128xf32>,
    return
  }
  func.func @transform_0(%arg0: i32) -> (i32, i32, i32) {
    %c0_i32 = arith.constant 0 : i32
    %c0_i32_0 = arith.constant 0 : i32
    %c0_i32_1 = arith.constant 0 : i32
    return %arg0, %c0_i32, %c0_i32_0 : i32, i32, i32
  }
  func.func @transform_1(%arg0: i32) -> (i32, i32) {
    %c0_i32 = arith.constant 0 : i32
    %c0_i32_0 = arith.constant 0 : i32
    %c0_i32_1 = arith.constant 0 : i32
    return %c0_i32, %c0_i32_0 : i32, i32
  }
  func.func @transform_2(%arg0: i32) -> (i32, i32) {
    %c0_i32 = arith.constant 0 : i32
    %c0_i32_0 = arith.constant 0 : i32
    %c0_i32_1 = arith.constant 0 : i32
    return %c0_i32, %c0_i32_0 : i32, i32
  }
  func.func @transform_3(%arg0: i32) -> (i32, i32) {
    %c0_i32 = arith.constant 0 : i32
    %c0_i32_0 = arith.constant 0 : i32
    %c0_i32_1 = arith.constant 0 : i32
    return %c0_i32, %c0_i32_0 : i32, i32
  }
  func.func @transform_4(%arg0: i32) -> (i32, i32) {
    %c0_i32 = arith.constant 0 : i32
    %c0_i32_0 = arith.constant 0 : i32
    %c0_i32_1 = arith.constant 0 : i32
    return %c0_i32, %c0_i32_0 : i32, i32
  }
  func.func @transform_5(%arg0: i32) -> (i32, i32, i32) {
    %c0_i32 = arith.constant 0 : i32
    %c0_i32_0 = arith.constant 0 : i32
    %c0_i32_1 = arith.constant 0 : i32
    return %arg0, %c0_i32, %c0_i32_0 : i32, i32, i32
  }
}

module attributes {stable_mosaic.version = 11 : i64} {
  func.func @kernel(%arg0: i32, %arg1: memref<1x8x128xf32, #tpu.memory_space<vmem>>, %arg2: memref<7x128xf32, #tpu.memory_space<vmem>>, %arg3: memref<1x128xf32, #tpu.memory_space<vmem>>, %arg4: memref<1x128xf32, #tpu.memory_space<vmem>>, %arg5: memref<1x128xf32, #tpu.memory_space<vmem>>, %arg6: memref<128x512xf32, #tpu.memory_space<vmem>>, %arg7: memref<1x512xf32, #tpu.memory_space<vmem>>, %arg8: memref<1x512xf32, #tpu.memory_space<vmem>>, %arg9: memref<1x512xf32, #tpu.memory_space<vmem>>, %arg10: memref<512x128xf32, #tpu.memory_space<vmem>>, %arg11: memref<1x128xf32, #tpu.memory_space<vmem>>, %arg12: memref<1x8x128xf32, #tpu.memory_space<vmem>>) attributes {dimension_semantics = [#tpu.dimension_semantics<parallel>], iteration_bounds = array<i64: 2>, scalar_prefetch = 0 : i64, scratch_operands = 0 : i64, tpu.core_type = #tpu.core_type<tc>, window_params = [{transform_indices = @transform_0, window_bounds = array<i64: 1, 8, 128>}, {pipeline_mode = #tpu.pipeline_mode<synchronous>, transform_indices = @transform_1, window_bounds = array<i64: 7, 128>}, {pipeline_mode = #tpu.pipeline_mode<synchronous>, transform_indices = @transform_2, window_bounds = array<i64: 1, 128>}, {pipeline_mode = #tpu.pipeline_mode<synchronous>, transform_indices = @transform_3, window_bounds = array<i64: 1, 128>}, {pipeline_mode = #tpu.pipeline_mode<synchronous>, transform_indices = @transform_4, window_bounds = array<i64: 1, 128>}, {pipeline_mode = #tpu.pipeline_mode<synchronous>, transform_indices = @transform_5, window_bounds = array<i64: 128, 512>}, {pipeline_mode = #tpu.pipeline_mode<synchronous>, transform_indices = @transform_6, window_bounds = array<i64: 1, 512>}, {pipeline_mode = #tpu.pipeline_mode<synchronous>, transform_indices = @transform_7, window_bounds = array<i64: 1, 512>}, {pipeline_mode = #tpu.pipeline_mode<synchronous>, transform_indices = @transform_8, window_bounds = array<i64: 1, 512>}, {pipeline_mode = #tpu.pipeline_mode<synchronous>, transform_indices = @transform_9, window_bounds = array<i64: 512, 128>}, {pipeline_mode = #tpu.pipeline_mode<synchronous>, transform_indices = @transform_10, window_bounds = array<i64: 1, 128>}, {transform_indices = @transform_11, window_bounds = array<i64: 1, 8, 128>}]} {
    %c0 = arith.constant 0 : index
    %c0_0 = arith.constant 0 : index
    %c0_1 = arith.constant 0 : index
    %0 = vector.load %arg1[%c0, %c0_0, %c0_1] : memref<1x8x128xf32, #tpu.memory_space<vmem>>, vector<1x8x128xf32>
    %1 = vector.shape_cast %0 : vector<1x8x128xf32> to vector<8x128xf32>
    %cst = arith.constant 0.000000e+00 : f32
    %2 = vector.broadcast %cst : f32 to vector<8x128xf32>
    %3 = tpu.concatenate %2, %1, %2 in 0 : vector<8x128xf32>, vector<8x128xf32>, vector<8x128xf32> -> vector<24x128xf32>
    %c0_2 = arith.constant 0 : index
    %c0_3 = arith.constant 0 : index
    %4 = vector.load %arg2[%c0_2, %c0_3] : memref<7x128xf32, #tpu.memory_space<vmem>>, vector<7x128xf32>
    %cst_4 = arith.constant 0.000000e+00 : f32
    %5 = vector.broadcast %cst_4 : f32 to vector<8x128xf32>
    %6 = vector.extract_strided_slice %3 {offsets = [5, 0], sizes = [8, 128], strides = [1, 1]} : vector<24x128xf32> to vector<8x128xf32>
    %7 = vector.extract_strided_slice %4 {offsets = [0, 0], sizes = [1, 128], strides = [1, 1]} : vector<7x128xf32> to vector<1x128xf32>
    %8 = vector.broadcast %7 : vector<1x128xf32> to vector<8x128xf32>
    %9 = arith.mulf %6, %8 : vector<8x128xf32>
    %10 = arith.addf %5, %9 : vector<8x128xf32>
    %11 = vector.extract_strided_slice %3 {offsets = [6, 0], sizes = [8, 128], strides = [1, 1]} : vector<24x128xf32> to vector<8x128xf32>
    %12 = vector.extract_strided_slice %4 {offsets = [1, 0], sizes = [1, 128], strides = [1, 1]} : vector<7x128xf32> to vector<1x128xf32>
    %13 = vector.broadcast %12 : vector<1x128xf32> to vector<8x128xf32>
    %14 = arith.mulf %11, %13 : vector<8x128xf32>
    %15 = arith.addf %10, %14 : vector<8x128xf32>
    %16 = vector.extract_strided_slice %3 {offsets = [7, 0], sizes = [8, 128], strides = [1, 1]} : vector<24x128xf32> to vector<8x128xf32>
    %17 = vector.extract_strided_slice %4 {offsets = [2, 0], sizes = [1, 128], strides = [1, 1]} : vector<7x128xf32> to vector<1x128xf32>
    %18 = vector.broadcast %17 : vector<1x128xf32> to vector<8x128xf32>
    %19 = arith.mulf %16, %18 : vector<8x128xf32>
    %20 = arith.addf %15, %19 : vector<8x128xf32>
    %21 = vector.extract_strided_slice %3 {offsets = [8, 0], sizes = [8, 128], strides = [1, 1]} : vector<24x128xf32> to vector<8x128xf32>
    %22 = vector.extract_strided_slice %4 {offsets = [3, 0], sizes = [1, 128], strides = [1, 1]} : vector<7x128xf32> to vector<1x128xf32>
    %23 = vector.broadcast %22 : vector<1x128xf32> to vector<8x128xf32>
    %24 = arith.mulf %21, %23 : vector<8x128xf32>
    %25 = arith.addf %20, %24 : vector<8x128xf32>
    %26 = vector.extract_strided_slice %3 {offsets = [9, 0], sizes = [8, 128], strides = [1, 1]} : vector<24x128xf32> to vector<8x128xf32>
    %27 = vector.extract_strided_slice %4 {offsets = [4, 0], sizes = [1, 128], strides = [1, 1]} : vector<7x128xf32> to vector<1x128xf32>
    %28 = vector.broadcast %27 : vector<1x128xf32> to vector<8x128xf32>
    %29 = arith.mulf %26, %28 : vector<8x128xf32>
    %30 = arith.addf %25, %29 : vector<8x128xf32>
    %31 = vector.extract_strided_slice %3 {offsets = [10, 0], sizes = [8, 128], strides = [1, 1]} : vector<24x128xf32> to vector<8x128xf32>
    %32 = vector.extract_strided_slice %4 {offsets = [5, 0], sizes = [1, 128], strides = [1, 1]} : vector<7x128xf32> to vector<1x128xf32>
    %33 = vector.broadcast %32 : vector<1x128xf32> to vector<8x128xf32>
    %34 = arith.mulf %31, %33 : vector<8x128xf32>
    %35 = arith.addf %30, %34 : vector<8x128xf32>
    %36 = vector.extract_strided_slice %3 {offsets = [11, 0], sizes = [8, 128], strides = [1, 1]} : vector<24x128xf32> to vector<8x128xf32>
    %37 = vector.extract_strided_slice %4 {offsets = [6, 0], sizes = [1, 128], strides = [1, 1]} : vector<7x128xf32> to vector<1x128xf32>
    %38 = vector.broadcast %37 : vector<1x128xf32> to vector<8x128xf32>
    %39 = arith.mulf %36, %38 : vector<8x128xf32>
    %40 = arith.addf %35, %39 : vector<8x128xf32>
    %c0_5 = arith.constant 0 : index
    %c0_6 = arith.constant 0 : index
    %41 = vector.load %arg3[%c0_5, %c0_6] : memref<1x128xf32, #tpu.memory_space<vmem>>, vector<1x128xf32>
    %42 = vector.broadcast %41 : vector<1x128xf32> to vector<8x128xf32>
    %43 = arith.addf %40, %42 : vector<8x128xf32>
    %cst_7 = arith.constant dense<0.000000e+00> : vector<8xf32>
    %44 = vector.multi_reduction <add>, %43, %cst_7 [1] : vector<8x128xf32> to vector<8xf32>
    %45 = vector.shape_cast %44 : vector<8xf32> to vector<8x1xf32>
    %cst_8 = arith.constant 1.280000e+02 : f32
    %46 = vector.broadcast %cst_8 : f32 to vector<8x1xf32>
    %47 = arith.divf %45, %46 : vector<8x1xf32>
    %48 = vector.broadcast %47 : vector<8x1xf32> to vector<8x128xf32>
    %49 = arith.subf %43, %48 : vector<8x128xf32>
    %50 = arith.mulf %49, %49 : vector<8x128xf32>
    %cst_9 = arith.constant dense<0.000000e+00> : vector<8xf32>
    %51 = vector.multi_reduction <add>, %50, %cst_9 [1] : vector<8x128xf32> to vector<8xf32>
    %52 = vector.shape_cast %51 : vector<8xf32> to vector<8x1xf32>
    %cst_10 = arith.constant 1.280000e+02 : f32
    %53 = vector.broadcast %cst_10 : f32 to vector<8x1xf32>
    %54 = arith.divf %52, %53 : vector<8x1xf32>
    %55 = vector.broadcast %47 : vector<8x1xf32> to vector<8x128xf32>
    %56 = arith.subf %43, %55 : vector<8x128xf32>
    %cst_11 = arith.constant 9.99999997E-7 : f32
    %57 = vector.broadcast %cst_11 : f32 to vector<8x1xf32>
    %58 = arith.addf %54, %57 : vector<8x1xf32>
    %59 = math.rsqrt %58 : vector<8x1xf32>
    %60 = vector.broadcast %59 : vector<8x1xf32> to vector<8x128xf32>
    %61 = arith.mulf %56, %60 : vector<8x128xf32>
    %c0_12 = arith.constant 0 : index
    %c0_13 = arith.constant 0 : index
    %62 = vector.load %arg4[%c0_12, %c0_13] : memref<1x128xf32, #tpu.memory_space<vmem>>, vector<1x128xf32>
    %63 = vector.broadcast %62 : vector<1x128xf32> to vector<8x128xf32>
    %64 = arith.mulf %61, %63 : vector<8x128xf32>
    %c0_14 = arith.constant 0 : index
    %c0_15 = arith.constant 0 : index
    %65 = vector.load %arg5[%c0_14, %c0_15] : memref<1x128xf32, #tpu.memory_space<vmem>>, vector<1x128xf32>
    %66 = vector.broadcast %65 : vector<1x128xf32> to vector<8x128xf32>
    %67 = arith.addf %64, %66 : vector<8x128xf32>
    %c0_16 = arith.constant 0 : index
    %c0_17 = arith.constant 0 : index
    %68 = vector.load %arg6[%c0_16, %c0_17] : memref<128x512xf32, #tpu.memory_space<vmem>>, vector<128x512xf32>
    %cst_18 = arith.constant dense<0.000000e+00> : vector<8x512xf32>
    %69 = tpu.matmul %67, %68, %cst_18 {dimension_numbers = #tpu.dot_dimension_numbers<[1], [0], [0], [1], [0, 0, 1, 1], [], []>} : vector<8x128xf32>, vector<128x512xf32>, vector<8x512xf32> -> vector<8x512xf32>
    %c0_19 = arith.constant 0 : index
    %c0_20 = arith.constant 0 : index
    %70 = vector.load %arg7[%c0_19, %c0_20] : memref<1x512xf32, #tpu.memory_space<vmem>>, vector<1x512xf32>
    %71 = vector.broadcast %70 : vector<1x512xf32> to vector<8x512xf32>
    %72 = arith.addf %69, %71 : vector<8x512xf32>
    %cst_21 = arith.constant 0.707106769 : f32
    %73 = vector.broadcast %cst_21 : f32 to vector<8x512xf32>
    %74 = arith.mulf %72, %73 : vector<8x512xf32>
    %75 = math.absf %74 : vector<8x512xf32>
    %cst_22 = arith.constant 0.000000e+00 : f32
    %76 = vector.broadcast %cst_22 : f32 to vector<8x512xf32>
    %77 = arith.cmpf oge, %74, %76 : vector<8x512xf32>
    %cst_23 = arith.constant 1.000000e+00 : f32
    %cst_24 = arith.constant -1.000000e+00 : f32
    %78 = vector.broadcast %cst_23 : f32 to vector<8x512xf32>
    %79 = vector.broadcast %cst_24 : f32 to vector<8x512xf32>
    %80 = arith.select %77, %78, %79 : vector<8x512xi1>, vector<8x512xf32>
    %cst_25 = arith.constant 0.327591091 : f32
    %81 = vector.broadcast %cst_25 : f32 to vector<8x512xf32>
    %82 = arith.mulf %81, %75 : vector<8x512xf32>
    %cst_26 = arith.constant 1.000000e+00 : f32
    %83 = vector.broadcast %cst_26 : f32 to vector<8x512xf32>
    %84 = arith.addf %83, %82 : vector<8x512xf32>
    %cst_27 = arith.constant 1.000000e+00 : f32
    %85 = vector.broadcast %cst_27 : f32 to vector<8x512xf32>
    %86 = arith.divf %85, %84 : vector<8x512xf32>
    %cst_28 = arith.constant 1.06140542 : f32
    %87 = vector.broadcast %cst_28 : f32 to vector<8x512xf32>
    %88 = arith.mulf %87, %86 : vector<8x512xf32>
    %cst_29 = arith.constant 1.45315206 : f32
    %89 = vector.broadcast %cst_29 : f32 to vector<8x512xf32>
    %90 = arith.subf %88, %89 : vector<8x512xf32>
    %91 = arith.mulf %90, %86 : vector<8x512xf32>
    %cst_30 = arith.constant 1.42141378 : f32
    %92 = vector.broadcast %cst_30 : f32 to vector<8x512xf32>
    %93 = arith.addf %91, %92 : vector<8x512xf32>
    %94 = arith.mulf %93, %86 : vector<8x512xf32>
    %cst_31 = arith.constant 0.284496725 : f32
    %95 = vector.broadcast %cst_31 : f32 to vector<8x512xf32>
    %96 = arith.subf %94, %95 : vector<8x512xf32>
    %97 = arith.mulf %96, %86 : vector<8x512xf32>
    %cst_32 = arith.constant 0.254829586 : f32
    %98 = vector.broadcast %cst_32 : f32 to vector<8x512xf32>
    %99 = arith.addf %97, %98 : vector<8x512xf32>
    %100 = arith.mulf %99, %86 : vector<8x512xf32>
    %cst_33 = arith.constant 0.000000e+00 : f32
    %101 = vector.broadcast %cst_33 : f32 to vector<8x512xf32>
    %102 = arith.subf %101, %75 : vector<8x512xf32>
    %103 = arith.mulf %102, %75 : vector<8x512xf32>
    %104 = math.exp %103 : vector<8x512xf32>
    %105 = arith.mulf %100, %104 : vector<8x512xf32>
    %cst_34 = arith.constant 1.000000e+00 : f32
    %106 = vector.broadcast %cst_34 : f32 to vector<8x512xf32>
    %107 = arith.subf %106, %105 : vector<8x512xf32>
    %108 = arith.mulf %80, %107 : vector<8x512xf32>
    %cst_35 = arith.constant 5.000000e-01 : f32
    %109 = vector.broadcast %cst_35 : f32 to vector<8x512xf32>
    %110 = arith.mulf %109, %72 : vector<8x512xf32>
    %cst_36 = arith.constant 1.000000e+00 : f32
    %111 = vector.broadcast %cst_36 : f32 to vector<8x512xf32>
    %112 = arith.addf %111, %108 : vector<8x512xf32>
    %113 = arith.mulf %110, %112 : vector<8x512xf32>
    %114 = arith.mulf %113, %113 : vector<8x512xf32>
    %cst_37 = arith.constant dense<0.000000e+00> : vector<512xf32>
    %115 = vector.multi_reduction <add>, %114, %cst_37 [0] : vector<8x512xf32> to vector<512xf32>
    %116 = vector.shape_cast %115 : vector<512xf32> to vector<1x512xf32>
    %117 = math.sqrt %116 : vector<1x512xf32>
    %cst_38 = arith.constant dense<0.000000e+00> : vector<1xf32>
    %118 = vector.multi_reduction <add>, %117, %cst_38 [1] : vector<1x512xf32> to vector<1xf32>
    %119 = vector.shape_cast %118 : vector<1xf32> to vector<1x1xf32>
    %cst_39 = arith.constant 5.120000e+02 : f32
    %120 = vector.broadcast %cst_39 : f32 to vector<1x1xf32>
    %121 = arith.divf %119, %120 : vector<1x1xf32>
    %cst_40 = arith.constant 9.99999997E-7 : f32
    %122 = vector.broadcast %cst_40 : f32 to vector<1x1xf32>
    %123 = arith.addf %121, %122 : vector<1x1xf32>
    %124 = vector.broadcast %123 : vector<1x1xf32> to vector<1x512xf32>
    %125 = arith.divf %117, %124 : vector<1x512xf32>
    %c0_41 = arith.constant 0 : index
    %c0_42 = arith.constant 0 : index
    %126 = vector.load %arg8[%c0_41, %c0_42] : memref<1x512xf32, #tpu.memory_space<vmem>>, vector<1x512xf32>
    %127 = vector.broadcast %125 : vector<1x512xf32> to vector<8x512xf32>
    %128 = arith.mulf %113, %127 : vector<8x512xf32>
    %129 = vector.broadcast %126 : vector<1x512xf32> to vector<8x512xf32>
    %130 = arith.mulf %129, %128 : vector<8x512xf32>
    %c0_43 = arith.constant 0 : index
    %c0_44 = arith.constant 0 : index
    %131 = vector.load %arg9[%c0_43, %c0_44] : memref<1x512xf32, #tpu.memory_space<vmem>>, vector<1x512xf32>
    %132 = vector.broadcast %131 : vector<1x512xf32> to vector<8x512xf32>
    %133 = arith.addf %130, %132 : vector<8x512xf32>
    %134 = arith.addf %133, %113 : vector<8x512xf32>
    %c0_45 = arith.constant 0 : index
    %c0_46 = arith.constant 0 : index
    %135 = vector.load %arg10[%c0_45, %c0_46] : memref<512x128xf32, #tpu.memory_space<vmem>>, vector<512x128xf32>
    %cst_47 = arith.constant dense<0.000000e+00> : vector<8x128xf32>
    %136 = tpu.matmul %134, %135, %cst_47 {dimension_numbers = #tpu.dot_dimension_numbers<[1], [0], [0], [1], [0, 0, 1, 1], [], []>} : vector<8x512xf32>, vector<512x128xf32>, vector<8x128xf32> -> vector<8x128xf32>
    %c0_48 = arith.constant 0 : index
    %c0_49 = arith.constant 0 : index
    %137 = vector.load %arg11[%c0_48, %c0_49] : memref<1x128xf32, #tpu.memory_space<vmem>>, vector<1x128xf32>
    %138 = vector.broadcast %137 : vector<1x128xf32> to vector<8x128xf32>
    %139 = arith.addf %136, %138 : vector<8x128xf32>
    %140 = arith.addf %139, %1 : vector<8x128xf32>
    %c0_50 = arith.constant 0 : index
    %c0_51 = arith.constant 0 : index
    %c0_52 = arith.constant 0 : index
    %141 = vector.load %arg12[%c0_50, %c0_51, %c0_52] : memref<1x8x128xf32, #tpu.memory_space<vmem>>, vector<1x8x128xf32>
    %142 = vector.shape_cast %141 : vector<1x8x128xf32> to vector<8x128xf32>
    %143 = vector.shape_cast %140 : vector<8x128xf32> to vector<1x8x128xf32>
    tpu.vector_store %arg12[%c0_50, %c0_51, %c0_52], %143 {strides = array<i32>} : memref<1x8x128xf32, #tpu.memory_space<vmem>>, vector<1x8x128xf32>,
    return
  }
  func.func @transform_0(%arg0: i32) -> (i32, i32, i32) {
    %c0_i32 = arith.constant 0 : i32
    %c0_i32_0 = arith.constant 0 : i32
    %c0_i32_1 = arith.constant 0 : i32
    return %arg0, %c0_i32, %c0_i32_0 : i32, i32, i32
  }
  func.func @transform_1(%arg0: i32) -> (i32, i32) {
    %c0_i32 = arith.constant 0 : i32
    %c0_i32_0 = arith.constant 0 : i32
    %c0_i32_1 = arith.constant 0 : i32
    return %c0_i32, %c0_i32_0 : i32, i32
  }
  func.func @transform_2(%arg0: i32) -> (i32, i32) {
    %c0_i32 = arith.constant 0 : i32
    %c0_i32_0 = arith.constant 0 : i32
    %c0_i32_1 = arith.constant 0 : i32
    return %c0_i32, %c0_i32_0 : i32, i32
  }
  func.func @transform_3(%arg0: i32) -> (i32, i32) {
    %c0_i32 = arith.constant 0 : i32
    %c0_i32_0 = arith.constant 0 : i32
    %c0_i32_1 = arith.constant 0 : i32
    return %c0_i32, %c0_i32_0 : i32, i32
  }
  func.func @transform_4(%arg0: i32) -> (i32, i32) {
    %c0_i32 = arith.constant 0 : i32
    %c0_i32_0 = arith.constant 0 : i32
    %c0_i32_1 = arith.constant 0 : i32
    return %c0_i32, %c0_i32_0 : i32, i32
  }
  func.func @transform_5(%arg0: i32) -> (i32, i32) {
    %c0_i32 = arith.constant 0 : i32
    %c0_i32_0 = arith.constant 0 : i32
    %c0_i32_1 = arith.constant 0 : i32
    return %c0_i32, %c0_i32_0 : i32, i32
  }
  func.func @transform_6(%arg0: i32) -> (i32, i32) {
    %c0_i32 = arith.constant 0 : i32
    %c0_i32_0 = arith.constant 0 : i32
    %c0_i32_1 = arith.constant 0 : i32
    return %c0_i32, %c0_i32_0 : i32, i32
  }
  func.func @transform_7(%arg0: i32) -> (i32, i32) {
    %c0_i32 = arith.constant 0 : i32
    %c0_i32_0 = arith.constant 0 : i32
    %c0_i32_1 = arith.constant 0 : i32
    return %c0_i32, %c0_i32_0 : i32, i32
  }
  func.func @transform_8(%arg0: i32) -> (i32, i32) {
    %c0_i32 = arith.constant 0 : i32
    %c0_i32_0 = arith.constant 0 : i32
    %c0_i32_1 = arith.constant 0 : i32
    return %c0_i32, %c0_i32_0 : i32, i32
  }
  func.func @transform_9(%arg0: i32) -> (i32, i32) {
    %c0_i32 = arith.constant 0 : i32
    %c0_i32_0 = arith.constant 0 : i32
    %c0_i32_1 = arith.constant 0 : i32
    return %c0_i32, %c0_i32_0 : i32, i32
  }
  func.func @transform_10(%arg0: i32) -> (i32, i32) {
    %c0_i32 = arith.constant 0 : i32
    %c0_i32_0 = arith.constant 0 : i32
    %c0_i32_1 = arith.constant 0 : i32
    return %c0_i32, %c0_i32_0 : i32, i32
  }
  func.func @transform_11(%arg0: i32) -> (i32, i32, i32) {
    %c0_i32 = arith.constant 0 : i32
    %c0_i32_0 = arith.constant 0 : i32
    %c0_i32_1 = arith.constant 0 : i32
    return %arg0, %c0_i32, %c0_i32_0 : i32, i32, i32
  }
}

</mosaic_0001>

<llo_original>
// kernel: _lambda_.8
$region0: #{_lambda_.8}
  #allocation0 [shape = 'u32[]', space=smem, size = 0x4, offset = 0x4, fixed_abs, tag = 'smem constant byte address 0x4 - core index']
  #allocation1 [shape = 'u32[144,128]{1,0:T(1,128)}', space=vmem, size = 0x12000, scoped, tag = 'internal scratch']
  %s0 = inlined_call_operand.vmem [shape: f32[2,64,4], index: 0, kind: input, shape index: {}]
  %s1 = inlined_call_operand.vmem [shape: f32[4,32], index: 1, kind: input, shape index: {}]
  %s2 = inlined_call_operand.vmem [shape: f32[1,32], index: 2, kind: input, shape index: {}]
  %s3 = inlined_call_operand.vmem [shape: f32[1,32], index: 3, kind: input, shape index: {}]
  %s4 = inlined_call_operand.vmem [shape: f32[1,32], index: 4, kind: input, shape index: {}]
  %s5 = inlined_call_operand.vmem [shape: f32[2,64,32], index: 5, kind: output, shape index: {}]
  %s6 = sld [smem:[#allocation0]]
  $region53: #{_lambda_.8} parent=0
    _
  %s8 = ssub.s32 1, %s6
  %s9 = scalar_select 0, %s8, %s6
  loop: start=0, step=1, limit=4
  $region2: #{_lambda_.8} parent=0 // loop_pre_header
    _
  $region3: #{_lambda_.8} parent=0 // loop_header
    %s11 = sphi 0, %s15
    %p12 = scmp.ge.s32.totalorder %s11, 4
    %s21 = sphi 0, %s23
    %s24 = sphi 0, %s21
    %s25 = sphi 0, %s24
    %s41 = sphi 0, %s25
    %s45 = sphi 0, %s45
    %s47 = sphi 0, %s45
    %s48 = sphi 0, %s47
    %s62 = sphi 0, %s48
    %s66 = sphi 0, %s66
    %s68 = sphi 0, %s66
    %s69 = sphi 0, %s68
    %s83 = sphi 0, %s69
    %s87 = sphi 0, %s87
    %s89 = sphi 0, %s87
    %s90 = sphi 0, %s89
    %s104 = sphi 0, %s90
    %s108 = sphi 0, %s108
    %s110 = sphi 0, %s108
    %s111 = sphi 0, %s110
    %s125 = sphi 0, %s111
    %s131 = sphi 0, %s133
    %s134 = sphi 0, %s131
    %s135 = sphi 0, %s134
    %s151 = sphi 0, %s135
  $region4: #{_lambda_.8} parent=0 // loop_header_branch
    %14 = sbr.rel (%p12) target = $region8
  $region5: #{_lambda_.8} parent=0 // loop_body
    %s16 = ssub.s32 %s11, 1
    %s17 = ssub.s32 %s11, 2
    %s18 = sadd.s32 %s11, 1
    %s19 = ssub.s32 %s11, %s18
    %p20 = scmp.eq.s32.totalorder %s19, 0
    %s22 = sadd.s32 %s21, 1
    %s23 = scalar_select %p20, %s21, %s22
    %p26 = pneg %p20
    %p27 = scmp.eq.s32.totalorder %s11, 1
    %p28 = por %p26, %p27
    %p29 = scmp.ne.s32.totalorder %s21, %s24
    %p30 = scmp.eq.s32.totalorder %s11, 0
    %p31 = por %p29, %p30
    %p32 = scmp.ne.s32.totalorder %s21, %s24
    %p33 = scmp.eq.s32.totalorder %s16, 1
    %p34 = por %p32, %p33
    %p35 = scmp.ne.s32.totalorder %s24, %s25
    %p36 = scmp.eq.s32.totalorder %s16, 0
    %p37 = por %p35, %p36
    %p38 = scmp.ne.s32.totalorder %s24, %s25
    %p39 = scmp.eq.s32.totalorder %s17, 1
    %p40 = por %p38, %p39
    %p42 = scmp.ne.s32.totalorder %s25, %s41
    %p43 = scmp.eq.s32.totalorder %s17, 0
    %p44 = por %p42, %p43
    %s46 = sadd.s32 %s45, 1
    %p49 = scmp.eq.s32.totalorder %s11, 1
    %p50 = scmp.ne.s32.totalorder %s45, %s47
    %p51 = scmp.eq.s32.totalorder %s11, 0
    %p52 = por %p50, %p51
    %p53 = scmp.ne.s32.totalorder %s45, %s47
    %p54 = scmp.eq.s32.totalorder %s16, 1
    %p55 = por %p53, %p54
    %p56 = scmp.ne.s32.totalorder %s47, %s48
    %p57 = scmp.eq.s32.totalorder %s16, 0
    %p58 = por %p56, %p57
    %p59 = scmp.ne.s32.totalorder %s47, %s48
    %p60 = scmp.eq.s32.totalorder %s17, 1
    %p61 = por %p59, %p60
    %p63 = scmp.ne.s32.totalorder %s48, %s62
    %p64 = scmp.eq.s32.totalorder %s17, 0
    %p65 = por %p63, %p64
    %s67 = sadd.s32 %s66, 1
    %p70 = scmp.eq.s32.totalorder %s11, 1
    %p71 = scmp.ne.s32.totalorder %s66, %s68
    %p72 = scmp.eq.s32.totalorder %s11, 0
    %p73 = por %p71, %p72
    %p74 = scmp.ne.s32.totalorder %s66, %s68
    %p75 = scmp.eq.s32.totalorder %s16, 1
    %p76 = por %p74, %p75
    %p77 = scmp.ne.s32.totalorder %s68, %s69
    %p78 = scmp.eq.s32.totalorder %s16, 0
    %p79 = por %p77, %p78
    %p80 = scmp.ne.s32.totalorder %s68, %s69
    %p81 = scmp.eq.s32.totalorder %s17, 1
    %p82 = por %p80, %p81
    %p84 = scmp.ne.s32.totalorder %s69, %s83
    %p85 = scmp.eq.s32.totalorder %s17, 0
    %p86 = por %p84, %p85
    %s88 = sadd.s32 %s87, 1
    %p91 = scmp.eq.s32.totalorder %s11, 1
    %p92 = scmp.ne.s32.totalorder %s87, %s89
    %p93 = scmp.eq.s32.totalorder %s11, 0
    %p94 = por %p92, %p93
    %p95 = scmp.ne.s32.totalorder %s87, %s89
    %p96 = scmp.eq.s32.totalorder %s16, 1
    %p97 = por %p95, %p96
    %p98 = scmp.ne.s32.totalorder %s89, %s90
    %p99 = scmp.eq.s32.totalorder %s16, 0
    %p100 = por %p98, %p99
    %p101 = scmp.ne.s32.totalorder %s89, %s90
    %p102 = scmp.eq.s32.totalorder %s17, 1
    %p103 = por %p101, %p102
    %p105 = scmp.ne.s32.totalorder %s90, %s104
    %p106 = scmp.eq.s32.totalorder %s17, 0
    %p107 = por %p105, %p106
    %s109 = sadd.s32 %s108, 1
    %p112 = scmp.eq.s32.totalorder %s11, 1
    %p113 = scmp.ne.s32.totalorder %s108, %s110
    %p114 = scmp.eq.s32.totalorder %s11, 0
    %p115 = por %p113, %p114
    %p116 = scmp.ne.s32.totalorder %s108, %s110
    %p117 = scmp.eq.s32.totalorder %s16, 1
    %p118 = por %p116, %p117
    %p119 = scmp.ne.s32.totalorder %s110, %s111
    %p120 = scmp.eq.s32.totalorder %s16, 0
    %p121 = por %p119, %p120
    %p122 = scmp.ne.s32.totalorder %s110, %s111
    %p123 = scmp.eq.s32.totalorder %s17, 1
    %p124 = por %p122, %p123
    %p126 = scmp.ne.s32.totalorder %s111, %s125
    %p127 = scmp.eq.s32.totalorder %s17, 0
    %p128 = por %p126, %p127
    %s129 = ssub.s32 %s11, %s18
    %p130 = scmp.eq.s32.totalorder %s129, 0
    %s132 = sadd.s32 %s131, 1
    %s133 = scalar_select %p130, %s131, %s132
    %p136 = pneg %p130
    %p137 = scmp.eq.s32.totalorder %s11, 1
    %p138 = por %p136, %p137
    %p139 = scmp.ne.s32.totalorder %s131, %s134
    %p140 = scmp.eq.s32.totalorder %s11, 0
    %p141 = por %p139, %p140
    %p142 = scmp.ne.s32.totalorder %s131, %s134
    %p143 = scmp.eq.s32.totalorder %s16, 1
    %p144 = por %p142, %p143
    %p145 = scmp.ne.s32.totalorder %s134, %s135
    %p146 = scmp.eq.s32.totalorder %s16, 0
    %p147 = por %p145, %p146
    %p148 = scmp.ne.s32.totalorder %s134, %s135
    %p149 = scmp.eq.s32.totalorder %s17, 1
    %p150 = por %p148, %p149
    %p152 = scmp.ne.s32.totalorder %s135, %s151
    %p153 = scmp.eq.s32.totalorder %s17, 0
    %p154 = por %p152, %p153
    %p155 = scmp.le.s32.totalorder 1, %s11
    %p156 = scmp.lt.s32.totalorder %s11, 3
    %p157 = pnand %p155, %p156
    %p158 = pneg %p157
    // Predicated region
    $region9: #{_lambda_.8} parent=5 // pred_check
      _
    $region10: #{_lambda_.8} parent=5 // pred_check_branch
      %160 = sbr.rel (%p157) target = $region12
    $region11: #{_lambda_.8} parent=5 // pred_region
      %s161 = ssub.s32 %s11, 1
      // Predicated region
      $region13: #{_lambda_.8} parent=11 // pred_check
        %p162 = pneg %p58
      $region14: #{_lambda_.8} parent=11 // pred_check_branch
        %164 = sbr.rel (%p162) target = $region16
      $region15: #{_lambda_.8} parent=11 // pred_region
        _
      $region16: #{_lambda_.8} parent=11 // pred_fallthru
        _
      // Predicated region
      $region17: #{_lambda_.8} parent=11 // pred_check
        %p165 = pneg %p79
      $region18: #{_lambda_.8} parent=11 // pred_check_branch
        %167 = sbr.rel (%p165) target = $region20
      $region19: #{_lambda_.8} parent=11 // pred_region
        _
      $region20: #{_lambda_.8} parent=11 // pred_fallthru
        _
      // Predicated region
      $region21: #{_lambda_.8} parent=11 // pred_check
        %p168 = pneg %p100
      $region22: #{_lambda_.8} parent=11 // pred_check_branch
        %170 = sbr.rel (%p168) target = $region24
      $region23: #{_lambda_.8} parent=11 // pred_region
        _
      $region24: #{_lambda_.8} parent=11 // pred_fallthru
        _
      // Predicated region
      $region25: #{_lambda_.8} parent=11 // pred_check
        %p171 = pneg %p121
      $region26: #{_lambda_.8} parent=11 // pred_check_branch
        %173 = sbr.rel (%p171) target = $region28
      $region27: #{_lambda_.8} parent=11 // pred_region
        _
      $region28: #{_lambda_.8} parent=11 // pred_fallthru
        _
    $region12: #{_lambda_.8} parent=5 // pred_fallthru
      _
    %p174 = scmp.lt.s32.totalorder %s11, 2
    // Predicated region
    $region29: #{_lambda_.8} parent=5 // pred_check
      %p175 = pneg %p174
    $region30: #{_lambda_.8} parent=5 // pred_check_branch
      %177 = sbr.rel (%p175) target = $region32
    $region31: #{_lambda_.8} parent=5 // pred_region
      // Predicated region
      $region33: #{_lambda_.8} parent=31 // pred_check
        %p178 = pneg %p31
      $region34: #{_lambda_.8} parent=31 // pred_check_branch
        %180 = sbr.rel (%p178) target = $region36
      $region35: #{_lambda_.8} parent=31 // pred_region
        %p181 = scmp.lt.s32.totalorder %s11, 1
        %s182 = scalar_select %p181, %s11, 1
        %s183 = smul.addr %s182, 8
        %s184 = smul.addr %s183, 8
        %s185 = scalar_lea.vmem %s0, %s184
      $region36: #{_lambda_.8} parent=31 // pred_fallthru
        _
    $region32: #{_lambda_.8} parent=5 // pred_fallthru
      _
    %p186 = scmp.le.s32.totalorder 1, %s11
    %p187 = scmp.lt.s32.totalorder %s11, 3
    %p188 = pnand %p186, %p187
    %p189 = pneg %p188
    // Predicated region
    $region37: #{_lambda_.8} parent=5 // pred_check
      _
    $region38: #{_lambda_.8} parent=5 // pred_check_branch
      %191 = sbr.rel (%p188) target = $region40
    $region39: #{_lambda_.8} parent=5 // pred_region
      %s192 = ssub.s32 %s11, 1
      %p193 = scmp.lt.s32.totalorder %s16, 1
      %s194 = scalar_select %p193, %s16, 1
      %s195 = smul.addr %s194, 8
      %s196 = smul.addr %s195, 8
      %s197 = scalar_lea.vmem %s0, %s196
      %p198 = pneg %p37
      %p199 = pneg %p34
      %p200 = pneg %p58
      %p201 = pneg %p55
      %p202 = pneg %p79
      %p203 = pneg %p76
      %p204 = pneg %p100
      %p205 = pneg %p97
      %p206 = pneg %p121
      %p207 = pneg %p118
      %p208 = pneg %p147
      %p209 = pneg %p144
      %p210 = scmp.lt.s32.totalorder %s16, 1
      %s211 = scalar_select %p210, %s16, 1
      %s212 = smul.addr %s211, 8
      %s213 = smul.addr %s212, 8
      %s214 = scalar_lea.vmem %s5, %s213
      %p215 = scmp.lt.s32.totalorder %s16, 1
      %s216 = scalar_select %p215, %s16, 1
      %s217 = smul.addr %s216, 8
      %s218 = smul.addr %s217, 8
      %s219 = scalar_lea.vmem %s0, %s218
      %p220 = scmp.lt.s32.totalorder %s16, 1
      %s221 = scalar_select %p220, %s16, 1
      %s222 = smul.addr %s221, 8
      %s223 = smul.addr %s222, 8
      %s224 = scalar_lea.vmem %s5, %s223
      %v225 = vld [vmem:[%s219] sm:$0xff]
      %v226 = vld [vmem:[%s219 + $0x8] sm:$0xff]
      %v227 = vld [vmem:[%s219 + $0x10] sm:$0xff]
      %v228 = vld [vmem:[%s219 + $0x18] sm:$0xff]
      %v229 = vld [vmem:[%s219 + $0x20] sm:$0xff]
      %v230 = vld [vmem:[%s219 + $0x28] sm:$0xff]
      %v231 = vld [vmem:[%s219 + $0x30] sm:$0xff]
      %v232 = vld [vmem:[%s219 + $0x38] sm:$0xff]
      %v233 = vsub.f32 %v225, 1.0
      %v234 = vsub.f32 %v226, 1.0
      %v235 = vsub.f32 %v227, 1.0
      %v236 = vsub.f32 %v228, 1.0
      %v237 = vsub.f32 %v229, 1.0
      %v238 = vsub.f32 %v230, 1.0
      %v239 = vsub.f32 %v231, 1.0
      %v240 = vsub.f32 %v232, 1.0
      %v241 = vrcp.pop 0.2
      %v242 = vmul.f32 %v233, %v241
      %v243 = vmul.f32 %v234, %v241
      %v244 = vmul.f32 %v235, %v241
      %v245 = vmul.f32 %v236, %v241
      %v246 = vmul.f32 %v237, %v241
      %v247 = vmul.f32 %v238, %v241
      %v248 = vmul.f32 %v239, %v241
      %v249 = vmul.f32 %v240, %v241
      %v250 = vld [vmem:[%s1] sm:$0xf]
      %v251 = vld [vmem:[%s2] sm:$0x1]
      %v253 = vlaneseq
      %v254 = vshrl.u32 %v253, 7
      %v255 = vsub.s32 0, %v254
      %v256 = vrot.slane %v251, %v255
      %vm258 = vcmask 31744
      %v260 = vsel %vm258, %v242, 0
      %v263 = vsel %vm258, %v243, 0
      %v266 = vsel %vm258, %v244, 0
      %v269 = vsel %vm258, %v245, 0
      %v272 = vsel %vm258, %v246, 0
      %v275 = vsel %vm258, %v247, 0
      %v278 = vsel %vm258, %v248, 0
      %v281 = vsel %vm258, %v249, 0
      %vm283 = vcmask 1043456
      %v285 = vsel %vm283, %v250, 0
      %287 = vmatprep.subr.mxu0 0.0
      %288 = vmatpush1.msra.mxu0 0.0
      %289 = vmatprep.subr.mxu0 0.0
      %290 = vmatpush1.msra.mxu0 0.0
      %291 = vmatprep.subr.mxu0 0.0
      %292 = vmatpush1.msra.mxu0 0.0
      %293 = vmatprep.subr.mxu0 0.0
      %294 = vmatpush1.msra.mxu0 0.0
      %295 = vmatprep.subr.mxu0 0.0
      %296 = vmatpush1.msra.mxu0 0.0
      %297 = vmatprep.subr.mxu0 0.0
      %298 = vmatpush1.msra.mxu0 0.0
      %299 = vmatprep.subr.mxu0 0.0
      %300 = vmatpush1.msra.mxu0 0.0
      %301 = vmatprep.subr.mxu0 0.0
      %302 = vmatpush1.msra.mxu0 0.0
      %303 = vmatprep.subr.mxu0 0.0
      %304 = vmatpush1.msra.mxu0 0.0
      %305 = vmatprep.subr.mxu0 0.0
      %306 = vmatpush1.msra.mxu0 0.0
      %307 = vmatprep.subr.mxu0 0.0
      %308 = vmatpush1.msra.mxu0 0.0
      %309 = vmatprep.subr.mxu0 0.0
      %310 = vmatpush1.msra.mxu0 0.0
      %311 = vmatprep.subr.mxu0 0.0
      %312 = vmatpush1.msra.mxu0 0.0
      %313 = vmatprep.subr.mxu0 0.0
      %314 = vmatpush1.msra.mxu0 0.0
      %315 = vmatprep.subr.mxu0 0.0
      %316 = vmatpush1.msra.mxu0 0.0
      %317 = vmatprep.subr.mxu0 0.0
      %318 = vmatpush1.msra.mxu0 %v285
      %319 = vmatprep.subr.mxu0 0.0
      %320 = vmatpush2.msra.mxu0 0.0
      %321 = vmatprep.subr.mxu0 0.0
      %322 = vmatpush2.msra.mxu0 0.0
      %323 = vmatprep.subr.mxu0 0.0
      %324 = vmatpush2.msra.mxu0 0.0
      %325 = vmatprep.subr.mxu0 0.0
      %326 = vmatpush2.msra.mxu0 0.0
      %327 = vmatprep.subr.mxu0 0.0
      %328 = vmatpush2.msra.mxu0 0.0
      %329 = vmatprep.subr.mxu0 0.0
      %330 = vmatpush2.msra.mxu0 0.0
      %331 = vmatprep.subr.mxu0 0.0
      %332 = vmatpush2.msra.mxu0 0.0
      %333 = vmatprep.subr.mxu0 0.0
      %334 = vmatpush2.msra.mxu0 0.0
      %335 = vmatprep.subr.mxu0 0.0
      %336 = vmatpush2.msra.mxu0 0.0
      %337 = vmatprep.subr.mxu0 0.0
      %338 = vmatpush2.msra.mxu0 0.0
      %339 = vmatprep.subr.mxu0 0.0
      %340 = vmatpush2.msra.mxu0 0.0
      %341 = vmatprep.subr.mxu0 0.0
      %342 = vmatpush2.msra.mxu0 0.0
      %343 = vmatprep.subr.mxu0 0.0
      %344 = vmatpush2.msra.mxu0 0.0
      %345 = vmatprep.subr.mxu0 0.0
      %346 = vmatpush2.msra.mxu0 0.0
      %347 = vmatprep.subr.mxu0 0.0
      %348 = vmatpush2.msra.mxu0 0.0
      %349 = vmatprep.subr.mxu0 0.0
      %350 = vmatpush2.msra.mxu0 0.0
      %351 = vmatprep.mubr.f32.mxu0 0.0
      %352 = vmatmul.mubr.f32.gmra.mxu0 %v260
      %v353 = vpop.f32.mrf.mxu0
      %v354 = vadd.f32 %v256, %v353
      %v355 = vpop.f32.mrf.mxu0
      %356 = vmatprep.mubr.f32.mxu0 0.0
      %357 = vmatmul.mubr.f32.gmra.mxu0 %v263
      %v358 = vpop.f32.mrf.mxu0
      %v359 = vadd.f32 %v256, %v358
      %v360 = vpop.f32.mrf.mxu0
      %361 = vmatprep.mubr.f32.mxu0 0.0
      %362 = vmatmul.mubr.f32.gmra.mxu0 %v266
      %v363 = vpop.f32.mrf.mxu0
      %v364 = vadd.f32 %v256, %v363
      %v365 = vpop.f32.mrf.mxu0
      %366 = vmatprep.mubr.f32.mxu0 0.0
      %367 = vmatmul.mubr.f32.gmra.mxu0 %v269
      %v368 = vpop.f32.mrf.mxu0
      %v369 = vadd.f32 %v256, %v368
      %v370 = vpop.f32.mrf.mxu0
      %371 = vmatprep.mubr.f32.mxu0 0.0
      %372 = vmatmul.mubr.f32.gmra.mxu0 %v272
      %v373 = vpop.f32.mrf.mxu0
      %v374 = vadd.f32 %v256, %v373
      %v375 = vpop.f32.mrf.mxu0
      %376 = vmatprep.mubr.f32.mxu0 0.0
      %377 = vmatmul.mubr.f32.gmra.mxu0 %v275
      %v378 = vpop.f32.mrf.mxu0
      %v379 = vadd.f32 %v256, %v378
      %v380 = vpop.f32.mrf.mxu0
      %381 = vmatprep.mubr.f32.mxu0 0.0
      %382 = vmatmul.mubr.f32.gmra.mxu0 %v278
      %v383 = vpop.f32.mrf.mxu0
      %v384 = vadd.f32 %v256, %v383
      %v385 = vpop.f32.mrf.mxu0
      %386 = vmatprep.mubr.f32.mxu0 0.0
      %387 = vmatmul.mubr.f32.gmra.mxu0 %v281
      %v388 = vpop.f32.mrf.mxu0
      %v389 = vadd.f32 %v256, %v388
      %v390 = vpop.f32.mrf.mxu0
      %391 = vdwg.mxu0
      %vm392 = vcmask 261120
      %v393 = vsel %vm392, %v354, 0.0
      %394 = vadd.xlane.f32.xlu0 %v393
      %v395 = vpop.xlane.xlu0 %394
      %v396 = vsel %vm392, %v359, 0.0
      %397 = vadd.xlane.f32.xlu0 %v396
      %v398 = vpop.xlane.xlu0 %397
      %v399 = vsel %vm392, %v364, 0.0
      %400 = vadd.xlane.f32.xlu0 %v399
      %v401 = vpop.xlane.xlu0 %400
      %v402 = vsel %vm392, %v369, 0.0
      %403 = vadd.xlane.f32.xlu0 %v402
      %v404 = vpop.xlane.xlu0 %403
      %v405 = vsel %vm392, %v374, 0.0
      %406 = vadd.xlane.f32.xlu0 %v405
      %v407 = vpop.xlane.xlu0 %406
      %v408 = vsel %vm392, %v379, 0.0
      %409 = vadd.xlane.f32.xlu0 %v408
      %v410 = vpop.xlane.xlu0 %409
      %v411 = vsel %vm392, %v384, 0.0
      %412 = vadd.xlane.f32.xlu0 %v411
      %v413 = vpop.xlane.xlu0 %412
      %v414 = vsel %vm392, %v389, 0.0
      %415 = vadd.xlane.f32.xlu0 %v414
      %v416 = vpop.xlane.xlu0 %415
      %v417 = vrcp.pop 32.0
      %v418 = vmul.f32 %v395, %v417
      %v419 = vmul.f32 %v398, %v417
      %v420 = vmul.f32 %v401, %v417
      %v421 = vmul.f32 %v404, %v417
      %v422 = vmul.f32 %v407, %v417
      %v423 = vmul.f32 %v410, %v417
      %v424 = vmul.f32 %v413, %v417
      %v425 = vmul.f32 %v416, %v417
      %v426 = vsub.f32 %v354, %v418
      %v427 = vsub.f32 %v359, %v419
      %v428 = vsub.f32 %v364, %v420
      %v429 = vsub.f32 %v369, %v421
      %v430 = vsub.f32 %v374, %v422
      %v431 = vsub.f32 %v379, %v423
      %v432 = vsub.f32 %v384, %v424
      %v433 = vsub.f32 %v389, %v425
      %v434 = vmul.f32 %v426, %v426
      %v435 = vmul.f32 %v427, %v427
      %v436 = vmul.f32 %v428, %v428
      %v437 = vmul.f32 %v429, %v429
      %v438 = vmul.f32 %v430, %v430
      %v439 = vmul.f32 %v431, %v431
      %v440 = vmul.f32 %v432, %v432
      %v441 = vmul.f32 %v433, %v433
      %v442 = vsel %vm392, %v434, 0.0
      %443 = vadd.xlane.f32.xlu0 %v442
      %v444 = vpop.xlane.xlu0 %443
      %v445 = vsel %vm392, %v435, 0.0
      %446 = vadd.xlane.f32.xlu0 %v445
      %v447 = vpop.xlane.xlu0 %446
      %v448 = vsel %vm392, %v436, 0.0
      %449 = vadd.xlane.f32.xlu0 %v448
      %v450 = vpop.xlane.xlu0 %449
      %v451 = vsel %vm392, %v437, 0.0
      %452 = vadd.xlane.f32.xlu0 %v451
      %v453 = vpop.xlane.xlu0 %452
      %v454 = vsel %vm392, %v438, 0.0
      %455 = vadd.xlane.f32.xlu0 %v454
      %v456 = vpop.xlane.xlu0 %455
      %v457 = vsel %vm392, %v439, 0.0
      %458 = vadd.xlane.f32.xlu0 %v457
      %v459 = vpop.xlane.xlu0 %458
      %v460 = vsel %vm392, %v440, 0.0
      %461 = vadd.xlane.f32.xlu0 %v460
      %v462 = vpop.xlane.xlu0 %461
      %v463 = vsel %vm392, %v441, 0.0
      %464 = vadd.xlane.f32.xlu0 %v463
      %v465 = vpop.xlane.xlu0 %464
      %v466 = vmul.f32 %v444, %v417
      %v467 = vmul.f32 %v447, %v417
      %v468 = vmul.f32 %v450, %v417
      %v469 = vmul.f32 %v453, %v417
      %v470 = vmul.f32 %v456, %v417
      %v471 = vmul.f32 %v459, %v417
      %v472 = vmul.f32 %v462, %v417
      %v473 = vmul.f32 %v465, %v417
      %v474 = vadd.f32 %v466, 1e-06
      %v475 = vadd.f32 %v467, 1e-06
      %v476 = vadd.f32 %v468, 1e-06
      %v477 = vadd.f32 %v469, 1e-06
      %v478 = vadd.f32 %v470, 1e-06
      %v479 = vadd.f32 %v471, 1e-06
      %v480 = vadd.f32 %v472, 1e-06
      %v481 = vadd.f32 %v473, 1e-06
      %v482 = vrsqrt.pop %v474
      %v483 = vrsqrt.pop %v475
      %v484 = vrsqrt.pop %v476
      %v485 = vrsqrt.pop %v477
      %v486 = vrsqrt.pop %v478
      %v487 = vrsqrt.pop %v479
      %v488 = vrsqrt.pop %v480
      %v489 = vrsqrt.pop %v481
      %v490 = vmul.f32 %v426, %v482
      %v491 = vmul.f32 %v427, %v483
      %v492 = vmul.f32 %v428, %v484
      %v493 = vmul.f32 %v429, %v485
      %v494 = vmul.f32 %v430, %v486
      %v495 = vmul.f32 %v431, %v487
      %v496 = vmul.f32 %v432, %v488
      %v497 = vmul.f32 %v433, %v489
      %v498 = vld [vmem:[%s3] sm:$0x1]
      %v500 = vlaneseq
      %v501 = vshrl.u32 %v500, 7
      %v502 = vsub.s32 0, %v501
      %v503 = vrot.slane %v498, %v502
      %v505 = vmul.f32 %v490, %v503
      %v506 = vmul.f32 %v491, %v503
      %v507 = vmul.f32 %v492, %v503
      %v508 = vmul.f32 %v493, %v503
      %v509 = vmul.f32 %v494, %v503
      %v510 = vmul.f32 %v495, %v503
      %v511 = vmul.f32 %v496, %v503
      %v512 = vmul.f32 %v497, %v503
      %v513 = vld [vmem:[%s4] sm:$0x1]
      %v515 = vlaneseq
      %v516 = vshrl.u32 %v515, 7
      %v517 = vsub.s32 0, %v516
      %v518 = vrot.slane %v513, %v517
      %v520 = vadd.f32 %v505, %v518
      %v521 = vadd.f32 %v506, %v518
      %v522 = vadd.f32 %v507, %v518
      %v523 = vadd.f32 %v508, %v518
      %v524 = vadd.f32 %v509, %v518
      %v525 = vadd.f32 %v510, %v518
      %v526 = vadd.f32 %v511, %v518
      %v527 = vadd.f32 %v512, %v518
      %528 = vst.msk [vmem:[%s224] sm:$0xff] %vm392, %v520
      %529 = vst.msk [vmem:[%s224 + $0x8] sm:$0xff] %vm392, %v521
      %530 = vst.msk [vmem:[%s224 + $0x10] sm:$0xff] %vm392, %v522
      %531 = vst.msk [vmem:[%s224 + $0x18] sm:$0xff] %vm392, %v523
      %532 = vst.msk [vmem:[%s224 + $0x20] sm:$0xff] %vm392, %v524
      %533 = vst.msk [vmem:[%s224 + $0x28] sm:$0xff] %vm392, %v525
      %534 = vst.msk [vmem:[%s224 + $0x30] sm:$0xff] %vm392, %v526
      %535 = vst.msk [vmem:[%s224 + $0x38] sm:$0xff] %vm392, %v527
      %p536 = scmp.lt.s32.totalorder %s16, 1
      %s537 = scalar_select %p536, %s16, 1
      %s538 = smul.addr %s537, 8
      %s539 = smul.addr %s538, 8
      %s540 = scalar_lea.vmem %s5, %s539
      // Predicated region
      $region41: #{_lambda_.8} parent=39 // pred_check
        %p541 = pneg %p144
      $region42: #{_lambda_.8} parent=39 // pred_check_branch
        %543 = sbr.rel (%p541) target = $region44
      $region43: #{_lambda_.8} parent=39 // pred_region
        _
      $region44: #{_lambda_.8} parent=39 // pred_fallthru
        _
    $region40: #{_lambda_.8} parent=5 // pred_fallthru
      _
    %p544 = scmp.le.s32.totalorder 2, %s11
    // Predicated region
    $region45: #{_lambda_.8} parent=5 // pred_check
      %p545 = pneg %p544
    $region46: #{_lambda_.8} parent=5 // pred_check_branch
      %547 = sbr.rel (%p545) target = $region48
    $region47: #{_lambda_.8} parent=5 // pred_region
      %s548 = ssub.s32 %s11, 2
      // Predicated region
      $region49: #{_lambda_.8} parent=47 // pred_check
        %p549 = pneg %p150
      $region50: #{_lambda_.8} parent=47 // pred_check_branch
        %551 = sbr.rel (%p549) target = $region52
      $region51: #{_lambda_.8} parent=47 // pred_region
        %p552 = scmp.lt.s32.totalorder %s17, 1
        %s553 = scalar_select %p552, %s17, 1
        %s554 = smul.addr %s553, 8
        %s555 = smul.addr %s554, 8
        %s556 = scalar_lea.vmem %s5, %s555
      $region52: #{_lambda_.8} parent=47 // pred_fallthru
        _
    $region48: #{_lambda_.8} parent=5 // pred_fallthru
      _
  $region6: #{_lambda_.8} parent=0 // loop_footer
    %s15 = sadd.s32 1, %s11
  $region7: #{_lambda_.8} parent=0 // loop_footer_branch
    %10 = sbr.rel target = $region3
  $region8: #{_lambda_.8} parent=0 // loop_exit
    _

// kernel: _lambda_.9
$region0: #{_lambda_.9}
  #allocation0 [shape = 'u32[]', space=smem, size = 0x4, offset = 0x4, fixed_abs, tag = 'smem constant byte address 0x4 - core index']
  #allocation1 [shape = 'u32[144,128]{1,0:T(1,128)}', space=vmem, size = 0x12000, scoped, tag = 'internal scratch']
  %s0 = inlined_call_operand.vmem [shape: f32[2,64,32], index: 0, kind: input, shape index: {}]
  %s1 = inlined_call_operand.vmem [shape: f32[7,32], index: 1, kind: input, shape index: {}]
  %s2 = inlined_call_operand.vmem [shape: f32[1,32], index: 2, kind: input, shape index: {}]
  %s3 = inlined_call_operand.vmem [shape: f32[1,32], index: 3, kind: input, shape index: {}]
  %s4 = inlined_call_operand.vmem [shape: f32[1,32], index: 4, kind: input, shape index: {}]
  %s5 = inlined_call_operand.vmem [shape: f32[32,128], index: 5, kind: input, shape index: {}]
  %s6 = inlined_call_operand.vmem [shape: f32[1,128], index: 6, kind: input, shape index: {}]
  %s7 = inlined_call_operand.vmem [shape: f32[1,128], index: 7, kind: input, shape index: {}]
  %s8 = inlined_call_operand.vmem [shape: f32[1,128], index: 8, kind: input, shape index: {}]
  %s9 = inlined_call_operand.vmem [shape: f32[128,32], index: 9, kind: input, shape index: {}]
  %s10 = inlined_call_operand.vmem [shape: f32[1,32], index: 10, kind: input, shape index: {}]
  %s11 = inlined_call_operand.vmem [shape: f32[2,64,32], index: 11, kind: output, shape index: {}]
  %s12 = sld [smem:[#allocation0]]
  $region77: #{_lambda_.9} parent=0
    _
  %s14 = ssub.s32 1, %s12
  %s15 = scalar_select 0, %s14, %s12
  loop: start=0, step=1, limit=4
  $region2: #{_lambda_.9} parent=0 // loop_pre_header
    _
  $region3: #{_lambda_.9} parent=0 // loop_header
    %s17 = sphi 0, %s21
    %p18 = scmp.ge.s32.totalorder %s17, 4
    %s27 = sphi 0, %s29
    %s30 = sphi 0, %s27
    %s31 = sphi 0, %s30
    %s47 = sphi 0, %s31
    %s51 = sphi 0, %s51
    %s53 = sphi 0, %s51
    %s54 = sphi 0, %s53
    %s68 = sphi 0, %s54
    %s72 = sphi 0, %s72
    %s74 = sphi 0, %s72
    %s75 = sphi 0, %s74
    %s89 = sphi 0, %s75
    %s93 = sphi 0, %s93
    %s95 = sphi 0, %s93
    %s96 = sphi 0, %s95
    %s110 = sphi 0, %s96
    %s114 = sphi 0, %s114
    %s116 = sphi 0, %s114
    %s117 = sphi 0, %s116
    %s131 = sphi 0, %s117
    %s135 = sphi 0, %s135
    %s137 = sphi 0, %s135
    %s138 = sphi 0, %s137
    %s152 = sphi 0, %s138
    %s156 = sphi 0, %s156
    %s158 = sphi 0, %s156
    %s159 = sphi 0, %s158
    %s173 = sphi 0, %s159
    %s177 = sphi 0, %s177
    %s179 = sphi 0, %s177
    %s180 = sphi 0, %s179
    %s194 = sphi 0, %s180
    %s198 = sphi 0, %s198
    %s200 = sphi 0, %s198
    %s201 = sphi 0, %s200
    %s215 = sphi 0, %s201
    %s219 = sphi 0, %s219
    %s221 = sphi 0, %s219
    %s222 = sphi 0, %s221
    %s236 = sphi 0, %s222
    %s240 = sphi 0, %s240
    %s242 = sphi 0, %s240
    %s243 = sphi 0, %s242
    %s257 = sphi 0, %s243
    %s263 = sphi 0, %s265
    %s266 = sphi 0, %s263
    %s267 = sphi 0, %s266
    %s283 = sphi 0, %s267
  $region4: #{_lambda_.9} parent=0 // loop_header_branch
    %20 = sbr.rel (%p18) target = $region8
  $region5: #{_lambda_.9} parent=0 // loop_body
    %s22 = ssub.s32 %s17, 1
    %s23 = ssub.s32 %s17, 2
    %s24 = sadd.s32 %s17, 1
    %s25 = ssub.s32 %s17, %s24
    %p26 = scmp.eq.s32.totalorder %s25, 0
    %s28 = sadd.s32 %s27, 1
    %s29 = scalar_select %p26, %s27, %s28
    %p32 = pneg %p26
    %p33 = scmp.eq.s32.totalorder %s17, 1
    %p34 = por %p32, %p33
    %p35 = scmp.ne.s32.totalorder %s27, %s30
    %p36 = scmp.eq.s32.totalorder %s17, 0
    %p37 = por %p35, %p36
    %p38 = scmp.ne.s32.totalorder %s27, %s30
    %p39 = scmp.eq.s32.totalorder %s22, 1
    %p40 = por %p38, %p39
    %p41 = scmp.ne.s32.totalorder %s30, %s31
    %p42 = scmp.eq.s32.totalorder %s22, 0
    %p43 = por %p41, %p42
    %p44 = scmp.ne.s32.totalorder %s30, %s31
    %p45 = scmp.eq.s32.totalorder %s23, 1
    %p46 = por %p44, %p45
    %p48 = scmp.ne.s32.totalorder %s31, %s47
    %p49 = scmp.eq.s32.totalorder %s23, 0
    %p50 = por %p48, %p49
    %s52 = sadd.s32 %s51, 1
    %p55 = scmp.eq.s32.totalorder %s17, 1
    %p56 = scmp.ne.s32.totalorder %s51, %s53
    %p57 = scmp.eq.s32.totalorder %s17, 0
    %p58 = por %p56, %p57
    %p59 = scmp.ne.s32.totalorder %s51, %s53
    %p60 = scmp.eq.s32.totalorder %s22, 1
    %p61 = por %p59, %p60
    %p62 = scmp.ne.s32.totalorder %s53, %s54
    %p63 = scmp.eq.s32.totalorder %s22, 0
    %p64 = por %p62, %p63
    %p65 = scmp.ne.s32.totalorder %s53, %s54
    %p66 = scmp.eq.s32.totalorder %s23, 1
    %p67 = por %p65, %p66
    %p69 = scmp.ne.s32.totalorder %s54, %s68
    %p70 = scmp.eq.s32.totalorder %s23, 0
    %p71 = por %p69, %p70
    %s73 = sadd.s32 %s72, 1
    %p76 = scmp.eq.s32.totalorder %s17, 1
    %p77 = scmp.ne.s32.totalorder %s72, %s74
    %p78 = scmp.eq.s32.totalorder %s17, 0
    %p79 = por %p77, %p78
    %p80 = scmp.ne.s32.totalorder %s72, %s74
    %p81 = scmp.eq.s32.totalorder %s22, 1
    %p82 = por %p80, %p81
    %p83 = scmp.ne.s32.totalorder %s74, %s75
    %p84 = scmp.eq.s32.totalorder %s22, 0
    %p85 = por %p83, %p84
    %p86 = scmp.ne.s32.totalorder %s74, %s75
    %p87 = scmp.eq.s32.totalorder %s23, 1
    %p88 = por %p86, %p87
    %p90 = scmp.ne.s32.totalorder %s75, %s89
    %p91 = scmp.eq.s32.totalorder %s23, 0
    %p92 = por %p90, %p91
    %s94 = sadd.s32 %s93, 1
    %p97 = scmp.eq.s32.totalorder %s17, 1
    %p98 = scmp.ne.s32.totalorder %s93, %s95
    %p99 = scmp.eq.s32.totalorder %s17, 0
    %p100 = por %p98, %p99
    %p101 = scmp.ne.s32.totalorder %s93, %s95
    %p102 = scmp.eq.s32.totalorder %s22, 1
    %p103 = por %p101, %p102
    %p104 = scmp.ne.s32.totalorder %s95, %s96
    %p105 = scmp.eq.s32.totalorder %s22, 0
    %p106 = por %p104, %p105
    %p107 = scmp.ne.s32.totalorder %s95, %s96
    %p108 = scmp.eq.s32.totalorder %s23, 1
    %p109 = por %p107, %p108
    %p111 = scmp.ne.s32.totalorder %s96, %s110
    %p112 = scmp.eq.s32.totalorder %s23, 0
    %p113 = por %p111, %p112
    %s115 = sadd.s32 %s114, 1
    %p118 = scmp.eq.s32.totalorder %s17, 1
    %p119 = scmp.ne.s32.totalorder %s114, %s116
    %p120 = scmp.eq.s32.totalorder %s17, 0
    %p121 = por %p119, %p120
    %p122 = scmp.ne.s32.totalorder %s114, %s116
    %p123 = scmp.eq.s32.totalorder %s22, 1
    %p124 = por %p122, %p123
    %p125 = scmp.ne.s32.totalorder %s116, %s117
    %p126 = scmp.eq.s32.totalorder %s22, 0
    %p127 = por %p125, %p126
    %p128 = scmp.ne.s32.totalorder %s116, %s117
    %p129 = scmp.eq.s32.totalorder %s23, 1
    %p130 = por %p128, %p129
    %p132 = scmp.ne.s32.totalorder %s117, %s131
    %p133 = scmp.eq.s32.totalorder %s23, 0
    %p134 = por %p132, %p133
    %s136 = sadd.s32 %s135, 1
    %p139 = scmp.eq.s32.totalorder %s17, 1
    %p140 = scmp.ne.s32.totalorder %s135, %s137
    %p141 = scmp.eq.s32.totalorder %s17, 0
    %p142 = por %p140, %p141
    %p143 = scmp.ne.s32.totalorder %s135, %s137
    %p144 = scmp.eq.s32.totalorder %s22, 1
    %p145 = por %p143, %p144
    %p146 = scmp.ne.s32.totalorder %s137, %s138
    %p147 = scmp.eq.s32.totalorder %s22, 0
    %p148 = por %p146, %p147
    %p149 = scmp.ne.s32.totalorder %s137, %s138
    %p150 = scmp.eq.s32.totalorder %s23, 1
    %p151 = por %p149, %p150
    %p153 = scmp.ne.s32.totalorder %s138, %s152
    %p154 = scmp.eq.s32.totalorder %s23, 0
    %p155 = por %p153, %p154
    %s157 = sadd.s32 %s156, 1
    %p160 = scmp.eq.s32.totalorder %s17, 1
    %p161 = scmp.ne.s32.totalorder %s156, %s158
    %p162 = scmp.eq.s32.totalorder %s17, 0
    %p163 = por %p161, %p162
    %p164 = scmp.ne.s32.totalorder %s156, %s158
    %p165 = scmp.eq.s32.totalorder %s22, 1
    %p166 = por %p164, %p165
    %p167 = scmp.ne.s32.totalorder %s158, %s159
    %p168 = scmp.eq.s32.totalorder %s22, 0
    %p169 = por %p167, %p168
    %p170 = scmp.ne.s32.totalorder %s158, %s159
    %p171 = scmp.eq.s32.totalorder %s23, 1
    %p172 = por %p170, %p171
    %p174 = scmp.ne.s32.totalorder %s159, %s173
    %p175 = scmp.eq.s32.totalorder %s23, 0
    %p176 = por %p174, %p175
    %s178 = sadd.s32 %s177, 1
    %p181 = scmp.eq.s32.totalorder %s17, 1
    %p182 = scmp.ne.s32.totalorder %s177, %s179
    %p183 = scmp.eq.s32.totalorder %s17, 0
    %p184 = por %p182, %p183
    %p185 = scmp.ne.s32.totalorder %s177, %s179
    %p186 = scmp.eq.s32.totalorder %s22, 1
    %p187 = por %p185, %p186
    %p188 = scmp.ne.s32.totalorder %s179, %s180
    %p189 = scmp.eq.s32.totalorder %s22, 0
    %p190 = por %p188, %p189
    %p191 = scmp.ne.s32.totalorder %s179, %s180
    %p192 = scmp.eq.s32.totalorder %s23, 1
    %p193 = por %p191, %p192
    %p195 = scmp.ne.s32.totalorder %s180, %s194
    %p196 = scmp.eq.s32.totalorder %s23, 0
    %p197 = por %p195, %p196
    %s199 = sadd.s32 %s198, 1
    %p202 = scmp.eq.s32.totalorder %s17, 1
    %p203 = scmp.ne.s32.totalorder %s198, %s200
    %p204 = scmp.eq.s32.totalorder %s17, 0
    %p205 = por %p203, %p204
    %p206 = scmp.ne.s32.totalorder %s198, %s200
    %p207 = scmp.eq.s32.totalorder %s22, 1
    %p208 = por %p206, %p207
    %p209 = scmp.ne.s32.totalorder %s200, %s201
    %p210 = scmp.eq.s32.totalorder %s22, 0
    %p211 = por %p209, %p210
    %p212 = scmp.ne.s32.totalorder %s200, %s201
    %p213 = scmp.eq.s32.totalorder %s23, 1
    %p214 = por %p212, %p213
    %p216 = scmp.ne.s32.totalorder %s201, %s215
    %p217 = scmp.eq.s32.totalorder %s23, 0
    %p218 = por %p216, %p217
    %s220 = sadd.s32 %s219, 1
    %p223 = scmp.eq.s32.totalorder %s17, 1
    %p224 = scmp.ne.s32.totalorder %s219, %s221
    %p225 = scmp.eq.s32.totalorder %s17, 0
    %p226 = por %p224, %p225
    %p227 = scmp.ne.s32.totalorder %s219, %s221
    %p228 = scmp.eq.s32.totalorder %s22, 1
    %p229 = por %p227, %p228
    %p230 = scmp.ne.s32.totalorder %s221, %s222
    %p231 = scmp.eq.s32.totalorder %s22, 0
    %p232 = por %p230, %p231
    %p233 = scmp.ne.s32.totalorder %s221, %s222
    %p234 = scmp.eq.s32.totalorder %s23, 1
    %p235 = por %p233, %p234
    %p237 = scmp.ne.s32.totalorder %s222, %s236
    %p238 = scmp.eq.s32.totalorder %s23, 0
    %p239 = por %p237, %p238
    %s241 = sadd.s32 %s240, 1
    %p244 = scmp.eq.s32.totalorder %s17, 1
    %p245 = scmp.ne.s32.totalorder %s240, %s242
    %p246 = scmp.eq.s32.totalorder %s17, 0
    %p247 = por %p245, %p246
    %p248 = scmp.ne.s32.totalorder %s240, %s242
    %p249 = scmp.eq.s32.totalorder %s22, 1
    %p250 = por %p248, %p249
    %p251 = scmp.ne.s32.totalorder %s242, %s243
    %p252 = scmp.eq.s32.totalorder %s22, 0
    %p253 = por %p251, %p252
    %p254 = scmp.ne.s32.totalorder %s242, %s243
    %p255 = scmp.eq.s32.totalorder %s23, 1
    %p256 = por %p254, %p255
    %p258 = scmp.ne.s32.totalorder %s243, %s257
    %p259 = scmp.eq.s32.totalorder %s23, 0
    %p260 = por %p258, %p259
    %s261 = ssub.s32 %s17, %s24
    %p262 = scmp.eq.s32.totalorder %s261, 0
    %s264 = sadd.s32 %s263, 1
    %s265 = scalar_select %p262, %s263, %s264
    %p268 = pneg %p262
    %p269 = scmp.eq.s32.totalorder %s17, 1
    %p270 = por %p268, %p269
    %p271 = scmp.ne.s32.totalorder %s263, %s266
    %p272 = scmp.eq.s32.totalorder %s17, 0
    %p273 = por %p271, %p272
    %p274 = scmp.ne.s32.totalorder %s263, %s266
    %p275 = scmp.eq.s32.totalorder %s22, 1
    %p276 = por %p274, %p275
    %p277 = scmp.ne.s32.totalorder %s266, %s267
    %p278 = scmp.eq.s32.totalorder %s22, 0
    %p279 = por %p277, %p278
    %p280 = scmp.ne.s32.totalorder %s266, %s267
    %p281 = scmp.eq.s32.totalorder %s23, 1
    %p282 = por %p280, %p281
    %p284 = scmp.ne.s32.totalorder %s267, %s283
    %p285 = scmp.eq.s32.totalorder %s23, 0
    %p286 = por %p284, %p285
    %p287 = scmp.le.s32.totalorder 1, %s17
    %p288 = scmp.lt.s32.totalorder %s17, 3
    %p289 = pnand %p287, %p288
    %p290 = pneg %p289
    // Predicated region
    $region9: #{_lambda_.9} parent=5 // pred_check
      _
    $region10: #{_lambda_.9} parent=5 // pred_check_branch
      %292 = sbr.rel (%p289) target = $region12
    $region11: #{_lambda_.9} parent=5 // pred_region
      %s293 = ssub.s32 %s17, 1
      // Predicated region
      $region13: #{_lambda_.9} parent=11 // pred_check
        %p294 = pneg %p64
      $region14: #{_lambda_.9} parent=11 // pred_check_branch
        %296 = sbr.rel (%p294) target = $region16
      $region15: #{_lambda_.9} parent=11 // pred_region
        _
      $region16: #{_lambda_.9} parent=11 // pred_fallthru
        _
      // Predicated region
      $region17: #{_lambda_.9} parent=11 // pred_check
        %p297 = pneg %p85
      $region18: #{_lambda_.9} parent=11 // pred_check_branch
        %299 = sbr.rel (%p297) target = $region20
      $region19: #{_lambda_.9} parent=11 // pred_region
        _
      $region20: #{_lambda_.9} parent=11 // pred_fallthru
        _
      // Predicated region
      $region21: #{_lambda_.9} parent=11 // pred_check
        %p300 = pneg %p106
      $region22: #{_lambda_.9} parent=11 // pred_check_branch
        %302 = sbr.rel (%p300) target = $region24
      $region23: #{_lambda_.9} parent=11 // pred_region
        _
      $region24: #{_lambda_.9} parent=11 // pred_fallthru
        _
      // Predicated region
      $region25: #{_lambda_.9} parent=11 // pred_check
        %p303 = pneg %p127
      $region26: #{_lambda_.9} parent=11 // pred_check_branch
        %305 = sbr.rel (%p303) target = $region28
      $region27: #{_lambda_.9} parent=11 // pred_region
        _
      $region28: #{_lambda_.9} parent=11 // pred_fallthru
        _
      // Predicated region
      $region29: #{_lambda_.9} parent=11 // pred_check
        %p306 = pneg %p148
      $region30: #{_lambda_.9} parent=11 // pred_check_branch
        %308 = sbr.rel (%p306) target = $region32
      $region31: #{_lambda_.9} parent=11 // pred_region
        _
      $region32: #{_lambda_.9} parent=11 // pred_fallthru
        _
      // Predicated region
      $region33: #{_lambda_.9} parent=11 // pred_check
        %p309 = pneg %p169
      $region34: #{_lambda_.9} parent=11 // pred_check_branch
        %311 = sbr.rel (%p309) target = $region36
      $region35: #{_lambda_.9} parent=11 // pred_region
        _
      $region36: #{_lambda_.9} parent=11 // pred_fallthru
        _
      // Predicated region
      $region37: #{_lambda_.9} parent=11 // pred_check
        %p312 = pneg %p190
      $region38: #{_lambda_.9} parent=11 // pred_check_branch
        %314 = sbr.rel (%p312) target = $region40
      $region39: #{_lambda_.9} parent=11 // pred_region
        _
      $region40: #{_lambda_.9} parent=11 // pred_fallthru
        _
      // Predicated region
      $region41: #{_lambda_.9} parent=11 // pred_check
        %p315 = pneg %p211
      $region42: #{_lambda_.9} parent=11 // pred_check_branch
        %317 = sbr.rel (%p315) target = $region44
      $region43: #{_lambda_.9} parent=11 // pred_region
        _
      $region44: #{_lambda_.9} parent=11 // pred_fallthru
        _
      // Predicated region
      $region45: #{_lambda_.9} parent=11 // pred_check
        %p318 = pneg %p232
      $region46: #{_lambda_.9} parent=11 // pred_check_branch
        %320 = sbr.rel (%p318) target = $region48
      $region47: #{_lambda_.9} parent=11 // pred_region
        _
      $region48: #{_lambda_.9} parent=11 // pred_fallthru
        _
      // Predicated region
      $region49: #{_lambda_.9} parent=11 // pred_check
        %p321 = pneg %p253
      $region50: #{_lambda_.9} parent=11 // pred_check_branch
        %323 = sbr.rel (%p321) target = $region52
      $region51: #{_lambda_.9} parent=11 // pred_region
        _
      $region52: #{_lambda_.9} parent=11 // pred_fallthru
        _
    $region12: #{_lambda_.9} parent=5 // pred_fallthru
      _
    %p324 = scmp.lt.s32.totalorder %s17, 2
    // Predicated region
    $region53: #{_lambda_.9} parent=5 // pred_check
      %p325 = pneg %p324
    $region54: #{_lambda_.9} parent=5 // pred_check_branch
      %327 = sbr.rel (%p325) target = $region56
    $region55: #{_lambda_.9} parent=5 // pred_region
      // Predicated region
      $region57: #{_lambda_.9} parent=55 // pred_check
        %p328 = pneg %p37
      $region58: #{_lambda_.9} parent=55 // pred_check_branch
        %330 = sbr.rel (%p328) target = $region60
      $region59: #{_lambda_.9} parent=55 // pred_region
        %p331 = scmp.lt.s32.totalorder %s17, 1
        %s332 = scalar_select %p331, %s17, 1
        %s333 = smul.addr %s332, 8
        %s334 = smul.addr %s333, 8
        %s335 = scalar_lea.vmem %s0, %s334
      $region60: #{_lambda_.9} parent=55 // pred_fallthru
        _
    $region56: #{_lambda_.9} parent=5 // pred_fallthru
      _
    %p336 = scmp.le.s32.totalorder 1, %s17
    %p337 = scmp.lt.s32.totalorder %s17, 3
    %p338 = pnand %p336, %p337
    %p339 = pneg %p338
    // Predicated region
    $region61: #{_lambda_.9} parent=5 // pred_check
      _
    $region62: #{_lambda_.9} parent=5 // pred_check_branch
      %341 = sbr.rel (%p338) target = $region64
    $region63: #{_lambda_.9} parent=5 // pred_region
      %s342 = ssub.s32 %s17, 1
      %p343 = scmp.lt.s32.totalorder %s22, 1
      %s344 = scalar_select %p343, %s22, 1
      %s345 = smul.addr %s344, 8
      %s346 = smul.addr %s345, 8
      %s347 = scalar_lea.vmem %s0, %s346
      %p348 = pneg %p43
      %p349 = pneg %p40
      %p350 = pneg %p64
      %p351 = pneg %p61
      %p352 = pneg %p85
      %p353 = pneg %p82
      %p354 = pneg %p106
      %p355 = pneg %p103
      %p356 = pneg %p127
      %p357 = pneg %p124
      %p358 = pneg %p148
      %p359 = pneg %p145
      %p360 = pneg %p169
      %p361 = pneg %p166
      %p362 = pneg %p190
      %p363 = pneg %p187
      %p364 = pneg %p211
      %p365 = pneg %p208
      %p366 = pneg %p232
      %p367 = pneg %p229
      %p368 = pneg %p253
      %p369 = pneg %p250
      %p370 = pneg %p279
      %p371 = pneg %p276
      %p372 = scmp.lt.s32.totalorder %s22, 1
      %s373 = scalar_select %p372, %s22, 1
      %s374 = smul.addr %s373, 8
      %s375 = smul.addr %s374, 8
      %s376 = scalar_lea.vmem %s11, %s375
      %p377 = scmp.lt.s32.totalorder %s22, 1
      %s378 = scalar_select %p377, %s22, 1
      %s379 = smul.addr %s378, 8
      %s380 = smul.addr %s379, 8
      %s381 = scalar_lea.vmem %s0, %s380
      %p382 = scmp.lt.s32.totalorder %s22, 1
      %s383 = scalar_select %p382, %s22, 1
      %s384 = smul.addr %s383, 8
      %s385 = smul.addr %s384, 8
      %s386 = scalar_lea.vmem %s11, %s385
      %v387 = vld [vmem:[%s381] sm:$0xff]
      %v388 = vld [vmem:[%s381 + $0x8] sm:$0xff]
      %v389 = vld [vmem:[%s381 + $0x10] sm:$0xff]
      %v390 = vld [vmem:[%s381 + $0x18] sm:$0xff]
      %v391 = vld [vmem:[%s381 + $0x20] sm:$0xff]
      %v392 = vld [vmem:[%s381 + $0x28] sm:$0xff]
      %v393 = vld [vmem:[%s381 + $0x30] sm:$0xff]
      %v394 = vld [vmem:[%s381 + $0x38] sm:$0xff]
      %v395 = vld [vmem:[%s1] sm:$0x7f]
      %v396 = vlaneseq
      %v397 = vshrl.u32 %v396, 7
      %v398 = vsub.s32 0, %v397
      %v399 = vrot.slane %v395, %v398
      %v400 = vmul.f32 %v399, 0.0
      %v401 = vmul.f32 %v387, %v399
      %v402 = vmul.f32 %v388, %v399
      %v403 = vmul.f32 %v389, %v399
      %v404 = vmul.f32 %v390, %v399
      %v405 = vmul.f32 %v391, %v399
      %v406 = vmul.f32 %v392, %v399
      %v407 = vmul.f32 %v393, %v399
      %v408 = vmul.f32 %v394, %v399
      %v409 = vadd.f32 %v400, 0.0
      %v410 = vadd.f32 %v401, 0.0
      %v411 = vadd.f32 %v402, 0.0
      %v412 = vadd.f32 %v403, 0.0
      %v413 = vadd.f32 %v404, 0.0
      %v414 = vadd.f32 %v405, 0.0
      %v415 = vadd.f32 %v406, 0.0
      %v416 = vadd.f32 %v407, 0.0
      %v417 = vadd.f32 %v408, 0.0
      %v418 = vlaneseq
      %v419 = vshrl.u32 %v418, 7
      %v420 = vsub.s32 1, %v419
      %v421 = vrot.slane %v395, %v420
      %v422 = vmul.f32 %v421, 0.0
      %v423 = vmul.f32 %v387, %v421
      %v424 = vmul.f32 %v388, %v421
      %v425 = vmul.f32 %v389, %v421
      %v426 = vmul.f32 %v390, %v421
      %v427 = vmul.f32 %v391, %v421
      %v428 = vmul.f32 %v392, %v421
      %v429 = vmul.f32 %v393, %v421
      %v430 = vmul.f32 %v394, %v421
      %vm440 = vcmask 1046528
      %v441 = vrot.slane %v422, 1
      %v442 = vrot.slane %v423, 1
      %v443 = vsel %vm440, %v441, %v442
      %v444 = vrot.slane %v424, 1
      %v445 = vsel %vm440, %v442, %v444
      %v446 = vrot.slane %v425, 1
      %v447 = vsel %vm440, %v444, %v446
      %v448 = vrot.slane %v426, 1
      %v449 = vsel %vm440, %v446, %v448
      %v450 = vrot.slane %v427, 1
      %v451 = vsel %vm440, %v448, %v450
      %v452 = vrot.slane %v428, 1
      %v453 = vsel %vm440, %v450, %v452
      %v454 = vrot.slane %v429, 1
      %v455 = vsel %vm440, %v452, %v454
      %v456 = vrot.slane %v430, 1
      %v457 = vsel %vm440, %v454, %v456
      %v467 = vadd.f32 %v409, %v443
      %v468 = vadd.f32 %v410, %v445
      %v469 = vadd.f32 %v411, %v447
      %v470 = vadd.f32 %v412, %v449
      %v471 = vadd.f32 %v413, %v451
      %v472 = vadd.f32 %v414, %v453
      %v473 = vadd.f32 %v415, %v455
      %v474 = vadd.f32 %v416, %v457
      %v475 = vadd.f32 %v417, %v456
      %v476 = vlaneseq
      %v477 = vshrl.u32 %v476, 7
      %v478 = vsub.s32 2, %v477
      %v479 = vrot.slane %v395, %v478
      %v480 = vmul.f32 %v479, 0.0
      %v481 = vmul.f32 %v387, %v479
      %v482 = vmul.f32 %v388, %v479
      %v483 = vmul.f32 %v389, %v479
      %v484 = vmul.f32 %v390, %v479
      %v485 = vmul.f32 %v391, %v479
      %v486 = vmul.f32 %v392, %v479
      %v487 = vmul.f32 %v393, %v479
      %v488 = vmul.f32 %v394, %v479
      %vm498 = vcmask 1045504
      %v499 = vrot.slane %v480, 2
      %v500 = vrot.slane %v481, 2
      %v501 = vsel %vm498, %v499, %v500
      %v502 = vrot.slane %v482, 2
      %v503 = vsel %vm498, %v500, %v502
      %v504 = vrot.slane %v483, 2
      %v505 = vsel %vm498, %v502, %v504
      %v506 = vrot.slane %v484, 2
      %v507 = vsel %vm498, %v504, %v506
      %v508 = vrot.slane %v485, 2
      %v509 = vsel %vm498, %v506, %v508
      %v510 = vrot.slane %v486, 2
      %v511 = vsel %vm498, %v508, %v510
      %v512 = vrot.slane %v487, 2
      %v513 = vsel %vm498, %v510, %v512
      %v514 = vrot.slane %v488, 2
      %v515 = vsel %vm498, %v512, %v514
      %v525 = vadd.f32 %v467, %v501
      %v526 = vadd.f32 %v468, %v503
      %v527 = vadd.f32 %v469, %v505
      %v528 = vadd.f32 %v470, %v507
      %v529 = vadd.f32 %v471, %v509
      %v530 = vadd.f32 %v472, %v511
      %v531 = vadd.f32 %v473, %v513
      %v532 = vadd.f32 %v474, %v515
      %v533 = vadd.f32 %v475, %v514
      %v534 = vlaneseq
      %v535 = vshrl.u32 %v534, 7
      %v536 = vsub.s32 3, %v535
      %v537 = vrot.slane %v395, %v536
      %v538 = vmul.f32 %v387, %v537
      %v539 = vmul.f32 %v388, %v537
      %v540 = vmul.f32 %v389, %v537
      %v541 = vmul.f32 %v390, %v537
      %v542 = vmul.f32 %v391, %v537
      %v543 = vmul.f32 %v392, %v537
      %v544 = vmul.f32 %v393, %v537
      %v545 = vmul.f32 %v394, %v537
      %vm554 = vcmask 1044480
      %v555 = vrot.slane %v538, 3
      %v556 = vrot.slane %v539, 3
      %v557 = vsel %vm554, %v555, %v556
      %v558 = vrot.slane %v540, 3
      %v559 = vsel %vm554, %v556, %v558
      %v560 = vrot.slane %v541, 3
      %v561 = vsel %vm554, %v558, %v560
      %v562 = vrot.slane %v542, 3
      %v563 = vsel %vm554, %v560, %v562
      %v564 = vrot.slane %v543, 3
      %v565 = vsel %vm554, %v562, %v564
      %v566 = vrot.slane %v544, 3
      %v567 = vsel %vm554, %v564, %v566
      %v568 = vrot.slane %v545, 3
      %v569 = vsel %vm554, %v566, %v568
      %v579 = vadd.f32 %v525, %v555
      %v580 = vadd.f32 %v526, %v557
      %v581 = vadd.f32 %v527, %v559
      %v582 = vadd.f32 %v528, %v561
      %v583 = vadd.f32 %v529, %v563
      %v584 = vadd.f32 %v530, %v565
      %v585 = vadd.f32 %v531, %v567
      %v586 = vadd.f32 %v532, %v569
      %v587 = vadd.f32 %v533, %v568
      %v588 = vlaneseq
      %v589 = vshrl.u32 %v588, 7
      %v590 = vsub.s32 4, %v589
      %v591 = vrot.slane %v395, %v590
      %v592 = vmul.f32 %v387, %v591
      %v593 = vmul.f32 %v388, %v591
      %v594 = vmul.f32 %v389, %v591
      %v595 = vmul.f32 %v390, %v591
      %v596 = vmul.f32 %v391, %v591
      %v597 = vmul.f32 %v392, %v591
      %v598 = vmul.f32 %v393, %v591
      %v599 = vmul.f32 %v394, %v591
      %v600 = vmul.f32 %v591, 0.0
      %vm610 = vcmask 1043456
      %v611 = vrot.slane %v592, 4
      %v612 = vrot.slane %v593, 4
      %v613 = vsel %vm610, %v611, %v612
      %v614 = vrot.slane %v594, 4
      %v615 = vsel %vm610, %v612, %v614
      %v616 = vrot.slane %v595, 4
      %v617 = vsel %vm610, %v614, %v616
      %v618 = vrot.slane %v596, 4
      %v619 = vsel %vm610, %v616, %v618
      %v620 = vrot.slane %v597, 4
      %v621 = vsel %vm610, %v618, %v620
      %v622 = vrot.slane %v598, 4
      %v623 = vsel %vm610, %v620, %v622
      %v624 = vrot.slane %v599, 4
      %v625 = vsel %vm610, %v622, %v624
      %v626 = vrot.slane %v600, 4
      %v627 = vsel %vm610, %v624, %v626
      %v637 = vadd.f32 %v579, %v611
      %v638 = vadd.f32 %v580, %v613
      %v639 = vadd.f32 %v581, %v615
      %v640 = vadd.f32 %v582, %v617
      %v641 = vadd.f32 %v583, %v619
      %v642 = vadd.f32 %v584, %v621
      %v643 = vadd.f32 %v585, %v623
      %v644 = vadd.f32 %v586, %v625
      %v645 = vadd.f32 %v587, %v627
      %v646 = vlaneseq
      %v647 = vshrl.u32 %v646, 7
      %v648 = vsub.s32 5, %v647
      %v649 = vrot.slane %v395, %v648
      %v650 = vmul.f32 %v387, %v649
      %v651 = vmul.f32 %v388, %v649
      %v652 = vmul.f32 %v389, %v649
      %v653 = vmul.f32 %v390, %v649
      %v654 = vmul.f32 %v391, %v649
      %v655 = vmul.f32 %v392, %v649
      %v656 = vmul.f32 %v393, %v649
      %v657 = vmul.f32 %v394, %v649
      %v658 = vmul.f32 %v649, 0.0
      %vm668 = vcmask 1042432
      %v669 = vrot.slane %v650, 5
      %v670 = vrot.slane %v651, 5
      %v671 = vsel %vm668, %v669, %v670
      %v672 = vrot.slane %v652, 5
      %v673 = vsel %vm668, %v670, %v672
      %v674 = vrot.slane %v653, 5
      %v675 = vsel %vm668, %v672, %v674
      %v676 = vrot.slane %v654, 5
      %v677 = vsel %vm668, %v674, %v676
      %v678 = vrot.slane %v655, 5
      %v679 = vsel %vm668, %v676, %v678
      %v680 = vrot.slane %v656, 5
      %v681 = vsel %vm668, %v678, %v680
      %v682 = vrot.slane %v657, 5
      %v683 = vsel %vm668, %v680, %v682
      %v684 = vrot.slane %v658, 5
      %v685 = vsel %vm668, %v682, %v684
      %v695 = vadd.f32 %v637, %v669
      %v696 = vadd.f32 %v638, %v671
      %v697 = vadd.f32 %v639, %v673
      %v698 = vadd.f32 %v640, %v675
      %v699 = vadd.f32 %v641, %v677
      %v700 = vadd.f32 %v642, %v679
      %v701 = vadd.f32 %v643, %v681
      %v702 = vadd.f32 %v644, %v683
      %v703 = vadd.f32 %v645, %v685
      %v704 = vlaneseq
      %v705 = vshrl.u32 %v704, 7
      %v706 = vsub.s32 6, %v705
      %v707 = vrot.slane %v395, %v706
      %v708 = vmul.f32 %v387, %v707
      %v709 = vmul.f32 %v388, %v707
      %v710 = vmul.f32 %v389, %v707
      %v711 = vmul.f32 %v390, %v707
      %v712 = vmul.f32 %v391, %v707
      %v713 = vmul.f32 %v392, %v707
      %v714 = vmul.f32 %v393, %v707
      %v715 = vmul.f32 %v394, %v707
      %v716 = vmul.f32 %v707, 0.0
      %vm726 = vcmask 1041408
      %v727 = vrot.slane %v708, 6
      %v728 = vrot.slane %v709, 6
      %v729 = vsel %vm726, %v727, %v728
      %v730 = vrot.slane %v710, 6
      %v731 = vsel %vm726, %v728, %v730
      %v732 = vrot.slane %v711, 6
      %v733 = vsel %vm726, %v730, %v732
      %v734 = vrot.slane %v712, 6
      %v735 = vsel %vm726, %v732, %v734
      %v736 = vrot.slane %v713, 6
      %v737 = vsel %vm726, %v734, %v736
      %v738 = vrot.slane %v714, 6
      %v739 = vsel %vm726, %v736, %v738
      %v740 = vrot.slane %v715, 6
      %v741 = vsel %vm726, %v738, %v740
      %v742 = vrot.slane %v716, 6
      %v743 = vsel %vm726, %v740, %v742
      %v753 = vadd.f32 %v695, %v727
      %v754 = vadd.f32 %v696, %v729
      %v755 = vadd.f32 %v697, %v731
      %v756 = vadd.f32 %v698, %v733
      %v757 = vadd.f32 %v699, %v735
      %v758 = vadd.f32 %v700, %v737
      %v759 = vadd.f32 %v701, %v739
      %v760 = vadd.f32 %v702, %v741
      %v761 = vadd.f32 %v703, %v743
      %v762 = vld [vmem:[%s2] sm:$0x1]
      %v764 = vlaneseq
      %v765 = vshrl.u32 %v764, 7
      %v766 = vsub.s32 0, %v765
      %v767 = vrot.slane %v762, %v766
      %v769 = vadd.f32 %v753, %v767
      %v770 = vadd.f32 %v754, %v767
      %v771 = vadd.f32 %v755, %v767
      %v772 = vadd.f32 %v756, %v767
      %v773 = vadd.f32 %v757, %v767
      %v774 = vadd.f32 %v758, %v767
      %v775 = vadd.f32 %v759, %v767
      %v776 = vadd.f32 %v760, %v767
      %v777 = vadd.f32 %v761, %v767
      %vm778 = vcmask 261125
      %v779 = vsel %vm778, %v769, 0.0
      %780 = vadd.xlane.f32.xlu0 %v779
      %v781 = vpop.xlane.xlu0 %780
      %vm782 = vcmask 261120
      %v783 = vsel %vm782, %v770, 0.0
      %784 = vadd.xlane.f32.xlu0 %v783
      %v785 = vpop.xlane.xlu0 %784
      %v786 = vsel %vm782, %v771, 0.0
      %787 = vadd.xlane.f32.xlu0 %v786
      %v788 = vpop.xlane.xlu0 %787
      %v789 = vsel %vm782, %v772, 0.0
      %790 = vadd.xlane.f32.xlu0 %v789
      %v791 = vpop.xlane.xlu0 %790
      %v792 = vsel %vm782, %v773, 0.0
      %793 = vadd.xlane.f32.xlu0 %v792
      %v794 = vpop.xlane.xlu0 %793
      %v795 = vsel %vm782, %v774, 0.0
      %796 = vadd.xlane.f32.xlu0 %v795
      %v797 = vpop.xlane.xlu0 %796
      %v798 = vsel %vm782, %v775, 0.0
      %799 = vadd.xlane.f32.xlu0 %v798
      %v800 = vpop.xlane.xlu0 %799
      %v801 = vsel %vm782, %v776, 0.0
      %802 = vadd.xlane.f32.xlu0 %v801
      %v803 = vpop.xlane.xlu0 %802
      %vm804 = vcmask 258048
      %v805 = vsel %vm804, %v777, 0.0
      %806 = vadd.xlane.f32.xlu0 %v805
      %v807 = vpop.xlane.xlu0 %806
      %v808 = vrcp.pop 32.0
      %v809 = vmul.f32 %v781, %v808
      %v810 = vmul.f32 %v785, %v808
      %v811 = vmul.f32 %v788, %v808
      %v812 = vmul.f32 %v791, %v808
      %v813 = vmul.f32 %v794, %v808
      %v814 = vmul.f32 %v797, %v808
      %v815 = vmul.f32 %v800, %v808
      %v816 = vmul.f32 %v803, %v808
      %v817 = vmul.f32 %v807, %v808
      %v818 = vsub.f32 %v769, %v809
      %v819 = vsub.f32 %v770, %v810
      %v820 = vsub.f32 %v771, %v811
      %v821 = vsub.f32 %v772, %v812
      %v822 = vsub.f32 %v773, %v813
      %v823 = vsub.f32 %v774, %v814
      %v824 = vsub.f32 %v775, %v815
      %v825 = vsub.f32 %v776, %v816
      %v826 = vsub.f32 %v777, %v817
      %v827 = vmul.f32 %v818, %v818
      %v828 = vmul.f32 %v819, %v819
      %v829 = vmul.f32 %v820, %v820
      %v830 = vmul.f32 %v821, %v821
      %v831 = vmul.f32 %v822, %v822
      %v832 = vmul.f32 %v823, %v823
      %v833 = vmul.f32 %v824, %v824
      %v834 = vmul.f32 %v825, %v825
      %v835 = vmul.f32 %v826, %v826
      %v836 = vsel %vm778, %v827, 0.0
      %837 = vadd.xlane.f32.xlu0 %v836
      %v838 = vpop.xlane.xlu0 %837
      %v839 = vsel %vm782, %v828, 0.0
      %840 = vadd.xlane.f32.xlu0 %v839
      %v841 = vpop.xlane.xlu0 %840
      %v842 = vsel %vm782, %v829, 0.0
      %843 = vadd.xlane.f32.xlu0 %v842
      %v844 = vpop.xlane.xlu0 %843
      %v845 = vsel %vm782, %v830, 0.0
      %846 = vadd.xlane.f32.xlu0 %v845
      %v847 = vpop.xlane.xlu0 %846
      %v848 = vsel %vm782, %v831, 0.0
      %849 = vadd.xlane.f32.xlu0 %v848
      %v850 = vpop.xlane.xlu0 %849
      %v851 = vsel %vm782, %v832, 0.0
      %852 = vadd.xlane.f32.xlu0 %v851
      %v853 = vpop.xlane.xlu0 %852
      %v854 = vsel %vm782, %v833, 0.0
      %855 = vadd.xlane.f32.xlu0 %v854
      %v856 = vpop.xlane.xlu0 %855
      %v857 = vsel %vm782, %v834, 0.0
      %858 = vadd.xlane.f32.xlu0 %v857
      %v859 = vpop.xlane.xlu0 %858
      %v860 = vsel %vm804, %v835, 0.0
      %861 = vadd.xlane.f32.xlu0 %v860
      %v862 = vpop.xlane.xlu0 %861
      %v863 = vmul.f32 %v838, %v808
      %v864 = vmul.f32 %v841, %v808
      %v865 = vmul.f32 %v844, %v808
      %v866 = vmul.f32 %v847, %v808
      %v867 = vmul.f32 %v850, %v808
      %v868 = vmul.f32 %v853, %v808
      %v869 = vmul.f32 %v856, %v808
      %v870 = vmul.f32 %v859, %v808
      %v871 = vmul.f32 %v862, %v808
      %v872 = vadd.f32 %v863, 1e-06
      %v873 = vadd.f32 %v864, 1e-06
      %v874 = vadd.f32 %v865, 1e-06
      %v875 = vadd.f32 %v866, 1e-06
      %v876 = vadd.f32 %v867, 1e-06
      %v877 = vadd.f32 %v868, 1e-06
      %v878 = vadd.f32 %v869, 1e-06
      %v879 = vadd.f32 %v870, 1e-06
      %v880 = vadd.f32 %v871, 1e-06
      %v881 = vrsqrt.pop %v872
      %v882 = vrsqrt.pop %v873
      %v883 = vrsqrt.pop %v874
      %v884 = vrsqrt.pop %v875
      %v885 = vrsqrt.pop %v876
      %v886 = vrsqrt.pop %v877
      %v887 = vrsqrt.pop %v878
      %v888 = vrsqrt.pop %v879
      %v889 = vrsqrt.pop %v880
      %v890 = vmul.f32 %v818, %v881
      %v891 = vmul.f32 %v819, %v882
      %v892 = vmul.f32 %v820, %v883
      %v893 = vmul.f32 %v821, %v884
      %v894 = vmul.f32 %v822, %v885
      %v895 = vmul.f32 %v823, %v886
      %v896 = vmul.f32 %v824, %v887
      %v897 = vmul.f32 %v825, %v888
      %v898 = vmul.f32 %v826, %v889
      %v899 = vld [vmem:[%s3] sm:$0x1]
      %v901 = vlaneseq
      %v902 = vshrl.u32 %v901, 7
      %v903 = vsub.s32 0, %v902
      %v904 = vrot.slane %v899, %v903
      %v906 = vmul.f32 %v890, %v904
      %v907 = vmul.f32 %v891, %v904
      %v908 = vmul.f32 %v892, %v904
      %v909 = vmul.f32 %v893, %v904
      %v910 = vmul.f32 %v894, %v904
      %v911 = vmul.f32 %v895, %v904
      %v912 = vmul.f32 %v896, %v904
      %v913 = vmul.f32 %v897, %v904
      %v914 = vmul.f32 %v898, %v904
      %v915 = vld [vmem:[%s4] sm:$0x1]
      %v917 = vlaneseq
      %v918 = vshrl.u32 %v917, 7
      %v919 = vsub.s32 0, %v918
      %v920 = vrot.slane %v915, %v919
      %v922 = vadd.f32 %v906, %v920
      %v923 = vadd.f32 %v907, %v920
      %v924 = vadd.f32 %v908, %v920
      %v925 = vadd.f32 %v909, %v920
      %v926 = vadd.f32 %v910, %v920
      %v927 = vadd.f32 %v911, %v920
      %v928 = vadd.f32 %v912, %v920
      %v929 = vadd.f32 %v913, %v920
      %v930 = vadd.f32 %v914, %v920
      %v931 = vld [vmem:[%s5] sm:$0xff]
      %v932 = vld [vmem:[%s5 + $0x8] sm:$0xff]
      %v933 = vld [vmem:[%s5 + $0x10] sm:$0xff]
      %v934 = vld [vmem:[%s5 + $0x18] sm:$0xff]
      %v935 = vld [vmem:[%s6] sm:$0x1]
      %v937 = vlaneseq
      %v938 = vshrl.u32 %v937, 7
      %v939 = vsub.s32 0, %v938
      %v940 = vrot.slane %v935, %v939
      %v951 = vrot.slane %v922, 5
      %v952 = vrot.slane %v923, 5
      %v953 = vsel %vm668, %v951, %v952
      %v954 = vrot.slane %v924, 5
      %v955 = vsel %vm668, %v952, %v954
      %v956 = vrot.slane %v925, 5
      %v957 = vsel %vm668, %v954, %v956
      %v958 = vrot.slane %v926, 5
      %v959 = vsel %vm668, %v956, %v958
      %v960 = vrot.slane %v927, 5
      %v961 = vsel %vm668, %v958, %v960
      %v962 = vrot.slane %v928, 5
      %v963 = vsel %vm668, %v960, %v962
      %v964 = vrot.slane %v929, 5
      %v965 = vsel %vm668, %v962, %v964
      %v966 = vrot.slane %v930, 5
      %v967 = vsel %vm668, %v964, %v966
      %v968 = vsel %vm782, %v953, 0
      %v970 = vsel %vm782, %v955, 0
      %v972 = vsel %vm782, %v957, 0
      %v974 = vsel %vm782, %v959, 0
      %v976 = vsel %vm782, %v961, 0
      %v978 = vsel %vm782, %v963, 0
      %v980 = vsel %vm782, %v965, 0
      %v982 = vsel %vm782, %v967, 0
      %984 = vmatprep.subr.mxu0 0.0
      %985 = vmatpush1.msra.mxu0 0.0
      %986 = vmatprep.subr.mxu0 0.0
      %987 = vmatpush1.msra.mxu0 0.0
      %988 = vmatprep.subr.mxu0 0.0
      %989 = vmatpush1.msra.mxu0 0.0
      %990 = vmatprep.subr.mxu0 0.0
      %991 = vmatpush1.msra.mxu0 0.0
      %992 = vmatprep.subr.mxu0 0.0
      %993 = vmatpush1.msra.mxu0 0.0
      %994 = vmatprep.subr.mxu0 0.0
      %995 = vmatpush1.msra.mxu0 0.0
      %996 = vmatprep.subr.mxu0 0.0
      %997 = vmatpush1.msra.mxu0 0.0
      %998 = vmatprep.subr.mxu0 0.0
      %999 = vmatpush1.msra.mxu0 0.0
      %1000 = vmatprep.subr.mxu0 0.0
      %1001 = vmatpush1.msra.mxu0 0.0
      %1002 = vmatprep.subr.mxu0 0.0
      %1003 = vmatpush1.msra.mxu0 0.0
      %1004 = vmatprep.subr.mxu0 0.0
      %1005 = vmatpush1.msra.mxu0 0.0
      %1006 = vmatprep.subr.mxu0 0.0
      %1007 = vmatpush1.msra.mxu0 0.0
      %1008 = vmatprep.subr.mxu0 0.0
      %1009 = vmatpush1.msra.mxu0 %v934
      %1010 = vmatprep.subr.mxu0 0.0
      %1011 = vmatpush1.msra.mxu0 %v933
      %1012 = vmatprep.subr.mxu0 0.0
      %1013 = vmatpush1.msra.mxu0 %v932
      %1014 = vmatprep.subr.mxu0 0.0
      %1015 = vmatpush1.msra.mxu0 %v931
      %1016 = vmatprep.subr.mxu0 0.0
      %1017 = vmatpush2.msra.mxu0 0.0
      %1018 = vmatprep.subr.mxu0 0.0
      %1019 = vmatpush2.msra.mxu0 0.0
      %1020 = vmatprep.subr.mxu0 0.0
      %1021 = vmatpush2.msra.mxu0 0.0
      %1022 = vmatprep.subr.mxu0 0.0
      %1023 = vmatpush2.msra.mxu0 0.0
      %1024 = vmatprep.subr.mxu0 0.0
      %1025 = vmatpush2.msra.mxu0 0.0
      %1026 = vmatprep.subr.mxu0 0.0
      %1027 = vmatpush2.msra.mxu0 0.0
      %1028 = vmatprep.subr.mxu0 0.0
      %1029 = vmatpush2.msra.mxu0 0.0
      %1030 = vmatprep.subr.mxu0 0.0
      %1031 = vmatpush2.msra.mxu0 0.0
      %1032 = vmatprep.subr.mxu0 0.0
      %1033 = vmatpush2.msra.mxu0 0.0
      %1034 = vmatprep.subr.mxu0 0.0
      %1035 = vmatpush2.msra.mxu0 0.0
      %1036 = vmatprep.subr.mxu0 0.0
      %1037 = vmatpush2.msra.mxu0 0.0
      %1038 = vmatprep.subr.mxu0 0.0
      %1039 = vmatpush2.msra.mxu0 0.0
      %1040 = vmatprep.subr.mxu0 0.0
      %1041 = vmatpush2.msra.mxu0 0.0
      %1042 = vmatprep.subr.mxu0 0.0
      %1043 = vmatpush2.msra.mxu0 0.0
      %1044 = vmatprep.subr.mxu0 0.0
      %1045 = vmatpush2.msra.mxu0 0.0
      %1046 = vmatprep.subr.mxu0 0.0
      %1047 = vmatpush2.msra.mxu0 0.0
      %1048 = vmatprep.mubr.f32.mxu0 0.0
      %1049 = vmatmul.mubr.f32.gmra.mxu0 %v968
      %v1050 = vpop.f32.mrf.mxu0
      %v1051 = vadd.f32 %v940, %v1050
      %v1052 = vpop.f32.mrf.mxu0
      %1053 = vmatprep.mubr.f32.mxu0 0.0
      %1054 = vmatmul.mubr.f32.gmra.mxu0 %v970
      %v1055 = vpop.f32.mrf.mxu0
      %v1056 = vadd.f32 %v940, %v1055
      %v1057 = vpop.f32.mrf.mxu0
      %1058 = vmatprep.mubr.f32.mxu0 0.0
      %1059 = vmatmul.mubr.f32.gmra.mxu0 %v972
      %v1060 = vpop.f32.mrf.mxu0
      %v1061 = vadd.f32 %v940, %v1060
      %v1062 = vpop.f32.mrf.mxu0
      %1063 = vmatprep.mubr.f32.mxu0 0.0
      %1064 = vmatmul.mubr.f32.gmra.mxu0 %v974
      %v1065 = vpop.f32.mrf.mxu0
      %v1066 = vadd.f32 %v940, %v1065
      %v1067 = vpop.f32.mrf.mxu0
      %1068 = vmatprep.mubr.f32.mxu0 0.0
      %1069 = vmatmul.mubr.f32.gmra.mxu0 %v976
      %v1070 = vpop.f32.mrf.mxu0
      %v1071 = vadd.f32 %v940, %v1070
      %v1072 = vpop.f32.mrf.mxu0
      %1073 = vmatprep.mubr.f32.mxu0 0.0
      %1074 = vmatmul.mubr.f32.gmra.mxu0 %v978
      %v1075 = vpop.f32.mrf.mxu0
      %v1076 = vadd.f32 %v940, %v1075
      %v1077 = vpop.f32.mrf.mxu0
      %1078 = vmatprep.mubr.f32.mxu0 0.0
      %1079 = vmatmul.mubr.f32.gmra.mxu0 %v980
      %v1080 = vpop.f32.mrf.mxu0
      %v1081 = vadd.f32 %v940, %v1080
      %v1082 = vpop.f32.mrf.mxu0
      %1083 = vmatprep.mubr.f32.mxu0 0.0
      %1084 = vmatmul.mubr.f32.gmra.mxu0 %v982
      %v1085 = vpop.f32.mrf.mxu0
      %v1086 = vadd.f32 %v940, %v1085
      %v1087 = vpop.f32.mrf.mxu0
      %1088 = vdwg.mxu0
      %v1089 = vmul.f32 %v1051, 0.70710677
      %v1090 = vmul.f32 %v1056, 0.70710677
      %v1091 = vmul.f32 %v1061, 0.70710677
      %v1092 = vmul.f32 %v1066, 0.70710677
      %v1093 = vmul.f32 %v1071, 0.70710677
      %v1094 = vmul.f32 %v1076, 0.70710677
      %v1095 = vmul.f32 %v1081, 0.70710677
      %v1096 = vmul.f32 %v1086, 0.70710677
      %v1097 = vand.u32 2147483647, %v1089
      %v1098 = vand.u32 2147483647, %v1090
      %v1099 = vand.u32 2147483647, %v1091
      %v1100 = vand.u32 2147483647, %v1092
      %v1101 = vand.u32 2147483647, %v1093
      %v1102 = vand.u32 2147483647, %v1094
      %v1103 = vand.u32 2147483647, %v1095
      %v1104 = vand.u32 2147483647, %v1096
      %vm1105 = vcmp.ge.f32.partialorder %v1089, 0.0
      %vm1106 = vcmp.ge.f32.partialorder %v1090, 0.0
      %vm1107 = vcmp.ge.f32.partialorder %v1091, 0.0
      %vm1108 = vcmp.ge.f32.partialorder %v1092, 0.0
      %vm1109 = vcmp.ge.f32.partialorder %v1093, 0.0
      %vm1110 = vcmp.ge.f32.partialorder %v1094, 0.0
      %vm1111 = vcmp.ge.f32.partialorder %v1095, 0.0
      %vm1112 = vcmp.ge.f32.partialorder %v1096, 0.0
      %v1113 = vsel %vm1105, 1.0, -1.0
      %v1114 = vsel %vm1106, 1.0, -1.0
      %v1115 = vsel %vm1107, 1.0, -1.0
      %v1116 = vsel %vm1108, 1.0, -1.0
      %v1117 = vsel %vm1109, 1.0, -1.0
      %v1118 = vsel %vm1110, 1.0, -1.0
      %v1119 = vsel %vm1111, 1.0, -1.0
      %v1120 = vsel %vm1112, 1.0, -1.0
      %v1121 = vmul.f32 %v1097, 0.3275911
      %v1122 = vmul.f32 %v1098, 0.3275911
      %v1123 = vmul.f32 %v1099, 0.3275911
      %v1124 = vmul.f32 %v1100, 0.3275911
      %v1125 = vmul.f32 %v1101, 0.3275911
      %v1126 = vmul.f32 %v1102, 0.3275911
      %v1127 = vmul.f32 %v1103, 0.3275911
      %v1128 = vmul.f32 %v1104, 0.3275911
      %v1129 = vadd.f32 %v1121, 1.0
      %v1130 = vadd.f32 %v1122, 1.0
      %v1131 = vadd.f32 %v1123, 1.0
      %v1132 = vadd.f32 %v1124, 1.0
      %v1133 = vadd.f32 %v1125, 1.0
      %v1134 = vadd.f32 %v1126, 1.0
      %v1135 = vadd.f32 %v1127, 1.0
      %v1136 = vadd.f32 %v1128, 1.0
      %v1137 = vrcp.pop %v1129
      %v1138 = vmul.f32 1.0, %v1137
      %v1139 = vrcp.pop %v1130
      %v1140 = vmul.f32 1.0, %v1139
      %v1141 = vrcp.pop %v1131
      %v1142 = vmul.f32 1.0, %v1141
      %v1143 = vrcp.pop %v1132
      %v1144 = vmul.f32 1.0, %v1143
      %v1145 = vrcp.pop %v1133
      %v1146 = vmul.f32 1.0, %v1145
      %v1147 = vrcp.pop %v1134
      %v1148 = vmul.f32 1.0, %v1147
      %v1149 = vrcp.pop %v1135
      %v1150 = vmul.f32 1.0, %v1149
      %v1151 = vrcp.pop %v1136
      %v1152 = vmul.f32 1.0, %v1151
      %v1153 = vmul.f32 %v1138, 1.0614054
      %v1154 = vmul.f32 %v1140, 1.0614054
      %v1155 = vmul.f32 %v1142, 1.0614054
      %v1156 = vmul.f32 %v1144, 1.0614054
      %v1157 = vmul.f32 %v1146, 1.0614054
      %v1158 = vmul.f32 %v1148, 1.0614054
      %v1159 = vmul.f32 %v1150, 1.0614054
      %v1160 = vmul.f32 %v1152, 1.0614054
      %v1161 = vsub.f32 %v1153, 1.4531521
      %v1162 = vsub.f32 %v1154, 1.4531521
      %v1163 = vsub.f32 %v1155, 1.4531521
      %v1164 = vsub.f32 %v1156, 1.4531521
      %v1165 = vsub.f32 %v1157, 1.4531521
      %v1166 = vsub.f32 %v1158, 1.4531521
      %v1167 = vsub.f32 %v1159, 1.4531521
      %v1168 = vsub.f32 %v1160, 1.4531521
      %v1169 = vmul.f32 %v1161, %v1138
      %v1170 = vmul.f32 %v1162, %v1140
      %v1171 = vmul.f32 %v1163, %v1142
      %v1172 = vmul.f32 %v1164, %v1144
      %v1173 = vmul.f32 %v1165, %v1146
      %v1174 = vmul.f32 %v1166, %v1148
      %v1175 = vmul.f32 %v1167, %v1150
      %v1176 = vmul.f32 %v1168, %v1152
      %v1177 = vadd.f32 %v1169, 1.4214138
      %v1178 = vadd.f32 %v1170, 1.4214138
      %v1179 = vadd.f32 %v1171, 1.4214138
      %v1180 = vadd.f32 %v1172, 1.4214138
      %v1181 = vadd.f32 %v1173, 1.4214138
      %v1182 = vadd.f32 %v1174, 1.4214138
      %v1183 = vadd.f32 %v1175, 1.4214138
      %v1184 = vadd.f32 %v1176, 1.4214138
      %v1185 = vmul.f32 %v1177, %v1138
      %v1186 = vmul.f32 %v1178, %v1140
      %v1187 = vmul.f32 %v1179, %v1142
      %v1188 = vmul.f32 %v1180, %v1144
      %v1189 = vmul.f32 %v1181, %v1146
      %v1190 = vmul.f32 %v1182, %v1148
      %v1191 = vmul.f32 %v1183, %v1150
      %v1192 = vmul.f32 %v1184, %v1152
      %v1193 = vsub.f32 %v1185, 0.28449672
      %v1194 = vsub.f32 %v1186, 0.28449672
      %v1195 = vsub.f32 %v1187, 0.28449672
      %v1196 = vsub.f32 %v1188, 0.28449672
      %v1197 = vsub.f32 %v1189, 0.28449672
      %v1198 = vsub.f32 %v1190, 0.28449672
      %v1199 = vsub.f32 %v1191, 0.28449672
      %v1200 = vsub.f32 %v1192, 0.28449672
      %v1201 = vmul.f32 %v1193, %v1138
      %v1202 = vmul.f32 %v1194, %v1140
      %v1203 = vmul.f32 %v1195, %v1142
      %v1204 = vmul.f32 %v1196, %v1144
      %v1205 = vmul.f32 %v1197, %v1146
      %v1206 = vmul.f32 %v1198, %v1148
      %v1207 = vmul.f32 %v1199, %v1150
      %v1208 = vmul.f32 %v1200, %v1152
      %v1209 = vadd.f32 %v1201, 0.2548296
      %v1210 = vadd.f32 %v1202, 0.2548296
      %v1211 = vadd.f32 %v1203, 0.2548296
      %v1212 = vadd.f32 %v1204, 0.2548296
      %v1213 = vadd.f32 %v1205, 0.2548296
      %v1214 = vadd.f32 %v1206, 0.2548296
      %v1215 = vadd.f32 %v1207, 0.2548296
      %v1216 = vadd.f32 %v1208, 0.2548296
      %v1217 = vmul.f32 %v1209, %v1138
      %v1218 = vmul.f32 %v1210, %v1140
      %v1219 = vmul.f32 %v1211, %v1142
      %v1220 = vmul.f32 %v1212, %v1144
      %v1221 = vmul.f32 %v1213, %v1146
      %v1222 = vmul.f32 %v1214, %v1148
      %v1223 = vmul.f32 %v1215, %v1150
      %v1224 = vmul.f32 %v1216, %v1152
      %v1225 = vsub.f32 0.0, %v1097
      %v1226 = vsub.f32 0.0, %v1098
      %v1227 = vsub.f32 0.0, %v1099
      %v1228 = vsub.f32 0.0, %v1100
      %v1229 = vsub.f32 0.0, %v1101
      %v1230 = vsub.f32 0.0, %v1102
      %v1231 = vsub.f32 0.0, %v1103
      %v1232 = vsub.f32 0.0, %v1104
      %v1233 = vmul.f32 %v1225, %v1097
      %v1234 = vmul.f32 %v1226, %v1098
      %v1235 = vmul.f32 %v1227, %v1099
      %v1236 = vmul.f32 %v1228, %v1100
      %v1237 = vmul.f32 %v1229, %v1101
      %v1238 = vmul.f32 %v1230, %v1102
      %v1239 = vmul.f32 %v1231, %v1103
      %v1240 = vmul.f32 %v1232, %v1104
      %v1241 = vmul.f32 %v1233, 1.442695
      %v1242 = vpow.pop %v1241
      %v1243 = vmul.f32 %v1234, 1.442695
      %v1244 = vpow.pop %v1243
      %v1245 = vmul.f32 %v1235, 1.442695
      %v1246 = vpow.pop %v1245
      %v1247 = vmul.f32 %v1236, 1.442695
      %v1248 = vpow.pop %v1247
      %v1249 = vmul.f32 %v1237, 1.442695
      %v1250 = vpow.pop %v1249
      %v1251 = vmul.f32 %v1238, 1.442695
      %v1252 = vpow.pop %v1251
      %v1253 = vmul.f32 %v1239, 1.442695
      %v1254 = vpow.pop %v1253
      %v1255 = vmul.f32 %v1240, 1.442695
      %v1256 = vpow.pop %v1255
      %v1257 = vmul.f32 %v1217, %v1242
      %v1258 = vmul.f32 %v1218, %v1244
      %v1259 = vmul.f32 %v1219, %v1246
      %v1260 = vmul.f32 %v1220, %v1248
      %v1261 = vmul.f32 %v1221, %v1250
      %v1262 = vmul.f32 %v1222, %v1252
      %v1263 = vmul.f32 %v1223, %v1254
      %v1264 = vmul.f32 %v1224, %v1256
      %v1265 = vsub.f32 1.0, %v1257
      %v1266 = vsub.f32 1.0, %v1258
      %v1267 = vsub.f32 1.0, %v1259
      %v1268 = vsub.f32 1.0, %v1260
      %v1269 = vsub.f32 1.0, %v1261
      %v1270 = vsub.f32 1.0, %v1262
      %v1271 = vsub.f32 1.0, %v1263
      %v1272 = vsub.f32 1.0, %v1264
      %v1273 = vmul.f32 %v1113, %v1265
      %v1274 = vmul.f32 %v1114, %v1266
      %v1275 = vmul.f32 %v1115, %v1267
      %v1276 = vmul.f32 %v1116, %v1268
      %v1277 = vmul.f32 %v1117, %v1269
      %v1278 = vmul.f32 %v1118, %v1270
      %v1279 = vmul.f32 %v1119, %v1271
      %v1280 = vmul.f32 %v1120, %v1272
      %v1281 = vmul.f32 %v1051, 0.5
      %v1282 = vmul.f32 %v1056, 0.5
      %v1283 = vmul.f32 %v1061, 0.5
      %v1284 = vmul.f32 %v1066, 0.5
      %v1285 = vmul.f32 %v1071, 0.5
      %v1286 = vmul.f32 %v1076, 0.5
      %v1287 = vmul.f32 %v1081, 0.5
      %v1288 = vmul.f32 %v1086, 0.5
      %v1289 = vadd.f32 %v1273, 1.0
      %v1290 = vadd.f32 %v1274, 1.0
      %v1291 = vadd.f32 %v1275, 1.0
      %v1292 = vadd.f32 %v1276, 1.0
      %v1293 = vadd.f32 %v1277, 1.0
      %v1294 = vadd.f32 %v1278, 1.0
      %v1295 = vadd.f32 %v1279, 1.0
      %v1296 = vadd.f32 %v1280, 1.0
      %v1297 = vmul.f32 %v1281, %v1289
      %v1298 = vmul.f32 %v1282, %v1290
      %v1299 = vmul.f32 %v1283, %v1291
      %v1300 = vmul.f32 %v1284, %v1292
      %v1301 = vmul.f32 %v1285, %v1293
      %v1302 = vmul.f32 %v1286, %v1294
      %v1303 = vmul.f32 %v1287, %v1295
      %v1304 = vmul.f32 %v1288, %v1296
      %v1305 = vmul.f32 %v1297, %v1297
      %v1306 = vmul.f32 %v1298, %v1298
      %v1307 = vmul.f32 %v1299, %v1299
      %v1308 = vmul.f32 %v1300, %v1300
      %v1309 = vmul.f32 %v1301, %v1301
      %v1310 = vmul.f32 %v1302, %v1302
      %v1311 = vmul.f32 %v1303, %v1303
      %v1312 = vmul.f32 %v1304, %v1304
      %v1313 = vadd.f32 %v1305, %v1306
      %v1314 = vadd.f32 %v1313, %v1307
      %v1315 = vadd.f32 %v1314, %v1308
      %v1316 = vadd.f32 %v1315, %v1309
      %v1317 = vadd.f32 %v1316, %v1310
      %v1318 = vadd.f32 %v1317, %v1311
      %v1319 = vadd.f32 %v1318, %v1312
      %v1320 = vrot.slane %v1319, 4
      %v1321 = vadd.f32 %v1319, %v1320
      %v1322 = vrot.slane %v1321, 2
      %v1323 = vadd.f32 %v1321, %v1322
      %v1324 = vrot.slane %v1323, 1
      %v1325 = vadd.f32 %v1323, %v1324
      %v1326 = vrsqrt.pop %v1325
      %v1327 = vmul.f32 %v1325, %v1326
      %vm1328 = vcmp.eq.f32.partialorder %v1325, inf
      %v1329 = vsel %vm1328, %v1325, %v1327
      %vm1330 = vcmp.eq.f32.partialorder %v1325, 0.0
      %v1331 = vand.u32 %v1325, 2147483648
      %v1332 = vsel %vm1330, %v1331, %v1329
      %1333 = vadd.xlane.f32.xlu0 %v1332
      %v1334 = vpop.xlane.xlu0 %1333
      %v1335 = vrcp.pop 128.0
      %v1336 = vmul.f32 %v1334, %v1335
      %v1337 = vadd.f32 %v1336, 1e-06
      %v1338 = vrcp.pop %v1337
      %v1339 = vmul.f32 %v1332, %v1338
      %v1340 = vld [vmem:[%s7] sm:$0x1]
      %v1341 = vmul.f32 %v1297, %v1339
      %v1342 = vmul.f32 %v1298, %v1339
      %v1343 = vmul.f32 %v1299, %v1339
      %v1344 = vmul.f32 %v1300, %v1339
      %v1345 = vmul.f32 %v1301, %v1339
      %v1346 = vmul.f32 %v1302, %v1339
      %v1347 = vmul.f32 %v1303, %v1339
      %v1348 = vmul.f32 %v1304, %v1339
      %v1350 = vlaneseq
      %v1351 = vshrl.u32 %v1350, 7
      %v1352 = vsub.s32 0, %v1351
      %v1353 = vrot.slane %v1340, %v1352
      %v1355 = vmul.f32 %v1353, %v1341
      %v1356 = vmul.f32 %v1353, %v1342
      %v1357 = vmul.f32 %v1353, %v1343
      %v1358 = vmul.f32 %v1353, %v1344
      %v1359 = vmul.f32 %v1353, %v1345
      %v1360 = vmul.f32 %v1353, %v1346
      %v1361 = vmul.f32 %v1353, %v1347
      %v1362 = vmul.f32 %v1353, %v1348
      %v1363 = vld [vmem:[%s8] sm:$0x1]
      %v1365 = vlaneseq
      %v1366 = vshrl.u32 %v1365, 7
      %v1367 = vsub.s32 0, %v1366
      %v1368 = vrot.slane %v1363, %v1367
      %v1370 = vadd.f32 %v1355, %v1368
      %v1371 = vadd.f32 %v1356, %v1368
      %v1372 = vadd.f32 %v1357, %v1368
      %v1373 = vadd.f32 %v1358, %v1368
      %v1374 = vadd.f32 %v1359, %v1368
      %v1375 = vadd.f32 %v1360, %v1368
      %v1376 = vadd.f32 %v1361, %v1368
      %v1377 = vadd.f32 %v1362, %v1368
      %v1378 = vadd.f32 %v1370, %v1297
      %v1379 = vadd.f32 %v1371, %v1298
      %v1380 = vadd.f32 %v1372, %v1299
      %v1381 = vadd.f32 %v1373, %v1300
      %v1382 = vadd.f32 %v1374, %v1301
      %v1383 = vadd.f32 %v1375, %v1302
      %v1384 = vadd.f32 %v1376, %v1303
      %v1385 = vadd.f32 %v1377, %v1304
      %v1386 = vld [vmem:[%s9] sm:$0xff]
      %v1387 = vld [vmem:[%s9 + $0x8] sm:$0xff]
      %v1388 = vld [vmem:[%s9 + $0x10] sm:$0xff]
      %v1389 = vld [vmem:[%s9 + $0x18] sm:$0xff]
      %v1390 = vld [vmem:[%s9 + $0x20] sm:$0xff]
      %v1391 = vld [vmem:[%s9 + $0x28] sm:$0xff]
      %v1392 = vld [vmem:[%s9 + $0x30] sm:$0xff]
      %v1393 = vld [vmem:[%s9 + $0x38] sm:$0xff]
      %v1394 = vld [vmem:[%s9 + $0x40] sm:$0xff]
      %v1395 = vld [vmem:[%s9 + $0x48] sm:$0xff]
      %v1396 = vld [vmem:[%s9 + $0x50] sm:$0xff]
      %v1397 = vld [vmem:[%s9 + $0x58] sm:$0xff]
      %v1398 = vld [vmem:[%s9 + $0x60] sm:$0xff]
      %v1399 = vld [vmem:[%s9 + $0x68] sm:$0xff]
      %v1400 = vld [vmem:[%s9 + $0x70] sm:$0xff]
      %v1401 = vld [vmem:[%s9 + $0x78] sm:$0xff]
      %v1402 = vld [vmem:[%s10] sm:$0x1]
      %v1404 = vlaneseq
      %v1405 = vshrl.u32 %v1404, 7
      %v1406 = vsub.s32 0, %v1405
      %v1407 = vrot.slane %v1402, %v1406
      %1409 = vmatprep.subr.mxu0 0.0
      %1410 = vmatpush1.msra.mxu0 %v1401
      %1411 = vmatprep.subr.mxu0 0.0
      %1412 = vmatpush1.msra.mxu0 %v1400
      %1413 = vmatprep.subr.mxu0 0.0
      %1414 = vmatpush1.msra.mxu0 %v1399
      %1415 = vmatprep.subr.mxu0 0.0
      %1416 = vmatpush1.msra.mxu0 %v1398
      %1417 = vmatprep.subr.mxu0 0.0
      %1418 = vmatpush1.msra.mxu0 %v1397
      %1419 = vmatprep.subr.mxu0 0.0
      %1420 = vmatpush1.msra.mxu0 %v1396
      %1421 = vmatprep.subr.mxu0 0.0
      %1422 = vmatpush1.msra.mxu0 %v1395
      %1423 = vmatprep.subr.mxu0 0.0
      %1424 = vmatpush1.msra.mxu0 %v1394
      %1425 = vmatprep.subr.mxu0 0.0
      %1426 = vmatpush1.msra.mxu0 %v1393
      %1427 = vmatprep.subr.mxu0 0.0
      %1428 = vmatpush1.msra.mxu0 %v1392
      %1429 = vmatprep.subr.mxu0 0.0
      %1430 = vmatpush1.msra.mxu0 %v1391
      %1431 = vmatprep.subr.mxu0 0.0
      %1432 = vmatpush1.msra.mxu0 %v1390
      %1433 = vmatprep.subr.mxu0 0.0
      %1434 = vmatpush1.msra.mxu0 %v1389
      %1435 = vmatprep.subr.mxu0 0.0
      %1436 = vmatpush1.msra.mxu0 %v1388
      %1437 = vmatprep.subr.mxu0 0.0
      %1438 = vmatpush1.msra.mxu0 %v1387
      %1439 = vmatprep.subr.mxu0 0.0
      %1440 = vmatpush1.msra.mxu0 %v1386
      %1441 = vmatprep.subr.mxu0 0.0
      %1442 = vmatpush2.msra.mxu0 0.0
      %1443 = vmatprep.subr.mxu0 0.0
      %1444 = vmatpush2.msra.mxu0 0.0
      %1445 = vmatprep.subr.mxu0 0.0
      %1446 = vmatpush2.msra.mxu0 0.0
      %1447 = vmatprep.subr.mxu0 0.0
      %1448 = vmatpush2.msra.mxu0 0.0
      %1449 = vmatprep.subr.mxu0 0.0
      %1450 = vmatpush2.msra.mxu0 0.0
      %1451 = vmatprep.subr.mxu0 0.0
      %1452 = vmatpush2.msra.mxu0 0.0
      %1453 = vmatprep.subr.mxu0 0.0
      %1454 = vmatpush2.msra.mxu0 0.0
      %1455 = vmatprep.subr.mxu0 0.0
      %1456 = vmatpush2.msra.mxu0 0.0
      %1457 = vmatprep.subr.mxu0 0.0
      %1458 = vmatpush2.msra.mxu0 0.0
      %1459 = vmatprep.subr.mxu0 0.0
      %1460 = vmatpush2.msra.mxu0 0.0
      %1461 = vmatprep.subr.mxu0 0.0
      %1462 = vmatpush2.msra.mxu0 0.0
      %1463 = vmatprep.subr.mxu0 0.0
      %1464 = vmatpush2.msra.mxu0 0.0
      %1465 = vmatprep.subr.mxu0 0.0
      %1466 = vmatpush2.msra.mxu0 0.0
      %1467 = vmatprep.subr.mxu0 0.0
      %1468 = vmatpush2.msra.mxu0 0.0
      %1469 = vmatprep.subr.mxu0 0.0
      %1470 = vmatpush2.msra.mxu0 0.0
      %1471 = vmatprep.subr.mxu0 0.0
      %1472 = vmatpush2.msra.mxu0 0.0
      %1473 = vmatprep.mubr.f32.mxu0 0.0
      %1474 = vmatmul.mubr.f32.gmra.mxu0 %v1378
      %v1475 = vpop.f32.mrf.mxu0
      %v1476 = vadd.f32 %v1407, %v1475
      %v1477 = vpop.f32.mrf.mxu0
      %1478 = vmatprep.mubr.f32.mxu0 0.0
      %1479 = vmatmul.mubr.f32.gmra.mxu0 %v1379
      %v1480 = vpop.f32.mrf.mxu0
      %v1481 = vadd.f32 %v1407, %v1480
      %v1482 = vpop.f32.mrf.mxu0
      %1483 = vmatprep.mubr.f32.mxu0 0.0
      %1484 = vmatmul.mubr.f32.gmra.mxu0 %v1380
      %v1485 = vpop.f32.mrf.mxu0
      %v1486 = vadd.f32 %v1407, %v1485
      %v1487 = vpop.f32.mrf.mxu0
      %1488 = vmatprep.mubr.f32.mxu0 0.0
      %1489 = vmatmul.mubr.f32.gmra.mxu0 %v1381
      %v1490 = vpop.f32.mrf.mxu0
      %v1491 = vadd.f32 %v1407, %v1490
      %v1492 = vpop.f32.mrf.mxu0
      %1493 = vmatprep.mubr.f32.mxu0 0.0
      %1494 = vmatmul.mubr.f32.gmra.mxu0 %v1382
      %v1495 = vpop.f32.mrf.mxu0
      %v1496 = vadd.f32 %v1407, %v1495
      %v1497 = vpop.f32.mrf.mxu0
      %1498 = vmatprep.mubr.f32.mxu0 0.0
      %1499 = vmatmul.mubr.f32.gmra.mxu0 %v1383
      %v1500 = vpop.f32.mrf.mxu0
      %v1501 = vadd.f32 %v1407, %v1500
      %v1502 = vpop.f32.mrf.mxu0
      %1503 = vmatprep.mubr.f32.mxu0 0.0
      %1504 = vmatmul.mubr.f32.gmra.mxu0 %v1384
      %v1505 = vpop.f32.mrf.mxu0
      %v1506 = vadd.f32 %v1407, %v1505
      %v1507 = vpop.f32.mrf.mxu0
      %1508 = vmatprep.mubr.f32.mxu0 0.0
      %1509 = vmatmul.mubr.f32.gmra.mxu0 %v1385
      %v1510 = vpop.f32.mrf.mxu0
      %v1511 = vadd.f32 %v1407, %v1510
      %v1512 = vpop.f32.mrf.mxu0
      %1513 = vdwg.mxu0
      %v1514 = vadd.f32 %v1476, %v387
      %v1515 = vadd.f32 %v1481, %v388
      %v1516 = vadd.f32 %v1486, %v389
      %v1517 = vadd.f32 %v1491, %v390
      %v1518 = vadd.f32 %v1496, %v391
      %v1519 = vadd.f32 %v1501, %v392
      %v1520 = vadd.f32 %v1506, %v393
      %v1521 = vadd.f32 %v1511, %v394
      %1522 = vst.msk [vmem:[%s386] sm:$0xff] %vm782, %v1514
      %1523 = vst.msk [vmem:[%s386 + $0x8] sm:$0xff] %vm782, %v1515
      %1524 = vst.msk [vmem:[%s386 + $0x10] sm:$0xff] %vm782, %v1516
      %1525 = vst.msk [vmem:[%s386 + $0x18] sm:$0xff] %vm782, %v1517
      %1526 = vst.msk [vmem:[%s386 + $0x20] sm:$0xff] %vm782, %v1518
      %1527 = vst.msk [vmem:[%s386 + $0x28] sm:$0xff] %vm782, %v1519
      %1528 = vst.msk [vmem:[%s386 + $0x30] sm:$0xff] %vm782, %v1520
      %1529 = vst.msk [vmem:[%s386 + $0x38] sm:$0xff] %vm782, %v1521
      %p1530 = scmp.lt.s32.totalorder %s22, 1
      %s1531 = scalar_select %p1530, %s22, 1
      %s1532 = smul.addr %s1531, 8
      %s1533 = smul.addr %s1532, 8
      %s1534 = scalar_lea.vmem %s11, %s1533
      // Predicated region
      $region65: #{_lambda_.9} parent=63 // pred_check
        %p1535 = pneg %p276
      $region66: #{_lambda_.9} parent=63 // pred_check_branch
        %1537 = sbr.rel (%p1535) target = $region68
      $region67: #{_lambda_.9} parent=63 // pred_region
        _
      $region68: #{_lambda_.9} parent=63 // pred_fallthru
        _
    $region64: #{_lambda_.9} parent=5 // pred_fallthru
      _
    %p1538 = scmp.le.s32.totalorder 2, %s17
    // Predicated region
    $region69: #{_lambda_.9} parent=5 // pred_check
      %p1539 = pneg %p1538
    $region70: #{_lambda_.9} parent=5 // pred_check_branch
      %1541 = sbr.rel (%p1539) target = $region72
    $region71: #{_lambda_.9} parent=5 // pred_region
      %s1542 = ssub.s32 %s17, 2
      // Predicated region
      $region73: #{_lambda_.9} parent=71 // pred_check
        %p1543 = pneg %p282
      $region74: #{_lambda_.9} parent=71 // pred_check_branch
        %1545 = sbr.rel (%p1543) target = $region76
      $region75: #{_lambda_.9} parent=71 // pred_region
        %p1546 = scmp.lt.s32.totalorder %s23, 1
        %s1547 = scalar_select %p1546, %s23, 1
        %s1548 = smul.addr %s1547, 8
        %s1549 = smul.addr %s1548, 8
        %s1550 = scalar_lea.vmem %s11, %s1549
      $region76: #{_lambda_.9} parent=71 // pred_fallthru
        _
    $region72: #{_lambda_.9} parent=5 // pred_fallthru
      _
  $region6: #{_lambda_.9} parent=0 // loop_footer
    %s21 = sadd.s32 1, %s17
  $region7: #{_lambda_.9} parent=0 // loop_footer_branch
    %16 = sbr.rel target = $region3
  $region8: #{_lambda_.9} parent=0 // loop_exit
    _

// kernel: _lambda_.10
$region0: #{_lambda_.10}
  #allocation0 [shape = 'u32[]', space=smem, size = 0x4, offset = 0x4, fixed_abs, tag = 'smem constant byte address 0x4 - core index']
  #allocation1 [shape = 'u32[144,128]{1,0:T(1,128)}', space=vmem, size = 0x12000, scoped, tag = 'internal scratch']
  %s0 = inlined_call_operand.vmem [shape: f32[2,32,64], index: 0, kind: input, shape index: {}]
  %s1 = inlined_call_operand.vmem [shape: f32[1,64], index: 1, kind: input, shape index: {}]
  %s2 = inlined_call_operand.vmem [shape: f32[1,64], index: 2, kind: input, shape index: {}]
  %s3 = inlined_call_operand.vmem [shape: f32[64,64], index: 3, kind: input, shape index: {}]
  %s4 = inlined_call_operand.vmem [shape: f32[1,64], index: 4, kind: input, shape index: {}]
  %s5 = inlined_call_operand.vmem [shape: f32[2,32,64], index: 5, kind: output, shape index: {}]
  %s6 = sld [smem:[#allocation0]]
  $region53: #{_lambda_.10} parent=0
    _
  %s8 = ssub.s32 1, %s6
  %s9 = scalar_select 0, %s8, %s6
  loop: start=0, step=1, limit=4
  $region2: #{_lambda_.10} parent=0 // loop_pre_header
    _
  $region3: #{_lambda_.10} parent=0 // loop_header
    %s11 = sphi 0, %s15
    %p12 = scmp.ge.s32.totalorder %s11, 4
    %s21 = sphi 0, %s23
    %s24 = sphi 0, %s21
    %s25 = sphi 0, %s24
    %s41 = sphi 0, %s25
    %s45 = sphi 0, %s45
    %s47 = sphi 0, %s45
    %s48 = sphi 0, %s47
    %s62 = sphi 0, %s48
    %s66 = sphi 0, %s66
    %s68 = sphi 0, %s66
    %s69 = sphi 0, %s68
    %s83 = sphi 0, %s69
    %s87 = sphi 0, %s87
    %s89 = sphi 0, %s87
    %s90 = sphi 0, %s89
    %s104 = sphi 0, %s90
    %s108 = sphi 0, %s108
    %s110 = sphi 0, %s108
    %s111 = sphi 0, %s110
    %s125 = sphi 0, %s111
    %s131 = sphi 0, %s133
    %s134 = sphi 0, %s131
    %s135 = sphi 0, %s134
    %s151 = sphi 0, %s135
  $region4: #{_lambda_.10} parent=0 // loop_header_branch
    %14 = sbr.rel (%p12) target = $region8
  $region5: #{_lambda_.10} parent=0 // loop_body
    %s16 = ssub.s32 %s11, 1
    %s17 = ssub.s32 %s11, 2
    %s18 = sadd.s32 %s11, 1
    %s19 = ssub.s32 %s11, %s18
    %p20 = scmp.eq.s32.totalorder %s19, 0
    %s22 = sadd.s32 %s21, 1
    %s23 = scalar_select %p20, %s21, %s22
    %p26 = pneg %p20
    %p27 = scmp.eq.s32.totalorder %s11, 1
    %p28 = por %p26, %p27
    %p29 = scmp.ne.s32.totalorder %s21, %s24
    %p30 = scmp.eq.s32.totalorder %s11, 0
    %p31 = por %p29, %p30
    %p32 = scmp.ne.s32.totalorder %s21, %s24
    %p33 = scmp.eq.s32.totalorder %s16, 1
    %p34 = por %p32, %p33
    %p35 = scmp.ne.s32.totalorder %s24, %s25
    %p36 = scmp.eq.s32.totalorder %s16, 0
    %p37 = por %p35, %p36
    %p38 = scmp.ne.s32.totalorder %s24, %s25
    %p39 = scmp.eq.s32.totalorder %s17, 1
    %p40 = por %p38, %p39
    %p42 = scmp.ne.s32.totalorder %s25, %s41
    %p43 = scmp.eq.s32.totalorder %s17, 0
    %p44 = por %p42, %p43
    %s46 = sadd.s32 %s45, 1
    %p49 = scmp.eq.s32.totalorder %s11, 1
    %p50 = scmp.ne.s32.totalorder %s45, %s47
    %p51 = scmp.eq.s32.totalorder %s11, 0
    %p52 = por %p50, %p51
    %p53 = scmp.ne.s32.totalorder %s45, %s47
    %p54 = scmp.eq.s32.totalorder %s16, 1
    %p55 = por %p53, %p54
    %p56 = scmp.ne.s32.totalorder %s47, %s48
    %p57 = scmp.eq.s32.totalorder %s16, 0
    %p58 = por %p56, %p57
    %p59 = scmp.ne.s32.totalorder %s47, %s48
    %p60 = scmp.eq.s32.totalorder %s17, 1
    %p61 = por %p59, %p60
    %p63 = scmp.ne.s32.totalorder %s48, %s62
    %p64 = scmp.eq.s32.totalorder %s17, 0
    %p65 = por %p63, %p64
    %s67 = sadd.s32 %s66, 1
    %p70 = scmp.eq.s32.totalorder %s11, 1
    %p71 = scmp.ne.s32.totalorder %s66, %s68
    %p72 = scmp.eq.s32.totalorder %s11, 0
    %p73 = por %p71, %p72
    %p74 = scmp.ne.s32.totalorder %s66, %s68
    %p75 = scmp.eq.s32.totalorder %s16, 1
    %p76 = por %p74, %p75
    %p77 = scmp.ne.s32.totalorder %s68, %s69
    %p78 = scmp.eq.s32.totalorder %s16, 0
    %p79 = por %p77, %p78
    %p80 = scmp.ne.s32.totalorder %s68, %s69
    %p81 = scmp.eq.s32.totalorder %s17, 1
    %p82 = por %p80, %p81
    %p84 = scmp.ne.s32.totalorder %s69, %s83
    %p85 = scmp.eq.s32.totalorder %s17, 0
    %p86 = por %p84, %p85
    %s88 = sadd.s32 %s87, 1
    %p91 = scmp.eq.s32.totalorder %s11, 1
    %p92 = scmp.ne.s32.totalorder %s87, %s89
    %p93 = scmp.eq.s32.totalorder %s11, 0
    %p94 = por %p92, %p93
    %p95 = scmp.ne.s32.totalorder %s87, %s89
    %p96 = scmp.eq.s32.totalorder %s16, 1
    %p97 = por %p95, %p96
    %p98 = scmp.ne.s32.totalorder %s89, %s90
    %p99 = scmp.eq.s32.totalorder %s16, 0
    %p100 = por %p98, %p99
    %p101 = scmp.ne.s32.totalorder %s89, %s90
    %p102 = scmp.eq.s32.totalorder %s17, 1
    %p103 = por %p101, %p102
    %p105 = scmp.ne.s32.totalorder %s90, %s104
    %p106 = scmp.eq.s32.totalorder %s17, 0
    %p107 = por %p105, %p106
    %s109 = sadd.s32 %s108, 1
    %p112 = scmp.eq.s32.totalorder %s11, 1
    %p113 = scmp.ne.s32.totalorder %s108, %s110
    %p114 = scmp.eq.s32.totalorder %s11, 0
    %p115 = por %p113, %p114
    %p116 = scmp.ne.s32.totalorder %s108, %s110
    %p117 = scmp.eq.s32.totalorder %s16, 1
    %p118 = por %p116, %p117
    %p119 = scmp.ne.s32.totalorder %s110, %s111
    %p120 = scmp.eq.s32.totalorder %s16, 0
    %p121 = por %p119, %p120
    %p122 = scmp.ne.s32.totalorder %s110, %s111
    %p123 = scmp.eq.s32.totalorder %s17, 1
    %p124 = por %p122, %p123
    %p126 = scmp.ne.s32.totalorder %s111, %s125
    %p127 = scmp.eq.s32.totalorder %s17, 0
    %p128 = por %p126, %p127
    %s129 = ssub.s32 %s11, %s18
    %p130 = scmp.eq.s32.totalorder %s129, 0
    %s132 = sadd.s32 %s131, 1
    %s133 = scalar_select %p130, %s131, %s132
    %p136 = pneg %p130
    %p137 = scmp.eq.s32.totalorder %s11, 1
    %p138 = por %p136, %p137
    %p139 = scmp.ne.s32.totalorder %s131, %s134
    %p140 = scmp.eq.s32.totalorder %s11, 0
    %p141 = por %p139, %p140
    %p142 = scmp.ne.s32.totalorder %s131, %s134
    %p143 = scmp.eq.s32.totalorder %s16, 1
    %p144 = por %p142, %p143
    %p145 = scmp.ne.s32.totalorder %s134, %s135
    %p146 = scmp.eq.s32.totalorder %s16, 0
    %p147 = por %p145, %p146
    %p148 = scmp.ne.s32.totalorder %s134, %s135
    %p149 = scmp.eq.s32.totalorder %s17, 1
    %p150 = por %p148, %p149
    %p152 = scmp.ne.s32.totalorder %s135, %s151
    %p153 = scmp.eq.s32.totalorder %s17, 0
    %p154 = por %p152, %p153
    %p155 = scmp.le.s32.totalorder 1, %s11
    %p156 = scmp.lt.s32.totalorder %s11, 3
    %p157 = pnand %p155, %p156
    %p158 = pneg %p157
    // Predicated region
    $region9: #{_lambda_.10} parent=5 // pred_check
      _
    $region10: #{_lambda_.10} parent=5 // pred_check_branch
      %160 = sbr.rel (%p157) target = $region12
    $region11: #{_lambda_.10} parent=5 // pred_region
      %s161 = ssub.s32 %s11, 1
      // Predicated region
      $region13: #{_lambda_.10} parent=11 // pred_check
        %p162 = pneg %p58
      $region14: #{_lambda_.10} parent=11 // pred_check_branch
        %164 = sbr.rel (%p162) target = $region16
      $region15: #{_lambda_.10} parent=11 // pred_region
        _
      $region16: #{_lambda_.10} parent=11 // pred_fallthru
        _
      // Predicated region
      $region17: #{_lambda_.10} parent=11 // pred_check
        %p165 = pneg %p79
      $region18: #{_lambda_.10} parent=11 // pred_check_branch
        %167 = sbr.rel (%p165) target = $region20
      $region19: #{_lambda_.10} parent=11 // pred_region
        _
      $region20: #{_lambda_.10} parent=11 // pred_fallthru
        _
      // Predicated region
      $region21: #{_lambda_.10} parent=11 // pred_check
        %p168 = pneg %p100
      $region22: #{_lambda_.10} parent=11 // pred_check_branch
        %170 = sbr.rel (%p168) target = $region24
      $region23: #{_lambda_.10} parent=11 // pred_region
        _
      $region24: #{_lambda_.10} parent=11 // pred_fallthru
        _
      // Predicated region
      $region25: #{_lambda_.10} parent=11 // pred_check
        %p171 = pneg %p121
      $region26: #{_lambda_.10} parent=11 // pred_check_branch
        %173 = sbr.rel (%p171) target = $region28
      $region27: #{_lambda_.10} parent=11 // pred_region
        _
      $region28: #{_lambda_.10} parent=11 // pred_fallthru
        _
    $region12: #{_lambda_.10} parent=5 // pred_fallthru
      _
    %p174 = scmp.lt.s32.totalorder %s11, 2
    // Predicated region
    $region29: #{_lambda_.10} parent=5 // pred_check
      %p175 = pneg %p174
    $region30: #{_lambda_.10} parent=5 // pred_check_branch
      %177 = sbr.rel (%p175) target = $region32
    $region31: #{_lambda_.10} parent=5 // pred_region
      // Predicated region
      $region33: #{_lambda_.10} parent=31 // pred_check
        %p178 = pneg %p31
      $region34: #{_lambda_.10} parent=31 // pred_check_branch
        %180 = sbr.rel (%p178) target = $region36
      $region35: #{_lambda_.10} parent=31 // pred_region
        %p181 = scmp.lt.s32.totalorder %s11, 1
        %s182 = scalar_select %p181, %s11, 1
        %s183 = smul.addr %s182, 4
        %s184 = smul.addr %s183, 8
        %s185 = scalar_lea.vmem %s0, %s184
      $region36: #{_lambda_.10} parent=31 // pred_fallthru
        _
    $region32: #{_lambda_.10} parent=5 // pred_fallthru
      _
    %p186 = scmp.le.s32.totalorder 1, %s11
    %p187 = scmp.lt.s32.totalorder %s11, 3
    %p188 = pnand %p186, %p187
    %p189 = pneg %p188
    // Predicated region
    $region37: #{_lambda_.10} parent=5 // pred_check
      _
    $region38: #{_lambda_.10} parent=5 // pred_check_branch
      %191 = sbr.rel (%p188) target = $region40
    $region39: #{_lambda_.10} parent=5 // pred_region
      %s192 = ssub.s32 %s11, 1
      %p193 = scmp.lt.s32.totalorder %s16, 1
      %s194 = scalar_select %p193, %s16, 1
      %s195 = smul.addr %s194, 4
      %s196 = smul.addr %s195, 8
      %s197 = scalar_lea.vmem %s0, %s196
      %p198 = pneg %p37
      %p199 = pneg %p34
      %p200 = pneg %p58
      %p201 = pneg %p55
      %p202 = pneg %p79
      %p203 = pneg %p76
      %p204 = pneg %p100
      %p205 = pneg %p97
      %p206 = pneg %p121
      %p207 = pneg %p118
      %p208 = pneg %p147
      %p209 = pneg %p144
      %p210 = scmp.lt.s32.totalorder %s16, 1
      %s211 = scalar_select %p210, %s16, 1
      %s212 = smul.addr %s211, 4
      %s213 = smul.addr %s212, 8
      %s214 = scalar_lea.vmem %s5, %s213
      %p215 = scmp.lt.s32.totalorder %s16, 1
      %s216 = scalar_select %p215, %s16, 1
      %s217 = smul.addr %s216, 4
      %s218 = smul.addr %s217, 8
      %s219 = scalar_lea.vmem %s0, %s218
      %p220 = scmp.lt.s32.totalorder %s16, 1
      %s221 = scalar_select %p220, %s16, 1
      %s222 = smul.addr %s221, 4
      %s223 = smul.addr %s222, 8
      %s224 = scalar_lea.vmem %s5, %s223
      %v225 = vld [vmem:[%s219] sm:$0xff]
      %v226 = vld [vmem:[%s219 + $0x8] sm:$0xff]
      %v227 = vld [vmem:[%s219 + $0x10] sm:$0xff]
      %v228 = vld [vmem:[%s219 + $0x18] sm:$0xff]
      %v229 = vld [vmem:[%s1] sm:$0x1]
      %v230 = vld [vmem:[%s2] sm:$0x1]
      %v231 = vlaneseq
      %v232 = vand.u32 %v231, 127
      %vm233 = vcmp.lt.s32.totalorder %v232, 32
      %v234 = vsel %vm233, %v225, 0.0
      %v235 = vsel %vm233, %v226, 0.0
      %v236 = vsel %vm233, %v227, 0.0
      %v237 = vsel %vm233, %v228, 0.0
      %vm238 = vcmask 523264
      %v239 = vsel %vm238, %v234, 0.0
      %240 = vadd.xlane.f32.xlu0 %v239
      %v241 = vpop.xlane.xlu0 %240
      %v242 = vsel %vm238, %v235, 0.0
      %243 = vadd.xlane.f32.xlu0 %v242
      %v244 = vpop.xlane.xlu0 %243
      %v245 = vsel %vm238, %v236, 0.0
      %246 = vadd.xlane.f32.xlu0 %v245
      %v247 = vpop.xlane.xlu0 %246
      %v248 = vsel %vm238, %v237, 0.0
      %249 = vadd.xlane.f32.xlu0 %v248
      %v250 = vpop.xlane.xlu0 %249
      %v251 = vmul.f32 %v241, 0.03125
      %v252 = vmul.f32 %v244, 0.03125
      %v253 = vmul.f32 %v247, 0.03125
      %v254 = vmul.f32 %v250, 0.03125
      %v255 = vsel %vm233, 0.0, %v225
      %v256 = vsel %vm233, 0.0, %v226
      %v257 = vsel %vm233, 0.0, %v227
      %v258 = vsel %vm233, 0.0, %v228
      %v259 = vsel %vm238, %v255, 0.0
      %260 = vadd.xlane.f32.xlu0 %v259
      %v261 = vpop.xlane.xlu0 %260
      %v262 = vsel %vm238, %v256, 0.0
      %263 = vadd.xlane.f32.xlu0 %v262
      %v264 = vpop.xlane.xlu0 %263
      %v265 = vsel %vm238, %v257, 0.0
      %266 = vadd.xlane.f32.xlu0 %v265
      %v267 = vpop.xlane.xlu0 %266
      %v268 = vsel %vm238, %v258, 0.0
      %269 = vadd.xlane.f32.xlu0 %v268
      %v270 = vpop.xlane.xlu0 %269
      %v271 = vmul.f32 %v261, 0.03125
      %v272 = vmul.f32 %v264, 0.03125
      %v273 = vmul.f32 %v267, 0.03125
      %v274 = vmul.f32 %v270, 0.03125
      %v275 = vsel %vm233, %v251, %v271
      %v276 = vsel %vm233, %v252, %v272
      %v277 = vsel %vm233, %v253, %v273
      %v278 = vsel %vm233, %v254, %v274
      %v279 = vsub.f32 %v225, %v275
      %v280 = vsub.f32 %v226, %v276
      %v281 = vsub.f32 %v227, %v277
      %v282 = vsub.f32 %v228, %v278
      %v283 = vmul.f32 %v279, %v279
      %v284 = vmul.f32 %v280, %v280
      %v285 = vmul.f32 %v281, %v281
      %v286 = vmul.f32 %v282, %v282
      %v287 = vsel %vm233, %v283, 0.0
      %v288 = vsel %vm233, %v284, 0.0
      %v289 = vsel %vm233, %v285, 0.0
      %v290 = vsel %vm233, %v286, 0.0
      %v291 = vsel %vm238, %v287, 0.0
      %292 = vadd.xlane.f32.xlu0 %v291
      %v293 = vpop.xlane.xlu0 %292
      %v294 = vsel %vm238, %v288, 0.0
      %295 = vadd.xlane.f32.xlu0 %v294
      %v296 = vpop.xlane.xlu0 %295
      %v297 = vsel %vm238, %v289, 0.0
      %298 = vadd.xlane.f32.xlu0 %v297
      %v299 = vpop.xlane.xlu0 %298
      %v300 = vsel %vm238, %v290, 0.0
      %301 = vadd.xlane.f32.xlu0 %v300
      %v302 = vpop.xlane.xlu0 %301
      %v303 = vmul.f32 %v293, 0.03125
      %v304 = vmul.f32 %v296, 0.03125
      %v305 = vmul.f32 %v299, 0.03125
      %v306 = vmul.f32 %v302, 0.03125
      %v307 = vsel %vm233, 0.0, %v283
      %v308 = vsel %vm233, 0.0, %v284
      %v309 = vsel %vm233, 0.0, %v285
      %v310 = vsel %vm233, 0.0, %v286
      %v311 = vsel %vm238, %v307, 0.0
      %312 = vadd.xlane.f32.xlu0 %v311
      %v313 = vpop.xlane.xlu0 %312
      %v314 = vsel %vm238, %v308, 0.0
      %315 = vadd.xlane.f32.xlu0 %v314
      %v316 = vpop.xlane.xlu0 %315
      %v317 = vsel %vm238, %v309, 0.0
      %318 = vadd.xlane.f32.xlu0 %v317
      %v319 = vpop.xlane.xlu0 %318
      %v320 = vsel %vm238, %v310, 0.0
      %321 = vadd.xlane.f32.xlu0 %v320
      %v322 = vpop.xlane.xlu0 %321
      %v323 = vmul.f32 %v313, 0.03125
      %v324 = vmul.f32 %v316, 0.03125
      %v325 = vmul.f32 %v319, 0.03125
      %v326 = vmul.f32 %v322, 0.03125
      %v327 = vsel %vm233, %v303, %v323
      %v328 = vsel %vm233, %v304, %v324
      %v329 = vsel %vm233, %v305, %v325
      %v330 = vsel %vm233, %v306, %v326
      %v331 = vadd.f32 %v327, 1e-06
      %v332 = vadd.f32 %v328, 1e-06
      %v333 = vadd.f32 %v329, 1e-06
      %v334 = vadd.f32 %v330, 1e-06
      %v335 = vrsqrt.pop %v331
      %v336 = vrsqrt.pop %v332
      %v337 = vrsqrt.pop %v333
      %v338 = vrsqrt.pop %v334
      %v339 = vmul.f32 %v279, %v335
      %v340 = vmul.f32 %v280, %v336
      %v341 = vmul.f32 %v281, %v337
      %v342 = vmul.f32 %v282, %v338
      %v344 = vlaneseq
      %v345 = vshrl.u32 %v344, 7
      %v346 = vsub.s32 0, %v345
      %v347 = vrot.slane %v229, %v346
      %v349 = vmul.f32 %v339, %v347
      %v350 = vmul.f32 %v340, %v347
      %v351 = vmul.f32 %v341, %v347
      %v352 = vmul.f32 %v342, %v347
      %v354 = vlaneseq
      %v355 = vshrl.u32 %v354, 7
      %v356 = vsub.s32 0, %v355
      %v357 = vrot.slane %v230, %v356
      %v359 = vadd.f32 %v349, %v357
      %v360 = vadd.f32 %v350, %v357
      %v361 = vadd.f32 %v351, %v357
      %v362 = vadd.f32 %v352, %v357
      %v363 = vld [vmem:[%s3] sm:$0xff]
      %v364 = vld [vmem:[%s3 + $0x8] sm:$0xff]
      %v365 = vld [vmem:[%s3 + $0x10] sm:$0xff]
      %v366 = vld [vmem:[%s3 + $0x18] sm:$0xff]
      %v367 = vld [vmem:[%s3 + $0x20] sm:$0xff]
      %v368 = vld [vmem:[%s3 + $0x28] sm:$0xff]
      %v369 = vld [vmem:[%s3 + $0x30] sm:$0xff]
      %v370 = vld [vmem:[%s3 + $0x38] sm:$0xff]
      %v371 = vld [vmem:[%s4] sm:$0x1]
      %v373 = vlaneseq
      %v374 = vshrl.u32 %v373, 7
      %v375 = vsub.s32 0, %v374
      %v376 = vrot.slane %v371, %v375
      %v379 = vsel %vm238, %v359, 0
      %v382 = vsel %vm238, %v360, 0
      %v385 = vsel %vm238, %v361, 0
      %v388 = vsel %vm238, %v362, 0
      %390 = vmatprep.subr.mxu0 0.0
      %391 = vmatpush1.msra.mxu0 0.0
      %392 = vmatprep.subr.mxu0 0.0
      %393 = vmatpush1.msra.mxu0 0.0
      %394 = vmatprep.subr.mxu0 0.0
      %395 = vmatpush1.msra.mxu0 0.0
      %396 = vmatprep.subr.mxu0 0.0
      %397 = vmatpush1.msra.mxu0 0.0
      %398 = vmatprep.subr.mxu0 0.0
      %399 = vmatpush1.msra.mxu0 0.0
      %400 = vmatprep.subr.mxu0 0.0
      %401 = vmatpush1.msra.mxu0 0.0
      %402 = vmatprep.subr.mxu0 0.0
      %403 = vmatpush1.msra.mxu0 0.0
      %404 = vmatprep.subr.mxu0 0.0
      %405 = vmatpush1.msra.mxu0 0.0
      %406 = vmatprep.subr.mxu0 0.0
      %407 = vmatpush1.msra.mxu0 %v370
      %408 = vmatprep.subr.mxu0 0.0
      %409 = vmatpush1.msra.mxu0 %v369
      %410 = vmatprep.subr.mxu0 0.0
      %411 = vmatpush1.msra.mxu0 %v368
      %412 = vmatprep.subr.mxu0 0.0
      %413 = vmatpush1.msra.mxu0 %v367
      %414 = vmatprep.subr.mxu0 0.0
      %415 = vmatpush1.msra.mxu0 %v366
      %416 = vmatprep.subr.mxu0 0.0
      %417 = vmatpush1.msra.mxu0 %v365
      %418 = vmatprep.subr.mxu0 0.0
      %419 = vmatpush1.msra.mxu0 %v364
      %420 = vmatprep.subr.mxu0 0.0
      %421 = vmatpush1.msra.mxu0 %v363
      %422 = vmatprep.subr.mxu0 0.0
      %423 = vmatpush2.msra.mxu0 0.0
      %424 = vmatprep.subr.mxu0 0.0
      %425 = vmatpush2.msra.mxu0 0.0
      %426 = vmatprep.subr.mxu0 0.0
      %427 = vmatpush2.msra.mxu0 0.0
      %428 = vmatprep.subr.mxu0 0.0
      %429 = vmatpush2.msra.mxu0 0.0
      %430 = vmatprep.subr.mxu0 0.0
      %431 = vmatpush2.msra.mxu0 0.0
      %432 = vmatprep.subr.mxu0 0.0
      %433 = vmatpush2.msra.mxu0 0.0
      %434 = vmatprep.subr.mxu0 0.0
      %435 = vmatpush2.msra.mxu0 0.0
      %436 = vmatprep.subr.mxu0 0.0
      %437 = vmatpush2.msra.mxu0 0.0
      %438 = vmatprep.subr.mxu0 0.0
      %439 = vmatpush2.msra.mxu0 0.0
      %440 = vmatprep.subr.mxu0 0.0
      %441 = vmatpush2.msra.mxu0 0.0
      %442 = vmatprep.subr.mxu0 0.0
      %443 = vmatpush2.msra.mxu0 0.0
      %444 = vmatprep.subr.mxu0 0.0
      %445 = vmatpush2.msra.mxu0 0.0
      %446 = vmatprep.subr.mxu0 0.0
      %447 = vmatpush2.msra.mxu0 0.0
      %448 = vmatprep.subr.mxu0 0.0
      %449 = vmatpush2.msra.mxu0 0.0
      %450 = vmatprep.subr.mxu0 0.0
      %451 = vmatpush2.msra.mxu0 0.0
      %452 = vmatprep.subr.mxu0 0.0
      %453 = vmatpush2.msra.mxu0 0.0
      %454 = vmatprep.mubr.f32.mxu0 0.0
      %455 = vmatmul.mubr.f32.gmra.mxu0 %v379
      %v456 = vpop.f32.mrf.mxu0
      %v457 = vadd.f32 %v376, %v456
      %v458 = vpop.f32.mrf.mxu0
      %459 = vmatprep.mubr.f32.mxu0 0.0
      %460 = vmatmul.mubr.f32.gmra.mxu0 %v382
      %v461 = vpop.f32.mrf.mxu0
      %v462 = vadd.f32 %v376, %v461
      %v463 = vpop.f32.mrf.mxu0
      %464 = vmatprep.mubr.f32.mxu0 0.0
      %465 = vmatmul.mubr.f32.gmra.mxu0 %v385
      %v466 = vpop.f32.mrf.mxu0
      %v467 = vadd.f32 %v376, %v466
      %v468 = vpop.f32.mrf.mxu0
      %469 = vmatprep.mubr.f32.mxu0 0.0
      %470 = vmatmul.mubr.f32.gmra.mxu0 %v388
      %v471 = vpop.f32.mrf.mxu0
      %v472 = vadd.f32 %v376, %v471
      %v473 = vpop.f32.mrf.mxu0
      %474 = vdwg.mxu0
      %475 = vst.msk [vmem:[%s224] sm:$0xff] %vm238, %v457
      %476 = vst.msk [vmem:[%s224 + $0x8] sm:$0xff] %vm238, %v462
      %477 = vst.msk [vmem:[%s224 + $0x10] sm:$0xff] %vm238, %v467
      %478 = vst.msk [vmem:[%s224 + $0x18] sm:$0xff] %vm238, %v472
      %p479 = scmp.lt.s32.totalorder %s16, 1
      %s480 = scalar_select %p479, %s16, 1
      %s481 = smul.addr %s480, 4
      %s482 = smul.addr %s481, 8
      %s483 = scalar_lea.vmem %s5, %s482
      // Predicated region
      $region41: #{_lambda_.10} parent=39 // pred_check
        %p484 = pneg %p144
      $region42: #{_lambda_.10} parent=39 // pred_check_branch
        %486 = sbr.rel (%p484) target = $region44
      $region43: #{_lambda_.10} parent=39 // pred_region
        _
      $region44: #{_lambda_.10} parent=39 // pred_fallthru
        _
    $region40: #{_lambda_.10} parent=5 // pred_fallthru
      _
    %p487 = scmp.le.s32.totalorder 2, %s11
    // Predicated region
    $region45: #{_lambda_.10} parent=5 // pred_check
      %p488 = pneg %p487
    $region46: #{_lambda_.10} parent=5 // pred_check_branch
      %490 = sbr.rel (%p488) target = $region48
    $region47: #{_lambda_.10} parent=5 // pred_region
      %s491 = ssub.s32 %s11, 2
      // Predicated region
      $region49: #{_lambda_.10} parent=47 // pred_check
        %p492 = pneg %p150
      $region50: #{_lambda_.10} parent=47 // pred_check_branch
        %494 = sbr.rel (%p492) target = $region52
      $region51: #{_lambda_.10} parent=47 // pred_region
        %p495 = scmp.lt.s32.totalorder %s17, 1
        %s496 = scalar_select %p495, %s17, 1
        %s497 = smul.addr %s496, 4
        %s498 = smul.addr %s497, 8
        %s499 = scalar_lea.vmem %s5, %s498
      $region52: #{_lambda_.10} parent=47 // pred_fallthru
        _
    $region48: #{_lambda_.10} parent=5 // pred_fallthru
      _
  $region6: #{_lambda_.10} parent=0 // loop_footer
    %s15 = sadd.s32 1, %s11
  $region7: #{_lambda_.10} parent=0 // loop_footer_branch
    %10 = sbr.rel target = $region3
  $region8: #{_lambda_.10} parent=0 // loop_exit
    _

// kernel: _lambda_.12
$region0: #{_lambda_.12}
  #allocation0 [shape = 'u32[]', space=smem, size = 0x4, offset = 0x4, fixed_abs, tag = 'smem constant byte address 0x4 - core index']
  #allocation1 [shape = 'u32[144,128]{1,0:T(1,128)}', space=vmem, size = 0x12000, scoped, tag = 'internal scratch']
  %s0 = inlined_call_operand.vmem [shape: f32[2,16,128], index: 0, kind: input, shape index: {}]
  %s1 = inlined_call_operand.vmem [shape: f32[1,128], index: 1, kind: input, shape index: {}]
  %s2 = inlined_call_operand.vmem [shape: f32[1,128], index: 2, kind: input, shape index: {}]
  %s3 = inlined_call_operand.vmem [shape: f32[128,96], index: 3, kind: input, shape index: {}]
  %s4 = inlined_call_operand.vmem [shape: f32[1,96], index: 4, kind: input, shape index: {}]
  %s5 = inlined_call_operand.vmem [shape: f32[2,16,96], index: 5, kind: output, shape index: {}]
  %s6 = sld [smem:[#allocation0]]
  $region53: #{_lambda_.12} parent=0
    _
  %s8 = ssub.s32 1, %s6
  %s9 = scalar_select 0, %s8, %s6
  loop: start=0, step=1, limit=4
  $region2: #{_lambda_.12} parent=0 // loop_pre_header
    _
  $region3: #{_lambda_.12} parent=0 // loop_header
    %s11 = sphi 0, %s15
    %p12 = scmp.ge.s32.totalorder %s11, 4
    %s21 = sphi 0, %s23
    %s24 = sphi 0, %s21
    %s25 = sphi 0, %s24
    %s41 = sphi 0, %s25
    %s45 = sphi 0, %s45
    %s47 = sphi 0, %s45
    %s48 = sphi 0, %s47
    %s62 = sphi 0, %s48
    %s66 = sphi 0, %s66
    %s68 = sphi 0, %s66
    %s69 = sphi 0, %s68
    %s83 = sphi 0, %s69
    %s87 = sphi 0, %s87
    %s89 = sphi 0, %s87
    %s90 = sphi 0, %s89
    %s104 = sphi 0, %s90
    %s108 = sphi 0, %s108
    %s110 = sphi 0, %s108
    %s111 = sphi 0, %s110
    %s125 = sphi 0, %s111
    %s131 = sphi 0, %s133
    %s134 = sphi 0, %s131
    %s135 = sphi 0, %s134
    %s151 = sphi 0, %s135
  $region4: #{_lambda_.12} parent=0 // loop_header_branch
    %14 = sbr.rel (%p12) target = $region8
  $region5: #{_lambda_.12} parent=0 // loop_body
    %s16 = ssub.s32 %s11, 1
    %s17 = ssub.s32 %s11, 2
    %s18 = sadd.s32 %s11, 1
    %s19 = ssub.s32 %s11, %s18
    %p20 = scmp.eq.s32.totalorder %s19, 0
    %s22 = sadd.s32 %s21, 1
    %s23 = scalar_select %p20, %s21, %s22
    %p26 = pneg %p20
    %p27 = scmp.eq.s32.totalorder %s11, 1
    %p28 = por %p26, %p27
    %p29 = scmp.ne.s32.totalorder %s21, %s24
    %p30 = scmp.eq.s32.totalorder %s11, 0
    %p31 = por %p29, %p30
    %p32 = scmp.ne.s32.totalorder %s21, %s24
    %p33 = scmp.eq.s32.totalorder %s16, 1
    %p34 = por %p32, %p33
    %p35 = scmp.ne.s32.totalorder %s24, %s25
    %p36 = scmp.eq.s32.totalorder %s16, 0
    %p37 = por %p35, %p36
    %p38 = scmp.ne.s32.totalorder %s24, %s25
    %p39 = scmp.eq.s32.totalorder %s17, 1
    %p40 = por %p38, %p39
    %p42 = scmp.ne.s32.totalorder %s25, %s41
    %p43 = scmp.eq.s32.totalorder %s17, 0
    %p44 = por %p42, %p43
    %s46 = sadd.s32 %s45, 1
    %p49 = scmp.eq.s32.totalorder %s11, 1
    %p50 = scmp.ne.s32.totalorder %s45, %s47
    %p51 = scmp.eq.s32.totalorder %s11, 0
    %p52 = por %p50, %p51
    %p53 = scmp.ne.s32.totalorder %s45, %s47
    %p54 = scmp.eq.s32.totalorder %s16, 1
    %p55 = por %p53, %p54
    %p56 = scmp.ne.s32.totalorder %s47, %s48
    %p57 = scmp.eq.s32.totalorder %s16, 0
    %p58 = por %p56, %p57
    %p59 = scmp.ne.s32.totalorder %s47, %s48
    %p60 = scmp.eq.s32.totalorder %s17, 1
    %p61 = por %p59, %p60
    %p63 = scmp.ne.s32.totalorder %s48, %s62
    %p64 = scmp.eq.s32.totalorder %s17, 0
    %p65 = por %p63, %p64
    %s67 = sadd.s32 %s66, 1
    %p70 = scmp.eq.s32.totalorder %s11, 1
    %p71 = scmp.ne.s32.totalorder %s66, %s68
    %p72 = scmp.eq.s32.totalorder %s11, 0
    %p73 = por %p71, %p72
    %p74 = scmp.ne.s32.totalorder %s66, %s68
    %p75 = scmp.eq.s32.totalorder %s16, 1
    %p76 = por %p74, %p75
    %p77 = scmp.ne.s32.totalorder %s68, %s69
    %p78 = scmp.eq.s32.totalorder %s16, 0
    %p79 = por %p77, %p78
    %p80 = scmp.ne.s32.totalorder %s68, %s69
    %p81 = scmp.eq.s32.totalorder %s17, 1
    %p82 = por %p80, %p81
    %p84 = scmp.ne.s32.totalorder %s69, %s83
    %p85 = scmp.eq.s32.totalorder %s17, 0
    %p86 = por %p84, %p85
    %s88 = sadd.s32 %s87, 1
    %p91 = scmp.eq.s32.totalorder %s11, 1
    %p92 = scmp.ne.s32.totalorder %s87, %s89
    %p93 = scmp.eq.s32.totalorder %s11, 0
    %p94 = por %p92, %p93
    %p95 = scmp.ne.s32.totalorder %s87, %s89
    %p96 = scmp.eq.s32.totalorder %s16, 1
    %p97 = por %p95, %p96
    %p98 = scmp.ne.s32.totalorder %s89, %s90
    %p99 = scmp.eq.s32.totalorder %s16, 0
    %p100 = por %p98, %p99
    %p101 = scmp.ne.s32.totalorder %s89, %s90
    %p102 = scmp.eq.s32.totalorder %s17, 1
    %p103 = por %p101, %p102
    %p105 = scmp.ne.s32.totalorder %s90, %s104
    %p106 = scmp.eq.s32.totalorder %s17, 0
    %p107 = por %p105, %p106
    %s109 = sadd.s32 %s108, 1
    %p112 = scmp.eq.s32.totalorder %s11, 1
    %p113 = scmp.ne.s32.totalorder %s108, %s110
    %p114 = scmp.eq.s32.totalorder %s11, 0
    %p115 = por %p113, %p114
    %p116 = scmp.ne.s32.totalorder %s108, %s110
    %p117 = scmp.eq.s32.totalorder %s16, 1
    %p118 = por %p116, %p117
    %p119 = scmp.ne.s32.totalorder %s110, %s111
    %p120 = scmp.eq.s32.totalorder %s16, 0
    %p121 = por %p119, %p120
    %p122 = scmp.ne.s32.totalorder %s110, %s111
    %p123 = scmp.eq.s32.totalorder %s17, 1
    %p124 = por %p122, %p123
    %p126 = scmp.ne.s32.totalorder %s111, %s125
    %p127 = scmp.eq.s32.totalorder %s17, 0
    %p128 = por %p126, %p127
    %s129 = ssub.s32 %s11, %s18
    %p130 = scmp.eq.s32.totalorder %s129, 0
    %s132 = sadd.s32 %s131, 1
    %s133 = scalar_select %p130, %s131, %s132
    %p136 = pneg %p130
    %p137 = scmp.eq.s32.totalorder %s11, 1
    %p138 = por %p136, %p137
    %p139 = scmp.ne.s32.totalorder %s131, %s134
    %p140 = scmp.eq.s32.totalorder %s11, 0
    %p141 = por %p139, %p140
    %p142 = scmp.ne.s32.totalorder %s131, %s134
    %p143 = scmp.eq.s32.totalorder %s16, 1
    %p144 = por %p142, %p143
    %p145 = scmp.ne.s32.totalorder %s134, %s135
    %p146 = scmp.eq.s32.totalorder %s16, 0
    %p147 = por %p145, %p146
    %p148 = scmp.ne.s32.totalorder %s134, %s135
    %p149 = scmp.eq.s32.totalorder %s17, 1
    %p150 = por %p148, %p149
    %p152 = scmp.ne.s32.totalorder %s135, %s151
    %p153 = scmp.eq.s32.totalorder %s17, 0
    %p154 = por %p152, %p153
    %p155 = scmp.le.s32.totalorder 1, %s11
    %p156 = scmp.lt.s32.totalorder %s11, 3
    %p157 = pnand %p155, %p156
    %p158 = pneg %p157
    // Predicated region
    $region9: #{_lambda_.12} parent=5 // pred_check
      _
    $region10: #{_lambda_.12} parent=5 // pred_check_branch
      %160 = sbr.rel (%p157) target = $region12
    $region11: #{_lambda_.12} parent=5 // pred_region
      %s161 = ssub.s32 %s11, 1
      // Predicated region
      $region13: #{_lambda_.12} parent=11 // pred_check
        %p162 = pneg %p58
      $region14: #{_lambda_.12} parent=11 // pred_check_branch
        %164 = sbr.rel (%p162) target = $region16
      $region15: #{_lambda_.12} parent=11 // pred_region
        _
      $region16: #{_lambda_.12} parent=11 // pred_fallthru
        _
      // Predicated region
      $region17: #{_lambda_.12} parent=11 // pred_check
        %p165 = pneg %p79
      $region18: #{_lambda_.12} parent=11 // pred_check_branch
        %167 = sbr.rel (%p165) target = $region20
      $region19: #{_lambda_.12} parent=11 // pred_region
        _
      $region20: #{_lambda_.12} parent=11 // pred_fallthru
        _
      // Predicated region
      $region21: #{_lambda_.12} parent=11 // pred_check
        %p168 = pneg %p100
      $region22: #{_lambda_.12} parent=11 // pred_check_branch
        %170 = sbr.rel (%p168) target = $region24
      $region23: #{_lambda_.12} parent=11 // pred_region
        _
      $region24: #{_lambda_.12} parent=11 // pred_fallthru
        _
      // Predicated region
      $region25: #{_lambda_.12} parent=11 // pred_check
        %p171 = pneg %p121
      $region26: #{_lambda_.12} parent=11 // pred_check_branch
        %173 = sbr.rel (%p171) target = $region28
      $region27: #{_lambda_.12} parent=11 // pred_region
        _
      $region28: #{_lambda_.12} parent=11 // pred_fallthru
        _
    $region12: #{_lambda_.12} parent=5 // pred_fallthru
      _
    %p174 = scmp.lt.s32.totalorder %s11, 2
    // Predicated region
    $region29: #{_lambda_.12} parent=5 // pred_check
      %p175 = pneg %p174
    $region30: #{_lambda_.12} parent=5 // pred_check_branch
      %177 = sbr.rel (%p175) target = $region32
    $region31: #{_lambda_.12} parent=5 // pred_region
      // Predicated region
      $region33: #{_lambda_.12} parent=31 // pred_check
        %p178 = pneg %p31
      $region34: #{_lambda_.12} parent=31 // pred_check_branch
        %180 = sbr.rel (%p178) target = $region36
      $region35: #{_lambda_.12} parent=31 // pred_region
        %p181 = scmp.lt.s32.totalorder %s11, 1
        %s182 = scalar_select %p181, %s11, 1
        %s183 = smul.addr %s182, 2
        %s184 = smul.addr %s183, 8
        %s185 = scalar_lea.vmem %s0, %s184
      $region36: #{_lambda_.12} parent=31 // pred_fallthru
        _
    $region32: #{_lambda_.12} parent=5 // pred_fallthru
      _
    %p186 = scmp.le.s32.totalorder 1, %s11
    %p187 = scmp.lt.s32.totalorder %s11, 3
    %p188 = pnand %p186, %p187
    %p189 = pneg %p188
    // Predicated region
    $region37: #{_lambda_.12} parent=5 // pred_check
      _
    $region38: #{_lambda_.12} parent=5 // pred_check_branch
      %191 = sbr.rel (%p188) target = $region40
    $region39: #{_lambda_.12} parent=5 // pred_region
      %s192 = ssub.s32 %s11, 1
      %p193 = scmp.lt.s32.totalorder %s16, 1
      %s194 = scalar_select %p193, %s16, 1
      %s195 = smul.addr %s194, 2
      %s196 = smul.addr %s195, 8
      %s197 = scalar_lea.vmem %s0, %s196
      %p198 = pneg %p37
      %p199 = pneg %p34
      %p200 = pneg %p58
      %p201 = pneg %p55
      %p202 = pneg %p79
      %p203 = pneg %p76
      %p204 = pneg %p100
      %p205 = pneg %p97
      %p206 = pneg %p121
      %p207 = pneg %p118
      %p208 = pneg %p147
      %p209 = pneg %p144
      %p210 = scmp.lt.s32.totalorder %s16, 1
      %s211 = scalar_select %p210, %s16, 1
      %s212 = smul.addr %s211, 2
      %s213 = smul.addr %s212, 8
      %s214 = scalar_lea.vmem %s5, %s213
      %p215 = scmp.lt.s32.totalorder %s16, 1
      %s216 = scalar_select %p215, %s16, 1
      %s217 = smul.addr %s216, 2
      %s218 = smul.addr %s217, 8
      %s219 = scalar_lea.vmem %s0, %s218
      %p220 = scmp.lt.s32.totalorder %s16, 1
      %s221 = scalar_select %p220, %s16, 1
      %s222 = smul.addr %s221, 2
      %s223 = smul.addr %s222, 8
      %s224 = scalar_lea.vmem %s5, %s223
      %v225 = vld [vmem:[%s219] sm:$0xff]
      %v226 = vld [vmem:[%s219 + $0x8] sm:$0xff]
      %v227 = vld [vmem:[%s1] sm:$0x1]
      %v228 = vld [vmem:[%s2] sm:$0x1]
      %v229 = vlaneseq
      %v230 = vand.u32 %v229, 127
      %vm231 = vcmp.lt.s32.totalorder %v230, 64
      %v232 = vsel %vm231, %v225, 0.0
      %v233 = vsel %vm231, %v226, 0.0
      %234 = vadd.xlane.f32.xlu0 %v232
      %v235 = vpop.xlane.xlu0 %234
      %236 = vadd.xlane.f32.xlu0 %v233
      %v237 = vpop.xlane.xlu0 %236
      %v238 = vmul.f32 %v235, 0.015625
      %v239 = vmul.f32 %v237, 0.015625
      %v240 = vsel %vm231, 0.0, %v225
      %v241 = vsel %vm231, 0.0, %v226
      %242 = vadd.xlane.f32.xlu0 %v240
      %v243 = vpop.xlane.xlu0 %242
      %244 = vadd.xlane.f32.xlu0 %v241
      %v245 = vpop.xlane.xlu0 %244
      %v246 = vmul.f32 %v243, 0.015625
      %v247 = vmul.f32 %v245, 0.015625
      %v248 = vsel %vm231, %v238, %v246
      %v249 = vsel %vm231, %v239, %v247
      %v250 = vsub.f32 %v225, %v248
      %v251 = vsub.f32 %v226, %v249
      %v252 = vmul.f32 %v250, %v250
      %v253 = vmul.f32 %v251, %v251
      %v254 = vsel %vm231, %v252, 0.0
      %v255 = vsel %vm231, %v253, 0.0
      %256 = vadd.xlane.f32.xlu0 %v254
      %v257 = vpop.xlane.xlu0 %256
      %258 = vadd.xlane.f32.xlu0 %v255
      %v259 = vpop.xlane.xlu0 %258
      %v260 = vmul.f32 %v257, 0.015625
      %v261 = vmul.f32 %v259, 0.015625
      %v262 = vsel %vm231, 0.0, %v252
      %v263 = vsel %vm231, 0.0, %v253
      %264 = vadd.xlane.f32.xlu0 %v262
      %v265 = vpop.xlane.xlu0 %264
      %266 = vadd.xlane.f32.xlu0 %v263
      %v267 = vpop.xlane.xlu0 %266
      %v268 = vmul.f32 %v265, 0.015625
      %v269 = vmul.f32 %v267, 0.015625
      %v270 = vsel %vm231, %v260, %v268
      %v271 = vsel %vm231, %v261, %v269
      %v272 = vadd.f32 %v270, 1e-06
      %v273 = vadd.f32 %v271, 1e-06
      %v274 = vrsqrt.pop %v272
      %v275 = vrsqrt.pop %v273
      %v276 = vmul.f32 %v250, %v274
      %v277 = vmul.f32 %v251, %v275
      %v279 = vlaneseq
      %v280 = vshrl.u32 %v279, 7
      %v281 = vsub.s32 0, %v280
      %v282 = vrot.slane %v227, %v281
      %v284 = vmul.f32 %v276, %v282
      %v285 = vmul.f32 %v277, %v282
      %v287 = vlaneseq
      %v288 = vshrl.u32 %v287, 7
      %v289 = vsub.s32 0, %v288
      %v290 = vrot.slane %v228, %v289
      %v292 = vadd.f32 %v284, %v290
      %v293 = vadd.f32 %v285, %v290
      %v294 = vld [vmem:[%s3] sm:$0xff]
      %v295 = vld [vmem:[%s3 + $0x8] sm:$0xff]
      %v296 = vld [vmem:[%s3 + $0x10] sm:$0xff]
      %v297 = vld [vmem:[%s3 + $0x18] sm:$0xff]
      %v298 = vld [vmem:[%s3 + $0x20] sm:$0xff]
      %v299 = vld [vmem:[%s3 + $0x28] sm:$0xff]
      %v300 = vld [vmem:[%s3 + $0x30] sm:$0xff]
      %v301 = vld [vmem:[%s3 + $0x38] sm:$0xff]
      %v302 = vld [vmem:[%s3 + $0x40] sm:$0xff]
      %v303 = vld [vmem:[%s3 + $0x48] sm:$0xff]
      %v304 = vld [vmem:[%s3 + $0x50] sm:$0xff]
      %v305 = vld [vmem:[%s3 + $0x58] sm:$0xff]
      %v306 = vld [vmem:[%s3 + $0x60] sm:$0xff]
      %v307 = vld [vmem:[%s3 + $0x68] sm:$0xff]
      %v308 = vld [vmem:[%s3 + $0x70] sm:$0xff]
      %v309 = vld [vmem:[%s3 + $0x78] sm:$0xff]
      %v310 = vld [vmem:[%s4] sm:$0x1]
      %v312 = vlaneseq
      %v313 = vshrl.u32 %v312, 7
      %v314 = vsub.s32 0, %v313
      %v315 = vrot.slane %v310, %v314
      %317 = vmatprep.subr.mxu0 0.0
      %318 = vmatpush1.msra.mxu0 %v309
      %319 = vmatprep.subr.mxu0 0.0
      %320 = vmatpush1.msra.mxu0 %v308
      %321 = vmatprep.subr.mxu0 0.0
      %322 = vmatpush1.msra.mxu0 %v307
      %323 = vmatprep.subr.mxu0 0.0
      %324 = vmatpush1.msra.mxu0 %v306
      %325 = vmatprep.subr.mxu0 0.0
      %326 = vmatpush1.msra.mxu0 %v305
      %327 = vmatprep.subr.mxu0 0.0
      %328 = vmatpush1.msra.mxu0 %v304
      %329 = vmatprep.subr.mxu0 0.0
      %330 = vmatpush1.msra.mxu0 %v303
      %331 = vmatprep.subr.mxu0 0.0
      %332 = vmatpush1.msra.mxu0 %v302
      %333 = vmatprep.subr.mxu0 0.0
      %334 = vmatpush1.msra.mxu0 %v301
      %335 = vmatprep.subr.mxu0 0.0
      %336 = vmatpush1.msra.mxu0 %v300
      %337 = vmatprep.subr.mxu0 0.0
      %338 = vmatpush1.msra.mxu0 %v299
      %339 = vmatprep.subr.mxu0 0.0
      %340 = vmatpush1.msra.mxu0 %v298
      %341 = vmatprep.subr.mxu0 0.0
      %342 = vmatpush1.msra.mxu0 %v297
      %343 = vmatprep.subr.mxu0 0.0
      %344 = vmatpush1.msra.mxu0 %v296
      %345 = vmatprep.subr.mxu0 0.0
      %346 = vmatpush1.msra.mxu0 %v295
      %347 = vmatprep.subr.mxu0 0.0
      %348 = vmatpush1.msra.mxu0 %v294
      %349 = vmatprep.subr.mxu0 0.0
      %350 = vmatpush2.msra.mxu0 0.0
      %351 = vmatprep.subr.mxu0 0.0
      %352 = vmatpush2.msra.mxu0 0.0
      %353 = vmatprep.subr.mxu0 0.0
      %354 = vmatpush2.msra.mxu0 0.0
      %355 = vmatprep.subr.mxu0 0.0
      %356 = vmatpush2.msra.mxu0 0.0
      %357 = vmatprep.subr.mxu0 0.0
      %358 = vmatpush2.msra.mxu0 0.0
      %359 = vmatprep.subr.mxu0 0.0
      %360 = vmatpush2.msra.mxu0 0.0
      %361 = vmatprep.subr.mxu0 0.0
      %362 = vmatpush2.msra.mxu0 0.0
      %363 = vmatprep.subr.mxu0 0.0
      %364 = vmatpush2.msra.mxu0 0.0
      %365 = vmatprep.subr.mxu0 0.0
      %366 = vmatpush2.msra.mxu0 0.0
      %367 = vmatprep.subr.mxu0 0.0
      %368 = vmatpush2.msra.mxu0 0.0
      %369 = vmatprep.subr.mxu0 0.0
      %370 = vmatpush2.msra.mxu0 0.0
      %371 = vmatprep.subr.mxu0 0.0
      %372 = vmatpush2.msra.mxu0 0.0
      %373 = vmatprep.subr.mxu0 0.0
      %374 = vmatpush2.msra.mxu0 0.0
      %375 = vmatprep.subr.mxu0 0.0
      %376 = vmatpush2.msra.mxu0 0.0
      %377 = vmatprep.subr.mxu0 0.0
      %378 = vmatpush2.msra.mxu0 0.0
      %379 = vmatprep.subr.mxu0 0.0
      %380 = vmatpush2.msra.mxu0 0.0
      %381 = vmatprep.mubr.f32.mxu0 0.0
      %382 = vmatmul.mubr.f32.gmra.mxu0 %v292
      %v383 = vpop.f32.mrf.mxu0
      %v384 = vadd.f32 %v315, %v383
      %v385 = vpop.f32.mrf.mxu0
      %386 = vmatprep.mubr.f32.mxu0 0.0
      %387 = vmatmul.mubr.f32.gmra.mxu0 %v293
      %v388 = vpop.f32.mrf.mxu0
      %v389 = vadd.f32 %v315, %v388
      %v390 = vpop.f32.mrf.mxu0
      %391 = vdwg.mxu0
      %vm392 = vcmask 785408
      %393 = vst.msk [vmem:[%s224] sm:$0xff] %vm392, %v384
      %394 = vst.msk [vmem:[%s224 + $0x8] sm:$0xff] %vm392, %v389
      %p395 = scmp.lt.s32.totalorder %s16, 1
      %s396 = scalar_select %p395, %s16, 1
      %s397 = smul.addr %s396, 2
      %s398 = smul.addr %s397, 8
      %s399 = scalar_lea.vmem %s5, %s398
      // Predicated region
      $region41: #{_lambda_.12} parent=39 // pred_check
        %p400 = pneg %p144
      $region42: #{_lambda_.12} parent=39 // pred_check_branch
        %402 = sbr.rel (%p400) target = $region44
      $region43: #{_lambda_.12} parent=39 // pred_region
        _
      $region44: #{_lambda_.12} parent=39 // pred_fallthru
        _
    $region40: #{_lambda_.12} parent=5 // pred_fallthru
      _
    %p403 = scmp.le.s32.totalorder 2, %s11
    // Predicated region
    $region45: #{_lambda_.12} parent=5 // pred_check
      %p404 = pneg %p403
    $region46: #{_lambda_.12} parent=5 // pred_check_branch
      %406 = sbr.rel (%p404) target = $region48
    $region47: #{_lambda_.12} parent=5 // pred_region
      %s407 = ssub.s32 %s11, 2
      // Predicated region
      $region49: #{_lambda_.12} parent=47 // pred_check
        %p408 = pneg %p150
      $region50: #{_lambda_.12} parent=47 // pred_check_branch
        %410 = sbr.rel (%p408) target = $region52
      $region51: #{_lambda_.12} parent=47 // pred_region
        %p411 = scmp.lt.s32.totalorder %s17, 1
        %s412 = scalar_select %p411, %s17, 1
        %s413 = smul.addr %s412, 2
        %s414 = smul.addr %s413, 8
        %s415 = scalar_lea.vmem %s5, %s414
      $region52: #{_lambda_.12} parent=47 // pred_fallthru
        _
    $region48: #{_lambda_.12} parent=5 // pred_fallthru
      _
  $region6: #{_lambda_.12} parent=0 // loop_footer
    %s15 = sadd.s32 1, %s11
  $region7: #{_lambda_.12} parent=0 // loop_footer_branch
    %10 = sbr.rel target = $region3
  $region8: #{_lambda_.12} parent=0 // loop_exit
    _

// kernel: _lambda_.11
$region0: #{_lambda_.11}
  #allocation0 [shape = 'u32[]', space=smem, size = 0x4, offset = 0x4, fixed_abs, tag = 'smem constant byte address 0x4 - core index']
  #allocation1 [shape = 'u32[144,128]{1,0:T(1,128)}', space=vmem, size = 0x12000, scoped, tag = 'internal scratch']
  %s0 = inlined_call_operand.vmem [shape: f32[2,32,64], index: 0, kind: input, shape index: {}]
  %s1 = inlined_call_operand.vmem [shape: f32[7,64], index: 1, kind: input, shape index: {}]
  %s2 = inlined_call_operand.vmem [shape: f32[1,64], index: 2, kind: input, shape index: {}]
  %s3 = inlined_call_operand.vmem [shape: f32[1,64], index: 3, kind: input, shape index: {}]
  %s4 = inlined_call_operand.vmem [shape: f32[1,64], index: 4, kind: input, shape index: {}]
  %s5 = inlined_call_operand.vmem [shape: f32[64,256], index: 5, kind: input, shape index: {}]
  %s6 = inlined_call_operand.vmem [shape: f32[1,256], index: 6, kind: input, shape index: {}]
  %s7 = inlined_call_operand.vmem [shape: f32[1,256], index: 7, kind: input, shape index: {}]
  %s8 = inlined_call_operand.vmem [shape: f32[1,256], index: 8, kind: input, shape index: {}]
  %s9 = inlined_call_operand.vmem [shape: f32[256,64], index: 9, kind: input, shape index: {}]
  %s10 = inlined_call_operand.vmem [shape: f32[1,64], index: 10, kind: input, shape index: {}]
  %s11 = inlined_call_operand.vmem [shape: f32[2,32,64], index: 11, kind: output, shape index: {}]
  %s12 = sld [smem:[#allocation0]]
  $region77: #{_lambda_.11} parent=0
    _
  %s14 = ssub.s32 1, %s12
  %s15 = scalar_select 0, %s14, %s12
  loop: start=0, step=1, limit=4
  $region2: #{_lambda_.11} parent=0 // loop_pre_header
    _
  $region3: #{_lambda_.11} parent=0 // loop_header
    %s17 = sphi 0, %s21
    %p18 = scmp.ge.s32.totalorder %s17, 4
    %s27 = sphi 0, %s29
    %s30 = sphi 0, %s27
    %s31 = sphi 0, %s30
    %s47 = sphi 0, %s31
    %s51 = sphi 0, %s51
    %s53 = sphi 0, %s51
    %s54 = sphi 0, %s53
    %s68 = sphi 0, %s54
    %s72 = sphi 0, %s72
    %s74 = sphi 0, %s72
    %s75 = sphi 0, %s74
    %s89 = sphi 0, %s75
    %s93 = sphi 0, %s93
    %s95 = sphi 0, %s93
    %s96 = sphi 0, %s95
    %s110 = sphi 0, %s96
    %s114 = sphi 0, %s114
    %s116 = sphi 0, %s114
    %s117 = sphi 0, %s116
    %s131 = sphi 0, %s117
    %s135 = sphi 0, %s135
    %s137 = sphi 0, %s135
    %s138 = sphi 0, %s137
    %s152 = sphi 0, %s138
    %s156 = sphi 0, %s156
    %s158 = sphi 0, %s156
    %s159 = sphi 0, %s158
    %s173 = sphi 0, %s159
    %s177 = sphi 0, %s177
    %s179 = sphi 0, %s177
    %s180 = sphi 0, %s179
    %s194 = sphi 0, %s180
    %s198 = sphi 0, %s198
    %s200 = sphi 0, %s198
    %s201 = sphi 0, %s200
    %s215 = sphi 0, %s201
    %s219 = sphi 0, %s219
    %s221 = sphi 0, %s219
    %s222 = sphi 0, %s221
    %s236 = sphi 0, %s222
    %s240 = sphi 0, %s240
    %s242 = sphi 0, %s240
    %s243 = sphi 0, %s242
    %s257 = sphi 0, %s243
    %s263 = sphi 0, %s265
    %s266 = sphi 0, %s263
    %s267 = sphi 0, %s266
    %s283 = sphi 0, %s267
  $region4: #{_lambda_.11} parent=0 // loop_header_branch
    %20 = sbr.rel (%p18) target = $region8
  $region5: #{_lambda_.11} parent=0 // loop_body
    %s22 = ssub.s32 %s17, 1
    %s23 = ssub.s32 %s17, 2
    %s24 = sadd.s32 %s17, 1
    %s25 = ssub.s32 %s17, %s24
    %p26 = scmp.eq.s32.totalorder %s25, 0
    %s28 = sadd.s32 %s27, 1
    %s29 = scalar_select %p26, %s27, %s28
    %p32 = pneg %p26
    %p33 = scmp.eq.s32.totalorder %s17, 1
    %p34 = por %p32, %p33
    %p35 = scmp.ne.s32.totalorder %s27, %s30
    %p36 = scmp.eq.s32.totalorder %s17, 0
    %p37 = por %p35, %p36
    %p38 = scmp.ne.s32.totalorder %s27, %s30
    %p39 = scmp.eq.s32.totalorder %s22, 1
    %p40 = por %p38, %p39
    %p41 = scmp.ne.s32.totalorder %s30, %s31
    %p42 = scmp.eq.s32.totalorder %s22, 0
    %p43 = por %p41, %p42
    %p44 = scmp.ne.s32.totalorder %s30, %s31
    %p45 = scmp.eq.s32.totalorder %s23, 1
    %p46 = por %p44, %p45
    %p48 = scmp.ne.s32.totalorder %s31, %s47
    %p49 = scmp.eq.s32.totalorder %s23, 0
    %p50 = por %p48, %p49
    %s52 = sadd.s32 %s51, 1
    %p55 = scmp.eq.s32.totalorder %s17, 1
    %p56 = scmp.ne.s32.totalorder %s51, %s53
    %p57 = scmp.eq.s32.totalorder %s17, 0
    %p58 = por %p56, %p57
    %p59 = scmp.ne.s32.totalorder %s51, %s53
    %p60 = scmp.eq.s32.totalorder %s22, 1
    %p61 = por %p59, %p60
    %p62 = scmp.ne.s32.totalorder %s53, %s54
    %p63 = scmp.eq.s32.totalorder %s22, 0
    %p64 = por %p62, %p63
    %p65 = scmp.ne.s32.totalorder %s53, %s54
    %p66 = scmp.eq.s32.totalorder %s23, 1
    %p67 = por %p65, %p66
    %p69 = scmp.ne.s32.totalorder %s54, %s68
    %p70 = scmp.eq.s32.totalorder %s23, 0
    %p71 = por %p69, %p70
    %s73 = sadd.s32 %s72, 1
    %p76 = scmp.eq.s32.totalorder %s17, 1
    %p77 = scmp.ne.s32.totalorder %s72, %s74
    %p78 = scmp.eq.s32.totalorder %s17, 0
    %p79 = por %p77, %p78
    %p80 = scmp.ne.s32.totalorder %s72, %s74
    %p81 = scmp.eq.s32.totalorder %s22, 1
    %p82 = por %p80, %p81
    %p83 = scmp.ne.s32.totalorder %s74, %s75
    %p84 = scmp.eq.s32.totalorder %s22, 0
    %p85 = por %p83, %p84
    %p86 = scmp.ne.s32.totalorder %s74, %s75
    %p87 = scmp.eq.s32.totalorder %s23, 1
    %p88 = por %p86, %p87
    %p90 = scmp.ne.s32.totalorder %s75, %s89
    %p91 = scmp.eq.s32.totalorder %s23, 0
    %p92 = por %p90, %p91
    %s94 = sadd.s32 %s93, 1
    %p97 = scmp.eq.s32.totalorder %s17, 1
    %p98 = scmp.ne.s32.totalorder %s93, %s95
    %p99 = scmp.eq.s32.totalorder %s17, 0
    %p100 = por %p98, %p99
    %p101 = scmp.ne.s32.totalorder %s93, %s95
    %p102 = scmp.eq.s32.totalorder %s22, 1
    %p103 = por %p101, %p102
    %p104 = scmp.ne.s32.totalorder %s95, %s96
    %p105 = scmp.eq.s32.totalorder %s22, 0
    %p106 = por %p104, %p105
    %p107 = scmp.ne.s32.totalorder %s95, %s96
    %p108 = scmp.eq.s32.totalorder %s23, 1
    %p109 = por %p107, %p108
    %p111 = scmp.ne.s32.totalorder %s96, %s110
    %p112 = scmp.eq.s32.totalorder %s23, 0
    %p113 = por %p111, %p112
    %s115 = sadd.s32 %s114, 1
    %p118 = scmp.eq.s32.totalorder %s17, 1
    %p119 = scmp.ne.s32.totalorder %s114, %s116
    %p120 = scmp.eq.s32.totalorder %s17, 0
    %p121 = por %p119, %p120
    %p122 = scmp.ne.s32.totalorder %s114, %s116
    %p123 = scmp.eq.s32.totalorder %s22, 1
    %p124 = por %p122, %p123
    %p125 = scmp.ne.s32.totalorder %s116, %s117
    %p126 = scmp.eq.s32.totalorder %s22, 0
    %p127 = por %p125, %p126
    %p128 = scmp.ne.s32.totalorder %s116, %s117
    %p129 = scmp.eq.s32.totalorder %s23, 1
    %p130 = por %p128, %p129
    %p132 = scmp.ne.s32.totalorder %s117, %s131
    %p133 = scmp.eq.s32.totalorder %s23, 0
    %p134 = por %p132, %p133
    %s136 = sadd.s32 %s135, 1
    %p139 = scmp.eq.s32.totalorder %s17, 1
    %p140 = scmp.ne.s32.totalorder %s135, %s137
    %p141 = scmp.eq.s32.totalorder %s17, 0
    %p142 = por %p140, %p141
    %p143 = scmp.ne.s32.totalorder %s135, %s137
    %p144 = scmp.eq.s32.totalorder %s22, 1
    %p145 = por %p143, %p144
    %p146 = scmp.ne.s32.totalorder %s137, %s138
    %p147 = scmp.eq.s32.totalorder %s22, 0
    %p148 = por %p146, %p147
    %p149 = scmp.ne.s32.totalorder %s137, %s138
    %p150 = scmp.eq.s32.totalorder %s23, 1
    %p151 = por %p149, %p150
    %p153 = scmp.ne.s32.totalorder %s138, %s152
    %p154 = scmp.eq.s32.totalorder %s23, 0
    %p155 = por %p153, %p154
    %s157 = sadd.s32 %s156, 1
    %p160 = scmp.eq.s32.totalorder %s17, 1
    %p161 = scmp.ne.s32.totalorder %s156, %s158
    %p162 = scmp.eq.s32.totalorder %s17, 0
    %p163 = por %p161, %p162
    %p164 = scmp.ne.s32.totalorder %s156, %s158
    %p165 = scmp.eq.s32.totalorder %s22, 1
    %p166 = por %p164, %p165
    %p167 = scmp.ne.s32.totalorder %s158, %s159
    %p168 = scmp.eq.s32.totalorder %s22, 0
    %p169 = por %p167, %p168
    %p170 = scmp.ne.s32.totalorder %s158, %s159
    %p171 = scmp.eq.s32.totalorder %s23, 1
    %p172 = por %p170, %p171
    %p174 = scmp.ne.s32.totalorder %s159, %s173
    %p175 = scmp.eq.s32.totalorder %s23, 0
    %p176 = por %p174, %p175
    %s178 = sadd.s32 %s177, 1
    %p181 = scmp.eq.s32.totalorder %s17, 1
    %p182 = scmp.ne.s32.totalorder %s177, %s179
    %p183 = scmp.eq.s32.totalorder %s17, 0
    %p184 = por %p182, %p183
    %p185 = scmp.ne.s32.totalorder %s177, %s179
    %p186 = scmp.eq.s32.totalorder %s22, 1
    %p187 = por %p185, %p186
    %p188 = scmp.ne.s32.totalorder %s179, %s180
    %p189 = scmp.eq.s32.totalorder %s22, 0
    %p190 = por %p188, %p189
    %p191 = scmp.ne.s32.totalorder %s179, %s180
    %p192 = scmp.eq.s32.totalorder %s23, 1
    %p193 = por %p191, %p192
    %p195 = scmp.ne.s32.totalorder %s180, %s194
    %p196 = scmp.eq.s32.totalorder %s23, 0
    %p197 = por %p195, %p196
    %s199 = sadd.s32 %s198, 1
    %p202 = scmp.eq.s32.totalorder %s17, 1
    %p203 = scmp.ne.s32.totalorder %s198, %s200
    %p204 = scmp.eq.s32.totalorder %s17, 0
    %p205 = por %p203, %p204
    %p206 = scmp.ne.s32.totalorder %s198, %s200
    %p207 = scmp.eq.s32.totalorder %s22, 1
    %p208 = por %p206, %p207
    %p209 = scmp.ne.s32.totalorder %s200, %s201
    %p210 = scmp.eq.s32.totalorder %s22, 0
    %p211 = por %p209, %p210
    %p212 = scmp.ne.s32.totalorder %s200, %s201
    %p213 = scmp.eq.s32.totalorder %s23, 1
    %p214 = por %p212, %p213
    %p216 = scmp.ne.s32.totalorder %s201, %s215
    %p217 = scmp.eq.s32.totalorder %s23, 0
    %p218 = por %p216, %p217
    %s220 = sadd.s32 %s219, 1
    %p223 = scmp.eq.s32.totalorder %s17, 1
    %p224 = scmp.ne.s32.totalorder %s219, %s221
    %p225 = scmp.eq.s32.totalorder %s17, 0
    %p226 = por %p224, %p225
    %p227 = scmp.ne.s32.totalorder %s219, %s221
    %p228 = scmp.eq.s32.totalorder %s22, 1
    %p229 = por %p227, %p228
    %p230 = scmp.ne.s32.totalorder %s221, %s222
    %p231 = scmp.eq.s32.totalorder %s22, 0
    %p232 = por %p230, %p231
    %p233 = scmp.ne.s32.totalorder %s221, %s222
    %p234 = scmp.eq.s32.totalorder %s23, 1
    %p235 = por %p233, %p234
    %p237 = scmp.ne.s32.totalorder %s222, %s236
    %p238 = scmp.eq.s32.totalorder %s23, 0
    %p239 = por %p237, %p238
    %s241 = sadd.s32 %s240, 1
    %p244 = scmp.eq.s32.totalorder %s17, 1
    %p245 = scmp.ne.s32.totalorder %s240, %s242
    %p246 = scmp.eq.s32.totalorder %s17, 0
    %p247 = por %p245, %p246
    %p248 = scmp.ne.s32.totalorder %s240, %s242
    %p249 = scmp.eq.s32.totalorder %s22, 1
    %p250 = por %p248, %p249
    %p251 = scmp.ne.s32.totalorder %s242, %s243
    %p252 = scmp.eq.s32.totalorder %s22, 0
    %p253 = por %p251, %p252
    %p254 = scmp.ne.s32.totalorder %s242, %s243
    %p255 = scmp.eq.s32.totalorder %s23, 1
    %p256 = por %p254, %p255
    %p258 = scmp.ne.s32.totalorder %s243, %s257
    %p259 = scmp.eq.s32.totalorder %s23, 0
    %p260 = por %p258, %p259
    %s261 = ssub.s32 %s17, %s24
    %p262 = scmp.eq.s32.totalorder %s261, 0
    %s264 = sadd.s32 %s263, 1
    %s265 = scalar_select %p262, %s263, %s264
    %p268 = pneg %p262
    %p269 = scmp.eq.s32.totalorder %s17, 1
    %p270 = por %p268, %p269
    %p271 = scmp.ne.s32.totalorder %s263, %s266
    %p272 = scmp.eq.s32.totalorder %s17, 0
    %p273 = por %p271, %p272
    %p274 = scmp.ne.s32.totalorder %s263, %s266
    %p275 = scmp.eq.s32.totalorder %s22, 1
    %p276 = por %p274, %p275
    %p277 = scmp.ne.s32.totalorder %s266, %s267
    %p278 = scmp.eq.s32.totalorder %s22, 0
    %p279 = por %p277, %p278
    %p280 = scmp.ne.s32.totalorder %s266, %s267
    %p281 = scmp.eq.s32.totalorder %s23, 1
    %p282 = por %p280, %p281
    %p284 = scmp.ne.s32.totalorder %s267, %s283
    %p285 = scmp.eq.s32.totalorder %s23, 0
    %p286 = por %p284, %p285
    %p287 = scmp.le.s32.totalorder 1, %s17
    %p288 = scmp.lt.s32.totalorder %s17, 3
    %p289 = pnand %p287, %p288
    %p290 = pneg %p289
    // Predicated region
    $region9: #{_lambda_.11} parent=5 // pred_check
      _
    $region10: #{_lambda_.11} parent=5 // pred_check_branch
      %292 = sbr.rel (%p289) target = $region12
    $region11: #{_lambda_.11} parent=5 // pred_region
      %s293 = ssub.s32 %s17, 1
      // Predicated region
      $region13: #{_lambda_.11} parent=11 // pred_check
        %p294 = pneg %p64
      $region14: #{_lambda_.11} parent=11 // pred_check_branch
        %296 = sbr.rel (%p294) target = $region16
      $region15: #{_lambda_.11} parent=11 // pred_region
        _
      $region16: #{_lambda_.11} parent=11 // pred_fallthru
        _
      // Predicated region
      $region17: #{_lambda_.11} parent=11 // pred_check
        %p297 = pneg %p85
      $region18: #{_lambda_.11} parent=11 // pred_check_branch
        %299 = sbr.rel (%p297) target = $region20
      $region19: #{_lambda_.11} parent=11 // pred_region
        _
      $region20: #{_lambda_.11} parent=11 // pred_fallthru
        _
      // Predicated region
      $region21: #{_lambda_.11} parent=11 // pred_check
        %p300 = pneg %p106
      $region22: #{_lambda_.11} parent=11 // pred_check_branch
        %302 = sbr.rel (%p300) target = $region24
      $region23: #{_lambda_.11} parent=11 // pred_region
        _
      $region24: #{_lambda_.11} parent=11 // pred_fallthru
        _
      // Predicated region
      $region25: #{_lambda_.11} parent=11 // pred_check
        %p303 = pneg %p127
      $region26: #{_lambda_.11} parent=11 // pred_check_branch
        %305 = sbr.rel (%p303) target = $region28
      $region27: #{_lambda_.11} parent=11 // pred_region
        _
      $region28: #{_lambda_.11} parent=11 // pred_fallthru
        _
      // Predicated region
      $region29: #{_lambda_.11} parent=11 // pred_check
        %p306 = pneg %p148
      $region30: #{_lambda_.11} parent=11 // pred_check_branch
        %308 = sbr.rel (%p306) target = $region32
      $region31: #{_lambda_.11} parent=11 // pred_region
        _
      $region32: #{_lambda_.11} parent=11 // pred_fallthru
        _
      // Predicated region
      $region33: #{_lambda_.11} parent=11 // pred_check
        %p309 = pneg %p169
      $region34: #{_lambda_.11} parent=11 // pred_check_branch
        %311 = sbr.rel (%p309) target = $region36
      $region35: #{_lambda_.11} parent=11 // pred_region
        _
      $region36: #{_lambda_.11} parent=11 // pred_fallthru
        _
      // Predicated region
      $region37: #{_lambda_.11} parent=11 // pred_check
        %p312 = pneg %p190
      $region38: #{_lambda_.11} parent=11 // pred_check_branch
        %314 = sbr.rel (%p312) target = $region40
      $region39: #{_lambda_.11} parent=11 // pred_region
        _
      $region40: #{_lambda_.11} parent=11 // pred_fallthru
        _
      // Predicated region
      $region41: #{_lambda_.11} parent=11 // pred_check
        %p315 = pneg %p211
      $region42: #{_lambda_.11} parent=11 // pred_check_branch
        %317 = sbr.rel (%p315) target = $region44
      $region43: #{_lambda_.11} parent=11 // pred_region
        _
      $region44: #{_lambda_.11} parent=11 // pred_fallthru
        _
      // Predicated region
      $region45: #{_lambda_.11} parent=11 // pred_check
        %p318 = pneg %p232
      $region46: #{_lambda_.11} parent=11 // pred_check_branch
        %320 = sbr.rel (%p318) target = $region48
      $region47: #{_lambda_.11} parent=11 // pred_region
        _
      $region48: #{_lambda_.11} parent=11 // pred_fallthru
        _
      // Predicated region
      $region49: #{_lambda_.11} parent=11 // pred_check
        %p321 = pneg %p253
      $region50: #{_lambda_.11} parent=11 // pred_check_branch
        %323 = sbr.rel (%p321) target = $region52
      $region51: #{_lambda_.11} parent=11 // pred_region
        _
      $region52: #{_lambda_.11} parent=11 // pred_fallthru
        _
    $region12: #{_lambda_.11} parent=5 // pred_fallthru
      _
    %p324 = scmp.lt.s32.totalorder %s17, 2
    // Predicated region
    $region53: #{_lambda_.11} parent=5 // pred_check
      %p325 = pneg %p324
    $region54: #{_lambda_.11} parent=5 // pred_check_branch
      %327 = sbr.rel (%p325) target = $region56
    $region55: #{_lambda_.11} parent=5 // pred_region
      // Predicated region
      $region57: #{_lambda_.11} parent=55 // pred_check
        %p328 = pneg %p37
      $region58: #{_lambda_.11} parent=55 // pred_check_branch
        %330 = sbr.rel (%p328) target = $region60
      $region59: #{_lambda_.11} parent=55 // pred_region
        %p331 = scmp.lt.s32.totalorder %s17, 1
        %s332 = scalar_select %p331, %s17, 1
        %s333 = smul.addr %s332, 4
        %s334 = smul.addr %s333, 8
        %s335 = scalar_lea.vmem %s0, %s334
      $region60: #{_lambda_.11} parent=55 // pred_fallthru
        _
    $region56: #{_lambda_.11} parent=5 // pred_fallthru
      _
    %p336 = scmp.le.s32.totalorder 1, %s17
    %p337 = scmp.lt.s32.totalorder %s17, 3
    %p338 = pnand %p336, %p337
    %p339 = pneg %p338
    // Predicated region
    $region61: #{_lambda_.11} parent=5 // pred_check
      _
    $region62: #{_lambda_.11} parent=5 // pred_check_branch
      %341 = sbr.rel (%p338) target = $region64
    $region63: #{_lambda_.11} parent=5 // pred_region
      %s342 = ssub.s32 %s17, 1
      %p343 = scmp.lt.s32.totalorder %s22, 1
      %s344 = scalar_select %p343, %s22, 1
      %s345 = smul.addr %s344, 4
      %s346 = smul.addr %s345, 8
      %s347 = scalar_lea.vmem %s0, %s346
      %p348 = pneg %p43
      %p349 = pneg %p40
      %p350 = pneg %p64
      %p351 = pneg %p61
      %p352 = pneg %p85
      %p353 = pneg %p82
      %p354 = pneg %p106
      %p355 = pneg %p103
      %p356 = pneg %p127
      %p357 = pneg %p124
      %p358 = pneg %p148
      %p359 = pneg %p145
      %p360 = pneg %p169
      %p361 = pneg %p166
      %p362 = pneg %p190
      %p363 = pneg %p187
      %p364 = pneg %p211
      %p365 = pneg %p208
      %p366 = pneg %p232
      %p367 = pneg %p229
      %p368 = pneg %p253
      %p369 = pneg %p250
      %p370 = pneg %p279
      %p371 = pneg %p276
      %p372 = scmp.lt.s32.totalorder %s22, 1
      %s373 = scalar_select %p372, %s22, 1
      %s374 = smul.addr %s373, 4
      %s375 = smul.addr %s374, 8
      %s376 = scalar_lea.vmem %s11, %s375
      %p377 = scmp.lt.s32.totalorder %s22, 1
      %s378 = scalar_select %p377, %s22, 1
      %s379 = smul.addr %s378, 4
      %s380 = smul.addr %s379, 8
      %s381 = scalar_lea.vmem %s0, %s380
      %p382 = scmp.lt.s32.totalorder %s22, 1
      %s383 = scalar_select %p382, %s22, 1
      %s384 = smul.addr %s383, 4
      %s385 = smul.addr %s384, 8
      %s386 = scalar_lea.vmem %s11, %s385
      %v387 = vld [vmem:[%s381] sm:$0xff]
      %v388 = vld [vmem:[%s381 + $0x8] sm:$0xff]
      %v389 = vld [vmem:[%s381 + $0x10] sm:$0xff]
      %v390 = vld [vmem:[%s381 + $0x18] sm:$0xff]
      %v391 = vld [vmem:[%s1] sm:$0x7f]
      %v392 = vlaneseq
      %v393 = vshrl.u32 %v392, 7
      %v394 = vsub.s32 0, %v393
      %v395 = vrot.slane %v391, %v394
      %v396 = vmul.f32 %v395, 0.0
      %v397 = vmul.f32 %v387, %v395
      %v398 = vmul.f32 %v388, %v395
      %v399 = vmul.f32 %v389, %v395
      %v400 = vmul.f32 %v390, %v395
      %v401 = vadd.f32 %v396, 0.0
      %v402 = vadd.f32 %v397, 0.0
      %v403 = vadd.f32 %v398, 0.0
      %v404 = vadd.f32 %v399, 0.0
      %v405 = vadd.f32 %v400, 0.0
      %v406 = vlaneseq
      %v407 = vshrl.u32 %v406, 7
      %v408 = vsub.s32 1, %v407
      %v409 = vrot.slane %v391, %v408
      %v410 = vmul.f32 %v409, 0.0
      %v411 = vmul.f32 %v387, %v409
      %v412 = vmul.f32 %v388, %v409
      %v413 = vmul.f32 %v389, %v409
      %v414 = vmul.f32 %v390, %v409
      %vm420 = vcmask 1046528
      %v421 = vrot.slane %v410, 1
      %v422 = vrot.slane %v411, 1
      %v423 = vsel %vm420, %v421, %v422
      %v424 = vrot.slane %v412, 1
      %v425 = vsel %vm420, %v422, %v424
      %v426 = vrot.slane %v413, 1
      %v427 = vsel %vm420, %v424, %v426
      %v428 = vrot.slane %v414, 1
      %v429 = vsel %vm420, %v426, %v428
      %v435 = vadd.f32 %v401, %v423
      %v436 = vadd.f32 %v402, %v425
      %v437 = vadd.f32 %v403, %v427
      %v438 = vadd.f32 %v404, %v429
      %v439 = vadd.f32 %v405, %v428
      %v440 = vlaneseq
      %v441 = vshrl.u32 %v440, 7
      %v442 = vsub.s32 2, %v441
      %v443 = vrot.slane %v391, %v442
      %v444 = vmul.f32 %v443, 0.0
      %v445 = vmul.f32 %v387, %v443
      %v446 = vmul.f32 %v388, %v443
      %v447 = vmul.f32 %v389, %v443
      %v448 = vmul.f32 %v390, %v443
      %vm454 = vcmask 1045504
      %v455 = vrot.slane %v444, 2
      %v456 = vrot.slane %v445, 2
      %v457 = vsel %vm454, %v455, %v456
      %v458 = vrot.slane %v446, 2
      %v459 = vsel %vm454, %v456, %v458
      %v460 = vrot.slane %v447, 2
      %v461 = vsel %vm454, %v458, %v460
      %v462 = vrot.slane %v448, 2
      %v463 = vsel %vm454, %v460, %v462
      %v469 = vadd.f32 %v435, %v457
      %v470 = vadd.f32 %v436, %v459
      %v471 = vadd.f32 %v437, %v461
      %v472 = vadd.f32 %v438, %v463
      %v473 = vadd.f32 %v439, %v462
      %v474 = vlaneseq
      %v475 = vshrl.u32 %v474, 7
      %v476 = vsub.s32 3, %v475
      %v477 = vrot.slane %v391, %v476
      %v478 = vmul.f32 %v387, %v477
      %v479 = vmul.f32 %v388, %v477
      %v480 = vmul.f32 %v389, %v477
      %v481 = vmul.f32 %v390, %v477
      %vm486 = vcmask 1044480
      %v487 = vrot.slane %v478, 3
      %v488 = vrot.slane %v479, 3
      %v489 = vsel %vm486, %v487, %v488
      %v490 = vrot.slane %v480, 3
      %v491 = vsel %vm486, %v488, %v490
      %v492 = vrot.slane %v481, 3
      %v493 = vsel %vm486, %v490, %v492
      %v499 = vadd.f32 %v469, %v487
      %v500 = vadd.f32 %v470, %v489
      %v501 = vadd.f32 %v471, %v491
      %v502 = vadd.f32 %v472, %v493
      %v503 = vadd.f32 %v473, %v492
      %v504 = vlaneseq
      %v505 = vshrl.u32 %v504, 7
      %v506 = vsub.s32 4, %v505
      %v507 = vrot.slane %v391, %v506
      %v508 = vmul.f32 %v387, %v507
      %v509 = vmul.f32 %v388, %v507
      %v510 = vmul.f32 %v389, %v507
      %v511 = vmul.f32 %v390, %v507
      %v512 = vmul.f32 %v507, 0.0
      %vm518 = vcmask 1043456
      %v519 = vrot.slane %v508, 4
      %v520 = vrot.slane %v509, 4
      %v521 = vsel %vm518, %v519, %v520
      %v522 = vrot.slane %v510, 4
      %v523 = vsel %vm518, %v520, %v522
      %v524 = vrot.slane %v511, 4
      %v525 = vsel %vm518, %v522, %v524
      %v526 = vrot.slane %v512, 4
      %v527 = vsel %vm518, %v524, %v526
      %v533 = vadd.f32 %v499, %v519
      %v534 = vadd.f32 %v500, %v521
      %v535 = vadd.f32 %v501, %v523
      %v536 = vadd.f32 %v502, %v525
      %v537 = vadd.f32 %v503, %v527
      %v538 = vlaneseq
      %v539 = vshrl.u32 %v538, 7
      %v540 = vsub.s32 5, %v539
      %v541 = vrot.slane %v391, %v540
      %v542 = vmul.f32 %v387, %v541
      %v543 = vmul.f32 %v388, %v541
      %v544 = vmul.f32 %v389, %v541
      %v545 = vmul.f32 %v390, %v541
      %v546 = vmul.f32 %v541, 0.0
      %vm552 = vcmask 1042432
      %v553 = vrot.slane %v542, 5
      %v554 = vrot.slane %v543, 5
      %v555 = vsel %vm552, %v553, %v554
      %v556 = vrot.slane %v544, 5
      %v557 = vsel %vm552, %v554, %v556
      %v558 = vrot.slane %v545, 5
      %v559 = vsel %vm552, %v556, %v558
      %v560 = vrot.slane %v546, 5
      %v561 = vsel %vm552, %v558, %v560
      %v567 = vadd.f32 %v533, %v553
      %v568 = vadd.f32 %v534, %v555
      %v569 = vadd.f32 %v535, %v557
      %v570 = vadd.f32 %v536, %v559
      %v571 = vadd.f32 %v537, %v561
      %v572 = vlaneseq
      %v573 = vshrl.u32 %v572, 7
      %v574 = vsub.s32 6, %v573
      %v575 = vrot.slane %v391, %v574
      %v576 = vmul.f32 %v387, %v575
      %v577 = vmul.f32 %v388, %v575
      %v578 = vmul.f32 %v389, %v575
      %v579 = vmul.f32 %v390, %v575
      %v580 = vmul.f32 %v575, 0.0
      %vm586 = vcmask 1041408
      %v587 = vrot.slane %v576, 6
      %v588 = vrot.slane %v577, 6
      %v589 = vsel %vm586, %v587, %v588
      %v590 = vrot.slane %v578, 6
      %v591 = vsel %vm586, %v588, %v590
      %v592 = vrot.slane %v579, 6
      %v593 = vsel %vm586, %v590, %v592
      %v594 = vrot.slane %v580, 6
      %v595 = vsel %vm586, %v592, %v594
      %v601 = vadd.f32 %v567, %v587
      %v602 = vadd.f32 %v568, %v589
      %v603 = vadd.f32 %v569, %v591
      %v604 = vadd.f32 %v570, %v593
      %v605 = vadd.f32 %v571, %v595
      %v606 = vld [vmem:[%s2] sm:$0x1]
      %v608 = vlaneseq
      %v609 = vshrl.u32 %v608, 7
      %v610 = vsub.s32 0, %v609
      %v611 = vrot.slane %v606, %v610
      %v613 = vadd.f32 %v601, %v611
      %v614 = vadd.f32 %v602, %v611
      %v615 = vadd.f32 %v603, %v611
      %v616 = vadd.f32 %v604, %v611
      %v617 = vadd.f32 %v605, %v611
      %vm618 = vcmask 523269
      %v619 = vsel %vm618, %v613, 0.0
      %620 = vadd.xlane.f32.xlu0 %v619
      %v621 = vpop.xlane.xlu0 %620
      %vm622 = vcmask 523264
      %v623 = vsel %vm622, %v614, 0.0
      %624 = vadd.xlane.f32.xlu0 %v623
      %v625 = vpop.xlane.xlu0 %624
      %v626 = vsel %vm622, %v615, 0.0
      %627 = vadd.xlane.f32.xlu0 %v626
      %v628 = vpop.xlane.xlu0 %627
      %v629 = vsel %vm622, %v616, 0.0
      %630 = vadd.xlane.f32.xlu0 %v629
      %v631 = vpop.xlane.xlu0 %630
      %vm632 = vcmask 520192
      %v633 = vsel %vm632, %v617, 0.0
      %634 = vadd.xlane.f32.xlu0 %v633
      %v635 = vpop.xlane.xlu0 %634
      %v636 = vrcp.pop 64.0
      %v637 = vmul.f32 %v621, %v636
      %v638 = vmul.f32 %v625, %v636
      %v639 = vmul.f32 %v628, %v636
      %v640 = vmul.f32 %v631, %v636
      %v641 = vmul.f32 %v635, %v636
      %v642 = vsub.f32 %v613, %v637
      %v643 = vsub.f32 %v614, %v638
      %v644 = vsub.f32 %v615, %v639
      %v645 = vsub.f32 %v616, %v640
      %v646 = vsub.f32 %v617, %v641
      %v647 = vmul.f32 %v642, %v642
      %v648 = vmul.f32 %v643, %v643
      %v649 = vmul.f32 %v644, %v644
      %v650 = vmul.f32 %v645, %v645
      %v651 = vmul.f32 %v646, %v646
      %v652 = vsel %vm618, %v647, 0.0
      %653 = vadd.xlane.f32.xlu0 %v652
      %v654 = vpop.xlane.xlu0 %653
      %v655 = vsel %vm622, %v648, 0.0
      %656 = vadd.xlane.f32.xlu0 %v655
      %v657 = vpop.xlane.xlu0 %656
      %v658 = vsel %vm622, %v649, 0.0
      %659 = vadd.xlane.f32.xlu0 %v658
      %v660 = vpop.xlane.xlu0 %659
      %v661 = vsel %vm622, %v650, 0.0
      %662 = vadd.xlane.f32.xlu0 %v661
      %v663 = vpop.xlane.xlu0 %662
      %v664 = vsel %vm632, %v651, 0.0
      %665 = vadd.xlane.f32.xlu0 %v664
      %v666 = vpop.xlane.xlu0 %665
      %v667 = vmul.f32 %v654, %v636
      %v668 = vmul.f32 %v657, %v636
      %v669 = vmul.f32 %v660, %v636
      %v670 = vmul.f32 %v663, %v636
      %v671 = vmul.f32 %v666, %v636
      %v672 = vadd.f32 %v667, 1e-06
      %v673 = vadd.f32 %v668, 1e-06
      %v674 = vadd.f32 %v669, 1e-06
      %v675 = vadd.f32 %v670, 1e-06
      %v676 = vadd.f32 %v671, 1e-06
      %v677 = vrsqrt.pop %v672
      %v678 = vrsqrt.pop %v673
      %v679 = vrsqrt.pop %v674
      %v680 = vrsqrt.pop %v675
      %v681 = vrsqrt.pop %v676
      %v682 = vmul.f32 %v642, %v677
      %v683 = vmul.f32 %v643, %v678
      %v684 = vmul.f32 %v644, %v679
      %v685 = vmul.f32 %v645, %v680
      %v686 = vmul.f32 %v646, %v681
      %v687 = vld [vmem:[%s3] sm:$0x1]
      %v689 = vlaneseq
      %v690 = vshrl.u32 %v689, 7
      %v691 = vsub.s32 0, %v690
      %v692 = vrot.slane %v687, %v691
      %v694 = vmul.f32 %v682, %v692
      %v695 = vmul.f32 %v683, %v692
      %v696 = vmul.f32 %v684, %v692
      %v697 = vmul.f32 %v685, %v692
      %v698 = vmul.f32 %v686, %v692
      %v699 = vld [vmem:[%s4] sm:$0x1]
      %v701 = vlaneseq
      %v702 = vshrl.u32 %v701, 7
      %v703 = vsub.s32 0, %v702
      %v704 = vrot.slane %v699, %v703
      %v706 = vadd.f32 %v694, %v704
      %v707 = vadd.f32 %v695, %v704
      %v708 = vadd.f32 %v696, %v704
      %v709 = vadd.f32 %v697, %v704
      %v710 = vadd.f32 %v698, %v704
      %v711 = vld [vmem:[%s5] sm:$0xff]
      %v712 = vld [vmem:[%s5 + $0x8] sm:$0xff]
      %v713 = vld [vmem:[%s5 + $0x10] sm:$0xff]
      %v714 = vld [vmem:[%s5 + $0x18] sm:$0xff]
      %v715 = vld [vmem:[%s5 + $0x20] sm:$0xff]
      %v716 = vld [vmem:[%s5 + $0x28] sm:$0xff]
      %v717 = vld [vmem:[%s5 + $0x30] sm:$0xff]
      %v718 = vld [vmem:[%s5 + $0x38] sm:$0xff]
      %v719 = vld [vmem:[%s5 + $0x40] sm:$0xff]
      %v720 = vld [vmem:[%s5 + $0x48] sm:$0xff]
      %v721 = vld [vmem:[%s5 + $0x50] sm:$0xff]
      %v722 = vld [vmem:[%s5 + $0x58] sm:$0xff]
      %v723 = vld [vmem:[%s5 + $0x60] sm:$0xff]
      %v724 = vld [vmem:[%s5 + $0x68] sm:$0xff]
      %v725 = vld [vmem:[%s5 + $0x70] sm:$0xff]
      %v726 = vld [vmem:[%s5 + $0x78] sm:$0xff]
      %v727 = vld [vmem:[%s6] sm:$0x3]
      %v729 = vlaneseq
      %v730 = vshrl.u32 %v729, 7
      %v731 = vsub.s32 0, %v730
      %v732 = vrot.slane %v727, %v731
      %v733 = vlaneseq
      %v734 = vshrl.u32 %v733, 7
      %v735 = vsub.s32 1, %v734
      %v736 = vrot.slane %v727, %v735
      %v744 = vrot.slane %v706, 5
      %v745 = vrot.slane %v707, 5
      %v746 = vsel %vm552, %v744, %v745
      %v747 = vrot.slane %v708, 5
      %v748 = vsel %vm552, %v745, %v747
      %v749 = vrot.slane %v709, 5
      %v750 = vsel %vm552, %v747, %v749
      %v751 = vrot.slane %v710, 5
      %v752 = vsel %vm552, %v749, %v751
      %v753 = vsel %vm622, %v746, 0
      %v755 = vsel %vm622, %v748, 0
      %v757 = vsel %vm622, %v750, 0
      %v759 = vsel %vm622, %v752, 0
      %761 = vmatprep.subr.mxu0 0.0
      %762 = vmatpush1.msra.mxu0 0.0
      %763 = vmatprep.subr.mxu0 0.0
      %764 = vmatpush1.msra.mxu0 0.0
      %765 = vmatprep.subr.mxu0 0.0
      %766 = vmatpush1.msra.mxu0 0.0
      %767 = vmatprep.subr.mxu0 0.0
      %768 = vmatpush1.msra.mxu0 0.0
      %769 = vmatprep.subr.mxu0 0.0
      %770 = vmatpush1.msra.mxu0 0.0
      %771 = vmatprep.subr.mxu0 0.0
      %772 = vmatpush1.msra.mxu0 0.0
      %773 = vmatprep.subr.mxu0 0.0
      %774 = vmatpush1.msra.mxu0 0.0
      %775 = vmatprep.subr.mxu0 0.0
      %776 = vmatpush1.msra.mxu0 0.0
      %777 = vmatprep.subr.mxu0 %v726
      %778 = vmatpush1.msra.mxu0 %v725
      %779 = vmatprep.subr.mxu0 %v724
      %780 = vmatpush1.msra.mxu0 %v723
      %781 = vmatprep.subr.mxu0 %v722
      %782 = vmatpush1.msra.mxu0 %v721
      %783 = vmatprep.subr.mxu0 %v720
      %784 = vmatpush1.msra.mxu0 %v719
      %785 = vmatprep.subr.mxu0 %v718
      %786 = vmatpush1.msra.mxu0 %v717
      %787 = vmatprep.subr.mxu0 %v716
      %788 = vmatpush1.msra.mxu0 %v715
      %789 = vmatprep.subr.mxu0 %v714
      %790 = vmatpush1.msra.mxu0 %v713
      %791 = vmatprep.subr.mxu0 %v712
      %792 = vmatpush1.msra.mxu0 %v711
      %793 = vmatprep.subr.mxu0 0.0
      %794 = vmatpush2.msra.mxu0 0.0
      %795 = vmatprep.subr.mxu0 0.0
      %796 = vmatpush2.msra.mxu0 0.0
      %797 = vmatprep.subr.mxu0 0.0
      %798 = vmatpush2.msra.mxu0 0.0
      %799 = vmatprep.subr.mxu0 0.0
      %800 = vmatpush2.msra.mxu0 0.0
      %801 = vmatprep.subr.mxu0 0.0
      %802 = vmatpush2.msra.mxu0 0.0
      %803 = vmatprep.subr.mxu0 0.0
      %804 = vmatpush2.msra.mxu0 0.0
      %805 = vmatprep.subr.mxu0 0.0
      %806 = vmatpush2.msra.mxu0 0.0
      %807 = vmatprep.subr.mxu0 0.0
      %808 = vmatpush2.msra.mxu0 0.0
      %809 = vmatprep.subr.mxu0 0.0
      %810 = vmatpush2.msra.mxu0 0.0
      %811 = vmatprep.subr.mxu0 0.0
      %812 = vmatpush2.msra.mxu0 0.0
      %813 = vmatprep.subr.mxu0 0.0
      %814 = vmatpush2.msra.mxu0 0.0
      %815 = vmatprep.subr.mxu0 0.0
      %816 = vmatpush2.msra.mxu0 0.0
      %817 = vmatprep.subr.mxu0 0.0
      %818 = vmatpush2.msra.mxu0 0.0
      %819 = vmatprep.subr.mxu0 0.0
      %820 = vmatpush2.msra.mxu0 0.0
      %821 = vmatprep.subr.mxu0 0.0
      %822 = vmatpush2.msra.mxu0 0.0
      %823 = vmatprep.subr.mxu0 0.0
      %824 = vmatpush2.msra.mxu0 0.0
      %825 = vmatprep.mubr.f32.mxu0 0.0
      %826 = vmatmul.mubr.f32.gmra.mxu0 %v753
      %v827 = vpop.f32.mrf.mxu0
      %v828 = vadd.f32 %v732, %v827
      %v829 = vpop.f32.mrf.mxu0
      %v830 = vadd.f32 %v736, %v829
      %831 = vmatprep.mubr.f32.mxu0 0.0
      %832 = vmatmul.mubr.f32.gmra.mxu0 %v755
      %v833 = vpop.f32.mrf.mxu0
      %v834 = vadd.f32 %v732, %v833
      %v835 = vpop.f32.mrf.mxu0
      %v836 = vadd.f32 %v736, %v835
      %837 = vmatprep.mubr.f32.mxu0 0.0
      %838 = vmatmul.mubr.f32.gmra.mxu0 %v757
      %v839 = vpop.f32.mrf.mxu0
      %v840 = vadd.f32 %v732, %v839
      %v841 = vpop.f32.mrf.mxu0
      %v842 = vadd.f32 %v736, %v841
      %843 = vmatprep.mubr.f32.mxu0 0.0
      %844 = vmatmul.mubr.f32.gmra.mxu0 %v759
      %v845 = vpop.f32.mrf.mxu0
      %v846 = vadd.f32 %v732, %v845
      %v847 = vpop.f32.mrf.mxu0
      %v848 = vadd.f32 %v736, %v847
      %849 = vdwg.mxu0
      %v850 = vmul.f32 %v828, 0.70710677
      %v851 = vmul.f32 %v830, 0.70710677
      %v852 = vmul.f32 %v834, 0.70710677
      %v853 = vmul.f32 %v836, 0.70710677
      %v854 = vmul.f32 %v840, 0.70710677
      %v855 = vmul.f32 %v842, 0.70710677
      %v856 = vmul.f32 %v846, 0.70710677
      %v857 = vmul.f32 %v848, 0.70710677
      %v858 = vand.u32 2147483647, %v850
      %v859 = vand.u32 2147483647, %v851
      %v860 = vand.u32 2147483647, %v852
      %v861 = vand.u32 2147483647, %v853
      %v862 = vand.u32 2147483647, %v854
      %v863 = vand.u32 2147483647, %v855
      %v864 = vand.u32 2147483647, %v856
      %v865 = vand.u32 2147483647, %v857
      %vm866 = vcmp.ge.f32.partialorder %v850, 0.0
      %vm867 = vcmp.ge.f32.partialorder %v851, 0.0
      %vm868 = vcmp.ge.f32.partialorder %v852, 0.0
      %vm869 = vcmp.ge.f32.partialorder %v853, 0.0
      %vm870 = vcmp.ge.f32.partialorder %v854, 0.0
      %vm871 = vcmp.ge.f32.partialorder %v855, 0.0
      %vm872 = vcmp.ge.f32.partialorder %v856, 0.0
      %vm873 = vcmp.ge.f32.partialorder %v857, 0.0
      %v874 = vsel %vm866, 1.0, -1.0
      %v875 = vsel %vm867, 1.0, -1.0
      %v876 = vsel %vm868, 1.0, -1.0
      %v877 = vsel %vm869, 1.0, -1.0
      %v878 = vsel %vm870, 1.0, -1.0
      %v879 = vsel %vm871, 1.0, -1.0
      %v880 = vsel %vm872, 1.0, -1.0
      %v881 = vsel %vm873, 1.0, -1.0
      %v882 = vmul.f32 %v858, 0.3275911
      %v883 = vmul.f32 %v859, 0.3275911
      %v884 = vmul.f32 %v860, 0.3275911
      %v885 = vmul.f32 %v861, 0.3275911
      %v886 = vmul.f32 %v862, 0.3275911
      %v887 = vmul.f32 %v863, 0.3275911
      %v888 = vmul.f32 %v864, 0.3275911
      %v889 = vmul.f32 %v865, 0.3275911
      %v890 = vadd.f32 %v882, 1.0
      %v891 = vadd.f32 %v883, 1.0
      %v892 = vadd.f32 %v884, 1.0
      %v893 = vadd.f32 %v885, 1.0
      %v894 = vadd.f32 %v886, 1.0
      %v895 = vadd.f32 %v887, 1.0
      %v896 = vadd.f32 %v888, 1.0
      %v897 = vadd.f32 %v889, 1.0
      %v898 = vrcp.pop %v890
      %v899 = vmul.f32 1.0, %v898
      %v900 = vrcp.pop %v891
      %v901 = vmul.f32 1.0, %v900
      %v902 = vrcp.pop %v892
      %v903 = vmul.f32 1.0, %v902
      %v904 = vrcp.pop %v893
      %v905 = vmul.f32 1.0, %v904
      %v906 = vrcp.pop %v894
      %v907 = vmul.f32 1.0, %v906
      %v908 = vrcp.pop %v895
      %v909 = vmul.f32 1.0, %v908
      %v910 = vrcp.pop %v896
      %v911 = vmul.f32 1.0, %v910
      %v912 = vrcp.pop %v897
      %v913 = vmul.f32 1.0, %v912
      %v914 = vmul.f32 %v899, 1.0614054
      %v915 = vmul.f32 %v901, 1.0614054
      %v916 = vmul.f32 %v903, 1.0614054
      %v917 = vmul.f32 %v905, 1.0614054
      %v918 = vmul.f32 %v907, 1.0614054
      %v919 = vmul.f32 %v909, 1.0614054
      %v920 = vmul.f32 %v911, 1.0614054
      %v921 = vmul.f32 %v913, 1.0614054
      %v922 = vsub.f32 %v914, 1.4531521
      %v923 = vsub.f32 %v915, 1.4531521
      %v924 = vsub.f32 %v916, 1.4531521
      %v925 = vsub.f32 %v917, 1.4531521
      %v926 = vsub.f32 %v918, 1.4531521
      %v927 = vsub.f32 %v919, 1.4531521
      %v928 = vsub.f32 %v920, 1.4531521
      %v929 = vsub.f32 %v921, 1.4531521
      %v930 = vmul.f32 %v922, %v899
      %v931 = vmul.f32 %v923, %v901
      %v932 = vmul.f32 %v924, %v903
      %v933 = vmul.f32 %v925, %v905
      %v934 = vmul.f32 %v926, %v907
      %v935 = vmul.f32 %v927, %v909
      %v936 = vmul.f32 %v928, %v911
      %v937 = vmul.f32 %v929, %v913
      %v938 = vadd.f32 %v930, 1.4214138
      %v939 = vadd.f32 %v931, 1.4214138
      %v940 = vadd.f32 %v932, 1.4214138
      %v941 = vadd.f32 %v933, 1.4214138
      %v942 = vadd.f32 %v934, 1.4214138
      %v943 = vadd.f32 %v935, 1.4214138
      %v944 = vadd.f32 %v936, 1.4214138
      %v945 = vadd.f32 %v937, 1.4214138
      %v946 = vmul.f32 %v938, %v899
      %v947 = vmul.f32 %v939, %v901
      %v948 = vmul.f32 %v940, %v903
      %v949 = vmul.f32 %v941, %v905
      %v950 = vmul.f32 %v942, %v907
      %v951 = vmul.f32 %v943, %v909
      %v952 = vmul.f32 %v944, %v911
      %v953 = vmul.f32 %v945, %v913
      %v954 = vsub.f32 %v946, 0.28449672
      %v955 = vsub.f32 %v947, 0.28449672
      %v956 = vsub.f32 %v948, 0.28449672
      %v957 = vsub.f32 %v949, 0.28449672
      %v958 = vsub.f32 %v950, 0.28449672
      %v959 = vsub.f32 %v951, 0.28449672
      %v960 = vsub.f32 %v952, 0.28449672
      %v961 = vsub.f32 %v953, 0.28449672
      %v962 = vmul.f32 %v954, %v899
      %v963 = vmul.f32 %v955, %v901
      %v964 = vmul.f32 %v956, %v903
      %v965 = vmul.f32 %v957, %v905
      %v966 = vmul.f32 %v958, %v907
      %v967 = vmul.f32 %v959, %v909
      %v968 = vmul.f32 %v960, %v911
      %v969 = vmul.f32 %v961, %v913
      %v970 = vadd.f32 %v962, 0.2548296
      %v971 = vadd.f32 %v963, 0.2548296
      %v972 = vadd.f32 %v964, 0.2548296
      %v973 = vadd.f32 %v965, 0.2548296
      %v974 = vadd.f32 %v966, 0.2548296
      %v975 = vadd.f32 %v967, 0.2548296
      %v976 = vadd.f32 %v968, 0.2548296
      %v977 = vadd.f32 %v969, 0.2548296
      %v978 = vmul.f32 %v970, %v899
      %v979 = vmul.f32 %v971, %v901
      %v980 = vmul.f32 %v972, %v903
      %v981 = vmul.f32 %v973, %v905
      %v982 = vmul.f32 %v974, %v907
      %v983 = vmul.f32 %v975, %v909
      %v984 = vmul.f32 %v976, %v911
      %v985 = vmul.f32 %v977, %v913
      %v986 = vsub.f32 0.0, %v858
      %v987 = vsub.f32 0.0, %v859
      %v988 = vsub.f32 0.0, %v860
      %v989 = vsub.f32 0.0, %v861
      %v990 = vsub.f32 0.0, %v862
      %v991 = vsub.f32 0.0, %v863
      %v992 = vsub.f32 0.0, %v864
      %v993 = vsub.f32 0.0, %v865
      %v994 = vmul.f32 %v986, %v858
      %v995 = vmul.f32 %v987, %v859
      %v996 = vmul.f32 %v988, %v860
      %v997 = vmul.f32 %v989, %v861
      %v998 = vmul.f32 %v990, %v862
      %v999 = vmul.f32 %v991, %v863
      %v1000 = vmul.f32 %v992, %v864
      %v1001 = vmul.f32 %v993, %v865
      %v1002 = vmul.f32 %v994, 1.442695
      %v1003 = vpow.pop %v1002
      %v1004 = vmul.f32 %v995, 1.442695
      %v1005 = vpow.pop %v1004
      %v1006 = vmul.f32 %v996, 1.442695
      %v1007 = vpow.pop %v1006
      %v1008 = vmul.f32 %v997, 1.442695
      %v1009 = vpow.pop %v1008
      %v1010 = vmul.f32 %v998, 1.442695
      %v1011 = vpow.pop %v1010
      %v1012 = vmul.f32 %v999, 1.442695
      %v1013 = vpow.pop %v1012
      %v1014 = vmul.f32 %v1000, 1.442695
      %v1015 = vpow.pop %v1014
      %v1016 = vmul.f32 %v1001, 1.442695
      %v1017 = vpow.pop %v1016
      %v1018 = vmul.f32 %v978, %v1003
      %v1019 = vmul.f32 %v979, %v1005
      %v1020 = vmul.f32 %v980, %v1007
      %v1021 = vmul.f32 %v981, %v1009
      %v1022 = vmul.f32 %v982, %v1011
      %v1023 = vmul.f32 %v983, %v1013
      %v1024 = vmul.f32 %v984, %v1015
      %v1025 = vmul.f32 %v985, %v1017
      %v1026 = vsub.f32 1.0, %v1018
      %v1027 = vsub.f32 1.0, %v1019
      %v1028 = vsub.f32 1.0, %v1020
      %v1029 = vsub.f32 1.0, %v1021
      %v1030 = vsub.f32 1.0, %v1022
      %v1031 = vsub.f32 1.0, %v1023
      %v1032 = vsub.f32 1.0, %v1024
      %v1033 = vsub.f32 1.0, %v1025
      %v1034 = vmul.f32 %v874, %v1026
      %v1035 = vmul.f32 %v875, %v1027
      %v1036 = vmul.f32 %v876, %v1028
      %v1037 = vmul.f32 %v877, %v1029
      %v1038 = vmul.f32 %v878, %v1030
      %v1039 = vmul.f32 %v879, %v1031
      %v1040 = vmul.f32 %v880, %v1032
      %v1041 = vmul.f32 %v881, %v1033
      %v1042 = vmul.f32 %v828, 0.5
      %v1043 = vmul.f32 %v830, 0.5
      %v1044 = vmul.f32 %v834, 0.5
      %v1045 = vmul.f32 %v836, 0.5
      %v1046 = vmul.f32 %v840, 0.5
      %v1047 = vmul.f32 %v842, 0.5
      %v1048 = vmul.f32 %v846, 0.5
      %v1049 = vmul.f32 %v848, 0.5
      %v1050 = vadd.f32 %v1034, 1.0
      %v1051 = vadd.f32 %v1035, 1.0
      %v1052 = vadd.f32 %v1036, 1.0
      %v1053 = vadd.f32 %v1037, 1.0
      %v1054 = vadd.f32 %v1038, 1.0
      %v1055 = vadd.f32 %v1039, 1.0
      %v1056 = vadd.f32 %v1040, 1.0
      %v1057 = vadd.f32 %v1041, 1.0
      %v1058 = vmul.f32 %v1042, %v1050
      %v1059 = vmul.f32 %v1043, %v1051
      %v1060 = vmul.f32 %v1044, %v1052
      %v1061 = vmul.f32 %v1045, %v1053
      %v1062 = vmul.f32 %v1046, %v1054
      %v1063 = vmul.f32 %v1047, %v1055
      %v1064 = vmul.f32 %v1048, %v1056
      %v1065 = vmul.f32 %v1049, %v1057
      %v1066 = vmul.f32 %v1058, %v1058
      %v1067 = vmul.f32 %v1059, %v1059
      %v1068 = vmul.f32 %v1060, %v1060
      %v1069 = vmul.f32 %v1061, %v1061
      %v1070 = vmul.f32 %v1062, %v1062
      %v1071 = vmul.f32 %v1063, %v1063
      %v1072 = vmul.f32 %v1064, %v1064
      %v1073 = vmul.f32 %v1065, %v1065
      %v1074 = vadd.f32 %v1066, %v1068
      %v1075 = vadd.f32 %v1074, %v1070
      %v1076 = vadd.f32 %v1075, %v1072
      %v1077 = vrot.slane %v1076, 4
      %v1078 = vadd.f32 %v1076, %v1077
      %v1079 = vrot.slane %v1078, 2
      %v1080 = vadd.f32 %v1078, %v1079
      %v1081 = vrot.slane %v1080, 1
      %v1082 = vadd.f32 %v1080, %v1081
      %v1083 = vadd.f32 %v1067, %v1069
      %v1084 = vadd.f32 %v1083, %v1071
      %v1085 = vadd.f32 %v1084, %v1073
      %v1086 = vrot.slane %v1085, 4
      %v1087 = vadd.f32 %v1085, %v1086
      %v1088 = vrot.slane %v1087, 2
      %v1089 = vadd.f32 %v1087, %v1088
      %v1090 = vrot.slane %v1089, 1
      %v1091 = vadd.f32 %v1089, %v1090
      %v1092 = vrsqrt.pop %v1082
      %v1093 = vmul.f32 %v1082, %v1092
      %vm1094 = vcmp.eq.f32.partialorder %v1082, inf
      %v1095 = vsel %vm1094, %v1082, %v1093
      %vm1096 = vcmp.eq.f32.partialorder %v1082, 0.0
      %v1097 = vand.u32 %v1082, 2147483648
      %v1098 = vsel %vm1096, %v1097, %v1095
      %v1099 = vrsqrt.pop %v1091
      %v1100 = vmul.f32 %v1091, %v1099
      %vm1101 = vcmp.eq.f32.partialorder %v1091, inf
      %v1102 = vsel %vm1101, %v1091, %v1100
      %vm1103 = vcmp.eq.f32.partialorder %v1091, 0.0
      %v1104 = vand.u32 %v1091, 2147483648
      %v1105 = vsel %vm1103, %v1104, %v1102
      %v1106 = vadd.f32 %v1098, %v1105
      %1107 = vadd.xlane.f32.xlu0 %v1106
      %v1108 = vpop.xlane.xlu0 %1107
      %v1109 = vrcp.pop 256.0
      %v1110 = vmul.f32 %v1108, %v1109
      %v1111 = vadd.f32 %v1110, 1e-06
      %v1112 = vrcp.pop %v1111
      %v1113 = vmul.f32 %v1098, %v1112
      %v1114 = vmul.f32 %v1105, %v1112
      %v1115 = vld [vmem:[%s7] sm:$0x3]
      %v1116 = vmul.f32 %v1058, %v1113
      %v1117 = vmul.f32 %v1059, %v1114
      %v1118 = vmul.f32 %v1060, %v1113
      %v1119 = vmul.f32 %v1061, %v1114
      %v1120 = vmul.f32 %v1062, %v1113
      %v1121 = vmul.f32 %v1063, %v1114
      %v1122 = vmul.f32 %v1064, %v1113
      %v1123 = vmul.f32 %v1065, %v1114
      %v1125 = vlaneseq
      %v1126 = vshrl.u32 %v1125, 7
      %v1127 = vsub.s32 0, %v1126
      %v1128 = vrot.slane %v1115, %v1127
      %v1129 = vlaneseq
      %v1130 = vshrl.u32 %v1129, 7
      %v1131 = vsub.s32 1, %v1130
      %v1132 = vrot.slane %v1115, %v1131
      %v1135 = vmul.f32 %v1128, %v1116
      %v1136 = vmul.f32 %v1132, %v1117
      %v1137 = vmul.f32 %v1128, %v1118
      %v1138 = vmul.f32 %v1132, %v1119
      %v1139 = vmul.f32 %v1128, %v1120
      %v1140 = vmul.f32 %v1132, %v1121
      %v1141 = vmul.f32 %v1128, %v1122
      %v1142 = vmul.f32 %v1132, %v1123
      %v1143 = vld [vmem:[%s8] sm:$0x3]
      %v1145 = vlaneseq
      %v1146 = vshrl.u32 %v1145, 7
      %v1147 = vsub.s32 0, %v1146
      %v1148 = vrot.slane %v1143, %v1147
      %v1149 = vlaneseq
      %v1150 = vshrl.u32 %v1149, 7
      %v1151 = vsub.s32 1, %v1150
      %v1152 = vrot.slane %v1143, %v1151
      %v1155 = vadd.f32 %v1135, %v1148
      %v1156 = vadd.f32 %v1136, %v1152
      %v1157 = vadd.f32 %v1137, %v1148
      %v1158 = vadd.f32 %v1138, %v1152
      %v1159 = vadd.f32 %v1139, %v1148
      %v1160 = vadd.f32 %v1140, %v1152
      %v1161 = vadd.f32 %v1141, %v1148
      %v1162 = vadd.f32 %v1142, %v1152
      %v1163 = vadd.f32 %v1155, %v1058
      %v1164 = vadd.f32 %v1156, %v1059
      %v1165 = vadd.f32 %v1157, %v1060
      %v1166 = vadd.f32 %v1158, %v1061
      %v1167 = vadd.f32 %v1159, %v1062
      %v1168 = vadd.f32 %v1160, %v1063
      %v1169 = vadd.f32 %v1161, %v1064
      %v1170 = vadd.f32 %v1162, %v1065
      %v1171 = vld [vmem:[%s9] sm:$0xff]
      %v1172 = vld [vmem:[%s9 + $0x8] sm:$0xff]
      %v1173 = vld [vmem:[%s9 + $0x10] sm:$0xff]
      %v1174 = vld [vmem:[%s9 + $0x18] sm:$0xff]
      %v1175 = vld [vmem:[%s9 + $0x20] sm:$0xff]
      %v1176 = vld [vmem:[%s9 + $0x28] sm:$0xff]
      %v1177 = vld [vmem:[%s9 + $0x30] sm:$0xff]
      %v1178 = vld [vmem:[%s9 + $0x38] sm:$0xff]
      %v1179 = vld [vmem:[%s9 + $0x40] sm:$0xff]
      %v1180 = vld [vmem:[%s9 + $0x48] sm:$0xff]
      %v1181 = vld [vmem:[%s9 + $0x50] sm:$0xff]
      %v1182 = vld [vmem:[%s9 + $0x58] sm:$0xff]
      %v1183 = vld [vmem:[%s9 + $0x60] sm:$0xff]
      %v1184 = vld [vmem:[%s9 + $0x68] sm:$0xff]
      %v1185 = vld [vmem:[%s9 + $0x70] sm:$0xff]
      %v1186 = vld [vmem:[%s9 + $0x78] sm:$0xff]
      %v1187 = vld [vmem:[%s9 + $0x80] sm:$0xff]
      %v1188 = vld [vmem:[%s9 + $0x88] sm:$0xff]
      %v1189 = vld [vmem:[%s9 + $0x90] sm:$0xff]
      %v1190 = vld [vmem:[%s9 + $0x98] sm:$0xff]
      %v1191 = vld [vmem:[%s9 + $0xa0] sm:$0xff]
      %v1192 = vld [vmem:[%s9 + $0xa8] sm:$0xff]
      %v1193 = vld [vmem:[%s9 + $0xb0] sm:$0xff]
      %v1194 = vld [vmem:[%s9 + $0xb8] sm:$0xff]
      %v1195 = vld [vmem:[%s9 + $0xc0] sm:$0xff]
      %v1196 = vld [vmem:[%s9 + $0xc8] sm:$0xff]
      %v1197 = vld [vmem:[%s9 + $0xd0] sm:$0xff]
      %v1198 = vld [vmem:[%s9 + $0xd8] sm:$0xff]
      %v1199 = vld [vmem:[%s9 + $0xe0] sm:$0xff]
      %v1200 = vld [vmem:[%s9 + $0xe8] sm:$0xff]
      %v1201 = vld [vmem:[%s9 + $0xf0] sm:$0xff]
      %v1202 = vld [vmem:[%s9 + $0xf8] sm:$0xff]
      %v1203 = vld [vmem:[%s10] sm:$0x1]
      %v1205 = vlaneseq
      %v1206 = vshrl.u32 %v1205, 7
      %v1207 = vsub.s32 0, %v1206
      %v1208 = vrot.slane %v1203, %v1207
      %1210 = vmatprep.subr.mxu0 0.0
      %1211 = vmatpush1.msra.mxu0 %v1186
      %1212 = vmatprep.subr.mxu0 0.0
      %1213 = vmatpush1.msra.mxu0 %v1185
      %1214 = vmatprep.subr.mxu0 0.0
      %1215 = vmatpush1.msra.mxu0 %v1184
      %1216 = vmatprep.subr.mxu0 0.0
      %1217 = vmatpush1.msra.mxu0 %v1183
      %1218 = vmatprep.subr.mxu0 0.0
      %1219 = vmatpush1.msra.mxu0 %v1182
      %1220 = vmatprep.subr.mxu0 0.0
      %1221 = vmatpush1.msra.mxu0 %v1181
      %1222 = vmatprep.subr.mxu0 0.0
      %1223 = vmatpush1.msra.mxu0 %v1180
      %1224 = vmatprep.subr.mxu0 0.0
      %1225 = vmatpush1.msra.mxu0 %v1179
      %1226 = vmatprep.subr.mxu0 0.0
      %1227 = vmatpush1.msra.mxu0 %v1178
      %1228 = vmatprep.subr.mxu0 0.0
      %1229 = vmatpush1.msra.mxu0 %v1177
      %1230 = vmatprep.subr.mxu0 0.0
      %1231 = vmatpush1.msra.mxu0 %v1176
      %1232 = vmatprep.subr.mxu0 0.0
      %1233 = vmatpush1.msra.mxu0 %v1175
      %1234 = vmatprep.subr.mxu0 0.0
      %1235 = vmatpush1.msra.mxu0 %v1174
      %1236 = vmatprep.subr.mxu0 0.0
      %1237 = vmatpush1.msra.mxu0 %v1173
      %1238 = vmatprep.subr.mxu0 0.0
      %1239 = vmatpush1.msra.mxu0 %v1172
      %1240 = vmatprep.subr.mxu0 0.0
      %1241 = vmatpush1.msra.mxu0 %v1171
      %1242 = vmatprep.subr.mxu0 0.0
      %1243 = vmatpush2.msra.mxu0 %v1202
      %1244 = vmatprep.subr.mxu0 0.0
      %1245 = vmatpush2.msra.mxu0 %v1201
      %1246 = vmatprep.subr.mxu0 0.0
      %1247 = vmatpush2.msra.mxu0 %v1200
      %1248 = vmatprep.subr.mxu0 0.0
      %1249 = vmatpush2.msra.mxu0 %v1199
      %1250 = vmatprep.subr.mxu0 0.0
      %1251 = vmatpush2.msra.mxu0 %v1198
      %1252 = vmatprep.subr.mxu0 0.0
      %1253 = vmatpush2.msra.mxu0 %v1197
      %1254 = vmatprep.subr.mxu0 0.0
      %1255 = vmatpush2.msra.mxu0 %v1196
      %1256 = vmatprep.subr.mxu0 0.0
      %1257 = vmatpush2.msra.mxu0 %v1195
      %1258 = vmatprep.subr.mxu0 0.0
      %1259 = vmatpush2.msra.mxu0 %v1194
      %1260 = vmatprep.subr.mxu0 0.0
      %1261 = vmatpush2.msra.mxu0 %v1193
      %1262 = vmatprep.subr.mxu0 0.0
      %1263 = vmatpush2.msra.mxu0 %v1192
      %1264 = vmatprep.subr.mxu0 0.0
      %1265 = vmatpush2.msra.mxu0 %v1191
      %1266 = vmatprep.subr.mxu0 0.0
      %1267 = vmatpush2.msra.mxu0 %v1190
      %1268 = vmatprep.subr.mxu0 0.0
      %1269 = vmatpush2.msra.mxu0 %v1189
      %1270 = vmatprep.subr.mxu0 0.0
      %1271 = vmatpush2.msra.mxu0 %v1188
      %1272 = vmatprep.subr.mxu0 0.0
      %1273 = vmatpush2.msra.mxu0 %v1187
      %1274 = vmatprep.mubr.f32.mxu0 %v1164
      %1275 = vmatmul.mubr.f32.gmra.mxu0 %v1163
      %v1276 = vpop.f32.mrf.mxu0
      %v1277 = vadd.f32 %v1208, %v1276
      %v1278 = vpop.f32.mrf.mxu0
      %1279 = vmatprep.mubr.f32.mxu0 %v1166
      %1280 = vmatmul.mubr.f32.gmra.mxu0 %v1165
      %v1281 = vpop.f32.mrf.mxu0
      %v1282 = vadd.f32 %v1208, %v1281
      %v1283 = vpop.f32.mrf.mxu0
      %1284 = vmatprep.mubr.f32.mxu0 %v1168
      %1285 = vmatmul.mubr.f32.gmra.mxu0 %v1167
      %v1286 = vpop.f32.mrf.mxu0
      %v1287 = vadd.f32 %v1208, %v1286
      %v1288 = vpop.f32.mrf.mxu0
      %1289 = vmatprep.mubr.f32.mxu0 %v1170
      %1290 = vmatmul.mubr.f32.gmra.mxu0 %v1169
      %v1291 = vpop.f32.mrf.mxu0
      %v1292 = vadd.f32 %v1208, %v1291
      %v1293 = vpop.f32.mrf.mxu0
      %1294 = vdwg.mxu0
      %v1295 = vadd.f32 %v1277, %v387
      %v1296 = vadd.f32 %v1282, %v388
      %v1297 = vadd.f32 %v1287, %v389
      %v1298 = vadd.f32 %v1292, %v390
      %1299 = vst.msk [vmem:[%s386] sm:$0xff] %vm622, %v1295
      %1300 = vst.msk [vmem:[%s386 + $0x8] sm:$0xff] %vm622, %v1296
      %1301 = vst.msk [vmem:[%s386 + $0x10] sm:$0xff] %vm622, %v1297
      %1302 = vst.msk [vmem:[%s386 + $0x18] sm:$0xff] %vm622, %v1298
      %p1303 = scmp.lt.s32.totalorder %s22, 1
      %s1304 = scalar_select %p1303, %s22, 1
      %s1305 = smul.addr %s1304, 4
      %s1306 = smul.addr %s1305, 8
      %s1307 = scalar_lea.vmem %s11, %s1306
      // Predicated region
      $region65: #{_lambda_.11} parent=63 // pred_check
        %p1308 = pneg %p276
      $region66: #{_lambda_.11} parent=63 // pred_check_branch
        %1310 = sbr.rel (%p1308) target = $region68
      $region67: #{_lambda_.11} parent=63 // pred_region
        _
      $region68: #{_lambda_.11} parent=63 // pred_fallthru
        _
    $region64: #{_lambda_.11} parent=5 // pred_fallthru
      _
    %p1311 = scmp.le.s32.totalorder 2, %s17
    // Predicated region
    $region69: #{_lambda_.11} parent=5 // pred_check
      %p1312 = pneg %p1311
    $region70: #{_lambda_.11} parent=5 // pred_check_branch
      %1314 = sbr.rel (%p1312) target = $region72
    $region71: #{_lambda_.11} parent=5 // pred_region
      %s1315 = ssub.s32 %s17, 2
      // Predicated region
      $region73: #{_lambda_.11} parent=71 // pred_check
        %p1316 = pneg %p282
      $region74: #{_lambda_.11} parent=71 // pred_check_branch
        %1318 = sbr.rel (%p1316) target = $region76
      $region75: #{_lambda_.11} parent=71 // pred_region
        %p1319 = scmp.lt.s32.totalorder %s23, 1
        %s1320 = scalar_select %p1319, %s23, 1
        %s1321 = smul.addr %s1320, 4
        %s1322 = smul.addr %s1321, 8
        %s1323 = scalar_lea.vmem %s11, %s1322
      $region76: #{_lambda_.11} parent=71 // pred_fallthru
        _
    $region72: #{_lambda_.11} parent=5 // pred_fallthru
      _
  $region6: #{_lambda_.11} parent=0 // loop_footer
    %s21 = sadd.s32 1, %s17
  $region7: #{_lambda_.11} parent=0 // loop_footer_branch
    %16 = sbr.rel target = $region3
  $region8: #{_lambda_.11} parent=0 // loop_exit
    _

// kernel: _lambda_.14
$region0: #{_lambda_.14}
  #allocation0 [shape = 'u32[]', space=smem, size = 0x4, offset = 0x4, fixed_abs, tag = 'smem constant byte address 0x4 - core index']
  #allocation1 [shape = 'u32[144,128]{1,0:T(1,128)}', space=vmem, size = 0x12000, scoped, tag = 'internal scratch']
  %s0 = inlined_call_operand.vmem [shape: f32[2,8,192], index: 0, kind: input, shape index: {}]
  %s1 = inlined_call_operand.vmem [shape: f32[1,192], index: 1, kind: input, shape index: {}]
  %s2 = inlined_call_operand.vmem [shape: f32[1,192], index: 2, kind: input, shape index: {}]
  %s3 = inlined_call_operand.vmem [shape: f32[192,128], index: 3, kind: input, shape index: {}]
  %s4 = inlined_call_operand.vmem [shape: f32[1,128], index: 4, kind: input, shape index: {}]
  %s5 = inlined_call_operand.vmem [shape: f32[2,8,128], index: 5, kind: output, shape index: {}]
  %s6 = sld [smem:[#allocation0]]
  $region53: #{_lambda_.14} parent=0
    _
  %s8 = ssub.s32 1, %s6
  %s9 = scalar_select 0, %s8, %s6
  loop: start=0, step=1, limit=4
  $region2: #{_lambda_.14} parent=0 // loop_pre_header
    _
  $region3: #{_lambda_.14} parent=0 // loop_header
    %s11 = sphi 0, %s15
    %p12 = scmp.ge.s32.totalorder %s11, 4
    %s21 = sphi 0, %s23
    %s24 = sphi 0, %s21
    %s25 = sphi 0, %s24
    %s41 = sphi 0, %s25
    %s45 = sphi 0, %s45
    %s47 = sphi 0, %s45
    %s48 = sphi 0, %s47
    %s62 = sphi 0, %s48
    %s66 = sphi 0, %s66
    %s68 = sphi 0, %s66
    %s69 = sphi 0, %s68
    %s83 = sphi 0, %s69
    %s87 = sphi 0, %s87
    %s89 = sphi 0, %s87
    %s90 = sphi 0, %s89
    %s104 = sphi 0, %s90
    %s108 = sphi 0, %s108
    %s110 = sphi 0, %s108
    %s111 = sphi 0, %s110
    %s125 = sphi 0, %s111
    %s131 = sphi 0, %s133
    %s134 = sphi 0, %s131
    %s135 = sphi 0, %s134
    %s151 = sphi 0, %s135
  $region4: #{_lambda_.14} parent=0 // loop_header_branch
    %14 = sbr.rel (%p12) target = $region8
  $region5: #{_lambda_.14} parent=0 // loop_body
    %s16 = ssub.s32 %s11, 1
    %s17 = ssub.s32 %s11, 2
    %s18 = sadd.s32 %s11, 1
    %s19 = ssub.s32 %s11, %s18
    %p20 = scmp.eq.s32.totalorder %s19, 0
    %s22 = sadd.s32 %s21, 1
    %s23 = scalar_select %p20, %s21, %s22
    %p26 = pneg %p20
    %p27 = scmp.eq.s32.totalorder %s11, 1
    %p28 = por %p26, %p27
    %p29 = scmp.ne.s32.totalorder %s21, %s24
    %p30 = scmp.eq.s32.totalorder %s11, 0
    %p31 = por %p29, %p30
    %p32 = scmp.ne.s32.totalorder %s21, %s24
    %p33 = scmp.eq.s32.totalorder %s16, 1
    %p34 = por %p32, %p33
    %p35 = scmp.ne.s32.totalorder %s24, %s25
    %p36 = scmp.eq.s32.totalorder %s16, 0
    %p37 = por %p35, %p36
    %p38 = scmp.ne.s32.totalorder %s24, %s25
    %p39 = scmp.eq.s32.totalorder %s17, 1
    %p40 = por %p38, %p39
    %p42 = scmp.ne.s32.totalorder %s25, %s41
    %p43 = scmp.eq.s32.totalorder %s17, 0
    %p44 = por %p42, %p43
    %s46 = sadd.s32 %s45, 1
    %p49 = scmp.eq.s32.totalorder %s11, 1
    %p50 = scmp.ne.s32.totalorder %s45, %s47
    %p51 = scmp.eq.s32.totalorder %s11, 0
    %p52 = por %p50, %p51
    %p53 = scmp.ne.s32.totalorder %s45, %s47
    %p54 = scmp.eq.s32.totalorder %s16, 1
    %p55 = por %p53, %p54
    %p56 = scmp.ne.s32.totalorder %s47, %s48
    %p57 = scmp.eq.s32.totalorder %s16, 0
    %p58 = por %p56, %p57
    %p59 = scmp.ne.s32.totalorder %s47, %s48
    %p60 = scmp.eq.s32.totalorder %s17, 1
    %p61 = por %p59, %p60
    %p63 = scmp.ne.s32.totalorder %s48, %s62
    %p64 = scmp.eq.s32.totalorder %s17, 0
    %p65 = por %p63, %p64
    %s67 = sadd.s32 %s66, 1
    %p70 = scmp.eq.s32.totalorder %s11, 1
    %p71 = scmp.ne.s32.totalorder %s66, %s68
    %p72 = scmp.eq.s32.totalorder %s11, 0
    %p73 = por %p71, %p72
    %p74 = scmp.ne.s32.totalorder %s66, %s68
    %p75 = scmp.eq.s32.totalorder %s16, 1
    %p76 = por %p74, %p75
    %p77 = scmp.ne.s32.totalorder %s68, %s69
    %p78 = scmp.eq.s32.totalorder %s16, 0
    %p79 = por %p77, %p78
    %p80 = scmp.ne.s32.totalorder %s68, %s69
    %p81 = scmp.eq.s32.totalorder %s17, 1
    %p82 = por %p80, %p81
    %p84 = scmp.ne.s32.totalorder %s69, %s83
    %p85 = scmp.eq.s32.totalorder %s17, 0
    %p86 = por %p84, %p85
    %s88 = sadd.s32 %s87, 1
    %p91 = scmp.eq.s32.totalorder %s11, 1
    %p92 = scmp.ne.s32.totalorder %s87, %s89
    %p93 = scmp.eq.s32.totalorder %s11, 0
    %p94 = por %p92, %p93
    %p95 = scmp.ne.s32.totalorder %s87, %s89
    %p96 = scmp.eq.s32.totalorder %s16, 1
    %p97 = por %p95, %p96
    %p98 = scmp.ne.s32.totalorder %s89, %s90
    %p99 = scmp.eq.s32.totalorder %s16, 0
    %p100 = por %p98, %p99
    %p101 = scmp.ne.s32.totalorder %s89, %s90
    %p102 = scmp.eq.s32.totalorder %s17, 1
    %p103 = por %p101, %p102
    %p105 = scmp.ne.s32.totalorder %s90, %s104
    %p106 = scmp.eq.s32.totalorder %s17, 0
    %p107 = por %p105, %p106
    %s109 = sadd.s32 %s108, 1
    %p112 = scmp.eq.s32.totalorder %s11, 1
    %p113 = scmp.ne.s32.totalorder %s108, %s110
    %p114 = scmp.eq.s32.totalorder %s11, 0
    %p115 = por %p113, %p114
    %p116 = scmp.ne.s32.totalorder %s108, %s110
    %p117 = scmp.eq.s32.totalorder %s16, 1
    %p118 = por %p116, %p117
    %p119 = scmp.ne.s32.totalorder %s110, %s111
    %p120 = scmp.eq.s32.totalorder %s16, 0
    %p121 = por %p119, %p120
    %p122 = scmp.ne.s32.totalorder %s110, %s111
    %p123 = scmp.eq.s32.totalorder %s17, 1
    %p124 = por %p122, %p123
    %p126 = scmp.ne.s32.totalorder %s111, %s125
    %p127 = scmp.eq.s32.totalorder %s17, 0
    %p128 = por %p126, %p127
    %s129 = ssub.s32 %s11, %s18
    %p130 = scmp.eq.s32.totalorder %s129, 0
    %s132 = sadd.s32 %s131, 1
    %s133 = scalar_select %p130, %s131, %s132
    %p136 = pneg %p130
    %p137 = scmp.eq.s32.totalorder %s11, 1
    %p138 = por %p136, %p137
    %p139 = scmp.ne.s32.totalorder %s131, %s134
    %p140 = scmp.eq.s32.totalorder %s11, 0
    %p141 = por %p139, %p140
    %p142 = scmp.ne.s32.totalorder %s131, %s134
    %p143 = scmp.eq.s32.totalorder %s16, 1
    %p144 = por %p142, %p143
    %p145 = scmp.ne.s32.totalorder %s134, %s135
    %p146 = scmp.eq.s32.totalorder %s16, 0
    %p147 = por %p145, %p146
    %p148 = scmp.ne.s32.totalorder %s134, %s135
    %p149 = scmp.eq.s32.totalorder %s17, 1
    %p150 = por %p148, %p149
    %p152 = scmp.ne.s32.totalorder %s135, %s151
    %p153 = scmp.eq.s32.totalorder %s17, 0
    %p154 = por %p152, %p153
    %p155 = scmp.le.s32.totalorder 1, %s11
    %p156 = scmp.lt.s32.totalorder %s11, 3
    %p157 = pnand %p155, %p156
    %p158 = pneg %p157
    // Predicated region
    $region9: #{_lambda_.14} parent=5 // pred_check
      _
    $region10: #{_lambda_.14} parent=5 // pred_check_branch
      %160 = sbr.rel (%p157) target = $region12
    $region11: #{_lambda_.14} parent=5 // pred_region
      %s161 = ssub.s32 %s11, 1
      // Predicated region
      $region13: #{_lambda_.14} parent=11 // pred_check
        %p162 = pneg %p58
      $region14: #{_lambda_.14} parent=11 // pred_check_branch
        %164 = sbr.rel (%p162) target = $region16
      $region15: #{_lambda_.14} parent=11 // pred_region
        _
      $region16: #{_lambda_.14} parent=11 // pred_fallthru
        _
      // Predicated region
      $region17: #{_lambda_.14} parent=11 // pred_check
        %p165 = pneg %p79
      $region18: #{_lambda_.14} parent=11 // pred_check_branch
        %167 = sbr.rel (%p165) target = $region20
      $region19: #{_lambda_.14} parent=11 // pred_region
        _
      $region20: #{_lambda_.14} parent=11 // pred_fallthru
        _
      // Predicated region
      $region21: #{_lambda_.14} parent=11 // pred_check
        %p168 = pneg %p100
      $region22: #{_lambda_.14} parent=11 // pred_check_branch
        %170 = sbr.rel (%p168) target = $region24
      $region23: #{_lambda_.14} parent=11 // pred_region
        _
      $region24: #{_lambda_.14} parent=11 // pred_fallthru
        _
      // Predicated region
      $region25: #{_lambda_.14} parent=11 // pred_check
        %p171 = pneg %p121
      $region26: #{_lambda_.14} parent=11 // pred_check_branch
        %173 = sbr.rel (%p171) target = $region28
      $region27: #{_lambda_.14} parent=11 // pred_region
        _
      $region28: #{_lambda_.14} parent=11 // pred_fallthru
        _
    $region12: #{_lambda_.14} parent=5 // pred_fallthru
      _
    %p174 = scmp.lt.s32.totalorder %s11, 2
    // Predicated region
    $region29: #{_lambda_.14} parent=5 // pred_check
      %p175 = pneg %p174
    $region30: #{_lambda_.14} parent=5 // pred_check_branch
      %177 = sbr.rel (%p175) target = $region32
    $region31: #{_lambda_.14} parent=5 // pred_region
      // Predicated region
      $region33: #{_lambda_.14} parent=31 // pred_check
        %p178 = pneg %p31
      $region34: #{_lambda_.14} parent=31 // pred_check_branch
        %180 = sbr.rel (%p178) target = $region36
      $region35: #{_lambda_.14} parent=31 // pred_region
        %p181 = scmp.lt.s32.totalorder %s11, 1
        %s182 = scalar_select %p181, %s11, 1
        %s183 = smul.addr %s182, 2
        %s184 = smul.addr %s183, 8
        %s185 = scalar_lea.vmem %s0, %s184
      $region36: #{_lambda_.14} parent=31 // pred_fallthru
        _
    $region32: #{_lambda_.14} parent=5 // pred_fallthru
      _
    %p186 = scmp.le.s32.totalorder 1, %s11
    %p187 = scmp.lt.s32.totalorder %s11, 3
    %p188 = pnand %p186, %p187
    %p189 = pneg %p188
    // Predicated region
    $region37: #{_lambda_.14} parent=5 // pred_check
      _
    $region38: #{_lambda_.14} parent=5 // pred_check_branch
      %191 = sbr.rel (%p188) target = $region40
    $region39: #{_lambda_.14} parent=5 // pred_region
      %s192 = ssub.s32 %s11, 1
      %p193 = scmp.lt.s32.totalorder %s16, 1
      %s194 = scalar_select %p193, %s16, 1
      %s195 = smul.addr %s194, 2
      %s196 = smul.addr %s195, 8
      %s197 = scalar_lea.vmem %s0, %s196
      %p198 = pneg %p37
      %p199 = pneg %p34
      %p200 = pneg %p58
      %p201 = pneg %p55
      %p202 = pneg %p79
      %p203 = pneg %p76
      %p204 = pneg %p100
      %p205 = pneg %p97
      %p206 = pneg %p121
      %p207 = pneg %p118
      %p208 = pneg %p147
      %p209 = pneg %p144
      %p210 = scmp.lt.s32.totalorder %s16, 1
      %s211 = scalar_select %p210, %s16, 1
      %s212 = smul.addr %s211, 8
      %s213 = scalar_lea.vmem %s5, %s212
      %p214 = scmp.lt.s32.totalorder %s16, 1
      %s215 = scalar_select %p214, %s16, 1
      %s216 = smul.addr %s215, 2
      %s217 = smul.addr %s216, 8
      %s218 = scalar_lea.vmem %s0, %s217
      %p219 = scmp.lt.s32.totalorder %s16, 1
      %s220 = scalar_select %p219, %s16, 1
      %s221 = smul.addr %s220, 8
      %s222 = scalar_lea.vmem %s5, %s221
      %v223 = vld [vmem:[%s218] sm:$0xff]
      %v224 = vld [vmem:[%s218 + $0x8] sm:$0xff]
      %v225 = vld [vmem:[%s1] sm:$0x3]
      %v226 = vld [vmem:[%s2] sm:$0x3]
      %v227 = vlaneseq
      %v228 = vand.u32 %v227, 127
      %v229 = vadd.s32 %v228, 128
      %vm230 = vcmp.lt.s32.totalorder %v228, 96
      %vm231 = vcmp.lt.s32.totalorder %v229, 96
      %v232 = vsel %vm230, %v223, 0.0
      %v233 = vsel %vm231, %v224, 0.0
      %vm234 = vcmask 523264
      %v235 = vsel %vm234, %v233, 0.0
      %v236 = vadd.f32 %v232, %v235
      %237 = vadd.xlane.f32.xlu0 %v236
      %v238 = vpop.xlane.xlu0 %237
      %v239 = vmul.f32 %v238, 0.010416667
      %v240 = vsel %vm230, 0.0, %v223
      %v241 = vsel %vm231, 0.0, %v224
      %v242 = vsel %vm234, %v241, 0.0
      %v243 = vadd.f32 %v240, %v242
      %244 = vadd.xlane.f32.xlu0 %v243
      %v245 = vpop.xlane.xlu0 %244
      %v246 = vmul.f32 %v245, 0.010416667
      %v247 = vsel %vm230, %v239, %v246
      %v248 = vsel %vm231, %v239, %v246
      %v249 = vsub.f32 %v223, %v247
      %v250 = vsub.f32 %v224, %v248
      %v251 = vmul.f32 %v249, %v249
      %v252 = vmul.f32 %v250, %v250
      %v253 = vsel %vm230, %v251, 0.0
      %v254 = vsel %vm231, %v252, 0.0
      %v255 = vsel %vm234, %v254, 0.0
      %v256 = vadd.f32 %v253, %v255
      %257 = vadd.xlane.f32.xlu0 %v256
      %v258 = vpop.xlane.xlu0 %257
      %v259 = vmul.f32 %v258, 0.010416667
      %v260 = vsel %vm230, 0.0, %v251
      %v261 = vsel %vm231, 0.0, %v252
      %v262 = vsel %vm234, %v261, 0.0
      %v263 = vadd.f32 %v260, %v262
      %264 = vadd.xlane.f32.xlu0 %v263
      %v265 = vpop.xlane.xlu0 %264
      %v266 = vmul.f32 %v265, 0.010416667
      %v267 = vsel %vm230, %v259, %v266
      %v268 = vsel %vm231, %v259, %v266
      %v269 = vadd.f32 %v267, 1e-06
      %v270 = vadd.f32 %v268, 1e-06
      %v271 = vrsqrt.pop %v269
      %v272 = vrsqrt.pop %v270
      %v273 = vmul.f32 %v249, %v271
      %v274 = vmul.f32 %v250, %v272
      %v276 = vlaneseq
      %v277 = vshrl.u32 %v276, 7
      %v278 = vsub.s32 0, %v277
      %v279 = vrot.slane %v225, %v278
      %v280 = vlaneseq
      %v281 = vshrl.u32 %v280, 7
      %v282 = vsub.s32 1, %v281
      %v283 = vrot.slane %v225, %v282
      %v286 = vmul.f32 %v273, %v279
      %v287 = vmul.f32 %v274, %v283
      %v289 = vlaneseq
      %v290 = vshrl.u32 %v289, 7
      %v291 = vsub.s32 0, %v290
      %v292 = vrot.slane %v226, %v291
      %v293 = vlaneseq
      %v294 = vshrl.u32 %v293, 7
      %v295 = vsub.s32 1, %v294
      %v296 = vrot.slane %v226, %v295
      %v299 = vadd.f32 %v286, %v292
      %v300 = vadd.f32 %v287, %v296
      %v301 = vld [vmem:[%s3] sm:$0xff]
      %v302 = vld [vmem:[%s3 + $0x8] sm:$0xff]
      %v303 = vld [vmem:[%s3 + $0x10] sm:$0xff]
      %v304 = vld [vmem:[%s3 + $0x18] sm:$0xff]
      %v305 = vld [vmem:[%s3 + $0x20] sm:$0xff]
      %v306 = vld [vmem:[%s3 + $0x28] sm:$0xff]
      %v307 = vld [vmem:[%s3 + $0x30] sm:$0xff]
      %v308 = vld [vmem:[%s3 + $0x38] sm:$0xff]
      %v309 = vld [vmem:[%s3 + $0x40] sm:$0xff]
      %v310 = vld [vmem:[%s3 + $0x48] sm:$0xff]
      %v311 = vld [vmem:[%s3 + $0x50] sm:$0xff]
      %v312 = vld [vmem:[%s3 + $0x58] sm:$0xff]
      %v313 = vld [vmem:[%s3 + $0x60] sm:$0xff]
      %v314 = vld [vmem:[%s3 + $0x68] sm:$0xff]
      %v315 = vld [vmem:[%s3 + $0x70] sm:$0xff]
      %v316 = vld [vmem:[%s3 + $0x78] sm:$0xff]
      %v317 = vld [vmem:[%s3 + $0x80] sm:$0xff]
      %v318 = vld [vmem:[%s3 + $0x88] sm:$0xff]
      %v319 = vld [vmem:[%s3 + $0x90] sm:$0xff]
      %v320 = vld [vmem:[%s3 + $0x98] sm:$0xff]
      %v321 = vld [vmem:[%s3 + $0xa0] sm:$0xff]
      %v322 = vld [vmem:[%s3 + $0xa8] sm:$0xff]
      %v323 = vld [vmem:[%s3 + $0xb0] sm:$0xff]
      %v324 = vld [vmem:[%s3 + $0xb8] sm:$0xff]
      %v325 = vld [vmem:[%s4] sm:$0x1]
      %v327 = vlaneseq
      %v328 = vshrl.u32 %v327, 7
      %v329 = vsub.s32 0, %v328
      %v330 = vrot.slane %v325, %v329
      %v333 = vsel %vm234, %v300, 0
      %335 = vmatprep.subr.mxu0 0.0
      %336 = vmatpush1.msra.mxu0 %v316
      %337 = vmatprep.subr.mxu0 0.0
      %338 = vmatpush1.msra.mxu0 %v315
      %339 = vmatprep.subr.mxu0 0.0
      %340 = vmatpush1.msra.mxu0 %v314
      %341 = vmatprep.subr.mxu0 0.0
      %342 = vmatpush1.msra.mxu0 %v313
      %343 = vmatprep.subr.mxu0 0.0
      %344 = vmatpush1.msra.mxu0 %v312
      %345 = vmatprep.subr.mxu0 0.0
      %346 = vmatpush1.msra.mxu0 %v311
      %347 = vmatprep.subr.mxu0 0.0
      %348 = vmatpush1.msra.mxu0 %v310
      %349 = vmatprep.subr.mxu0 0.0
      %350 = vmatpush1.msra.mxu0 %v309
      %351 = vmatprep.subr.mxu0 0.0
      %352 = vmatpush1.msra.mxu0 %v308
      %353 = vmatprep.subr.mxu0 0.0
      %354 = vmatpush1.msra.mxu0 %v307
      %355 = vmatprep.subr.mxu0 0.0
      %356 = vmatpush1.msra.mxu0 %v306
      %357 = vmatprep.subr.mxu0 0.0
      %358 = vmatpush1.msra.mxu0 %v305
      %359 = vmatprep.subr.mxu0 0.0
      %360 = vmatpush1.msra.mxu0 %v304
      %361 = vmatprep.subr.mxu0 0.0
      %362 = vmatpush1.msra.mxu0 %v303
      %363 = vmatprep.subr.mxu0 0.0
      %364 = vmatpush1.msra.mxu0 %v302
      %365 = vmatprep.subr.mxu0 0.0
      %366 = vmatpush1.msra.mxu0 %v301
      %367 = vmatprep.subr.mxu0 0.0
      %368 = vmatpush2.msra.mxu0 0.0
      %369 = vmatprep.subr.mxu0 0.0
      %370 = vmatpush2.msra.mxu0 0.0
      %371 = vmatprep.subr.mxu0 0.0
      %372 = vmatpush2.msra.mxu0 0.0
      %373 = vmatprep.subr.mxu0 0.0
      %374 = vmatpush2.msra.mxu0 0.0
      %375 = vmatprep.subr.mxu0 0.0
      %376 = vmatpush2.msra.mxu0 0.0
      %377 = vmatprep.subr.mxu0 0.0
      %378 = vmatpush2.msra.mxu0 0.0
      %379 = vmatprep.subr.mxu0 0.0
      %380 = vmatpush2.msra.mxu0 0.0
      %381 = vmatprep.subr.mxu0 0.0
      %382 = vmatpush2.msra.mxu0 0.0
      %383 = vmatprep.subr.mxu0 0.0
      %384 = vmatpush2.msra.mxu0 %v324
      %385 = vmatprep.subr.mxu0 0.0
      %386 = vmatpush2.msra.mxu0 %v323
      %387 = vmatprep.subr.mxu0 0.0
      %388 = vmatpush2.msra.mxu0 %v322
      %389 = vmatprep.subr.mxu0 0.0
      %390 = vmatpush2.msra.mxu0 %v321
      %391 = vmatprep.subr.mxu0 0.0
      %392 = vmatpush2.msra.mxu0 %v320
      %393 = vmatprep.subr.mxu0 0.0
      %394 = vmatpush2.msra.mxu0 %v319
      %395 = vmatprep.subr.mxu0 0.0
      %396 = vmatpush2.msra.mxu0 %v318
      %397 = vmatprep.subr.mxu0 0.0
      %398 = vmatpush2.msra.mxu0 %v317
      %399 = vmatprep.mubr.f32.mxu0 %v333
      %400 = vmatmul.mubr.f32.gmra.mxu0 %v299
      %v401 = vpop.f32.mrf.mxu0
      %v402 = vadd.f32 %v330, %v401
      %v403 = vpop.f32.mrf.mxu0
      %404 = vdwg.mxu0
      %405 = vst [vmem:[%s222] sm:$0xff] %v402
      %p406 = scmp.lt.s32.totalorder %s16, 1
      %s407 = scalar_select %p406, %s16, 1
      %s408 = smul.addr %s407, 8
      %s409 = scalar_lea.vmem %s5, %s408
      // Predicated region
      $region41: #{_lambda_.14} parent=39 // pred_check
        %p410 = pneg %p144
      $region42: #{_lambda_.14} parent=39 // pred_check_branch
        %412 = sbr.rel (%p410) target = $region44
      $region43: #{_lambda_.14} parent=39 // pred_region
        _
      $region44: #{_lambda_.14} parent=39 // pred_fallthru
        _
    $region40: #{_lambda_.14} parent=5 // pred_fallthru
      _
    %p413 = scmp.le.s32.totalorder 2, %s11
    // Predicated region
    $region45: #{_lambda_.14} parent=5 // pred_check
      %p414 = pneg %p413
    $region46: #{_lambda_.14} parent=5 // pred_check_branch
      %416 = sbr.rel (%p414) target = $region48
    $region47: #{_lambda_.14} parent=5 // pred_region
      %s417 = ssub.s32 %s11, 2
      // Predicated region
      $region49: #{_lambda_.14} parent=47 // pred_check
        %p418 = pneg %p150
      $region50: #{_lambda_.14} parent=47 // pred_check_branch
        %420 = sbr.rel (%p418) target = $region52
      $region51: #{_lambda_.14} parent=47 // pred_region
        %p421 = scmp.lt.s32.totalorder %s17, 1
        %s422 = scalar_select %p421, %s17, 1
        %s423 = smul.addr %s422, 8
        %s424 = scalar_lea.vmem %s5, %s423
      $region52: #{_lambda_.14} parent=47 // pred_fallthru
        _
    $region48: #{_lambda_.14} parent=5 // pred_fallthru
      _
  $region6: #{_lambda_.14} parent=0 // loop_footer
    %s15 = sadd.s32 1, %s11
  $region7: #{_lambda_.14} parent=0 // loop_footer_branch
    %10 = sbr.rel target = $region3
  $region8: #{_lambda_.14} parent=0 // loop_exit
    _

// kernel: _lambda_.13
$region0: #{_lambda_.13}
  #allocation0 [shape = 'u32[]', space=smem, size = 0x4, offset = 0x4, fixed_abs, tag = 'smem constant byte address 0x4 - core index']
  #allocation1 [shape = 'u32[144,128]{1,0:T(1,128)}', space=vmem, size = 0x12000, scoped, tag = 'internal scratch']
  %s0 = inlined_call_operand.vmem [shape: f32[2,16,96], index: 0, kind: input, shape index: {}]
  %s1 = inlined_call_operand.vmem [shape: f32[7,96], index: 1, kind: input, shape index: {}]
  %s2 = inlined_call_operand.vmem [shape: f32[1,96], index: 2, kind: input, shape index: {}]
  %s3 = inlined_call_operand.vmem [shape: f32[1,96], index: 3, kind: input, shape index: {}]
  %s4 = inlined_call_operand.vmem [shape: f32[1,96], index: 4, kind: input, shape index: {}]
  %s5 = inlined_call_operand.vmem [shape: f32[96,384], index: 5, kind: input, shape index: {}]
  %s6 = inlined_call_operand.vmem [shape: f32[1,384], index: 6, kind: input, shape index: {}]
  %s7 = inlined_call_operand.vmem [shape: f32[1,384], index: 7, kind: input, shape index: {}]
  %s8 = inlined_call_operand.vmem [shape: f32[1,384], index: 8, kind: input, shape index: {}]
  %s9 = inlined_call_operand.vmem [shape: f32[384,96], index: 9, kind: input, shape index: {}]
  %s10 = inlined_call_operand.vmem [shape: f32[1,96], index: 10, kind: input, shape index: {}]
  %s11 = inlined_call_operand.vmem [shape: f32[2,16,96], index: 11, kind: output, shape index: {}]
  %s12 = sld [smem:[#allocation0]]
  $region77: #{_lambda_.13} parent=0
    _
  %s14 = ssub.s32 1, %s12
  %s15 = scalar_select 0, %s14, %s12
  loop: start=0, step=1, limit=4
  $region2: #{_lambda_.13} parent=0 // loop_pre_header
    _
  $region3: #{_lambda_.13} parent=0 // loop_header
    %s17 = sphi 0, %s21
    %p18 = scmp.ge.s32.totalorder %s17, 4
    %s27 = sphi 0, %s29
    %s30 = sphi 0, %s27
    %s31 = sphi 0, %s30
    %s47 = sphi 0, %s31
    %s51 = sphi 0, %s51
    %s53 = sphi 0, %s51
    %s54 = sphi 0, %s53
    %s68 = sphi 0, %s54
    %s72 = sphi 0, %s72
    %s74 = sphi 0, %s72
    %s75 = sphi 0, %s74
    %s89 = sphi 0, %s75
    %s93 = sphi 0, %s93
    %s95 = sphi 0, %s93
    %s96 = sphi 0, %s95
    %s110 = sphi 0, %s96
    %s114 = sphi 0, %s114
    %s116 = sphi 0, %s114
    %s117 = sphi 0, %s116
    %s131 = sphi 0, %s117
    %s135 = sphi 0, %s135
    %s137 = sphi 0, %s135
    %s138 = sphi 0, %s137
    %s152 = sphi 0, %s138
    %s156 = sphi 0, %s156
    %s158 = sphi 0, %s156
    %s159 = sphi 0, %s158
    %s173 = sphi 0, %s159
    %s177 = sphi 0, %s177
    %s179 = sphi 0, %s177
    %s180 = sphi 0, %s179
    %s194 = sphi 0, %s180
    %s198 = sphi 0, %s198
    %s200 = sphi 0, %s198
    %s201 = sphi 0, %s200
    %s215 = sphi 0, %s201
    %s219 = sphi 0, %s219
    %s221 = sphi 0, %s219
    %s222 = sphi 0, %s221
    %s236 = sphi 0, %s222
    %s240 = sphi 0, %s240
    %s242 = sphi 0, %s240
    %s243 = sphi 0, %s242
    %s257 = sphi 0, %s243
    %s263 = sphi 0, %s265
    %s266 = sphi 0, %s263
    %s267 = sphi 0, %s266
    %s283 = sphi 0, %s267
  $region4: #{_lambda_.13} parent=0 // loop_header_branch
    %20 = sbr.rel (%p18) target = $region8
  $region5: #{_lambda_.13} parent=0 // loop_body
    %s22 = ssub.s32 %s17, 1
    %s23 = ssub.s32 %s17, 2
    %s24 = sadd.s32 %s17, 1
    %s25 = ssub.s32 %s17, %s24
    %p26 = scmp.eq.s32.totalorder %s25, 0
    %s28 = sadd.s32 %s27, 1
    %s29 = scalar_select %p26, %s27, %s28
    %p32 = pneg %p26
    %p33 = scmp.eq.s32.totalorder %s17, 1
    %p34 = por %p32, %p33
    %p35 = scmp.ne.s32.totalorder %s27, %s30
    %p36 = scmp.eq.s32.totalorder %s17, 0
    %p37 = por %p35, %p36
    %p38 = scmp.ne.s32.totalorder %s27, %s30
    %p39 = scmp.eq.s32.totalorder %s22, 1
    %p40 = por %p38, %p39
    %p41 = scmp.ne.s32.totalorder %s30, %s31
    %p42 = scmp.eq.s32.totalorder %s22, 0
    %p43 = por %p41, %p42
    %p44 = scmp.ne.s32.totalorder %s30, %s31
    %p45 = scmp.eq.s32.totalorder %s23, 1
    %p46 = por %p44, %p45
    %p48 = scmp.ne.s32.totalorder %s31, %s47
    %p49 = scmp.eq.s32.totalorder %s23, 0
    %p50 = por %p48, %p49
    %s52 = sadd.s32 %s51, 1
    %p55 = scmp.eq.s32.totalorder %s17, 1
    %p56 = scmp.ne.s32.totalorder %s51, %s53
    %p57 = scmp.eq.s32.totalorder %s17, 0
    %p58 = por %p56, %p57
    %p59 = scmp.ne.s32.totalorder %s51, %s53
    %p60 = scmp.eq.s32.totalorder %s22, 1
    %p61 = por %p59, %p60
    %p62 = scmp.ne.s32.totalorder %s53, %s54
    %p63 = scmp.eq.s32.totalorder %s22, 0
    %p64 = por %p62, %p63
    %p65 = scmp.ne.s32.totalorder %s53, %s54
    %p66 = scmp.eq.s32.totalorder %s23, 1
    %p67 = por %p65, %p66
    %p69 = scmp.ne.s32.totalorder %s54, %s68
    %p70 = scmp.eq.s32.totalorder %s23, 0
    %p71 = por %p69, %p70
    %s73 = sadd.s32 %s72, 1
    %p76 = scmp.eq.s32.totalorder %s17, 1
    %p77 = scmp.ne.s32.totalorder %s72, %s74
    %p78 = scmp.eq.s32.totalorder %s17, 0
    %p79 = por %p77, %p78
    %p80 = scmp.ne.s32.totalorder %s72, %s74
    %p81 = scmp.eq.s32.totalorder %s22, 1
    %p82 = por %p80, %p81
    %p83 = scmp.ne.s32.totalorder %s74, %s75
    %p84 = scmp.eq.s32.totalorder %s22, 0
    %p85 = por %p83, %p84
    %p86 = scmp.ne.s32.totalorder %s74, %s75
    %p87 = scmp.eq.s32.totalorder %s23, 1
    %p88 = por %p86, %p87
    %p90 = scmp.ne.s32.totalorder %s75, %s89
    %p91 = scmp.eq.s32.totalorder %s23, 0
    %p92 = por %p90, %p91
    %s94 = sadd.s32 %s93, 1
    %p97 = scmp.eq.s32.totalorder %s17, 1
    %p98 = scmp.ne.s32.totalorder %s93, %s95
    %p99 = scmp.eq.s32.totalorder %s17, 0
    %p100 = por %p98, %p99
    %p101 = scmp.ne.s32.totalorder %s93, %s95
    %p102 = scmp.eq.s32.totalorder %s22, 1
    %p103 = por %p101, %p102
    %p104 = scmp.ne.s32.totalorder %s95, %s96
    %p105 = scmp.eq.s32.totalorder %s22, 0
    %p106 = por %p104, %p105
    %p107 = scmp.ne.s32.totalorder %s95, %s96
    %p108 = scmp.eq.s32.totalorder %s23, 1
    %p109 = por %p107, %p108
    %p111 = scmp.ne.s32.totalorder %s96, %s110
    %p112 = scmp.eq.s32.totalorder %s23, 0
    %p113 = por %p111, %p112
    %s115 = sadd.s32 %s114, 1
    %p118 = scmp.eq.s32.totalorder %s17, 1
    %p119 = scmp.ne.s32.totalorder %s114, %s116
    %p120 = scmp.eq.s32.totalorder %s17, 0
    %p121 = por %p119, %p120
    %p122 = scmp.ne.s32.totalorder %s114, %s116
    %p123 = scmp.eq.s32.totalorder %s22, 1
    %p124 = por %p122, %p123
    %p125 = scmp.ne.s32.totalorder %s116, %s117
    %p126 = scmp.eq.s32.totalorder %s22, 0
    %p127 = por %p125, %p126
    %p128 = scmp.ne.s32.totalorder %s116, %s117
    %p129 = scmp.eq.s32.totalorder %s23, 1
    %p130 = por %p128, %p129
    %p132 = scmp.ne.s32.totalorder %s117, %s131
    %p133 = scmp.eq.s32.totalorder %s23, 0
    %p134 = por %p132, %p133
    %s136 = sadd.s32 %s135, 1
    %p139 = scmp.eq.s32.totalorder %s17, 1
    %p140 = scmp.ne.s32.totalorder %s135, %s137
    %p141 = scmp.eq.s32.totalorder %s17, 0
    %p142 = por %p140, %p141
    %p143 = scmp.ne.s32.totalorder %s135, %s137
    %p144 = scmp.eq.s32.totalorder %s22, 1
    %p145 = por %p143, %p144
    %p146 = scmp.ne.s32.totalorder %s137, %s138
    %p147 = scmp.eq.s32.totalorder %s22, 0
    %p148 = por %p146, %p147
    %p149 = scmp.ne.s32.totalorder %s137, %s138
    %p150 = scmp.eq.s32.totalorder %s23, 1
    %p151 = por %p149, %p150
    %p153 = scmp.ne.s32.totalorder %s138, %s152
    %p154 = scmp.eq.s32.totalorder %s23, 0
    %p155 = por %p153, %p154
    %s157 = sadd.s32 %s156, 1
    %p160 = scmp.eq.s32.totalorder %s17, 1
    %p161 = scmp.ne.s32.totalorder %s156, %s158
    %p162 = scmp.eq.s32.totalorder %s17, 0
    %p163 = por %p161, %p162
    %p164 = scmp.ne.s32.totalorder %s156, %s158
    %p165 = scmp.eq.s32.totalorder %s22, 1
    %p166 = por %p164, %p165
    %p167 = scmp.ne.s32.totalorder %s158, %s159
    %p168 = scmp.eq.s32.totalorder %s22, 0
    %p169 = por %p167, %p168
    %p170 = scmp.ne.s32.totalorder %s158, %s159
    %p171 = scmp.eq.s32.totalorder %s23, 1
    %p172 = por %p170, %p171
    %p174 = scmp.ne.s32.totalorder %s159, %s173
    %p175 = scmp.eq.s32.totalorder %s23, 0
    %p176 = por %p174, %p175
    %s178 = sadd.s32 %s177, 1
    %p181 = scmp.eq.s32.totalorder %s17, 1
    %p182 = scmp.ne.s32.totalorder %s177, %s179
    %p183 = scmp.eq.s32.totalorder %s17, 0
    %p184 = por %p182, %p183
    %p185 = scmp.ne.s32.totalorder %s177, %s179
    %p186 = scmp.eq.s32.totalorder %s22, 1
    %p187 = por %p185, %p186
    %p188 = scmp.ne.s32.totalorder %s179, %s180
    %p189 = scmp.eq.s32.totalorder %s22, 0
    %p190 = por %p188, %p189
    %p191 = scmp.ne.s32.totalorder %s179, %s180
    %p192 = scmp.eq.s32.totalorder %s23, 1
    %p193 = por %p191, %p192
    %p195 = scmp.ne.s32.totalorder %s180, %s194
    %p196 = scmp.eq.s32.totalorder %s23, 0
    %p197 = por %p195, %p196
    %s199 = sadd.s32 %s198, 1
    %p202 = scmp.eq.s32.totalorder %s17, 1
    %p203 = scmp.ne.s32.totalorder %s198, %s200
    %p204 = scmp.eq.s32.totalorder %s17, 0
    %p205 = por %p203, %p204
    %p206 = scmp.ne.s32.totalorder %s198, %s200
    %p207 = scmp.eq.s32.totalorder %s22, 1
    %p208 = por %p206, %p207
    %p209 = scmp.ne.s32.totalorder %s200, %s201
    %p210 = scmp.eq.s32.totalorder %s22, 0
    %p211 = por %p209, %p210
    %p212 = scmp.ne.s32.totalorder %s200, %s201
    %p213 = scmp.eq.s32.totalorder %s23, 1
    %p214 = por %p212, %p213
    %p216 = scmp.ne.s32.totalorder %s201, %s215
    %p217 = scmp.eq.s32.totalorder %s23, 0
    %p218 = por %p216, %p217
    %s220 = sadd.s32 %s219, 1
    %p223 = scmp.eq.s32.totalorder %s17, 1
    %p224 = scmp.ne.s32.totalorder %s219, %s221
    %p225 = scmp.eq.s32.totalorder %s17, 0
    %p226 = por %p224, %p225
    %p227 = scmp.ne.s32.totalorder %s219, %s221
    %p228 = scmp.eq.s32.totalorder %s22, 1
    %p229 = por %p227, %p228
    %p230 = scmp.ne.s32.totalorder %s221, %s222
    %p231 = scmp.eq.s32.totalorder %s22, 0
    %p232 = por %p230, %p231
    %p233 = scmp.ne.s32.totalorder %s221, %s222
    %p234 = scmp.eq.s32.totalorder %s23, 1
    %p235 = por %p233, %p234
    %p237 = scmp.ne.s32.totalorder %s222, %s236
    %p238 = scmp.eq.s32.totalorder %s23, 0
    %p239 = por %p237, %p238
    %s241 = sadd.s32 %s240, 1
    %p244 = scmp.eq.s32.totalorder %s17, 1
    %p245 = scmp.ne.s32.totalorder %s240, %s242
    %p246 = scmp.eq.s32.totalorder %s17, 0
    %p247 = por %p245, %p246
    %p248 = scmp.ne.s32.totalorder %s240, %s242
    %p249 = scmp.eq.s32.totalorder %s22, 1
    %p250 = por %p248, %p249
    %p251 = scmp.ne.s32.totalorder %s242, %s243
    %p252 = scmp.eq.s32.totalorder %s22, 0
    %p253 = por %p251, %p252
    %p254 = scmp.ne.s32.totalorder %s242, %s243
    %p255 = scmp.eq.s32.totalorder %s23, 1
    %p256 = por %p254, %p255
    %p258 = scmp.ne.s32.totalorder %s243, %s257
    %p259 = scmp.eq.s32.totalorder %s23, 0
    %p260 = por %p258, %p259
    %s261 = ssub.s32 %s17, %s24
    %p262 = scmp.eq.s32.totalorder %s261, 0
    %s264 = sadd.s32 %s263, 1
    %s265 = scalar_select %p262, %s263, %s264
    %p268 = pneg %p262
    %p269 = scmp.eq.s32.totalorder %s17, 1
    %p270 = por %p268, %p269
    %p271 = scmp.ne.s32.totalorder %s263, %s266
    %p272 = scmp.eq.s32.totalorder %s17, 0
    %p273 = por %p271, %p272
    %p274 = scmp.ne.s32.totalorder %s263, %s266
    %p275 = scmp.eq.s32.totalorder %s22, 1
    %p276 = por %p274, %p275
    %p277 = scmp.ne.s32.totalorder %s266, %s267
    %p278 = scmp.eq.s32.totalorder %s22, 0
    %p279 = por %p277, %p278
    %p280 = scmp.ne.s32.totalorder %s266, %s267
    %p281 = scmp.eq.s32.totalorder %s23, 1
    %p282 = por %p280, %p281
    %p284 = scmp.ne.s32.totalorder %s267, %s283
    %p285 = scmp.eq.s32.totalorder %s23, 0
    %p286 = por %p284, %p285
    %p287 = scmp.le.s32.totalorder 1, %s17
    %p288 = scmp.lt.s32.totalorder %s17, 3
    %p289 = pnand %p287, %p288
    %p290 = pneg %p289
    // Predicated region
    $region9: #{_lambda_.13} parent=5 // pred_check
      _
    $region10: #{_lambda_.13} parent=5 // pred_check_branch
      %292 = sbr.rel (%p289) target = $region12
    $region11: #{_lambda_.13} parent=5 // pred_region
      %s293 = ssub.s32 %s17, 1
      // Predicated region
      $region13: #{_lambda_.13} parent=11 // pred_check
        %p294 = pneg %p64
      $region14: #{_lambda_.13} parent=11 // pred_check_branch
        %296 = sbr.rel (%p294) target = $region16
      $region15: #{_lambda_.13} parent=11 // pred_region
        _
      $region16: #{_lambda_.13} parent=11 // pred_fallthru
        _
      // Predicated region
      $region17: #{_lambda_.13} parent=11 // pred_check
        %p297 = pneg %p85
      $region18: #{_lambda_.13} parent=11 // pred_check_branch
        %299 = sbr.rel (%p297) target = $region20
      $region19: #{_lambda_.13} parent=11 // pred_region
        _
      $region20: #{_lambda_.13} parent=11 // pred_fallthru
        _
      // Predicated region
      $region21: #{_lambda_.13} parent=11 // pred_check
        %p300 = pneg %p106
      $region22: #{_lambda_.13} parent=11 // pred_check_branch
        %302 = sbr.rel (%p300) target = $region24
      $region23: #{_lambda_.13} parent=11 // pred_region
        _
      $region24: #{_lambda_.13} parent=11 // pred_fallthru
        _
      // Predicated region
      $region25: #{_lambda_.13} parent=11 // pred_check
        %p303 = pneg %p127
      $region26: #{_lambda_.13} parent=11 // pred_check_branch
        %305 = sbr.rel (%p303) target = $region28
      $region27: #{_lambda_.13} parent=11 // pred_region
        _
      $region28: #{_lambda_.13} parent=11 // pred_fallthru
        _
      // Predicated region
      $region29: #{_lambda_.13} parent=11 // pred_check
        %p306 = pneg %p148
      $region30: #{_lambda_.13} parent=11 // pred_check_branch
        %308 = sbr.rel (%p306) target = $region32
      $region31: #{_lambda_.13} parent=11 // pred_region
        _
      $region32: #{_lambda_.13} parent=11 // pred_fallthru
        _
      // Predicated region
      $region33: #{_lambda_.13} parent=11 // pred_check
        %p309 = pneg %p169
      $region34: #{_lambda_.13} parent=11 // pred_check_branch
        %311 = sbr.rel (%p309) target = $region36
      $region35: #{_lambda_.13} parent=11 // pred_region
        _
      $region36: #{_lambda_.13} parent=11 // pred_fallthru
        _
      // Predicated region
      $region37: #{_lambda_.13} parent=11 // pred_check
        %p312 = pneg %p190
      $region38: #{_lambda_.13} parent=11 // pred_check_branch
        %314 = sbr.rel (%p312) target = $region40
      $region39: #{_lambda_.13} parent=11 // pred_region
        _
      $region40: #{_lambda_.13} parent=11 // pred_fallthru
        _
      // Predicated region
      $region41: #{_lambda_.13} parent=11 // pred_check
        %p315 = pneg %p211
      $region42: #{_lambda_.13} parent=11 // pred_check_branch
        %317 = sbr.rel (%p315) target = $region44
      $region43: #{_lambda_.13} parent=11 // pred_region
        _
      $region44: #{_lambda_.13} parent=11 // pred_fallthru
        _
      // Predicated region
      $region45: #{_lambda_.13} parent=11 // pred_check
        %p318 = pneg %p232
      $region46: #{_lambda_.13} parent=11 // pred_check_branch
        %320 = sbr.rel (%p318) target = $region48
      $region47: #{_lambda_.13} parent=11 // pred_region
        _
      $region48: #{_lambda_.13} parent=11 // pred_fallthru
        _
      // Predicated region
      $region49: #{_lambda_.13} parent=11 // pred_check
        %p321 = pneg %p253
      $region50: #{_lambda_.13} parent=11 // pred_check_branch
        %323 = sbr.rel (%p321) target = $region52
      $region51: #{_lambda_.13} parent=11 // pred_region
        _
      $region52: #{_lambda_.13} parent=11 // pred_fallthru
        _
    $region12: #{_lambda_.13} parent=5 // pred_fallthru
      _
    %p324 = scmp.lt.s32.totalorder %s17, 2
    // Predicated region
    $region53: #{_lambda_.13} parent=5 // pred_check
      %p325 = pneg %p324
    $region54: #{_lambda_.13} parent=5 // pred_check_branch
      %327 = sbr.rel (%p325) target = $region56
    $region55: #{_lambda_.13} parent=5 // pred_region
      // Predicated region
      $region57: #{_lambda_.13} parent=55 // pred_check
        %p328 = pneg %p37
      $region58: #{_lambda_.13} parent=55 // pred_check_branch
        %330 = sbr.rel (%p328) target = $region60
      $region59: #{_lambda_.13} parent=55 // pred_region
        %p331 = scmp.lt.s32.totalorder %s17, 1
        %s332 = scalar_select %p331, %s17, 1
        %s333 = smul.addr %s332, 2
        %s334 = smul.addr %s333, 8
        %s335 = scalar_lea.vmem %s0, %s334
      $region60: #{_lambda_.13} parent=55 // pred_fallthru
        _
    $region56: #{_lambda_.13} parent=5 // pred_fallthru
      _
    %p336 = scmp.le.s32.totalorder 1, %s17
    %p337 = scmp.lt.s32.totalorder %s17, 3
    %p338 = pnand %p336, %p337
    %p339 = pneg %p338
    // Predicated region
    $region61: #{_lambda_.13} parent=5 // pred_check
      _
    $region62: #{_lambda_.13} parent=5 // pred_check_branch
      %341 = sbr.rel (%p338) target = $region64
    $region63: #{_lambda_.13} parent=5 // pred_region
      %s342 = ssub.s32 %s17, 1
      %p343 = scmp.lt.s32.totalorder %s22, 1
      %s344 = scalar_select %p343, %s22, 1
      %s345 = smul.addr %s344, 2
      %s346 = smul.addr %s345, 8
      %s347 = scalar_lea.vmem %s0, %s346
      %p348 = pneg %p43
      %p349 = pneg %p40
      %p350 = pneg %p64
      %p351 = pneg %p61
      %p352 = pneg %p85
      %p353 = pneg %p82
      %p354 = pneg %p106
      %p355 = pneg %p103
      %p356 = pneg %p127
      %p357 = pneg %p124
      %p358 = pneg %p148
      %p359 = pneg %p145
      %p360 = pneg %p169
      %p361 = pneg %p166
      %p362 = pneg %p190
      %p363 = pneg %p187
      %p364 = pneg %p211
      %p365 = pneg %p208
      %p366 = pneg %p232
      %p367 = pneg %p229
      %p368 = pneg %p253
      %p369 = pneg %p250
      %p370 = pneg %p279
      %p371 = pneg %p276
      %p372 = scmp.lt.s32.totalorder %s22, 1
      %s373 = scalar_select %p372, %s22, 1
      %s374 = smul.addr %s373, 2
      %s375 = smul.addr %s374, 8
      %s376 = scalar_lea.vmem %s11, %s375
      %p377 = scmp.lt.s32.totalorder %s22, 1
      %s378 = scalar_select %p377, %s22, 1
      %s379 = smul.addr %s378, 2
      %s380 = smul.addr %s379, 8
      %s381 = scalar_lea.vmem %s0, %s380
      %p382 = scmp.lt.s32.totalorder %s22, 1
      %s383 = scalar_select %p382, %s22, 1
      %s384 = smul.addr %s383, 2
      %s385 = smul.addr %s384, 8
      %s386 = scalar_lea.vmem %s11, %s385
      %v387 = vld [vmem:[%s381] sm:$0xff]
      %v388 = vld [vmem:[%s381 + $0x8] sm:$0xff]
      %v389 = vld [vmem:[%s1] sm:$0x7f]
      %v390 = vlaneseq
      %v391 = vshrl.u32 %v390, 7
      %v392 = vsub.s32 0, %v391
      %v393 = vrot.slane %v389, %v392
      %v394 = vmul.f32 %v393, 0.0
      %v395 = vmul.f32 %v387, %v393
      %v396 = vmul.f32 %v388, %v393
      %v397 = vadd.f32 %v394, 0.0
      %v398 = vadd.f32 %v395, 0.0
      %v399 = vadd.f32 %v396, 0.0
      %v400 = vlaneseq
      %v401 = vshrl.u32 %v400, 7
      %v402 = vsub.s32 1, %v401
      %v403 = vrot.slane %v389, %v402
      %v404 = vmul.f32 %v403, 0.0
      %v405 = vmul.f32 %v387, %v403
      %v406 = vmul.f32 %v388, %v403
      %vm410 = vcmask 1046528
      %v411 = vrot.slane %v404, 1
      %v412 = vrot.slane %v405, 1
      %v413 = vsel %vm410, %v411, %v412
      %v414 = vrot.slane %v406, 1
      %v415 = vsel %vm410, %v412, %v414
      %v419 = vadd.f32 %v397, %v413
      %v420 = vadd.f32 %v398, %v415
      %v421 = vadd.f32 %v399, %v414
      %v422 = vlaneseq
      %v423 = vshrl.u32 %v422, 7
      %v424 = vsub.s32 2, %v423
      %v425 = vrot.slane %v389, %v424
      %v426 = vmul.f32 %v425, 0.0
      %v427 = vmul.f32 %v387, %v425
      %v428 = vmul.f32 %v388, %v425
      %vm432 = vcmask 1045504
      %v433 = vrot.slane %v426, 2
      %v434 = vrot.slane %v427, 2
      %v435 = vsel %vm432, %v433, %v434
      %v436 = vrot.slane %v428, 2
      %v437 = vsel %vm432, %v434, %v436
      %v441 = vadd.f32 %v419, %v435
      %v442 = vadd.f32 %v420, %v437
      %v443 = vadd.f32 %v421, %v436
      %v444 = vlaneseq
      %v445 = vshrl.u32 %v444, 7
      %v446 = vsub.s32 3, %v445
      %v447 = vrot.slane %v389, %v446
      %v448 = vmul.f32 %v387, %v447
      %v449 = vmul.f32 %v388, %v447
      %vm452 = vcmask 1044480
      %v453 = vrot.slane %v448, 3
      %v454 = vrot.slane %v449, 3
      %v455 = vsel %vm452, %v453, %v454
      %v459 = vadd.f32 %v441, %v453
      %v460 = vadd.f32 %v442, %v455
      %v461 = vadd.f32 %v443, %v454
      %v462 = vlaneseq
      %v463 = vshrl.u32 %v462, 7
      %v464 = vsub.s32 4, %v463
      %v465 = vrot.slane %v389, %v464
      %v466 = vmul.f32 %v387, %v465
      %v467 = vmul.f32 %v388, %v465
      %v468 = vmul.f32 %v465, 0.0
      %vm472 = vcmask 1043456
      %v473 = vrot.slane %v466, 4
      %v474 = vrot.slane %v467, 4
      %v475 = vsel %vm472, %v473, %v474
      %v476 = vrot.slane %v468, 4
      %v477 = vsel %vm472, %v474, %v476
      %v481 = vadd.f32 %v459, %v473
      %v482 = vadd.f32 %v460, %v475
      %v483 = vadd.f32 %v461, %v477
      %v484 = vlaneseq
      %v485 = vshrl.u32 %v484, 7
      %v486 = vsub.s32 5, %v485
      %v487 = vrot.slane %v389, %v486
      %v488 = vmul.f32 %v387, %v487
      %v489 = vmul.f32 %v388, %v487
      %v490 = vmul.f32 %v487, 0.0
      %vm494 = vcmask 1042432
      %v495 = vrot.slane %v488, 5
      %v496 = vrot.slane %v489, 5
      %v497 = vsel %vm494, %v495, %v496
      %v498 = vrot.slane %v490, 5
      %v499 = vsel %vm494, %v496, %v498
      %v503 = vadd.f32 %v481, %v495
      %v504 = vadd.f32 %v482, %v497
      %v505 = vadd.f32 %v483, %v499
      %v506 = vlaneseq
      %v507 = vshrl.u32 %v506, 7
      %v508 = vsub.s32 6, %v507
      %v509 = vrot.slane %v389, %v508
      %v510 = vmul.f32 %v387, %v509
      %v511 = vmul.f32 %v388, %v509
      %v512 = vmul.f32 %v509, 0.0
      %vm516 = vcmask 1041408
      %v517 = vrot.slane %v510, 6
      %v518 = vrot.slane %v511, 6
      %v519 = vsel %vm516, %v517, %v518
      %v520 = vrot.slane %v512, 6
      %v521 = vsel %vm516, %v518, %v520
      %v525 = vadd.f32 %v503, %v517
      %v526 = vadd.f32 %v504, %v519
      %v527 = vadd.f32 %v505, %v521
      %v528 = vld [vmem:[%s2] sm:$0x1]
      %v530 = vlaneseq
      %v531 = vshrl.u32 %v530, 7
      %v532 = vsub.s32 0, %v531
      %v533 = vrot.slane %v528, %v532
      %v535 = vadd.f32 %v525, %v533
      %v536 = vadd.f32 %v526, %v533
      %v537 = vadd.f32 %v527, %v533
      %vm538 = vcmask 785413
      %v539 = vsel %vm538, %v535, 0.0
      %540 = vadd.xlane.f32.xlu0 %v539
      %v541 = vpop.xlane.xlu0 %540
      %vm542 = vcmask 785408
      %v543 = vsel %vm542, %v536, 0.0
      %544 = vadd.xlane.f32.xlu0 %v543
      %v545 = vpop.xlane.xlu0 %544
      %vm546 = vcmask 782336
      %v547 = vsel %vm546, %v537, 0.0
      %548 = vadd.xlane.f32.xlu0 %v547
      %v549 = vpop.xlane.xlu0 %548
      %v550 = vrcp.pop 96.0
      %v551 = vmul.f32 %v541, %v550
      %v552 = vmul.f32 %v545, %v550
      %v553 = vmul.f32 %v549, %v550
      %v554 = vsub.f32 %v535, %v551
      %v555 = vsub.f32 %v536, %v552
      %v556 = vsub.f32 %v537, %v553
      %v557 = vmul.f32 %v554, %v554
      %v558 = vmul.f32 %v555, %v555
      %v559 = vmul.f32 %v556, %v556
      %v560 = vsel %vm538, %v557, 0.0
      %561 = vadd.xlane.f32.xlu0 %v560
      %v562 = vpop.xlane.xlu0 %561
      %v563 = vsel %vm542, %v558, 0.0
      %564 = vadd.xlane.f32.xlu0 %v563
      %v565 = vpop.xlane.xlu0 %564
      %v566 = vsel %vm546, %v559, 0.0
      %567 = vadd.xlane.f32.xlu0 %v566
      %v568 = vpop.xlane.xlu0 %567
      %v569 = vmul.f32 %v562, %v550
      %v570 = vmul.f32 %v565, %v550
      %v571 = vmul.f32 %v568, %v550
      %v572 = vadd.f32 %v569, 1e-06
      %v573 = vadd.f32 %v570, 1e-06
      %v574 = vadd.f32 %v571, 1e-06
      %v575 = vrsqrt.pop %v572
      %v576 = vrsqrt.pop %v573
      %v577 = vrsqrt.pop %v574
      %v578 = vmul.f32 %v554, %v575
      %v579 = vmul.f32 %v555, %v576
      %v580 = vmul.f32 %v556, %v577
      %v581 = vld [vmem:[%s3] sm:$0x1]
      %v583 = vlaneseq
      %v584 = vshrl.u32 %v583, 7
      %v585 = vsub.s32 0, %v584
      %v586 = vrot.slane %v581, %v585
      %v588 = vmul.f32 %v578, %v586
      %v589 = vmul.f32 %v579, %v586
      %v590 = vmul.f32 %v580, %v586
      %v591 = vld [vmem:[%s4] sm:$0x1]
      %v593 = vlaneseq
      %v594 = vshrl.u32 %v593, 7
      %v595 = vsub.s32 0, %v594
      %v596 = vrot.slane %v591, %v595
      %v598 = vadd.f32 %v588, %v596
      %v599 = vadd.f32 %v589, %v596
      %v600 = vadd.f32 %v590, %v596
      %v601 = vld [vmem:[%s5] sm:$0xff]
      %v602 = vld [vmem:[%s5 + $0x8] sm:$0xff]
      %v603 = vld [vmem:[%s5 + $0x10] sm:$0xff]
      %v604 = vld [vmem:[%s5 + $0x18] sm:$0xff]
      %v605 = vld [vmem:[%s5 + $0x20] sm:$0xff]
      %v606 = vld [vmem:[%s5 + $0x28] sm:$0xff]
      %v607 = vld [vmem:[%s5 + $0x30] sm:$0xff]
      %v608 = vld [vmem:[%s5 + $0x38] sm:$0xff]
      %v609 = vld [vmem:[%s5 + $0x40] sm:$0xff]
      %v610 = vld [vmem:[%s5 + $0x48] sm:$0xff]
      %v611 = vld [vmem:[%s5 + $0x50] sm:$0xff]
      %v612 = vld [vmem:[%s5 + $0x58] sm:$0xff]
      %v613 = vld [vmem:[%s5 + $0x60] sm:$0xff]
      %v614 = vld [vmem:[%s5 + $0x68] sm:$0xff]
      %v615 = vld [vmem:[%s5 + $0x70] sm:$0xff]
      %v616 = vld [vmem:[%s5 + $0x78] sm:$0xff]
      %v617 = vld [vmem:[%s5 + $0x80] sm:$0xff]
      %v618 = vld [vmem:[%s5 + $0x88] sm:$0xff]
      %v619 = vld [vmem:[%s5 + $0x90] sm:$0xff]
      %v620 = vld [vmem:[%s5 + $0x98] sm:$0xff]
      %v621 = vld [vmem:[%s5 + $0xa0] sm:$0xff]
      %v622 = vld [vmem:[%s5 + $0xa8] sm:$0xff]
      %v623 = vld [vmem:[%s5 + $0xb0] sm:$0xff]
      %v624 = vld [vmem:[%s5 + $0xb8] sm:$0xff]
      %v625 = vld [vmem:[%s5 + $0xc0] sm:$0xff]
      %v626 = vld [vmem:[%s5 + $0xc8] sm:$0xff]
      %v627 = vld [vmem:[%s5 + $0xd0] sm:$0xff]
      %v628 = vld [vmem:[%s5 + $0xd8] sm:$0xff]
      %v629 = vld [vmem:[%s5 + $0xe0] sm:$0xff]
      %v630 = vld [vmem:[%s5 + $0xe8] sm:$0xff]
      %v631 = vld [vmem:[%s5 + $0xf0] sm:$0xff]
      %v632 = vld [vmem:[%s5 + $0xf8] sm:$0xff]
      %v633 = vld [vmem:[%s5 + $0x100] sm:$0xff]
      %v634 = vld [vmem:[%s5 + $0x108] sm:$0xff]
      %v635 = vld [vmem:[%s5 + $0x110] sm:$0xff]
      %v636 = vld [vmem:[%s5 + $0x118] sm:$0xff]
      %v637 = vld [vmem:[%s6] sm:$0x7]
      %v639 = vlaneseq
      %v640 = vshrl.u32 %v639, 7
      %v641 = vsub.s32 0, %v640
      %v642 = vrot.slane %v637, %v641
      %v643 = vlaneseq
      %v644 = vshrl.u32 %v643, 7
      %v645 = vsub.s32 1, %v644
      %v646 = vrot.slane %v637, %v645
      %v647 = vlaneseq
      %v648 = vshrl.u32 %v647, 7
      %v649 = vsub.s32 2, %v648
      %v650 = vrot.slane %v637, %v649
      %v657 = vrot.slane %v598, 5
      %v658 = vrot.slane %v599, 5
      %v659 = vsel %vm494, %v657, %v658
      %v660 = vrot.slane %v600, 5
      %v661 = vsel %vm494, %v658, %v660
      %v662 = vsel %vm542, %v659, 0
      %v664 = vsel %vm542, %v661, 0
      %666 = vmatprep.subr.mxu0 0.0
      %667 = vmatpush1.msra.mxu0 0.0
      %668 = vmatprep.subr.mxu0 0.0
      %669 = vmatpush1.msra.mxu0 0.0
      %670 = vmatprep.subr.mxu0 0.0
      %671 = vmatpush1.msra.mxu0 0.0
      %672 = vmatprep.subr.mxu0 0.0
      %673 = vmatpush1.msra.mxu0 0.0
      %674 = vmatprep.subr.mxu0 %v635
      %675 = vmatpush1.msra.mxu0 %v634
      %676 = vmatprep.subr.mxu0 %v632
      %677 = vmatpush1.msra.mxu0 %v631
      %678 = vmatprep.subr.mxu0 %v629
      %679 = vmatpush1.msra.mxu0 %v628
      %680 = vmatprep.subr.mxu0 %v626
      %681 = vmatpush1.msra.mxu0 %v625
      %682 = vmatprep.subr.mxu0 %v623
      %683 = vmatpush1.msra.mxu0 %v622
      %684 = vmatprep.subr.mxu0 %v620
      %685 = vmatpush1.msra.mxu0 %v619
      %686 = vmatprep.subr.mxu0 %v617
      %687 = vmatpush1.msra.mxu0 %v616
      %688 = vmatprep.subr.mxu0 %v614
      %689 = vmatpush1.msra.mxu0 %v613
      %690 = vmatprep.subr.mxu0 %v611
      %691 = vmatpush1.msra.mxu0 %v610
      %692 = vmatprep.subr.mxu0 %v608
      %693 = vmatpush1.msra.mxu0 %v607
      %694 = vmatprep.subr.mxu0 %v605
      %695 = vmatpush1.msra.mxu0 %v604
      %696 = vmatprep.subr.mxu0 %v602
      %697 = vmatpush1.msra.mxu0 %v601
      %698 = vmatprep.subr.mxu0 0.0
      %699 = vmatpush2.msra.mxu0 0.0
      %700 = vmatprep.subr.mxu0 0.0
      %701 = vmatpush2.msra.mxu0 0.0
      %702 = vmatprep.subr.mxu0 0.0
      %703 = vmatpush2.msra.mxu0 0.0
      %704 = vmatprep.subr.mxu0 0.0
      %705 = vmatpush2.msra.mxu0 0.0
      %706 = vmatprep.subr.mxu0 0.0
      %707 = vmatpush2.msra.mxu0 0.0
      %708 = vmatprep.subr.mxu0 0.0
      %709 = vmatpush2.msra.mxu0 0.0
      %710 = vmatprep.subr.mxu0 0.0
      %711 = vmatpush2.msra.mxu0 0.0
      %712 = vmatprep.subr.mxu0 0.0
      %713 = vmatpush2.msra.mxu0 0.0
      %714 = vmatprep.subr.mxu0 0.0
      %715 = vmatpush2.msra.mxu0 0.0
      %716 = vmatprep.subr.mxu0 0.0
      %717 = vmatpush2.msra.mxu0 0.0
      %718 = vmatprep.subr.mxu0 0.0
      %719 = vmatpush2.msra.mxu0 0.0
      %720 = vmatprep.subr.mxu0 0.0
      %721 = vmatpush2.msra.mxu0 0.0
      %722 = vmatprep.subr.mxu0 0.0
      %723 = vmatpush2.msra.mxu0 0.0
      %724 = vmatprep.subr.mxu0 0.0
      %725 = vmatpush2.msra.mxu0 0.0
      %726 = vmatprep.subr.mxu0 0.0
      %727 = vmatpush2.msra.mxu0 0.0
      %728 = vmatprep.subr.mxu0 0.0
      %729 = vmatpush2.msra.mxu0 0.0
      %730 = vmatprep.mubr.f32.mxu0 0.0
      %731 = vmatmul.mubr.f32.gmra.mxu0 %v662
      %v732 = vpop.f32.mrf.mxu0
      %v733 = vadd.f32 %v642, %v732
      %v734 = vpop.f32.mrf.mxu0
      %v735 = vadd.f32 %v646, %v734
      %736 = vmatprep.mubr.f32.mxu0 0.0
      %737 = vmatmul.mubr.f32.gmra.mxu0 %v664
      %v738 = vpop.f32.mrf.mxu0
      %v739 = vadd.f32 %v642, %v738
      %v740 = vpop.f32.mrf.mxu0
      %v741 = vadd.f32 %v646, %v740
      %742 = vdwg.mxu0
      %743 = vmatprep.subr.mxu0 0.0
      %744 = vmatpush1.msra.mxu0 0.0
      %745 = vmatprep.subr.mxu0 0.0
      %746 = vmatpush1.msra.mxu0 0.0
      %747 = vmatprep.subr.mxu0 0.0
      %748 = vmatpush1.msra.mxu0 0.0
      %749 = vmatprep.subr.mxu0 0.0
      %750 = vmatpush1.msra.mxu0 0.0
      %751 = vmatprep.subr.mxu0 0.0
      %752 = vmatpush1.msra.mxu0 %v636
      %753 = vmatprep.subr.mxu0 0.0
      %754 = vmatpush1.msra.mxu0 %v633
      %755 = vmatprep.subr.mxu0 0.0
      %756 = vmatpush1.msra.mxu0 %v630
      %757 = vmatprep.subr.mxu0 0.0
      %758 = vmatpush1.msra.mxu0 %v627
      %759 = vmatprep.subr.mxu0 0.0
      %760 = vmatpush1.msra.mxu0 %v624
      %761 = vmatprep.subr.mxu0 0.0
      %762 = vmatpush1.msra.mxu0 %v621
      %763 = vmatprep.subr.mxu0 0.0
      %764 = vmatpush1.msra.mxu0 %v618
      %765 = vmatprep.subr.mxu0 0.0
      %766 = vmatpush1.msra.mxu0 %v615
      %767 = vmatprep.subr.mxu0 0.0
      %768 = vmatpush1.msra.mxu0 %v612
      %769 = vmatprep.subr.mxu0 0.0
      %770 = vmatpush1.msra.mxu0 %v609
      %771 = vmatprep.subr.mxu0 0.0
      %772 = vmatpush1.msra.mxu0 %v606
      %773 = vmatprep.subr.mxu0 0.0
      %774 = vmatpush1.msra.mxu0 %v603
      %775 = vmatprep.subr.mxu0 0.0
      %776 = vmatpush2.msra.mxu0 0.0
      %777 = vmatprep.subr.mxu0 0.0
      %778 = vmatpush2.msra.mxu0 0.0
      %779 = vmatprep.subr.mxu0 0.0
      %780 = vmatpush2.msra.mxu0 0.0
      %781 = vmatprep.subr.mxu0 0.0
      %782 = vmatpush2.msra.mxu0 0.0
      %783 = vmatprep.subr.mxu0 0.0
      %784 = vmatpush2.msra.mxu0 0.0
      %785 = vmatprep.subr.mxu0 0.0
      %786 = vmatpush2.msra.mxu0 0.0
      %787 = vmatprep.subr.mxu0 0.0
      %788 = vmatpush2.msra.mxu0 0.0
      %789 = vmatprep.subr.mxu0 0.0
      %790 = vmatpush2.msra.mxu0 0.0
      %791 = vmatprep.subr.mxu0 0.0
      %792 = vmatpush2.msra.mxu0 0.0
      %793 = vmatprep.subr.mxu0 0.0
      %794 = vmatpush2.msra.mxu0 0.0
      %795 = vmatprep.subr.mxu0 0.0
      %796 = vmatpush2.msra.mxu0 0.0
      %797 = vmatprep.subr.mxu0 0.0
      %798 = vmatpush2.msra.mxu0 0.0
      %799 = vmatprep.subr.mxu0 0.0
      %800 = vmatpush2.msra.mxu0 0.0
      %801 = vmatprep.subr.mxu0 0.0
      %802 = vmatpush2.msra.mxu0 0.0
      %803 = vmatprep.subr.mxu0 0.0
      %804 = vmatpush2.msra.mxu0 0.0
      %805 = vmatprep.subr.mxu0 0.0
      %806 = vmatpush2.msra.mxu0 0.0
      %807 = vmatprep.mubr.f32.mxu0 0.0
      %808 = vmatmul.mubr.f32.gmra.mxu0 %v662
      %v809 = vpop.f32.mrf.mxu0
      %v810 = vadd.f32 %v650, %v809
      %v811 = vpop.f32.mrf.mxu0
      %812 = vmatprep.mubr.f32.mxu0 0.0
      %813 = vmatmul.mubr.f32.gmra.mxu0 %v664
      %v814 = vpop.f32.mrf.mxu0
      %v815 = vadd.f32 %v650, %v814
      %v816 = vpop.f32.mrf.mxu0
      %817 = vdwg.mxu0
      %v818 = vmul.f32 %v733, 0.70710677
      %v819 = vmul.f32 %v735, 0.70710677
      %v820 = vmul.f32 %v810, 0.70710677
      %v821 = vmul.f32 %v739, 0.70710677
      %v822 = vmul.f32 %v741, 0.70710677
      %v823 = vmul.f32 %v815, 0.70710677
      %v824 = vand.u32 2147483647, %v818
      %v825 = vand.u32 2147483647, %v819
      %v826 = vand.u32 2147483647, %v820
      %v827 = vand.u32 2147483647, %v821
      %v828 = vand.u32 2147483647, %v822
      %v829 = vand.u32 2147483647, %v823
      %vm830 = vcmp.ge.f32.partialorder %v818, 0.0
      %vm831 = vcmp.ge.f32.partialorder %v819, 0.0
      %vm832 = vcmp.ge.f32.partialorder %v820, 0.0
      %vm833 = vcmp.ge.f32.partialorder %v821, 0.0
      %vm834 = vcmp.ge.f32.partialorder %v822, 0.0
      %vm835 = vcmp.ge.f32.partialorder %v823, 0.0
      %v836 = vsel %vm830, 1.0, -1.0
      %v837 = vsel %vm831, 1.0, -1.0
      %v838 = vsel %vm832, 1.0, -1.0
      %v839 = vsel %vm833, 1.0, -1.0
      %v840 = vsel %vm834, 1.0, -1.0
      %v841 = vsel %vm835, 1.0, -1.0
      %v842 = vmul.f32 %v824, 0.3275911
      %v843 = vmul.f32 %v825, 0.3275911
      %v844 = vmul.f32 %v826, 0.3275911
      %v845 = vmul.f32 %v827, 0.3275911
      %v846 = vmul.f32 %v828, 0.3275911
      %v847 = vmul.f32 %v829, 0.3275911
      %v848 = vadd.f32 %v842, 1.0
      %v849 = vadd.f32 %v843, 1.0
      %v850 = vadd.f32 %v844, 1.0
      %v851 = vadd.f32 %v845, 1.0
      %v852 = vadd.f32 %v846, 1.0
      %v853 = vadd.f32 %v847, 1.0
      %v854 = vrcp.pop %v848
      %v855 = vmul.f32 1.0, %v854
      %v856 = vrcp.pop %v849
      %v857 = vmul.f32 1.0, %v856
      %v858 = vrcp.pop %v850
      %v859 = vmul.f32 1.0, %v858
      %v860 = vrcp.pop %v851
      %v861 = vmul.f32 1.0, %v860
      %v862 = vrcp.pop %v852
      %v863 = vmul.f32 1.0, %v862
      %v864 = vrcp.pop %v853
      %v865 = vmul.f32 1.0, %v864
      %v866 = vmul.f32 %v855, 1.0614054
      %v867 = vmul.f32 %v857, 1.0614054
      %v868 = vmul.f32 %v859, 1.0614054
      %v869 = vmul.f32 %v861, 1.0614054
      %v870 = vmul.f32 %v863, 1.0614054
      %v871 = vmul.f32 %v865, 1.0614054
      %v872 = vsub.f32 %v866, 1.4531521
      %v873 = vsub.f32 %v867, 1.4531521
      %v874 = vsub.f32 %v868, 1.4531521
      %v875 = vsub.f32 %v869, 1.4531521
      %v876 = vsub.f32 %v870, 1.4531521
      %v877 = vsub.f32 %v871, 1.4531521
      %v878 = vmul.f32 %v872, %v855
      %v879 = vmul.f32 %v873, %v857
      %v880 = vmul.f32 %v874, %v859
      %v881 = vmul.f32 %v875, %v861
      %v882 = vmul.f32 %v876, %v863
      %v883 = vmul.f32 %v877, %v865
      %v884 = vadd.f32 %v878, 1.4214138
      %v885 = vadd.f32 %v879, 1.4214138
      %v886 = vadd.f32 %v880, 1.4214138
      %v887 = vadd.f32 %v881, 1.4214138
      %v888 = vadd.f32 %v882, 1.4214138
      %v889 = vadd.f32 %v883, 1.4214138
      %v890 = vmul.f32 %v884, %v855
      %v891 = vmul.f32 %v885, %v857
      %v892 = vmul.f32 %v886, %v859
      %v893 = vmul.f32 %v887, %v861
      %v894 = vmul.f32 %v888, %v863
      %v895 = vmul.f32 %v889, %v865
      %v896 = vsub.f32 %v890, 0.28449672
      %v897 = vsub.f32 %v891, 0.28449672
      %v898 = vsub.f32 %v892, 0.28449672
      %v899 = vsub.f32 %v893, 0.28449672
      %v900 = vsub.f32 %v894, 0.28449672
      %v901 = vsub.f32 %v895, 0.28449672
      %v902 = vmul.f32 %v896, %v855
      %v903 = vmul.f32 %v897, %v857
      %v904 = vmul.f32 %v898, %v859
      %v905 = vmul.f32 %v899, %v861
      %v906 = vmul.f32 %v900, %v863
      %v907 = vmul.f32 %v901, %v865
      %v908 = vadd.f32 %v902, 0.2548296
      %v909 = vadd.f32 %v903, 0.2548296
      %v910 = vadd.f32 %v904, 0.2548296
      %v911 = vadd.f32 %v905, 0.2548296
      %v912 = vadd.f32 %v906, 0.2548296
      %v913 = vadd.f32 %v907, 0.2548296
      %v914 = vmul.f32 %v908, %v855
      %v915 = vmul.f32 %v909, %v857
      %v916 = vmul.f32 %v910, %v859
      %v917 = vmul.f32 %v911, %v861
      %v918 = vmul.f32 %v912, %v863
      %v919 = vmul.f32 %v913, %v865
      %v920 = vsub.f32 0.0, %v824
      %v921 = vsub.f32 0.0, %v825
      %v922 = vsub.f32 0.0, %v826
      %v923 = vsub.f32 0.0, %v827
      %v924 = vsub.f32 0.0, %v828
      %v925 = vsub.f32 0.0, %v829
      %v926 = vmul.f32 %v920, %v824
      %v927 = vmul.f32 %v921, %v825
      %v928 = vmul.f32 %v922, %v826
      %v929 = vmul.f32 %v923, %v827
      %v930 = vmul.f32 %v924, %v828
      %v931 = vmul.f32 %v925, %v829
      %v932 = vmul.f32 %v926, 1.442695
      %v933 = vpow.pop %v932
      %v934 = vmul.f32 %v927, 1.442695
      %v935 = vpow.pop %v934
      %v936 = vmul.f32 %v928, 1.442695
      %v937 = vpow.pop %v936
      %v938 = vmul.f32 %v929, 1.442695
      %v939 = vpow.pop %v938
      %v940 = vmul.f32 %v930, 1.442695
      %v941 = vpow.pop %v940
      %v942 = vmul.f32 %v931, 1.442695
      %v943 = vpow.pop %v942
      %v944 = vmul.f32 %v914, %v933
      %v945 = vmul.f32 %v915, %v935
      %v946 = vmul.f32 %v916, %v937
      %v947 = vmul.f32 %v917, %v939
      %v948 = vmul.f32 %v918, %v941
      %v949 = vmul.f32 %v919, %v943
      %v950 = vsub.f32 1.0, %v944
      %v951 = vsub.f32 1.0, %v945
      %v952 = vsub.f32 1.0, %v946
      %v953 = vsub.f32 1.0, %v947
      %v954 = vsub.f32 1.0, %v948
      %v955 = vsub.f32 1.0, %v949
      %v956 = vmul.f32 %v836, %v950
      %v957 = vmul.f32 %v837, %v951
      %v958 = vmul.f32 %v838, %v952
      %v959 = vmul.f32 %v839, %v953
      %v960 = vmul.f32 %v840, %v954
      %v961 = vmul.f32 %v841, %v955
      %v962 = vmul.f32 %v733, 0.5
      %v963 = vmul.f32 %v735, 0.5
      %v964 = vmul.f32 %v810, 0.5
      %v965 = vmul.f32 %v739, 0.5
      %v966 = vmul.f32 %v741, 0.5
      %v967 = vmul.f32 %v815, 0.5
      %v968 = vadd.f32 %v956, 1.0
      %v969 = vadd.f32 %v957, 1.0
      %v970 = vadd.f32 %v958, 1.0
      %v971 = vadd.f32 %v959, 1.0
      %v972 = vadd.f32 %v960, 1.0
      %v973 = vadd.f32 %v961, 1.0
      %v974 = vmul.f32 %v962, %v968
      %v975 = vmul.f32 %v963, %v969
      %v976 = vmul.f32 %v964, %v970
      %v977 = vmul.f32 %v965, %v971
      %v978 = vmul.f32 %v966, %v972
      %v979 = vmul.f32 %v967, %v973
      %v980 = vmul.f32 %v974, %v974
      %v981 = vmul.f32 %v975, %v975
      %v982 = vmul.f32 %v976, %v976
      %v983 = vmul.f32 %v977, %v977
      %v984 = vmul.f32 %v978, %v978
      %v985 = vmul.f32 %v979, %v979
      %v986 = vadd.f32 %v980, %v983
      %v987 = vrot.slane %v986, 4
      %v988 = vadd.f32 %v986, %v987
      %v989 = vrot.slane %v988, 2
      %v990 = vadd.f32 %v988, %v989
      %v991 = vrot.slane %v990, 1
      %v992 = vadd.f32 %v990, %v991
      %v993 = vadd.f32 %v981, %v984
      %v994 = vrot.slane %v993, 4
      %v995 = vadd.f32 %v993, %v994
      %v996 = vrot.slane %v995, 2
      %v997 = vadd.f32 %v995, %v996
      %v998 = vrot.slane %v997, 1
      %v999 = vadd.f32 %v997, %v998
      %v1000 = vadd.f32 %v982, %v985
      %v1001 = vrot.slane %v1000, 4
      %v1002 = vadd.f32 %v1000, %v1001
      %v1003 = vrot.slane %v1002, 2
      %v1004 = vadd.f32 %v1002, %v1003
      %v1005 = vrot.slane %v1004, 1
      %v1006 = vadd.f32 %v1004, %v1005
      %v1007 = vrsqrt.pop %v992
      %v1008 = vmul.f32 %v992, %v1007
      %vm1009 = vcmp.eq.f32.partialorder %v992, inf
      %v1010 = vsel %vm1009, %v992, %v1008
      %vm1011 = vcmp.eq.f32.partialorder %v992, 0.0
      %v1012 = vand.u32 %v992, 2147483648
      %v1013 = vsel %vm1011, %v1012, %v1010
      %v1014 = vrsqrt.pop %v999
      %v1015 = vmul.f32 %v999, %v1014
      %vm1016 = vcmp.eq.f32.partialorder %v999, inf
      %v1017 = vsel %vm1016, %v999, %v1015
      %vm1018 = vcmp.eq.f32.partialorder %v999, 0.0
      %v1019 = vand.u32 %v999, 2147483648
      %v1020 = vsel %vm1018, %v1019, %v1017
      %v1021 = vrsqrt.pop %v1006
      %v1022 = vmul.f32 %v1006, %v1021
      %vm1023 = vcmp.eq.f32.partialorder %v1006, inf
      %v1024 = vsel %vm1023, %v1006, %v1022
      %vm1025 = vcmp.eq.f32.partialorder %v1006, 0.0
      %v1026 = vand.u32 %v1006, 2147483648
      %v1027 = vsel %vm1025, %v1026, %v1024
      %v1028 = vadd.f32 %v1013, %v1020
      %v1029 = vadd.f32 %v1028, %v1027
      %1030 = vadd.xlane.f32.xlu0 %v1029
      %v1031 = vpop.xlane.xlu0 %1030
      %v1032 = vrcp.pop 384.0
      %v1033 = vmul.f32 %v1031, %v1032
      %v1034 = vadd.f32 %v1033, 1e-06
      %v1035 = vrcp.pop %v1034
      %v1036 = vmul.f32 %v1013, %v1035
      %v1037 = vmul.f32 %v1020, %v1035
      %v1038 = vmul.f32 %v1027, %v1035
      %v1039 = vld [vmem:[%s7] sm:$0x7]
      %v1040 = vmul.f32 %v974, %v1036
      %v1041 = vmul.f32 %v975, %v1037
      %v1042 = vmul.f32 %v976, %v1038
      %v1043 = vmul.f32 %v977, %v1036
      %v1044 = vmul.f32 %v978, %v1037
      %v1045 = vmul.f32 %v979, %v1038
      %v1047 = vlaneseq
      %v1048 = vshrl.u32 %v1047, 7
      %v1049 = vsub.s32 0, %v1048
      %v1050 = vrot.slane %v1039, %v1049
      %v1051 = vlaneseq
      %v1052 = vshrl.u32 %v1051, 7
      %v1053 = vsub.s32 1, %v1052
      %v1054 = vrot.slane %v1039, %v1053
      %v1055 = vlaneseq
      %v1056 = vshrl.u32 %v1055, 7
      %v1057 = vsub.s32 2, %v1056
      %v1058 = vrot.slane %v1039, %v1057
      %v1062 = vmul.f32 %v1050, %v1040
      %v1063 = vmul.f32 %v1054, %v1041
      %v1064 = vmul.f32 %v1058, %v1042
      %v1065 = vmul.f32 %v1050, %v1043
      %v1066 = vmul.f32 %v1054, %v1044
      %v1067 = vmul.f32 %v1058, %v1045
      %v1068 = vld [vmem:[%s8] sm:$0x7]
      %v1070 = vlaneseq
      %v1071 = vshrl.u32 %v1070, 7
      %v1072 = vsub.s32 0, %v1071
      %v1073 = vrot.slane %v1068, %v1072
      %v1074 = vlaneseq
      %v1075 = vshrl.u32 %v1074, 7
      %v1076 = vsub.s32 1, %v1075
      %v1077 = vrot.slane %v1068, %v1076
      %v1078 = vlaneseq
      %v1079 = vshrl.u32 %v1078, 7
      %v1080 = vsub.s32 2, %v1079
      %v1081 = vrot.slane %v1068, %v1080
      %v1085 = vadd.f32 %v1062, %v1073
      %v1086 = vadd.f32 %v1063, %v1077
      %v1087 = vadd.f32 %v1064, %v1081
      %v1088 = vadd.f32 %v1065, %v1073
      %v1089 = vadd.f32 %v1066, %v1077
      %v1090 = vadd.f32 %v1067, %v1081
      %v1091 = vadd.f32 %v1085, %v974
      %v1092 = vadd.f32 %v1086, %v975
      %v1093 = vadd.f32 %v1087, %v976
      %v1094 = vadd.f32 %v1088, %v977
      %v1095 = vadd.f32 %v1089, %v978
      %v1096 = vadd.f32 %v1090, %v979
      %v1097 = vld [vmem:[%s9] sm:$0xff]
      %v1098 = vld [vmem:[%s9 + $0x8] sm:$0xff]
      %v1099 = vld [vmem:[%s9 + $0x10] sm:$0xff]
      %v1100 = vld [vmem:[%s9 + $0x18] sm:$0xff]
      %v1101 = vld [vmem:[%s9 + $0x20] sm:$0xff]
      %v1102 = vld [vmem:[%s9 + $0x28] sm:$0xff]
      %v1103 = vld [vmem:[%s9 + $0x30] sm:$0xff]
      %v1104 = vld [vmem:[%s9 + $0x38] sm:$0xff]
      %v1105 = vld [vmem:[%s9 + $0x40] sm:$0xff]
      %v1106 = vld [vmem:[%s9 + $0x48] sm:$0xff]
      %v1107 = vld [vmem:[%s9 + $0x50] sm:$0xff]
      %v1108 = vld [vmem:[%s9 + $0x58] sm:$0xff]
      %v1109 = vld [vmem:[%s9 + $0x60] sm:$0xff]
      %v1110 = vld [vmem:[%s9 + $0x68] sm:$0xff]
      %v1111 = vld [vmem:[%s9 + $0x70] sm:$0xff]
      %v1112 = vld [vmem:[%s9 + $0x78] sm:$0xff]
      %v1113 = vld [vmem:[%s9 + $0x80] sm:$0xff]
      %v1114 = vld [vmem:[%s9 + $0x88] sm:$0xff]
      %v1115 = vld [vmem:[%s9 + $0x90] sm:$0xff]
      %v1116 = vld [vmem:[%s9 + $0x98] sm:$0xff]
      %v1117 = vld [vmem:[%s9 + $0xa0] sm:$0xff]
      %v1118 = vld [vmem:[%s9 + $0xa8] sm:$0xff]
      %v1119 = vld [vmem:[%s9 + $0xb0] sm:$0xff]
      %v1120 = vld [vmem:[%s9 + $0xb8] sm:$0xff]
      %v1121 = vld [vmem:[%s9 + $0xc0] sm:$0xff]
      %v1122 = vld [vmem:[%s9 + $0xc8] sm:$0xff]
      %v1123 = vld [vmem:[%s9 + $0xd0] sm:$0xff]
      %v1124 = vld [vmem:[%s9 + $0xd8] sm:$0xff]
      %v1125 = vld [vmem:[%s9 + $0xe0] sm:$0xff]
      %v1126 = vld [vmem:[%s9 + $0xe8] sm:$0xff]
      %v1127 = vld [vmem:[%s9 + $0xf0] sm:$0xff]
      %v1128 = vld [vmem:[%s9 + $0xf8] sm:$0xff]
      %v1129 = vld [vmem:[%s9 + $0x100] sm:$0xff]
      %v1130 = vld [vmem:[%s9 + $0x108] sm:$0xff]
      %v1131 = vld [vmem:[%s9 + $0x110] sm:$0xff]
      %v1132 = vld [vmem:[%s9 + $0x118] sm:$0xff]
      %v1133 = vld [vmem:[%s9 + $0x120] sm:$0xff]
      %v1134 = vld [vmem:[%s9 + $0x128] sm:$0xff]
      %v1135 = vld [vmem:[%s9 + $0x130] sm:$0xff]
      %v1136 = vld [vmem:[%s9 + $0x138] sm:$0xff]
      %v1137 = vld [vmem:[%s9 + $0x140] sm:$0xff]
      %v1138 = vld [vmem:[%s9 + $0x148] sm:$0xff]
      %v1139 = vld [vmem:[%s9 + $0x150] sm:$0xff]
      %v1140 = vld [vmem:[%s9 + $0x158] sm:$0xff]
      %v1141 = vld [vmem:[%s9 + $0x160] sm:$0xff]
      %v1142 = vld [vmem:[%s9 + $0x168] sm:$0xff]
      %v1143 = vld [vmem:[%s9 + $0x170] sm:$0xff]
      %v1144 = vld [vmem:[%s9 + $0x178] sm:$0xff]
      %v1145 = vld [vmem:[%s10] sm:$0x1]
      %v1147 = vlaneseq
      %v1148 = vshrl.u32 %v1147, 7
      %v1149 = vsub.s32 0, %v1148
      %v1150 = vrot.slane %v1145, %v1149
      %1152 = vmatprep.subr.mxu0 0.0
      %1153 = vmatpush1.msra.mxu0 %v1112
      %1154 = vmatprep.subr.mxu0 0.0
      %1155 = vmatpush1.msra.mxu0 %v1111
      %1156 = vmatprep.subr.mxu0 0.0
      %1157 = vmatpush1.msra.mxu0 %v1110
      %1158 = vmatprep.subr.mxu0 0.0
      %1159 = vmatpush1.msra.mxu0 %v1109
      %1160 = vmatprep.subr.mxu0 0.0
      %1161 = vmatpush1.msra.mxu0 %v1108
      %1162 = vmatprep.subr.mxu0 0.0
      %1163 = vmatpush1.msra.mxu0 %v1107
      %1164 = vmatprep.subr.mxu0 0.0
      %1165 = vmatpush1.msra.mxu0 %v1106
      %1166 = vmatprep.subr.mxu0 0.0
      %1167 = vmatpush1.msra.mxu0 %v1105
      %1168 = vmatprep.subr.mxu0 0.0
      %1169 = vmatpush1.msra.mxu0 %v1104
      %1170 = vmatprep.subr.mxu0 0.0
      %1171 = vmatpush1.msra.mxu0 %v1103
      %1172 = vmatprep.subr.mxu0 0.0
      %1173 = vmatpush1.msra.mxu0 %v1102
      %1174 = vmatprep.subr.mxu0 0.0
      %1175 = vmatpush1.msra.mxu0 %v1101
      %1176 = vmatprep.subr.mxu0 0.0
      %1177 = vmatpush1.msra.mxu0 %v1100
      %1178 = vmatprep.subr.mxu0 0.0
      %1179 = vmatpush1.msra.mxu0 %v1099
      %1180 = vmatprep.subr.mxu0 0.0
      %1181 = vmatpush1.msra.mxu0 %v1098
      %1182 = vmatprep.subr.mxu0 0.0
      %1183 = vmatpush1.msra.mxu0 %v1097
      %1184 = vmatprep.subr.mxu0 0.0
      %1185 = vmatpush2.msra.mxu0 %v1128
      %1186 = vmatprep.subr.mxu0 0.0
      %1187 = vmatpush2.msra.mxu0 %v1127
      %1188 = vmatprep.subr.mxu0 0.0
      %1189 = vmatpush2.msra.mxu0 %v1126
      %1190 = vmatprep.subr.mxu0 0.0
      %1191 = vmatpush2.msra.mxu0 %v1125
      %1192 = vmatprep.subr.mxu0 0.0
      %1193 = vmatpush2.msra.mxu0 %v1124
      %1194 = vmatprep.subr.mxu0 0.0
      %1195 = vmatpush2.msra.mxu0 %v1123
      %1196 = vmatprep.subr.mxu0 0.0
      %1197 = vmatpush2.msra.mxu0 %v1122
      %1198 = vmatprep.subr.mxu0 0.0
      %1199 = vmatpush2.msra.mxu0 %v1121
      %1200 = vmatprep.subr.mxu0 0.0
      %1201 = vmatpush2.msra.mxu0 %v1120
      %1202 = vmatprep.subr.mxu0 0.0
      %1203 = vmatpush2.msra.mxu0 %v1119
      %1204 = vmatprep.subr.mxu0 0.0
      %1205 = vmatpush2.msra.mxu0 %v1118
      %1206 = vmatprep.subr.mxu0 0.0
      %1207 = vmatpush2.msra.mxu0 %v1117
      %1208 = vmatprep.subr.mxu0 0.0
      %1209 = vmatpush2.msra.mxu0 %v1116
      %1210 = vmatprep.subr.mxu0 0.0
      %1211 = vmatpush2.msra.mxu0 %v1115
      %1212 = vmatprep.subr.mxu0 0.0
      %1213 = vmatpush2.msra.mxu0 %v1114
      %1214 = vmatprep.subr.mxu0 0.0
      %1215 = vmatpush2.msra.mxu0 %v1113
      %1216 = vmatprep.mubr.f32.mxu0 %v1092
      %1217 = vmatmul.mubr.f32.gmra.mxu0 %v1091
      %v1218 = vpop.f32.mrf.mxu0
      %v1219 = vadd.f32 %v1150, %v1218
      %v1220 = vpop.f32.mrf.mxu0
      %1221 = vmatprep.mubr.f32.mxu0 %v1095
      %1222 = vmatmul.mubr.f32.gmra.mxu0 %v1094
      %v1223 = vpop.f32.mrf.mxu0
      %v1224 = vadd.f32 %v1150, %v1223
      %v1225 = vpop.f32.mrf.mxu0
      %1226 = vdwg.mxu0
      %1227 = vmatprep.subr.mxu0 0.0
      %1228 = vmatpush1.msra.mxu0 %v1144
      %1229 = vmatprep.subr.mxu0 0.0
      %1230 = vmatpush1.msra.mxu0 %v1143
      %1231 = vmatprep.subr.mxu0 0.0
      %1232 = vmatpush1.msra.mxu0 %v1142
      %1233 = vmatprep.subr.mxu0 0.0
      %1234 = vmatpush1.msra.mxu0 %v1141
      %1235 = vmatprep.subr.mxu0 0.0
      %1236 = vmatpush1.msra.mxu0 %v1140
      %1237 = vmatprep.subr.mxu0 0.0
      %1238 = vmatpush1.msra.mxu0 %v1139
      %1239 = vmatprep.subr.mxu0 0.0
      %1240 = vmatpush1.msra.mxu0 %v1138
      %1241 = vmatprep.subr.mxu0 0.0
      %1242 = vmatpush1.msra.mxu0 %v1137
      %1243 = vmatprep.subr.mxu0 0.0
      %1244 = vmatpush1.msra.mxu0 %v1136
      %1245 = vmatprep.subr.mxu0 0.0
      %1246 = vmatpush1.msra.mxu0 %v1135
      %1247 = vmatprep.subr.mxu0 0.0
      %1248 = vmatpush1.msra.mxu0 %v1134
      %1249 = vmatprep.subr.mxu0 0.0
      %1250 = vmatpush1.msra.mxu0 %v1133
      %1251 = vmatprep.subr.mxu0 0.0
      %1252 = vmatpush1.msra.mxu0 %v1132
      %1253 = vmatprep.subr.mxu0 0.0
      %1254 = vmatpush1.msra.mxu0 %v1131
      %1255 = vmatprep.subr.mxu0 0.0
      %1256 = vmatpush1.msra.mxu0 %v1130
      %1257 = vmatprep.subr.mxu0 0.0
      %1258 = vmatpush1.msra.mxu0 %v1129
      %1259 = vmatprep.subr.mxu0 0.0
      %1260 = vmatpush2.msra.mxu0 0.0
      %1261 = vmatprep.subr.mxu0 0.0
      %1262 = vmatpush2.msra.mxu0 0.0
      %1263 = vmatprep.subr.mxu0 0.0
      %1264 = vmatpush2.msra.mxu0 0.0
      %1265 = vmatprep.subr.mxu0 0.0
      %1266 = vmatpush2.msra.mxu0 0.0
      %1267 = vmatprep.subr.mxu0 0.0
      %1268 = vmatpush2.msra.mxu0 0.0
      %1269 = vmatprep.subr.mxu0 0.0
      %1270 = vmatpush2.msra.mxu0 0.0
      %1271 = vmatprep.subr.mxu0 0.0
      %1272 = vmatpush2.msra.mxu0 0.0
      %1273 = vmatprep.subr.mxu0 0.0
      %1274 = vmatpush2.msra.mxu0 0.0
      %1275 = vmatprep.subr.mxu0 0.0
      %1276 = vmatpush2.msra.mxu0 0.0
      %1277 = vmatprep.subr.mxu0 0.0
      %1278 = vmatpush2.msra.mxu0 0.0
      %1279 = vmatprep.subr.mxu0 0.0
      %1280 = vmatpush2.msra.mxu0 0.0
      %1281 = vmatprep.subr.mxu0 0.0
      %1282 = vmatpush2.msra.mxu0 0.0
      %1283 = vmatprep.subr.mxu0 0.0
      %1284 = vmatpush2.msra.mxu0 0.0
      %1285 = vmatprep.subr.mxu0 0.0
      %1286 = vmatpush2.msra.mxu0 0.0
      %1287 = vmatprep.subr.mxu0 0.0
      %1288 = vmatpush2.msra.mxu0 0.0
      %1289 = vmatprep.subr.mxu0 0.0
      %1290 = vmatpush2.msra.mxu0 0.0
      %1291 = vmatprep.mubr.f32.mxu0 0.0
      %1292 = vmatmul.mubr.f32.gmra.mxu0 %v1093
      %v1293 = vpop.f32.mrf.mxu0
      %v1294 = vadd.f32 %v1219, %v1293
      %v1295 = vpop.f32.mrf.mxu0
      %1296 = vmatprep.mubr.f32.mxu0 0.0
      %1297 = vmatmul.mubr.f32.gmra.mxu0 %v1096
      %v1298 = vpop.f32.mrf.mxu0
      %v1299 = vadd.f32 %v1224, %v1298
      %v1300 = vpop.f32.mrf.mxu0
      %1301 = vdwg.mxu0
      %v1302 = vadd.f32 %v1294, %v387
      %v1303 = vadd.f32 %v1299, %v388
      %1304 = vst.msk [vmem:[%s386] sm:$0xff] %vm542, %v1302
      %1305 = vst.msk [vmem:[%s386 + $0x8] sm:$0xff] %vm542, %v1303
      %p1306 = scmp.lt.s32.totalorder %s22, 1
      %s1307 = scalar_select %p1306, %s22, 1
      %s1308 = smul.addr %s1307, 2
      %s1309 = smul.addr %s1308, 8
      %s1310 = scalar_lea.vmem %s11, %s1309
      // Predicated region
      $region65: #{_lambda_.13} parent=63 // pred_check
        %p1311 = pneg %p276
      $region66: #{_lambda_.13} parent=63 // pred_check_branch
        %1313 = sbr.rel (%p1311) target = $region68
      $region67: #{_lambda_.13} parent=63 // pred_region
        _
      $region68: #{_lambda_.13} parent=63 // pred_fallthru
        _
    $region64: #{_lambda_.13} parent=5 // pred_fallthru
      _
    %p1314 = scmp.le.s32.totalorder 2, %s17
    // Predicated region
    $region69: #{_lambda_.13} parent=5 // pred_check
      %p1315 = pneg %p1314
    $region70: #{_lambda_.13} parent=5 // pred_check_branch
      %1317 = sbr.rel (%p1315) target = $region72
    $region71: #{_lambda_.13} parent=5 // pred_region
      %s1318 = ssub.s32 %s17, 2
      // Predicated region
      $region73: #{_lambda_.13} parent=71 // pred_check
        %p1319 = pneg %p282
      $region74: #{_lambda_.13} parent=71 // pred_check_branch
        %1321 = sbr.rel (%p1319) target = $region76
      $region75: #{_lambda_.13} parent=71 // pred_region
        %p1322 = scmp.lt.s32.totalorder %s23, 1
        %s1323 = scalar_select %p1322, %s23, 1
        %s1324 = smul.addr %s1323, 2
        %s1325 = smul.addr %s1324, 8
        %s1326 = scalar_lea.vmem %s11, %s1325
      $region76: #{_lambda_.13} parent=71 // pred_fallthru
        _
    $region72: #{_lambda_.13} parent=5 // pred_fallthru
      _
  $region6: #{_lambda_.13} parent=0 // loop_footer
    %s21 = sadd.s32 1, %s17
  $region7: #{_lambda_.13} parent=0 // loop_footer_branch
    %16 = sbr.rel target = $region3
  $region8: #{_lambda_.13} parent=0 // loop_exit
    _

// kernel: _lambda_.15
$region0: #{_lambda_.15}
  #allocation0 [shape = 'u32[]', space=smem, size = 0x4, offset = 0x4, fixed_abs, tag = 'smem constant byte address 0x4 - core index']
  #allocation1 [shape = 'u32[144,128]{1,0:T(1,128)}', space=vmem, size = 0x12000, scoped, tag = 'internal scratch']
  %s0 = inlined_call_operand.vmem [shape: f32[2,8,128], index: 0, kind: input, shape index: {}]
  %s1 = inlined_call_operand.vmem [shape: f32[7,128], index: 1, kind: input, shape index: {}]
  %s2 = inlined_call_operand.vmem [shape: f32[1,128], index: 2, kind: input, shape index: {}]
  %s3 = inlined_call_operand.vmem [shape: f32[1,128], index: 3, kind: input, shape index: {}]
  %s4 = inlined_call_operand.vmem [shape: f32[1,128], index: 4, kind: input, shape index: {}]
  %s5 = inlined_call_operand.vmem [shape: f32[128,512], index: 5, kind: input, shape index: {}]
  %s6 = inlined_call_operand.vmem [shape: f32[1,512], index: 6, kind: input, shape index: {}]
  %s7 = inlined_call_operand.vmem [shape: f32[1,512], index: 7, kind: input, shape index: {}]
  %s8 = inlined_call_operand.vmem [shape: f32[1,512], index: 8, kind: input, shape index: {}]
  %s9 = inlined_call_operand.vmem [shape: f32[512,128], index: 9, kind: input, shape index: {}]
  %s10 = inlined_call_operand.vmem [shape: f32[1,128], index: 10, kind: input, shape index: {}]
  %s11 = inlined_call_operand.vmem [shape: f32[2,8,128], index: 11, kind: output, shape index: {}]
  %s12 = sld [smem:[#allocation0]]
  $region77: #{_lambda_.15} parent=0
    _
  %s14 = ssub.s32 1, %s12
  %s15 = scalar_select 0, %s14, %s12
  loop: start=0, step=1, limit=4
  $region2: #{_lambda_.15} parent=0 // loop_pre_header
    _
  $region3: #{_lambda_.15} parent=0 // loop_header
    %s17 = sphi 0, %s21
    %p18 = scmp.ge.s32.totalorder %s17, 4
    %s27 = sphi 0, %s29
    %s30 = sphi 0, %s27
    %s31 = sphi 0, %s30
    %s47 = sphi 0, %s31
    %s51 = sphi 0, %s51
    %s53 = sphi 0, %s51
    %s54 = sphi 0, %s53
    %s68 = sphi 0, %s54
    %s72 = sphi 0, %s72
    %s74 = sphi 0, %s72
    %s75 = sphi 0, %s74
    %s89 = sphi 0, %s75
    %s93 = sphi 0, %s93
    %s95 = sphi 0, %s93
    %s96 = sphi 0, %s95
    %s110 = sphi 0, %s96
    %s114 = sphi 0, %s114
    %s116 = sphi 0, %s114
    %s117 = sphi 0, %s116
    %s131 = sphi 0, %s117
    %s135 = sphi 0, %s135
    %s137 = sphi 0, %s135
    %s138 = sphi 0, %s137
    %s152 = sphi 0, %s138
    %s156 = sphi 0, %s156
    %s158 = sphi 0, %s156
    %s159 = sphi 0, %s158
    %s173 = sphi 0, %s159
    %s177 = sphi 0, %s177
    %s179 = sphi 0, %s177
    %s180 = sphi 0, %s179
    %s194 = sphi 0, %s180
    %s198 = sphi 0, %s198
    %s200 = sphi 0, %s198
    %s201 = sphi 0, %s200
    %s215 = sphi 0, %s201
    %s219 = sphi 0, %s219
    %s221 = sphi 0, %s219
    %s222 = sphi 0, %s221
    %s236 = sphi 0, %s222
    %s240 = sphi 0, %s240
    %s242 = sphi 0, %s240
    %s243 = sphi 0, %s242
    %s257 = sphi 0, %s243
    %s263 = sphi 0, %s265
    %s266 = sphi 0, %s263
    %s267 = sphi 0, %s266
    %s283 = sphi 0, %s267
  $region4: #{_lambda_.15} parent=0 // loop_header_branch
    %20 = sbr.rel (%p18) target = $region8
  $region5: #{_lambda_.15} parent=0 // loop_body
    %s22 = ssub.s32 %s17, 1
    %s23 = ssub.s32 %s17, 2
    %s24 = sadd.s32 %s17, 1
    %s25 = ssub.s32 %s17, %s24
    %p26 = scmp.eq.s32.totalorder %s25, 0
    %s28 = sadd.s32 %s27, 1
    %s29 = scalar_select %p26, %s27, %s28
    %p32 = pneg %p26
    %p33 = scmp.eq.s32.totalorder %s17, 1
    %p34 = por %p32, %p33
    %p35 = scmp.ne.s32.totalorder %s27, %s30
    %p36 = scmp.eq.s32.totalorder %s17, 0
    %p37 = por %p35, %p36
    %p38 = scmp.ne.s32.totalorder %s27, %s30
    %p39 = scmp.eq.s32.totalorder %s22, 1
    %p40 = por %p38, %p39
    %p41 = scmp.ne.s32.totalorder %s30, %s31
    %p42 = scmp.eq.s32.totalorder %s22, 0
    %p43 = por %p41, %p42
    %p44 = scmp.ne.s32.totalorder %s30, %s31
    %p45 = scmp.eq.s32.totalorder %s23, 1
    %p46 = por %p44, %p45
    %p48 = scmp.ne.s32.totalorder %s31, %s47
    %p49 = scmp.eq.s32.totalorder %s23, 0
    %p50 = por %p48, %p49
    %s52 = sadd.s32 %s51, 1
    %p55 = scmp.eq.s32.totalorder %s17, 1
    %p56 = scmp.ne.s32.totalorder %s51, %s53
    %p57 = scmp.eq.s32.totalorder %s17, 0
    %p58 = por %p56, %p57
    %p59 = scmp.ne.s32.totalorder %s51, %s53
    %p60 = scmp.eq.s32.totalorder %s22, 1
    %p61 = por %p59, %p60
    %p62 = scmp.ne.s32.totalorder %s53, %s54
    %p63 = scmp.eq.s32.totalorder %s22, 0
    %p64 = por %p62, %p63
    %p65 = scmp.ne.s32.totalorder %s53, %s54
    %p66 = scmp.eq.s32.totalorder %s23, 1
    %p67 = por %p65, %p66
    %p69 = scmp.ne.s32.totalorder %s54, %s68
    %p70 = scmp.eq.s32.totalorder %s23, 0
    %p71 = por %p69, %p70
    %s73 = sadd.s32 %s72, 1
    %p76 = scmp.eq.s32.totalorder %s17, 1
    %p77 = scmp.ne.s32.totalorder %s72, %s74
    %p78 = scmp.eq.s32.totalorder %s17, 0
    %p79 = por %p77, %p78
    %p80 = scmp.ne.s32.totalorder %s72, %s74
    %p81 = scmp.eq.s32.totalorder %s22, 1
    %p82 = por %p80, %p81
    %p83 = scmp.ne.s32.totalorder %s74, %s75
    %p84 = scmp.eq.s32.totalorder %s22, 0
    %p85 = por %p83, %p84
    %p86 = scmp.ne.s32.totalorder %s74, %s75
    %p87 = scmp.eq.s32.totalorder %s23, 1
    %p88 = por %p86, %p87
    %p90 = scmp.ne.s32.totalorder %s75, %s89
    %p91 = scmp.eq.s32.totalorder %s23, 0
    %p92 = por %p90, %p91
    %s94 = sadd.s32 %s93, 1
    %p97 = scmp.eq.s32.totalorder %s17, 1
    %p98 = scmp.ne.s32.totalorder %s93, %s95
    %p99 = scmp.eq.s32.totalorder %s17, 0
    %p100 = por %p98, %p99
    %p101 = scmp.ne.s32.totalorder %s93, %s95
    %p102 = scmp.eq.s32.totalorder %s22, 1
    %p103 = por %p101, %p102
    %p104 = scmp.ne.s32.totalorder %s95, %s96
    %p105 = scmp.eq.s32.totalorder %s22, 0
    %p106 = por %p104, %p105
    %p107 = scmp.ne.s32.totalorder %s95, %s96
    %p108 = scmp.eq.s32.totalorder %s23, 1
    %p109 = por %p107, %p108
    %p111 = scmp.ne.s32.totalorder %s96, %s110
    %p112 = scmp.eq.s32.totalorder %s23, 0
    %p113 = por %p111, %p112
    %s115 = sadd.s32 %s114, 1
    %p118 = scmp.eq.s32.totalorder %s17, 1
    %p119 = scmp.ne.s32.totalorder %s114, %s116
    %p120 = scmp.eq.s32.totalorder %s17, 0
    %p121 = por %p119, %p120
    %p122 = scmp.ne.s32.totalorder %s114, %s116
    %p123 = scmp.eq.s32.totalorder %s22, 1
    %p124 = por %p122, %p123
    %p125 = scmp.ne.s32.totalorder %s116, %s117
    %p126 = scmp.eq.s32.totalorder %s22, 0
    %p127 = por %p125, %p126
    %p128 = scmp.ne.s32.totalorder %s116, %s117
    %p129 = scmp.eq.s32.totalorder %s23, 1
    %p130 = por %p128, %p129
    %p132 = scmp.ne.s32.totalorder %s117, %s131
    %p133 = scmp.eq.s32.totalorder %s23, 0
    %p134 = por %p132, %p133
    %s136 = sadd.s32 %s135, 1
    %p139 = scmp.eq.s32.totalorder %s17, 1
    %p140 = scmp.ne.s32.totalorder %s135, %s137
    %p141 = scmp.eq.s32.totalorder %s17, 0
    %p142 = por %p140, %p141
    %p143 = scmp.ne.s32.totalorder %s135, %s137
    %p144 = scmp.eq.s32.totalorder %s22, 1
    %p145 = por %p143, %p144
    %p146 = scmp.ne.s32.totalorder %s137, %s138
    %p147 = scmp.eq.s32.totalorder %s22, 0
    %p148 = por %p146, %p147
    %p149 = scmp.ne.s32.totalorder %s137, %s138
    %p150 = scmp.eq.s32.totalorder %s23, 1
    %p151 = por %p149, %p150
    %p153 = scmp.ne.s32.totalorder %s138, %s152
    %p154 = scmp.eq.s32.totalorder %s23, 0
    %p155 = por %p153, %p154
    %s157 = sadd.s32 %s156, 1
    %p160 = scmp.eq.s32.totalorder %s17, 1
    %p161 = scmp.ne.s32.totalorder %s156, %s158
    %p162 = scmp.eq.s32.totalorder %s17, 0
    %p163 = por %p161, %p162
    %p164 = scmp.ne.s32.totalorder %s156, %s158
    %p165 = scmp.eq.s32.totalorder %s22, 1
    %p166 = por %p164, %p165
    %p167 = scmp.ne.s32.totalorder %s158, %s159
    %p168 = scmp.eq.s32.totalorder %s22, 0
    %p169 = por %p167, %p168
    %p170 = scmp.ne.s32.totalorder %s158, %s159
    %p171 = scmp.eq.s32.totalorder %s23, 1
    %p172 = por %p170, %p171
    %p174 = scmp.ne.s32.totalorder %s159, %s173
    %p175 = scmp.eq.s32.totalorder %s23, 0
    %p176 = por %p174, %p175
    %s178 = sadd.s32 %s177, 1
    %p181 = scmp.eq.s32.totalorder %s17, 1
    %p182 = scmp.ne.s32.totalorder %s177, %s179
    %p183 = scmp.eq.s32.totalorder %s17, 0
    %p184 = por %p182, %p183
    %p185 = scmp.ne.s32.totalorder %s177, %s179
    %p186 = scmp.eq.s32.totalorder %s22, 1
    %p187 = por %p185, %p186
    %p188 = scmp.ne.s32.totalorder %s179, %s180
    %p189 = scmp.eq.s32.totalorder %s22, 0
    %p190 = por %p188, %p189
    %p191 = scmp.ne.s32.totalorder %s179, %s180
    %p192 = scmp.eq.s32.totalorder %s23, 1
    %p193 = por %p191, %p192
    %p195 = scmp.ne.s32.totalorder %s180, %s194
    %p196 = scmp.eq.s32.totalorder %s23, 0
    %p197 = por %p195, %p196
    %s199 = sadd.s32 %s198, 1
    %p202 = scmp.eq.s32.totalorder %s17, 1
    %p203 = scmp.ne.s32.totalorder %s198, %s200
    %p204 = scmp.eq.s32.totalorder %s17, 0
    %p205 = por %p203, %p204
    %p206 = scmp.ne.s32.totalorder %s198, %s200
    %p207 = scmp.eq.s32.totalorder %s22, 1
    %p208 = por %p206, %p207
    %p209 = scmp.ne.s32.totalorder %s200, %s201
    %p210 = scmp.eq.s32.totalorder %s22, 0
    %p211 = por %p209, %p210
    %p212 = scmp.ne.s32.totalorder %s200, %s201
    %p213 = scmp.eq.s32.totalorder %s23, 1
    %p214 = por %p212, %p213
    %p216 = scmp.ne.s32.totalorder %s201, %s215
    %p217 = scmp.eq.s32.totalorder %s23, 0
    %p218 = por %p216, %p217
    %s220 = sadd.s32 %s219, 1
    %p223 = scmp.eq.s32.totalorder %s17, 1
    %p224 = scmp.ne.s32.totalorder %s219, %s221
    %p225 = scmp.eq.s32.totalorder %s17, 0
    %p226 = por %p224, %p225
    %p227 = scmp.ne.s32.totalorder %s219, %s221
    %p228 = scmp.eq.s32.totalorder %s22, 1
    %p229 = por %p227, %p228
    %p230 = scmp.ne.s32.totalorder %s221, %s222
    %p231 = scmp.eq.s32.totalorder %s22, 0
    %p232 = por %p230, %p231
    %p233 = scmp.ne.s32.totalorder %s221, %s222
    %p234 = scmp.eq.s32.totalorder %s23, 1
    %p235 = por %p233, %p234
    %p237 = scmp.ne.s32.totalorder %s222, %s236
    %p238 = scmp.eq.s32.totalorder %s23, 0
    %p239 = por %p237, %p238
    %s241 = sadd.s32 %s240, 1
    %p244 = scmp.eq.s32.totalorder %s17, 1
    %p245 = scmp.ne.s32.totalorder %s240, %s242
    %p246 = scmp.eq.s32.totalorder %s17, 0
    %p247 = por %p245, %p246
    %p248 = scmp.ne.s32.totalorder %s240, %s242
    %p249 = scmp.eq.s32.totalorder %s22, 1
    %p250 = por %p248, %p249
    %p251 = scmp.ne.s32.totalorder %s242, %s243
    %p252 = scmp.eq.s32.totalorder %s22, 0
    %p253 = por %p251, %p252
    %p254 = scmp.ne.s32.totalorder %s242, %s243
    %p255 = scmp.eq.s32.totalorder %s23, 1
    %p256 = por %p254, %p255
    %p258 = scmp.ne.s32.totalorder %s243, %s257
    %p259 = scmp.eq.s32.totalorder %s23, 0
    %p260 = por %p258, %p259
    %s261 = ssub.s32 %s17, %s24
    %p262 = scmp.eq.s32.totalorder %s261, 0
    %s264 = sadd.s32 %s263, 1
    %s265 = scalar_select %p262, %s263, %s264
    %p268 = pneg %p262
    %p269 = scmp.eq.s32.totalorder %s17, 1
    %p270 = por %p268, %p269
    %p271 = scmp.ne.s32.totalorder %s263, %s266
    %p272 = scmp.eq.s32.totalorder %s17, 0
    %p273 = por %p271, %p272
    %p274 = scmp.ne.s32.totalorder %s263, %s266
    %p275 = scmp.eq.s32.totalorder %s22, 1
    %p276 = por %p274, %p275
    %p277 = scmp.ne.s32.totalorder %s266, %s267
    %p278 = scmp.eq.s32.totalorder %s22, 0
    %p279 = por %p277, %p278
    %p280 = scmp.ne.s32.totalorder %s266, %s267
    %p281 = scmp.eq.s32.totalorder %s23, 1
    %p282 = por %p280, %p281
    %p284 = scmp.ne.s32.totalorder %s267, %s283
    %p285 = scmp.eq.s32.totalorder %s23, 0
    %p286 = por %p284, %p285
    %p287 = scmp.le.s32.totalorder 1, %s17
    %p288 = scmp.lt.s32.totalorder %s17, 3
    %p289 = pnand %p287, %p288
    %p290 = pneg %p289
    // Predicated region
    $region9: #{_lambda_.15} parent=5 // pred_check
      _
    $region10: #{_lambda_.15} parent=5 // pred_check_branch
      %292 = sbr.rel (%p289) target = $region12
    $region11: #{_lambda_.15} parent=5 // pred_region
      %s293 = ssub.s32 %s17, 1
      // Predicated region
      $region13: #{_lambda_.15} parent=11 // pred_check
        %p294 = pneg %p64
      $region14: #{_lambda_.15} parent=11 // pred_check_branch
        %296 = sbr.rel (%p294) target = $region16
      $region15: #{_lambda_.15} parent=11 // pred_region
        _
      $region16: #{_lambda_.15} parent=11 // pred_fallthru
        _
      // Predicated region
      $region17: #{_lambda_.15} parent=11 // pred_check
        %p297 = pneg %p85
      $region18: #{_lambda_.15} parent=11 // pred_check_branch
        %299 = sbr.rel (%p297) target = $region20
      $region19: #{_lambda_.15} parent=11 // pred_region
        _
      $region20: #{_lambda_.15} parent=11 // pred_fallthru
        _
      // Predicated region
      $region21: #{_lambda_.15} parent=11 // pred_check
        %p300 = pneg %p106
      $region22: #{_lambda_.15} parent=11 // pred_check_branch
        %302 = sbr.rel (%p300) target = $region24
      $region23: #{_lambda_.15} parent=11 // pred_region
        _
      $region24: #{_lambda_.15} parent=11 // pred_fallthru
        _
      // Predicated region
      $region25: #{_lambda_.15} parent=11 // pred_check
        %p303 = pneg %p127
      $region26: #{_lambda_.15} parent=11 // pred_check_branch
        %305 = sbr.rel (%p303) target = $region28
      $region27: #{_lambda_.15} parent=11 // pred_region
        _
      $region28: #{_lambda_.15} parent=11 // pred_fallthru
        _
      // Predicated region
      $region29: #{_lambda_.15} parent=11 // pred_check
        %p306 = pneg %p148
      $region30: #{_lambda_.15} parent=11 // pred_check_branch
        %308 = sbr.rel (%p306) target = $region32
      $region31: #{_lambda_.15} parent=11 // pred_region
        _
      $region32: #{_lambda_.15} parent=11 // pred_fallthru
        _
      // Predicated region
      $region33: #{_lambda_.15} parent=11 // pred_check
        %p309 = pneg %p169
      $region34: #{_lambda_.15} parent=11 // pred_check_branch
        %311 = sbr.rel (%p309) target = $region36
      $region35: #{_lambda_.15} parent=11 // pred_region
        _
      $region36: #{_lambda_.15} parent=11 // pred_fallthru
        _
      // Predicated region
      $region37: #{_lambda_.15} parent=11 // pred_check
        %p312 = pneg %p190
      $region38: #{_lambda_.15} parent=11 // pred_check_branch
        %314 = sbr.rel (%p312) target = $region40
      $region39: #{_lambda_.15} parent=11 // pred_region
        _
      $region40: #{_lambda_.15} parent=11 // pred_fallthru
        _
      // Predicated region
      $region41: #{_lambda_.15} parent=11 // pred_check
        %p315 = pneg %p211
      $region42: #{_lambda_.15} parent=11 // pred_check_branch
        %317 = sbr.rel (%p315) target = $region44
      $region43: #{_lambda_.15} parent=11 // pred_region
        _
      $region44: #{_lambda_.15} parent=11 // pred_fallthru
        _
      // Predicated region
      $region45: #{_lambda_.15} parent=11 // pred_check
        %p318 = pneg %p232
      $region46: #{_lambda_.15} parent=11 // pred_check_branch
        %320 = sbr.rel (%p318) target = $region48
      $region47: #{_lambda_.15} parent=11 // pred_region
        _
      $region48: #{_lambda_.15} parent=11 // pred_fallthru
        _
      // Predicated region
      $region49: #{_lambda_.15} parent=11 // pred_check
        %p321 = pneg %p253
      $region50: #{_lambda_.15} parent=11 // pred_check_branch
        %323 = sbr.rel (%p321) target = $region52
      $region51: #{_lambda_.15} parent=11 // pred_region
        _
      $region52: #{_lambda_.15} parent=11 // pred_fallthru
        _
    $region12: #{_lambda_.15} parent=5 // pred_fallthru
      _
    %p324 = scmp.lt.s32.totalorder %s17, 2
    // Predicated region
    $region53: #{_lambda_.15} parent=5 // pred_check
      %p325 = pneg %p324
    $region54: #{_lambda_.15} parent=5 // pred_check_branch
      %327 = sbr.rel (%p325) target = $region56
    $region55: #{_lambda_.15} parent=5 // pred_region
      // Predicated region
      $region57: #{_lambda_.15} parent=55 // pred_check
        %p328 = pneg %p37
      $region58: #{_lambda_.15} parent=55 // pred_check_branch
        %330 = sbr.rel (%p328) target = $region60
      $region59: #{_lambda_.15} parent=55 // pred_region
        %p331 = scmp.lt.s32.totalorder %s17, 1
        %s332 = scalar_select %p331, %s17, 1
        %s333 = smul.addr %s332, 8
        %s334 = scalar_lea.vmem %s0, %s333
      $region60: #{_lambda_.15} parent=55 // pred_fallthru
        _
    $region56: #{_lambda_.15} parent=5 // pred_fallthru
      _
    %p335 = scmp.le.s32.totalorder 1, %s17
    %p336 = scmp.lt.s32.totalorder %s17, 3
    %p337 = pnand %p335, %p336
    %p338 = pneg %p337
    // Predicated region
    $region61: #{_lambda_.15} parent=5 // pred_check
      _
    $region62: #{_lambda_.15} parent=5 // pred_check_branch
      %340 = sbr.rel (%p337) target = $region64
    $region63: #{_lambda_.15} parent=5 // pred_region
      %s341 = ssub.s32 %s17, 1
      %p342 = scmp.lt.s32.totalorder %s22, 1
      %s343 = scalar_select %p342, %s22, 1
      %s344 = smul.addr %s343, 8
      %s345 = scalar_lea.vmem %s0, %s344
      %p346 = pneg %p43
      %p347 = pneg %p40
      %p348 = pneg %p64
      %p349 = pneg %p61
      %p350 = pneg %p85
      %p351 = pneg %p82
      %p352 = pneg %p106
      %p353 = pneg %p103
      %p354 = pneg %p127
      %p355 = pneg %p124
      %p356 = pneg %p148
      %p357 = pneg %p145
      %p358 = pneg %p169
      %p359 = pneg %p166
      %p360 = pneg %p190
      %p361 = pneg %p187
      %p362 = pneg %p211
      %p363 = pneg %p208
      %p364 = pneg %p232
      %p365 = pneg %p229
      %p366 = pneg %p253
      %p367 = pneg %p250
      %p368 = pneg %p279
      %p369 = pneg %p276
      %p370 = scmp.lt.s32.totalorder %s22, 1
      %s371 = scalar_select %p370, %s22, 1
      %s372 = smul.addr %s371, 8
      %s373 = scalar_lea.vmem %s11, %s372
      %p374 = scmp.lt.s32.totalorder %s22, 1
      %s375 = scalar_select %p374, %s22, 1
      %s376 = smul.addr %s375, 8
      %s377 = scalar_lea.vmem %s0, %s376
      %p378 = scmp.lt.s32.totalorder %s22, 1
      %s379 = scalar_select %p378, %s22, 1
      %s380 = smul.addr %s379, 8
      %s381 = scalar_lea.vmem %s11, %s380
      %v382 = vld [vmem:[%s377] sm:$0xff]
      %v383 = vld [vmem:[%s1] sm:$0x7f]
      %v384 = vlaneseq
      %v385 = vshrl.u32 %v384, 7
      %v386 = vsub.s32 0, %v385
      %v387 = vrot.slane %v383, %v386
      %v388 = vmul.f32 %v387, 0.0
      %v389 = vmul.f32 %v382, %v387
      %v390 = vadd.f32 %v388, 0.0
      %v391 = vadd.f32 %v389, 0.0
      %v392 = vlaneseq
      %v393 = vshrl.u32 %v392, 7
      %v394 = vsub.s32 1, %v393
      %v395 = vrot.slane %v383, %v394
      %v396 = vmul.f32 %v395, 0.0
      %v397 = vmul.f32 %v382, %v395
      %vm400 = vcmask 1046528
      %v401 = vrot.slane %v396, 1
      %v402 = vrot.slane %v397, 1
      %v403 = vsel %vm400, %v401, %v402
      %v406 = vadd.f32 %v390, %v403
      %v407 = vadd.f32 %v391, %v402
      %v408 = vlaneseq
      %v409 = vshrl.u32 %v408, 7
      %v410 = vsub.s32 2, %v409
      %v411 = vrot.slane %v383, %v410
      %v412 = vmul.f32 %v411, 0.0
      %v413 = vmul.f32 %v382, %v411
      %vm416 = vcmask 1045504
      %v417 = vrot.slane %v412, 2
      %v418 = vrot.slane %v413, 2
      %v419 = vsel %vm416, %v417, %v418
      %v422 = vadd.f32 %v406, %v419
      %v423 = vadd.f32 %v407, %v418
      %v424 = vlaneseq
      %v425 = vshrl.u32 %v424, 7
      %v426 = vsub.s32 3, %v425
      %v427 = vrot.slane %v383, %v426
      %v428 = vmul.f32 %v382, %v427
      %v430 = vrot.slane %v428, 3
      %v432 = vadd.f32 %v422, %v430
      %v433 = vadd.f32 %v423, %v430
      %v434 = vlaneseq
      %v435 = vshrl.u32 %v434, 7
      %v436 = vsub.s32 4, %v435
      %v437 = vrot.slane %v383, %v436
      %v438 = vmul.f32 %v382, %v437
      %v439 = vmul.f32 %v437, 0.0
      %vm442 = vcmask 1043456
      %v443 = vrot.slane %v438, 4
      %v444 = vrot.slane %v439, 4
      %v445 = vsel %vm442, %v443, %v444
      %v448 = vadd.f32 %v432, %v443
      %v449 = vadd.f32 %v433, %v445
      %v450 = vlaneseq
      %v451 = vshrl.u32 %v450, 7
      %v452 = vsub.s32 5, %v451
      %v453 = vrot.slane %v383, %v452
      %v454 = vmul.f32 %v382, %v453
      %v455 = vmul.f32 %v453, 0.0
      %vm458 = vcmask 1042432
      %v459 = vrot.slane %v454, 5
      %v460 = vrot.slane %v455, 5
      %v461 = vsel %vm458, %v459, %v460
      %v464 = vadd.f32 %v448, %v459
      %v465 = vadd.f32 %v449, %v461
      %v466 = vlaneseq
      %v467 = vshrl.u32 %v466, 7
      %v468 = vsub.s32 6, %v467
      %v469 = vrot.slane %v383, %v468
      %v470 = vmul.f32 %v382, %v469
      %v471 = vmul.f32 %v469, 0.0
      %vm474 = vcmask 1041408
      %v475 = vrot.slane %v470, 6
      %v476 = vrot.slane %v471, 6
      %v477 = vsel %vm474, %v475, %v476
      %v480 = vadd.f32 %v464, %v475
      %v481 = vadd.f32 %v465, %v477
      %v482 = vld [vmem:[%s2] sm:$0x1]
      %v484 = vlaneseq
      %v485 = vshrl.u32 %v484, 7
      %v486 = vsub.s32 0, %v485
      %v487 = vrot.slane %v482, %v486
      %v489 = vadd.f32 %v480, %v487
      %v490 = vadd.f32 %v481, %v487
      %vm491 = vcmask 1047557
      %v492 = vsel %vm491, %v489, 0.0
      %493 = vadd.xlane.f32.xlu0 %v492
      %v494 = vpop.xlane.xlu0 %493
      %vm495 = vcmask 1044480
      %v496 = vsel %vm495, %v490, 0.0
      %497 = vadd.xlane.f32.xlu0 %v496
      %v498 = vpop.xlane.xlu0 %497
      %v499 = vrcp.pop 128.0
      %v500 = vmul.f32 %v494, %v499
      %v501 = vmul.f32 %v498, %v499
      %v502 = vsub.f32 %v489, %v500
      %v503 = vsub.f32 %v490, %v501
      %v504 = vmul.f32 %v502, %v502
      %v505 = vmul.f32 %v503, %v503
      %v506 = vsel %vm491, %v504, 0.0
      %507 = vadd.xlane.f32.xlu0 %v506
      %v508 = vpop.xlane.xlu0 %507
      %v509 = vsel %vm495, %v505, 0.0
      %510 = vadd.xlane.f32.xlu0 %v509
      %v511 = vpop.xlane.xlu0 %510
      %v512 = vmul.f32 %v508, %v499
      %v513 = vmul.f32 %v511, %v499
      %v514 = vadd.f32 %v512, 1e-06
      %v515 = vadd.f32 %v513, 1e-06
      %v516 = vrsqrt.pop %v514
      %v517 = vrsqrt.pop %v515
      %v518 = vmul.f32 %v502, %v516
      %v519 = vmul.f32 %v503, %v517
      %v520 = vld [vmem:[%s3] sm:$0x1]
      %v522 = vlaneseq
      %v523 = vshrl.u32 %v522, 7
      %v524 = vsub.s32 0, %v523
      %v525 = vrot.slane %v520, %v524
      %v527 = vmul.f32 %v518, %v525
      %v528 = vmul.f32 %v519, %v525
      %v529 = vld [vmem:[%s4] sm:$0x1]
      %v531 = vlaneseq
      %v532 = vshrl.u32 %v531, 7
      %v533 = vsub.s32 0, %v532
      %v534 = vrot.slane %v529, %v533
      %v536 = vadd.f32 %v527, %v534
      %v537 = vadd.f32 %v528, %v534
      %v538 = vld [vmem:[%s5] sm:$0xff]
      %v539 = vld [vmem:[%s5 + $0x8] sm:$0xff]
      %v540 = vld [vmem:[%s5 + $0x10] sm:$0xff]
      %v541 = vld [vmem:[%s5 + $0x18] sm:$0xff]
      %v542 = vld [vmem:[%s5 + $0x20] sm:$0xff]
      %v543 = vld [vmem:[%s5 + $0x28] sm:$0xff]
      %v544 = vld [vmem:[%s5 + $0x30] sm:$0xff]
      %v545 = vld [vmem:[%s5 + $0x38] sm:$0xff]
      %v546 = vld [vmem:[%s5 + $0x40] sm:$0xff]
      %v547 = vld [vmem:[%s5 + $0x48] sm:$0xff]
      %v548 = vld [vmem:[%s5 + $0x50] sm:$0xff]
      %v549 = vld [vmem:[%s5 + $0x58] sm:$0xff]
      %v550 = vld [vmem:[%s5 + $0x60] sm:$0xff]
      %v551 = vld [vmem:[%s5 + $0x68] sm:$0xff]
      %v552 = vld [vmem:[%s5 + $0x70] sm:$0xff]
      %v553 = vld [vmem:[%s5 + $0x78] sm:$0xff]
      %v554 = vld [vmem:[%s5 + $0x80] sm:$0xff]
      %v555 = vld [vmem:[%s5 + $0x88] sm:$0xff]
      %v556 = vld [vmem:[%s5 + $0x90] sm:$0xff]
      %v557 = vld [vmem:[%s5 + $0x98] sm:$0xff]
      %v558 = vld [vmem:[%s5 + $0xa0] sm:$0xff]
      %v559 = vld [vmem:[%s5 + $0xa8] sm:$0xff]
      %v560 = vld [vmem:[%s5 + $0xb0] sm:$0xff]
      %v561 = vld [vmem:[%s5 + $0xb8] sm:$0xff]
      %v562 = vld [vmem:[%s5 + $0xc0] sm:$0xff]
      %v563 = vld [vmem:[%s5 + $0xc8] sm:$0xff]
      %v564 = vld [vmem:[%s5 + $0xd0] sm:$0xff]
      %v565 = vld [vmem:[%s5 + $0xd8] sm:$0xff]
      %v566 = vld [vmem:[%s5 + $0xe0] sm:$0xff]
      %v567 = vld [vmem:[%s5 + $0xe8] sm:$0xff]
      %v568 = vld [vmem:[%s5 + $0xf0] sm:$0xff]
      %v569 = vld [vmem:[%s5 + $0xf8] sm:$0xff]
      %v570 = vld [vmem:[%s5 + $0x100] sm:$0xff]
      %v571 = vld [vmem:[%s5 + $0x108] sm:$0xff]
      %v572 = vld [vmem:[%s5 + $0x110] sm:$0xff]
      %v573 = vld [vmem:[%s5 + $0x118] sm:$0xff]
      %v574 = vld [vmem:[%s5 + $0x120] sm:$0xff]
      %v575 = vld [vmem:[%s5 + $0x128] sm:$0xff]
      %v576 = vld [vmem:[%s5 + $0x130] sm:$0xff]
      %v577 = vld [vmem:[%s5 + $0x138] sm:$0xff]
      %v578 = vld [vmem:[%s5 + $0x140] sm:$0xff]
      %v579 = vld [vmem:[%s5 + $0x148] sm:$0xff]
      %v580 = vld [vmem:[%s5 + $0x150] sm:$0xff]
      %v581 = vld [vmem:[%s5 + $0x158] sm:$0xff]
      %v582 = vld [vmem:[%s5 + $0x160] sm:$0xff]
      %v583 = vld [vmem:[%s5 + $0x168] sm:$0xff]
      %v584 = vld [vmem:[%s5 + $0x170] sm:$0xff]
      %v585 = vld [vmem:[%s5 + $0x178] sm:$0xff]
      %v586 = vld [vmem:[%s5 + $0x180] sm:$0xff]
      %v587 = vld [vmem:[%s5 + $0x188] sm:$0xff]
      %v588 = vld [vmem:[%s5 + $0x190] sm:$0xff]
      %v589 = vld [vmem:[%s5 + $0x198] sm:$0xff]
      %v590 = vld [vmem:[%s5 + $0x1a0] sm:$0xff]
      %v591 = vld [vmem:[%s5 + $0x1a8] sm:$0xff]
      %v592 = vld [vmem:[%s5 + $0x1b0] sm:$0xff]
      %v593 = vld [vmem:[%s5 + $0x1b8] sm:$0xff]
      %v594 = vld [vmem:[%s5 + $0x1c0] sm:$0xff]
      %v595 = vld [vmem:[%s5 + $0x1c8] sm:$0xff]
      %v596 = vld [vmem:[%s5 + $0x1d0] sm:$0xff]
      %v597 = vld [vmem:[%s5 + $0x1d8] sm:$0xff]
      %v598 = vld [vmem:[%s5 + $0x1e0] sm:$0xff]
      %v599 = vld [vmem:[%s5 + $0x1e8] sm:$0xff]
      %v600 = vld [vmem:[%s5 + $0x1f0] sm:$0xff]
      %v601 = vld [vmem:[%s5 + $0x1f8] sm:$0xff]
      %v602 = vld [vmem:[%s6] sm:$0xf]
      %v604 = vlaneseq
      %v605 = vshrl.u32 %v604, 7
      %v606 = vsub.s32 0, %v605
      %v607 = vrot.slane %v602, %v606
      %v608 = vlaneseq
      %v609 = vshrl.u32 %v608, 7
      %v610 = vsub.s32 1, %v609
      %v611 = vrot.slane %v602, %v610
      %v612 = vlaneseq
      %v613 = vshrl.u32 %v612, 7
      %v614 = vsub.s32 2, %v613
      %v615 = vrot.slane %v602, %v614
      %v616 = vlaneseq
      %v617 = vshrl.u32 %v616, 7
      %v618 = vsub.s32 3, %v617
      %v619 = vrot.slane %v602, %v618
      %v626 = vrot.slane %v536, 5
      %v627 = vrot.slane %v537, 5
      %v628 = vsel %vm458, %v626, %v627
      %630 = vmatprep.subr.mxu0 %v599
      %631 = vmatpush1.msra.mxu0 %v598
      %632 = vmatprep.subr.mxu0 %v595
      %633 = vmatpush1.msra.mxu0 %v594
      %634 = vmatprep.subr.mxu0 %v591
      %635 = vmatpush1.msra.mxu0 %v590
      %636 = vmatprep.subr.mxu0 %v587
      %637 = vmatpush1.msra.mxu0 %v586
      %638 = vmatprep.subr.mxu0 %v583
      %639 = vmatpush1.msra.mxu0 %v582
      %640 = vmatprep.subr.mxu0 %v579
      %641 = vmatpush1.msra.mxu0 %v578
      %642 = vmatprep.subr.mxu0 %v575
      %643 = vmatpush1.msra.mxu0 %v574
      %644 = vmatprep.subr.mxu0 %v571
      %645 = vmatpush1.msra.mxu0 %v570
      %646 = vmatprep.subr.mxu0 %v567
      %647 = vmatpush1.msra.mxu0 %v566
      %648 = vmatprep.subr.mxu0 %v563
      %649 = vmatpush1.msra.mxu0 %v562
      %650 = vmatprep.subr.mxu0 %v559
      %651 = vmatpush1.msra.mxu0 %v558
      %652 = vmatprep.subr.mxu0 %v555
      %653 = vmatpush1.msra.mxu0 %v554
      %654 = vmatprep.subr.mxu0 %v551
      %655 = vmatpush1.msra.mxu0 %v550
      %656 = vmatprep.subr.mxu0 %v547
      %657 = vmatpush1.msra.mxu0 %v546
      %658 = vmatprep.subr.mxu0 %v543
      %659 = vmatpush1.msra.mxu0 %v542
      %660 = vmatprep.subr.mxu0 %v539
      %661 = vmatpush1.msra.mxu0 %v538
      %662 = vmatprep.subr.mxu0 0.0
      %663 = vmatpush2.msra.mxu0 0.0
      %664 = vmatprep.subr.mxu0 0.0
      %665 = vmatpush2.msra.mxu0 0.0
      %666 = vmatprep.subr.mxu0 0.0
      %667 = vmatpush2.msra.mxu0 0.0
      %668 = vmatprep.subr.mxu0 0.0
      %669 = vmatpush2.msra.mxu0 0.0
      %670 = vmatprep.subr.mxu0 0.0
      %671 = vmatpush2.msra.mxu0 0.0
      %672 = vmatprep.subr.mxu0 0.0
      %673 = vmatpush2.msra.mxu0 0.0
      %674 = vmatprep.subr.mxu0 0.0
      %675 = vmatpush2.msra.mxu0 0.0
      %676 = vmatprep.subr.mxu0 0.0
      %677 = vmatpush2.msra.mxu0 0.0
      %678 = vmatprep.subr.mxu0 0.0
      %679 = vmatpush2.msra.mxu0 0.0
      %680 = vmatprep.subr.mxu0 0.0
      %681 = vmatpush2.msra.mxu0 0.0
      %682 = vmatprep.subr.mxu0 0.0
      %683 = vmatpush2.msra.mxu0 0.0
      %684 = vmatprep.subr.mxu0 0.0
      %685 = vmatpush2.msra.mxu0 0.0
      %686 = vmatprep.subr.mxu0 0.0
      %687 = vmatpush2.msra.mxu0 0.0
      %688 = vmatprep.subr.mxu0 0.0
      %689 = vmatpush2.msra.mxu0 0.0
      %690 = vmatprep.subr.mxu0 0.0
      %691 = vmatpush2.msra.mxu0 0.0
      %692 = vmatprep.subr.mxu0 0.0
      %693 = vmatpush2.msra.mxu0 0.0
      %694 = vmatprep.mubr.f32.mxu0 0.0
      %695 = vmatmul.mubr.f32.gmra.mxu0 %v628
      %v696 = vpop.f32.mrf.mxu0
      %v697 = vadd.f32 %v607, %v696
      %v698 = vpop.f32.mrf.mxu0
      %v699 = vadd.f32 %v611, %v698
      %700 = vdwg.mxu0
      %701 = vmatprep.subr.mxu0 %v601
      %702 = vmatpush1.msra.mxu0 %v600
      %703 = vmatprep.subr.mxu0 %v597
      %704 = vmatpush1.msra.mxu0 %v596
      %705 = vmatprep.subr.mxu0 %v593
      %706 = vmatpush1.msra.mxu0 %v592
      %707 = vmatprep.subr.mxu0 %v589
      %708 = vmatpush1.msra.mxu0 %v588
      %709 = vmatprep.subr.mxu0 %v585
      %710 = vmatpush1.msra.mxu0 %v584
      %711 = vmatprep.subr.mxu0 %v581
      %712 = vmatpush1.msra.mxu0 %v580
      %713 = vmatprep.subr.mxu0 %v577
      %714 = vmatpush1.msra.mxu0 %v576
      %715 = vmatprep.subr.mxu0 %v573
      %716 = vmatpush1.msra.mxu0 %v572
      %717 = vmatprep.subr.mxu0 %v569
      %718 = vmatpush1.msra.mxu0 %v568
      %719 = vmatprep.subr.mxu0 %v565
      %720 = vmatpush1.msra.mxu0 %v564
      %721 = vmatprep.subr.mxu0 %v561
      %722 = vmatpush1.msra.mxu0 %v560
      %723 = vmatprep.subr.mxu0 %v557
      %724 = vmatpush1.msra.mxu0 %v556
      %725 = vmatprep.subr.mxu0 %v553
      %726 = vmatpush1.msra.mxu0 %v552
      %727 = vmatprep.subr.mxu0 %v549
      %728 = vmatpush1.msra.mxu0 %v548
      %729 = vmatprep.subr.mxu0 %v545
      %730 = vmatpush1.msra.mxu0 %v544
      %731 = vmatprep.subr.mxu0 %v541
      %732 = vmatpush1.msra.mxu0 %v540
      %733 = vmatprep.subr.mxu0 0.0
      %734 = vmatpush2.msra.mxu0 0.0
      %735 = vmatprep.subr.mxu0 0.0
      %736 = vmatpush2.msra.mxu0 0.0
      %737 = vmatprep.subr.mxu0 0.0
      %738 = vmatpush2.msra.mxu0 0.0
      %739 = vmatprep.subr.mxu0 0.0
      %740 = vmatpush2.msra.mxu0 0.0
      %741 = vmatprep.subr.mxu0 0.0
      %742 = vmatpush2.msra.mxu0 0.0
      %743 = vmatprep.subr.mxu0 0.0
      %744 = vmatpush2.msra.mxu0 0.0
      %745 = vmatprep.subr.mxu0 0.0
      %746 = vmatpush2.msra.mxu0 0.0
      %747 = vmatprep.subr.mxu0 0.0
      %748 = vmatpush2.msra.mxu0 0.0
      %749 = vmatprep.subr.mxu0 0.0
      %750 = vmatpush2.msra.mxu0 0.0
      %751 = vmatprep.subr.mxu0 0.0
      %752 = vmatpush2.msra.mxu0 0.0
      %753 = vmatprep.subr.mxu0 0.0
      %754 = vmatpush2.msra.mxu0 0.0
      %755 = vmatprep.subr.mxu0 0.0
      %756 = vmatpush2.msra.mxu0 0.0
      %757 = vmatprep.subr.mxu0 0.0
      %758 = vmatpush2.msra.mxu0 0.0
      %759 = vmatprep.subr.mxu0 0.0
      %760 = vmatpush2.msra.mxu0 0.0
      %761 = vmatprep.subr.mxu0 0.0
      %762 = vmatpush2.msra.mxu0 0.0
      %763 = vmatprep.subr.mxu0 0.0
      %764 = vmatpush2.msra.mxu0 0.0
      %765 = vmatprep.mubr.f32.mxu0 0.0
      %766 = vmatmul.mubr.f32.gmra.mxu0 %v628
      %v767 = vpop.f32.mrf.mxu0
      %v768 = vadd.f32 %v615, %v767
      %v769 = vpop.f32.mrf.mxu0
      %v770 = vadd.f32 %v619, %v769
      %771 = vdwg.mxu0
      %v772 = vmul.f32 %v697, 0.70710677
      %v773 = vmul.f32 %v699, 0.70710677
      %v774 = vmul.f32 %v768, 0.70710677
      %v775 = vmul.f32 %v770, 0.70710677
      %v776 = vand.u32 2147483647, %v772
      %v777 = vand.u32 2147483647, %v773
      %v778 = vand.u32 2147483647, %v774
      %v779 = vand.u32 2147483647, %v775
      %vm780 = vcmp.ge.f32.partialorder %v772, 0.0
      %vm781 = vcmp.ge.f32.partialorder %v773, 0.0
      %vm782 = vcmp.ge.f32.partialorder %v774, 0.0
      %vm783 = vcmp.ge.f32.partialorder %v775, 0.0
      %v784 = vsel %vm780, 1.0, -1.0
      %v785 = vsel %vm781, 1.0, -1.0
      %v786 = vsel %vm782, 1.0, -1.0
      %v787 = vsel %vm783, 1.0, -1.0
      %v788 = vmul.f32 %v776, 0.3275911
      %v789 = vmul.f32 %v777, 0.3275911
      %v790 = vmul.f32 %v778, 0.3275911
      %v791 = vmul.f32 %v779, 0.3275911
      %v792 = vadd.f32 %v788, 1.0
      %v793 = vadd.f32 %v789, 1.0
      %v794 = vadd.f32 %v790, 1.0
      %v795 = vadd.f32 %v791, 1.0
      %v796 = vrcp.pop %v792
      %v797 = vmul.f32 1.0, %v796
      %v798 = vrcp.pop %v793
      %v799 = vmul.f32 1.0, %v798
      %v800 = vrcp.pop %v794
      %v801 = vmul.f32 1.0, %v800
      %v802 = vrcp.pop %v795
      %v803 = vmul.f32 1.0, %v802
      %v804 = vmul.f32 %v797, 1.0614054
      %v805 = vmul.f32 %v799, 1.0614054
      %v806 = vmul.f32 %v801, 1.0614054
      %v807 = vmul.f32 %v803, 1.0614054
      %v808 = vsub.f32 %v804, 1.4531521
      %v809 = vsub.f32 %v805, 1.4531521
      %v810 = vsub.f32 %v806, 1.4531521
      %v811 = vsub.f32 %v807, 1.4531521
      %v812 = vmul.f32 %v808, %v797
      %v813 = vmul.f32 %v809, %v799
      %v814 = vmul.f32 %v810, %v801
      %v815 = vmul.f32 %v811, %v803
      %v816 = vadd.f32 %v812, 1.4214138
      %v817 = vadd.f32 %v813, 1.4214138
      %v818 = vadd.f32 %v814, 1.4214138
      %v819 = vadd.f32 %v815, 1.4214138
      %v820 = vmul.f32 %v816, %v797
      %v821 = vmul.f32 %v817, %v799
      %v822 = vmul.f32 %v818, %v801
      %v823 = vmul.f32 %v819, %v803
      %v824 = vsub.f32 %v820, 0.28449672
      %v825 = vsub.f32 %v821, 0.28449672
      %v826 = vsub.f32 %v822, 0.28449672
      %v827 = vsub.f32 %v823, 0.28449672
      %v828 = vmul.f32 %v824, %v797
      %v829 = vmul.f32 %v825, %v799
      %v830 = vmul.f32 %v826, %v801
      %v831 = vmul.f32 %v827, %v803
      %v832 = vadd.f32 %v828, 0.2548296
      %v833 = vadd.f32 %v829, 0.2548296
      %v834 = vadd.f32 %v830, 0.2548296
      %v835 = vadd.f32 %v831, 0.2548296
      %v836 = vmul.f32 %v832, %v797
      %v837 = vmul.f32 %v833, %v799
      %v838 = vmul.f32 %v834, %v801
      %v839 = vmul.f32 %v835, %v803
      %v840 = vsub.f32 0.0, %v776
      %v841 = vsub.f32 0.0, %v777
      %v842 = vsub.f32 0.0, %v778
      %v843 = vsub.f32 0.0, %v779
      %v844 = vmul.f32 %v840, %v776
      %v845 = vmul.f32 %v841, %v777
      %v846 = vmul.f32 %v842, %v778
      %v847 = vmul.f32 %v843, %v779
      %v848 = vmul.f32 %v844, 1.442695
      %v849 = vpow.pop %v848
      %v850 = vmul.f32 %v845, 1.442695
      %v851 = vpow.pop %v850
      %v852 = vmul.f32 %v846, 1.442695
      %v853 = vpow.pop %v852
      %v854 = vmul.f32 %v847, 1.442695
      %v855 = vpow.pop %v854
      %v856 = vmul.f32 %v836, %v849
      %v857 = vmul.f32 %v837, %v851
      %v858 = vmul.f32 %v838, %v853
      %v859 = vmul.f32 %v839, %v855
      %v860 = vsub.f32 1.0, %v856
      %v861 = vsub.f32 1.0, %v857
      %v862 = vsub.f32 1.0, %v858
      %v863 = vsub.f32 1.0, %v859
      %v864 = vmul.f32 %v784, %v860
      %v865 = vmul.f32 %v785, %v861
      %v866 = vmul.f32 %v786, %v862
      %v867 = vmul.f32 %v787, %v863
      %v868 = vmul.f32 %v697, 0.5
      %v869 = vmul.f32 %v699, 0.5
      %v870 = vmul.f32 %v768, 0.5
      %v871 = vmul.f32 %v770, 0.5
      %v872 = vadd.f32 %v864, 1.0
      %v873 = vadd.f32 %v865, 1.0
      %v874 = vadd.f32 %v866, 1.0
      %v875 = vadd.f32 %v867, 1.0
      %v876 = vmul.f32 %v868, %v872
      %v877 = vmul.f32 %v869, %v873
      %v878 = vmul.f32 %v870, %v874
      %v879 = vmul.f32 %v871, %v875
      %v880 = vmul.f32 %v876, %v876
      %v881 = vmul.f32 %v877, %v877
      %v882 = vmul.f32 %v878, %v878
      %v883 = vmul.f32 %v879, %v879
      %v884 = vrot.slane %v880, 4
      %v885 = vadd.f32 %v880, %v884
      %v886 = vrot.slane %v885, 2
      %v887 = vadd.f32 %v885, %v886
      %v888 = vrot.slane %v887, 1
      %v889 = vadd.f32 %v887, %v888
      %v890 = vrot.slane %v881, 4
      %v891 = vadd.f32 %v881, %v890
      %v892 = vrot.slane %v891, 2
      %v893 = vadd.f32 %v891, %v892
      %v894 = vrot.slane %v893, 1
      %v895 = vadd.f32 %v893, %v894
      %v896 = vrot.slane %v882, 4
      %v897 = vadd.f32 %v882, %v896
      %v898 = vrot.slane %v897, 2
      %v899 = vadd.f32 %v897, %v898
      %v900 = vrot.slane %v899, 1
      %v901 = vadd.f32 %v899, %v900
      %v902 = vrot.slane %v883, 4
      %v903 = vadd.f32 %v883, %v902
      %v904 = vrot.slane %v903, 2
      %v905 = vadd.f32 %v903, %v904
      %v906 = vrot.slane %v905, 1
      %v907 = vadd.f32 %v905, %v906
      %v908 = vrsqrt.pop %v889
      %v909 = vmul.f32 %v889, %v908
      %vm910 = vcmp.eq.f32.partialorder %v889, inf
      %v911 = vsel %vm910, %v889, %v909
      %vm912 = vcmp.eq.f32.partialorder %v889, 0.0
      %v913 = vand.u32 %v889, 2147483648
      %v914 = vsel %vm912, %v913, %v911
      %v915 = vrsqrt.pop %v895
      %v916 = vmul.f32 %v895, %v915
      %vm917 = vcmp.eq.f32.partialorder %v895, inf
      %v918 = vsel %vm917, %v895, %v916
      %vm919 = vcmp.eq.f32.partialorder %v895, 0.0
      %v920 = vand.u32 %v895, 2147483648
      %v921 = vsel %vm919, %v920, %v918
      %v922 = vrsqrt.pop %v901
      %v923 = vmul.f32 %v901, %v922
      %vm924 = vcmp.eq.f32.partialorder %v901, inf
      %v925 = vsel %vm924, %v901, %v923
      %vm926 = vcmp.eq.f32.partialorder %v901, 0.0
      %v927 = vand.u32 %v901, 2147483648
      %v928 = vsel %vm926, %v927, %v925
      %v929 = vrsqrt.pop %v907
      %v930 = vmul.f32 %v907, %v929
      %vm931 = vcmp.eq.f32.partialorder %v907, inf
      %v932 = vsel %vm931, %v907, %v930
      %vm933 = vcmp.eq.f32.partialorder %v907, 0.0
      %v934 = vand.u32 %v907, 2147483648
      %v935 = vsel %vm933, %v934, %v932
      %v936 = vadd.f32 %v914, %v921
      %v937 = vadd.f32 %v936, %v928
      %v938 = vadd.f32 %v937, %v935
      %939 = vadd.xlane.f32.xlu0 %v938
      %v940 = vpop.xlane.xlu0 %939
      %v941 = vrcp.pop 512.0
      %v942 = vmul.f32 %v940, %v941
      %v943 = vadd.f32 %v942, 1e-06
      %v944 = vrcp.pop %v943
      %v945 = vmul.f32 %v914, %v944
      %v946 = vmul.f32 %v921, %v944
      %v947 = vmul.f32 %v928, %v944
      %v948 = vmul.f32 %v935, %v944
      %v949 = vld [vmem:[%s7] sm:$0xf]
      %v950 = vmul.f32 %v876, %v945
      %v951 = vmul.f32 %v877, %v946
      %v952 = vmul.f32 %v878, %v947
      %v953 = vmul.f32 %v879, %v948
      %v955 = vlaneseq
      %v956 = vshrl.u32 %v955, 7
      %v957 = vsub.s32 0, %v956
      %v958 = vrot.slane %v949, %v957
      %v959 = vlaneseq
      %v960 = vshrl.u32 %v959, 7
      %v961 = vsub.s32 1, %v960
      %v962 = vrot.slane %v949, %v961
      %v963 = vlaneseq
      %v964 = vshrl.u32 %v963, 7
      %v965 = vsub.s32 2, %v964
      %v966 = vrot.slane %v949, %v965
      %v967 = vlaneseq
      %v968 = vshrl.u32 %v967, 7
      %v969 = vsub.s32 3, %v968
      %v970 = vrot.slane %v949, %v969
      %v975 = vmul.f32 %v958, %v950
      %v976 = vmul.f32 %v962, %v951
      %v977 = vmul.f32 %v966, %v952
      %v978 = vmul.f32 %v970, %v953
      %v979 = vld [vmem:[%s8] sm:$0xf]
      %v981 = vlaneseq
      %v982 = vshrl.u32 %v981, 7
      %v983 = vsub.s32 0, %v982
      %v984 = vrot.slane %v979, %v983
      %v985 = vlaneseq
      %v986 = vshrl.u32 %v985, 7
      %v987 = vsub.s32 1, %v986
      %v988 = vrot.slane %v979, %v987
      %v989 = vlaneseq
      %v990 = vshrl.u32 %v989, 7
      %v991 = vsub.s32 2, %v990
      %v992 = vrot.slane %v979, %v991
      %v993 = vlaneseq
      %v994 = vshrl.u32 %v993, 7
      %v995 = vsub.s32 3, %v994
      %v996 = vrot.slane %v979, %v995
      %v1001 = vadd.f32 %v975, %v984
      %v1002 = vadd.f32 %v976, %v988
      %v1003 = vadd.f32 %v977, %v992
      %v1004 = vadd.f32 %v978, %v996
      %v1005 = vadd.f32 %v1001, %v876
      %v1006 = vadd.f32 %v1002, %v877
      %v1007 = vadd.f32 %v1003, %v878
      %v1008 = vadd.f32 %v1004, %v879
      %v1009 = vld [vmem:[%s9] sm:$0xff]
      %v1010 = vld [vmem:[%s9 + $0x8] sm:$0xff]
      %v1011 = vld [vmem:[%s9 + $0x10] sm:$0xff]
      %v1012 = vld [vmem:[%s9 + $0x18] sm:$0xff]
      %v1013 = vld [vmem:[%s9 + $0x20] sm:$0xff]
      %v1014 = vld [vmem:[%s9 + $0x28] sm:$0xff]
      %v1015 = vld [vmem:[%s9 + $0x30] sm:$0xff]
      %v1016 = vld [vmem:[%s9 + $0x38] sm:$0xff]
      %v1017 = vld [vmem:[%s9 + $0x40] sm:$0xff]
      %v1018 = vld [vmem:[%s9 + $0x48] sm:$0xff]
      %v1019 = vld [vmem:[%s9 + $0x50] sm:$0xff]
      %v1020 = vld [vmem:[%s9 + $0x58] sm:$0xff]
      %v1021 = vld [vmem:[%s9 + $0x60] sm:$0xff]
      %v1022 = vld [vmem:[%s9 + $0x68] sm:$0xff]
      %v1023 = vld [vmem:[%s9 + $0x70] sm:$0xff]
      %v1024 = vld [vmem:[%s9 + $0x78] sm:$0xff]
      %v1025 = vld [vmem:[%s9 + $0x80] sm:$0xff]
      %v1026 = vld [vmem:[%s9 + $0x88] sm:$0xff]
      %v1027 = vld [vmem:[%s9 + $0x90] sm:$0xff]
      %v1028 = vld [vmem:[%s9 + $0x98] sm:$0xff]
      %v1029 = vld [vmem:[%s9 + $0xa0] sm:$0xff]
      %v1030 = vld [vmem:[%s9 + $0xa8] sm:$0xff]
      %v1031 = vld [vmem:[%s9 + $0xb0] sm:$0xff]
      %v1032 = vld [vmem:[%s9 + $0xb8] sm:$0xff]
      %v1033 = vld [vmem:[%s9 + $0xc0] sm:$0xff]
      %v1034 = vld [vmem:[%s9 + $0xc8] sm:$0xff]
      %v1035 = vld [vmem:[%s9 + $0xd0] sm:$0xff]
      %v1036 = vld [vmem:[%s9 + $0xd8] sm:$0xff]
      %v1037 = vld [vmem:[%s9 + $0xe0] sm:$0xff]
      %v1038 = vld [vmem:[%s9 + $0xe8] sm:$0xff]
      %v1039 = vld [vmem:[%s9 + $0xf0] sm:$0xff]
      %v1040 = vld [vmem:[%s9 + $0xf8] sm:$0xff]
      %v1041 = vld [vmem:[%s9 + $0x100] sm:$0xff]
      %v1042 = vld [vmem:[%s9 + $0x108] sm:$0xff]
      %v1043 = vld [vmem:[%s9 + $0x110] sm:$0xff]
      %v1044 = vld [vmem:[%s9 + $0x118] sm:$0xff]
      %v1045 = vld [vmem:[%s9 + $0x120] sm:$0xff]
      %v1046 = vld [vmem:[%s9 + $0x128] sm:$0xff]
      %v1047 = vld [vmem:[%s9 + $0x130] sm:$0xff]
      %v1048 = vld [vmem:[%s9 + $0x138] sm:$0xff]
      %v1049 = vld [vmem:[%s9 + $0x140] sm:$0xff]
      %v1050 = vld [vmem:[%s9 + $0x148] sm:$0xff]
      %v1051 = vld [vmem:[%s9 + $0x150] sm:$0xff]
      %v1052 = vld [vmem:[%s9 + $0x158] sm:$0xff]
      %v1053 = vld [vmem:[%s9 + $0x160] sm:$0xff]
      %v1054 = vld [vmem:[%s9 + $0x168] sm:$0xff]
      %v1055 = vld [vmem:[%s9 + $0x170] sm:$0xff]
      %v1056 = vld [vmem:[%s9 + $0x178] sm:$0xff]
      %v1057 = vld [vmem:[%s9 + $0x180] sm:$0xff]
      %v1058 = vld [vmem:[%s9 + $0x188] sm:$0xff]
      %v1059 = vld [vmem:[%s9 + $0x190] sm:$0xff]
      %v1060 = vld [vmem:[%s9 + $0x198] sm:$0xff]
      %v1061 = vld [vmem:[%s9 + $0x1a0] sm:$0xff]
      %v1062 = vld [vmem:[%s9 + $0x1a8] sm:$0xff]
      %v1063 = vld [vmem:[%s9 + $0x1b0] sm:$0xff]
      %v1064 = vld [vmem:[%s9 + $0x1b8] sm:$0xff]
      %v1065 = vld [vmem:[%s9 + $0x1c0] sm:$0xff]
      %v1066 = vld [vmem:[%s9 + $0x1c8] sm:$0xff]
      %v1067 = vld [vmem:[%s9 + $0x1d0] sm:$0xff]
      %v1068 = vld [vmem:[%s9 + $0x1d8] sm:$0xff]
      %v1069 = vld [vmem:[%s9 + $0x1e0] sm:$0xff]
      %v1070 = vld [vmem:[%s9 + $0x1e8] sm:$0xff]
      %v1071 = vld [vmem:[%s9 + $0x1f0] sm:$0xff]
      %v1072 = vld [vmem:[%s9 + $0x1f8] sm:$0xff]
      %v1073 = vld [vmem:[%s10] sm:$0x1]
      %v1075 = vlaneseq
      %v1076 = vshrl.u32 %v1075, 7
      %v1077 = vsub.s32 0, %v1076
      %v1078 = vrot.slane %v1073, %v1077
      %1080 = vmatprep.subr.mxu0 0.0
      %1081 = vmatpush1.msra.mxu0 %v1024
      %1082 = vmatprep.subr.mxu0 0.0
      %1083 = vmatpush1.msra.mxu0 %v1023
      %1084 = vmatprep.subr.mxu0 0.0
      %1085 = vmatpush1.msra.mxu0 %v1022
      %1086 = vmatprep.subr.mxu0 0.0
      %1087 = vmatpush1.msra.mxu0 %v1021
      %1088 = vmatprep.subr.mxu0 0.0
      %1089 = vmatpush1.msra.mxu0 %v1020
      %1090 = vmatprep.subr.mxu0 0.0
      %1091 = vmatpush1.msra.mxu0 %v1019
      %1092 = vmatprep.subr.mxu0 0.0
      %1093 = vmatpush1.msra.mxu0 %v1018
      %1094 = vmatprep.subr.mxu0 0.0
      %1095 = vmatpush1.msra.mxu0 %v1017
      %1096 = vmatprep.subr.mxu0 0.0
      %1097 = vmatpush1.msra.mxu0 %v1016
      %1098 = vmatprep.subr.mxu0 0.0
      %1099 = vmatpush1.msra.mxu0 %v1015
      %1100 = vmatprep.subr.mxu0 0.0
      %1101 = vmatpush1.msra.mxu0 %v1014
      %1102 = vmatprep.subr.mxu0 0.0
      %1103 = vmatpush1.msra.mxu0 %v1013
      %1104 = vmatprep.subr.mxu0 0.0
      %1105 = vmatpush1.msra.mxu0 %v1012
      %1106 = vmatprep.subr.mxu0 0.0
      %1107 = vmatpush1.msra.mxu0 %v1011
      %1108 = vmatprep.subr.mxu0 0.0
      %1109 = vmatpush1.msra.mxu0 %v1010
      %1110 = vmatprep.subr.mxu0 0.0
      %1111 = vmatpush1.msra.mxu0 %v1009
      %1112 = vmatprep.subr.mxu0 0.0
      %1113 = vmatpush2.msra.mxu0 %v1040
      %1114 = vmatprep.subr.mxu0 0.0
      %1115 = vmatpush2.msra.mxu0 %v1039
      %1116 = vmatprep.subr.mxu0 0.0
      %1117 = vmatpush2.msra.mxu0 %v1038
      %1118 = vmatprep.subr.mxu0 0.0
      %1119 = vmatpush2.msra.mxu0 %v1037
      %1120 = vmatprep.subr.mxu0 0.0
      %1121 = vmatpush2.msra.mxu0 %v1036
      %1122 = vmatprep.subr.mxu0 0.0
      %1123 = vmatpush2.msra.mxu0 %v1035
      %1124 = vmatprep.subr.mxu0 0.0
      %1125 = vmatpush2.msra.mxu0 %v1034
      %1126 = vmatprep.subr.mxu0 0.0
      %1127 = vmatpush2.msra.mxu0 %v1033
      %1128 = vmatprep.subr.mxu0 0.0
      %1129 = vmatpush2.msra.mxu0 %v1032
      %1130 = vmatprep.subr.mxu0 0.0
      %1131 = vmatpush2.msra.mxu0 %v1031
      %1132 = vmatprep.subr.mxu0 0.0
      %1133 = vmatpush2.msra.mxu0 %v1030
      %1134 = vmatprep.subr.mxu0 0.0
      %1135 = vmatpush2.msra.mxu0 %v1029
      %1136 = vmatprep.subr.mxu0 0.0
      %1137 = vmatpush2.msra.mxu0 %v1028
      %1138 = vmatprep.subr.mxu0 0.0
      %1139 = vmatpush2.msra.mxu0 %v1027
      %1140 = vmatprep.subr.mxu0 0.0
      %1141 = vmatpush2.msra.mxu0 %v1026
      %1142 = vmatprep.subr.mxu0 0.0
      %1143 = vmatpush2.msra.mxu0 %v1025
      %1144 = vmatprep.mubr.f32.mxu0 %v1006
      %1145 = vmatmul.mubr.f32.gmra.mxu0 %v1005
      %v1146 = vpop.f32.mrf.mxu0
      %v1147 = vadd.f32 %v1078, %v1146
      %v1148 = vpop.f32.mrf.mxu0
      %1149 = vdwg.mxu0
      %1150 = vmatprep.subr.mxu0 0.0
      %1151 = vmatpush1.msra.mxu0 %v1056
      %1152 = vmatprep.subr.mxu0 0.0
      %1153 = vmatpush1.msra.mxu0 %v1055
      %1154 = vmatprep.subr.mxu0 0.0
      %1155 = vmatpush1.msra.mxu0 %v1054
      %1156 = vmatprep.subr.mxu0 0.0
      %1157 = vmatpush1.msra.mxu0 %v1053
      %1158 = vmatprep.subr.mxu0 0.0
      %1159 = vmatpush1.msra.mxu0 %v1052
      %1160 = vmatprep.subr.mxu0 0.0
      %1161 = vmatpush1.msra.mxu0 %v1051
      %1162 = vmatprep.subr.mxu0 0.0
      %1163 = vmatpush1.msra.mxu0 %v1050
      %1164 = vmatprep.subr.mxu0 0.0
      %1165 = vmatpush1.msra.mxu0 %v1049
      %1166 = vmatprep.subr.mxu0 0.0
      %1167 = vmatpush1.msra.mxu0 %v1048
      %1168 = vmatprep.subr.mxu0 0.0
      %1169 = vmatpush1.msra.mxu0 %v1047
      %1170 = vmatprep.subr.mxu0 0.0
      %1171 = vmatpush1.msra.mxu0 %v1046
      %1172 = vmatprep.subr.mxu0 0.0
      %1173 = vmatpush1.msra.mxu0 %v1045
      %1174 = vmatprep.subr.mxu0 0.0
      %1175 = vmatpush1.msra.mxu0 %v1044
      %1176 = vmatprep.subr.mxu0 0.0
      %1177 = vmatpush1.msra.mxu0 %v1043
      %1178 = vmatprep.subr.mxu0 0.0
      %1179 = vmatpush1.msra.mxu0 %v1042
      %1180 = vmatprep.subr.mxu0 0.0
      %1181 = vmatpush1.msra.mxu0 %v1041
      %1182 = vmatprep.subr.mxu0 0.0
      %1183 = vmatpush2.msra.mxu0 %v1072
      %1184 = vmatprep.subr.mxu0 0.0
      %1185 = vmatpush2.msra.mxu0 %v1071
      %1186 = vmatprep.subr.mxu0 0.0
      %1187 = vmatpush2.msra.mxu0 %v1070
      %1188 = vmatprep.subr.mxu0 0.0
      %1189 = vmatpush2.msra.mxu0 %v1069
      %1190 = vmatprep.subr.mxu0 0.0
      %1191 = vmatpush2.msra.mxu0 %v1068
      %1192 = vmatprep.subr.mxu0 0.0
      %1193 = vmatpush2.msra.mxu0 %v1067
      %1194 = vmatprep.subr.mxu0 0.0
      %1195 = vmatpush2.msra.mxu0 %v1066
      %1196 = vmatprep.subr.mxu0 0.0
      %1197 = vmatpush2.msra.mxu0 %v1065
      %1198 = vmatprep.subr.mxu0 0.0
      %1199 = vmatpush2.msra.mxu0 %v1064
      %1200 = vmatprep.subr.mxu0 0.0
      %1201 = vmatpush2.msra.mxu0 %v1063
      %1202 = vmatprep.subr.mxu0 0.0
      %1203 = vmatpush2.msra.mxu0 %v1062
      %1204 = vmatprep.subr.mxu0 0.0
      %1205 = vmatpush2.msra.mxu0 %v1061
      %1206 = vmatprep.subr.mxu0 0.0
      %1207 = vmatpush2.msra.mxu0 %v1060
      %1208 = vmatprep.subr.mxu0 0.0
      %1209 = vmatpush2.msra.mxu0 %v1059
      %1210 = vmatprep.subr.mxu0 0.0
      %1211 = vmatpush2.msra.mxu0 %v1058
      %1212 = vmatprep.subr.mxu0 0.0
      %1213 = vmatpush2.msra.mxu0 %v1057
      %1214 = vmatprep.mubr.f32.mxu0 %v1008
      %1215 = vmatmul.mubr.f32.gmra.mxu0 %v1007
      %v1216 = vpop.f32.mrf.mxu0
      %v1217 = vadd.f32 %v1147, %v1216
      %v1218 = vpop.f32.mrf.mxu0
      %1219 = vdwg.mxu0
      %v1220 = vadd.f32 %v1217, %v382
      %1221 = vst [vmem:[%s381] sm:$0xff] %v1220
      %p1222 = scmp.lt.s32.totalorder %s22, 1
      %s1223 = scalar_select %p1222, %s22, 1
      %s1224 = smul.addr %s1223, 8
      %s1225 = scalar_lea.vmem %s11, %s1224
      // Predicated region
      $region65: #{_lambda_.15} parent=63 // pred_check
        %p1226 = pneg %p276
      $region66: #{_lambda_.15} parent=63 // pred_check_branch
        %1228 = sbr.rel (%p1226) target = $region68
      $region67: #{_lambda_.15} parent=63 // pred_region
        _
      $region68: #{_lambda_.15} parent=63 // pred_fallthru
        _
    $region64: #{_lambda_.15} parent=5 // pred_fallthru
      _
    %p1229 = scmp.le.s32.totalorder 2, %s17
    // Predicated region
    $region69: #{_lambda_.15} parent=5 // pred_check
      %p1230 = pneg %p1229
    $region70: #{_lambda_.15} parent=5 // pred_check_branch
      %1232 = sbr.rel (%p1230) target = $region72
    $region71: #{_lambda_.15} parent=5 // pred_region
      %s1233 = ssub.s32 %s17, 2
      // Predicated region
      $region73: #{_lambda_.15} parent=71 // pred_check
        %p1234 = pneg %p282
      $region74: #{_lambda_.15} parent=71 // pred_check_branch
        %1236 = sbr.rel (%p1234) target = $region76
      $region75: #{_lambda_.15} parent=71 // pred_region
        %p1237 = scmp.lt.s32.totalorder %s23, 1
        %s1238 = scalar_select %p1237, %s23, 1
        %s1239 = smul.addr %s1238, 8
        %s1240 = scalar_lea.vmem %s11, %s1239
      $region76: #{_lambda_.15} parent=71 // pred_fallthru
        _
    $region72: #{_lambda_.15} parent=5 // pred_fallthru
      _
  $region6: #{_lambda_.15} parent=0 // loop_footer
    %s21 = sadd.s32 1, %s17
  $region7: #{_lambda_.15} parent=0 // loop_footer_branch
    %16 = sbr.rel target = $region3
  $region8: #{_lambda_.15} parent=0 // loop_exit
    _

</llo_original>
